<compile_context>
chip_gen: v7x
topology: tpu7x:2x2x1
jax: 0.10.0
libtpu: 0.0.40
codegen_flags: <defaults>
</compile_context>

<pallas_src>
import jax
import jax.numpy as jnp
import numpy as np
from jax.experimental import pallas as pl
from jax.experimental.pallas import tpu as pltpu

D_MODEL = 128
NHEAD = 4
HEAD_DIM = D_MODEL // NHEAD
DIM_FF = 2048          # nn.TransformerEncoderLayer default dim_feedforward
LN_EPS = 1e-5


# --------------------------------------------------------------------------------------
# Pallas kernel: full network (2 encoder layers + fc) for one (Bt, S, D) batch block
# --------------------------------------------------------------------------------------
def transformer_ner_kernel(x_ref, wqkv_ref, bqkv_ref, wo_ref, bo_ref,
                           ln1w_ref, ln1b_ref, w1_ref, b1_ref, w2_ref, b2_ref,
                           ln2w_ref, ln2b_ref, fcw_ref, fcb_ref, o_ref):
    Bt, S, D = x_ref.shape
    N = Bt * S
    nlayers = wqkv_ref.shape[0]

    # x streamed in as bf16 (halves input DMA); residual / LayerNorm path runs in f32.
    # Leading-dim merge only: layout-trivial.
    x = x_ref[...].reshape(N, D).astype(jnp.float32)                 # (N, D) f32

    for li in range(nlayers):                                        # static unroll (2 layers)
        # ---- fused QKV projection: single (N,D)x(D,3D) bf16 MXU matmul, f32 accumulation ----
        qkv = jnp.dot(x.astype(jnp.bfloat16), wqkv_ref[li],
                      preferred_element_type=jnp.float32) + bqkv_ref[li]
        # 1/sqrt(head_dim) is already folded into the q columns of wqkv/bqkv (init-time).
        q = qkv[:, :D_MODEL].astype(jnp.bfloat16)
        k = qkv[:, D_MODEL:2 * D_MODEL].astype(jnp.bfloat16)
        v = qkv[:, 2 * D_MODEL:].astype(jnp.bfloat16)

        # ---- self-attention: static H=4 loop of 3-D (single leading batch dim) bf16 einsums.
        # Kept as a loop (not a 4-D two-batch-dim einsum) for Mosaic lowering safety; this
        # block is a tiny fraction of total FLOPs vs. the 2048-wide FFN.
        ctx_heads = []
        for h in range(NHEAD):
            sl = slice(h * HEAD_DIM, (h + 1) * HEAD_DIM)
            qh = q[:, sl].reshape(Bt, S, HEAD_DIM)                   # leading-dim split only
            kh = k[:, sl].reshape(Bt, S, HEAD_DIM)
            vh = v[:, sl].reshape(Bt, S, HEAD_DIM)
            s = jnp.einsum('bqd,bkd->bqk', qh, kh,
                           preferred_element_type=jnp.float32)       # (Bt, S, S) f32
            s = s - jnp.max(s, axis=-1, keepdims=True)
            p = jnp.exp(s)
            p = p * pl.reciprocal(jnp.sum(p, axis=-1, keepdims=True), approx=True)
            ctx_h = jnp.einsum('bqk,bkd->bqd', p.astype(jnp.bfloat16), vh,
                               preferred_element_type=jnp.float32)   # (Bt, S, Dh) f32
            ctx_heads.append(ctx_h.reshape(N, HEAD_DIM))
        ctx = jnp.concatenate(ctx_heads, axis=-1)                    # (N, D)

        # ---- single K=128 output projection ----
        attn = jnp.dot(ctx.astype(jnp.bfloat16), wo_ref[li],
                       preferred_element_type=jnp.float32) + bo_ref[li]

        # ---- residual + LayerNorm 1 (f32) ----
        h1 = x + attn
        m1 = jnp.mean(h1, axis=-1, keepdims=True)
        v1 = jnp.mean((h1 - m1) ** 2, axis=-1, keepdims=True)
        h1 = (h1 - m1) * jax.lax.rsqrt(v1 + LN_EPS) * ln1w_ref[li] + ln1b_ref[li]

        # ---- feed-forward (relu), bf16 matmuls, f32 accumulation ----
        # TODO(synk): on v5e, if the (N,2048) f32 bias+ReLU stream ever becomes the binding
        #             slot, chunk it along the FF dim interleaved with the w2 matmul.
        ff = jnp.dot(h1.astype(jnp.bfloat16), w1_ref[li],
                     preferred_element_type=jnp.float32) + b1_ref[li]
        ff = jnp.maximum(ff, 0.0)
        ff = jnp.dot(ff.astype(jnp.bfloat16), w2_ref[li],
                     preferred_element_type=jnp.float32) + b2_ref[li]

        # ---- residual + LayerNorm 2 ----
        h2 = h1 + ff
        m2 = jnp.mean(h2, axis=-1, keepdims=True)
        v2 = jnp.mean((h2 - m2) ** 2, axis=-1, keepdims=True)
        x = (h2 - m2) * jax.lax.rsqrt(v2 + LN_EPS) * ln2w_ref[li] + ln2b_ref[li]

    # ---- final Linear, lane-dense (tagset padded to a multiple of 128), bf16 writeback ----
    logits = jnp.dot(x.astype(jnp.bfloat16), fcw_ref[...],
                     preferred_element_type=jnp.float32) + fcb_ref[...]
    o_ref[...] = logits.reshape(Bt, S, -1).astype(o_ref.dtype)


# --------------------------------------------------------------------------------------
# Wrapper
# --------------------------------------------------------------------------------------
_WEIGHT_NAMES = ('wqkv', 'bqkv', 'wo', 'bo', 'ln1w', 'ln1b',
                 'w1', 'b1', 'w2', 'b2', 'ln2w', 'ln2b', 'fc_w_pad', 'fc_b_pad')


def _vmem_budget():
    """Generation-aware rows-per-step target and explicit VMEM limit."""
    try:
        vmem_cap = pltpu.get_tpu_info().vmem_capacity_bytes
    except Exception:
        vmem_cap = 64 * 1024 * 1024              # conservative fallback (v7x per-TC size)
    if vmem_cap >= 100 * 1024 * 1024:            # v5e / v6e: 128 MiB per TensorCore
        return 2048, 100 * 1024 * 1024
    return 1024, 48 * 1024 * 1024                # v7x: 64 MiB per TensorCore


def forward(x_ids, params):
    B, S = x_ids.shape
    D = params['emb'].shape[1]
    assert S <= params['pos'].shape[1], "sequence longer than max_len positional table"

    # Embedding gather + learned positional add: glue, stays in plain JAX.
    # Streamed into the kernel as bf16 (first consumer is a bf16 MXU matmul anyway).
    x = (params['emb'][x_ids] + params['pos'][:, :S]).astype(jnp.bfloat16)

    target_rows, vmem_limit = _vmem_budget()

    # Fold enough batch elements per grid step to hit the rows target ...
    bt = max(1, min(B, target_rows // S))
    # ... but keep >=2 grid steps when batch allows, so v7x's two TensorCores both get work.
    if B > 1 and bt >= B:
        bt = (B + 1) // 2
    # Pad B up to a multiple of bt (padded rows dropped below) instead of shrinking bt.
    b_pad = ((B + bt - 1) // bt) * bt
    if b_pad != B:
        x = jnp.pad(x, ((0, b_pad - B), (0, 0), (0, 0)))
    grid = (b_pad // bt,)

    tpad = params['fc_w_pad'].shape[1]
    weights = [params[n] for n in _WEIGHT_NAMES]

    in_specs = [pl.BlockSpec((bt, S, D), lambda b: (b, 0, 0))]
    # Weights: full-array blocks with constant index maps -> fetched once, stay resident
    # across grid steps (no re-DMA).  Depth-2 buffering on them buys nothing.
    in_specs += [pl.BlockSpec(w.shape, lambda b, _nd=w.ndim: (0,) * _nd) for w in weights]

    out = pl.pallas_call(
        transformer_ner_kernel,
        out_shape=jax.ShapeDtypeStruct((b_pad, S, tpad), jnp.bfloat16),
        grid=grid,
        in_specs=in_specs,
        out_specs=pl.BlockSpec((bt, S, tpad), lambda b: (b, 0, 0)),
        compiler_params=pltpu.CompilerParams(
            dimension_semantics=("parallel",),   # batch blocks split across v7x's 2 TCs
            vmem_limit_bytes=vmem_limit),
    )(x, *weights)

    # Drop batch padding and tagset lane-padding; return f32 logits.
    return out[:B, :, :params['tagset']].astype(jnp.float32)


# --------------------------------------------------------------------------------------
# Deterministic parameter construction (shapes match the PyTorch module's __init__)
# Matmul weights stored stacked over layers, pre-transposed to (in, out), in bfloat16.
# The 1/sqrt(head_dim) attention scale is folded into the q projection (weights + bias).
# --------------------------------------------------------------------------------------
def init_params(key, vocab_size, tagset_size, d_model=D_MODEL, nlayers=2,
                max_len=32, dim_ff=DIM_FF):
    ks = jax.random.split(key, 12)
    scale = 0.05

    def nrm(k, shape, s=scale):
        return jax.random.normal(k, shape, jnp.float32) * s

    # Fold 1/sqrt(head_dim) into the q columns (mathematically identical to scaling q after
    # the projection, i.e. standard scaled-dot-product attention).
    q_scale = 1.0 / (HEAD_DIM ** 0.5)
    wqkv = nrm(ks[2], (nlayers, d_model, 3 * d_model))
    bqkv = nrm(ks[3], (nlayers, 1, 3 * d_model))
    wqkv = wqkv.at[:, :, :d_model].multiply(q_scale)
    bqkv = bqkv.at[:, :, :d_model].multiply(q_scale)

    p = {
        'emb': nrm(ks[0], (vocab_size, d_model), 0.1),
        'pos': nrm(ks[1], (1, max_len, d_model), 0.1),
        'wqkv': wqkv.astype(jnp.bfloat16),
        'bqkv': bqkv,
        'wo':   nrm(ks[4], (nlayers, d_model, d_model)).astype(jnp.bfloat16),
        'bo':   nrm(ks[5], (nlayers, 1, d_model)),
        'ln1w': jnp.ones((nlayers, 1, d_model), jnp.float32),
        'ln1b': jnp.zeros((nlayers, 1, d_model), jnp.float32),
        'w1':   nrm(ks[6], (nlayers, d_model, dim_ff)).astype(jnp.bfloat16),
        'b1':   nrm(ks[7], (nlayers, 1, dim_ff)),
        'w2':   nrm(ks[8], (nlayers, dim_ff, d_model)).astype(jnp.bfloat16),
        'b2':   nrm(ks[9], (nlayers, 1, d_model)),
        'ln2w': jnp.ones((nlayers, 1, d_model), jnp.float32),
        'ln2b': jnp.zeros((nlayers, 1, d_model), jnp.float32),
        'tagset': tagset_size,
    }
    # fc weight padded to a lane-dense width (multiple of 128); wrapper slices back.
    tpad = ((tagset_size + 127) // 128) * 128
    fcw = nrm(ks[10], (d_model, tagset_size))
    p['fc_w_pad'] = (jnp.zeros((d_model, tpad), jnp.float32)
                     .at[:, :tagset_size].set(fcw).astype(jnp.bfloat16))
    p['fc_b_pad'] = jnp.zeros((1, tpad), jnp.float32)
    return p


# --------------------------------------------------------------------------------------
# Pure-JAX f32 reference (uses the identical bf16-valued weights, upcast to f32).
# The q scale is already folded into wqkv/bqkv, so it is not applied again here.
# --------------------------------------------------------------------------------------
def _layer_norm(x, w, b):
    m = x.mean(-1, keepdims=True)
    v = ((x - m) ** 2).mean(-1, keepdims=True)
    return (x - m) * jax.lax.rsqrt(v + LN_EPS) * w + b


def ref_forward(x_ids, params):
    x = params['emb'][x_ids] + params['pos'][:, :x_ids.shape[1]]
    B, S, D = x.shape
    nlayers = params['wqkv'].shape[0]
    for i in range(nlayers):
        qkv = x @ params['wqkv'][i].astype(jnp.float32) + params['bqkv'][i][0]
        q, k, v = jnp.split(qkv, 3, axis=-1)
        q = q.reshape(B, S, NHEAD, HEAD_DIM).transpose(0, 2, 1, 3)   # scale already folded
        k = k.reshape(B, S, NHEAD, HEAD_DIM).transpose(0, 2, 1, 3)
        v = v.reshape(B, S, NHEAD, HEAD_DIM).transpose(0, 2, 1, 3)
        p = jax.nn.softmax(q @ k.transpose(0, 1, 3, 2), axis=-1)
        ctx = (p @ v).transpose(0, 2, 1, 3).reshape(B, S, D)
        attn = ctx @ params['wo'][i].astype(jnp.float32) + params['bo'][i][0]
        h1 = _layer_norm(x + attn, params['ln1w'][i][0], params['ln1b'][i][0])
        ff = jax.nn.relu(h1 @ params['w1'][i].astype(jnp.float32) + params['b1'][i][0])
        ff = ff @ params['w2'][i].astype(jnp.float32) + params['b2'][i][0]
        x = _layer_norm(h1 + ff, params['ln2w'][i][0], params['ln2b'][i][0])
    logits = x @ params['fc_w_pad'].astype(jnp.float32) + params['fc_b_pad'][0]
    return logits[:, :, :params['tagset']]


# --------------------------------------------------------------------------------------
if __name__ == "__main__":
    # TODO(synk): dropout (p=0.1) inside TransformerEncoderLayer only fires in train();
    #             this kernel implements eval-mode forward semantics.
    # TODO(synk): no src_key_padding_mask support (the PyTorch forward above doesn't pass one).
    key = jax.random.PRNGKey(0)
    pkey, xkey = jax.random.split(key)

    VOCAB, TAGSET = 32, 8
    B, S = 2, 8

    params = init_params(pkey, VOCAB, TAGSET)
    x_ids = jax.random.randint(xkey, (B, S), 0, VOCAB)

    out = jax.block_until_ready(forward(x_ids, params))
    assert out.shape == (B, S, TAGSET)

    ref = ref_forward(x_ids, params)
    # bf16 MXU matmuls / bf16 activation I/O with f32 accumulation, plus the approx
    # softmax reciprocal -> loose tolerance vs the pure-f32 reference.
    np.testing.assert_allclose(np.asarray(out), np.asarray(ref), atol=5e-2, rtol=5e-2)

    print("KERNEL_OK")
</pallas_src>

<mosaic_0001>
module attributes {stable_mosaic.version = 11 : i64} {
  func.func @transformer_ner_kernel(%arg0: i32, %arg1: memref<1x8x128xbf16, #tpu.memory_space<vmem>>, %arg2: memref<2x128x384xbf16, #tpu.memory_space<vmem>>, %arg3: memref<2x1x384xf32, #tpu.memory_space<vmem>>, %arg4: memref<2x128x128xbf16, #tpu.memory_space<vmem>>, %arg5: memref<2x1x128xf32, #tpu.memory_space<vmem>>, %arg6: memref<2x1x128xf32, #tpu.memory_space<vmem>>, %arg7: memref<2x1x128xf32, #tpu.memory_space<vmem>>, %arg8: memref<2x128x2048xbf16, #tpu.memory_space<vmem>>, %arg9: memref<2x1x2048xf32, #tpu.memory_space<vmem>>, %arg10: memref<2x2048x128xbf16, #tpu.memory_space<vmem>>, %arg11: memref<2x1x128xf32, #tpu.memory_space<vmem>>, %arg12: memref<2x1x128xf32, #tpu.memory_space<vmem>>, %arg13: memref<2x1x128xf32, #tpu.memory_space<vmem>>, %arg14: memref<128x128xbf16, #tpu.memory_space<vmem>>, %arg15: memref<1x128xf32, #tpu.memory_space<vmem>>, %arg16: memref<1x8x128xbf16, #tpu.memory_space<vmem>>) attributes {dimension_semantics = [#tpu.dimension_semantics<parallel>], iteration_bounds = array<i64: 2>, scalar_prefetch = 0 : i64, scratch_operands = 0 : i64, tpu.core_type = #tpu.core_type<tc>, window_params = [{transform_indices = @transform_0, window_bounds = array<i64: 1, 8, 128>}, {pipeline_mode = #tpu.pipeline_mode<synchronous>, transform_indices = @transform_1, window_bounds = array<i64: 2, 128, 384>}, {pipeline_mode = #tpu.pipeline_mode<synchronous>, transform_indices = @transform_2, window_bounds = array<i64: 2, 1, 384>}, {pipeline_mode = #tpu.pipeline_mode<synchronous>, transform_indices = @transform_3, window_bounds = array<i64: 2, 128, 128>}, {pipeline_mode = #tpu.pipeline_mode<synchronous>, transform_indices = @transform_4, window_bounds = array<i64: 2, 1, 128>}, {pipeline_mode = #tpu.pipeline_mode<synchronous>, transform_indices = @transform_5, window_bounds = array<i64: 2, 1, 128>}, {pipeline_mode = #tpu.pipeline_mode<synchronous>, transform_indices = @transform_6, window_bounds = array<i64: 2, 1, 128>}, {pipeline_mode = #tpu.pipeline_mode<synchronous>, transform_indices = @transform_7, window_bounds = array<i64: 2, 128, 2048>}, {pipeline_mode = #tpu.pipeline_mode<synchronous>, transform_indices = @transform_8, window_bounds = array<i64: 2, 1, 2048>}, {pipeline_mode = #tpu.pipeline_mode<synchronous>, transform_indices = @transform_9, window_bounds = array<i64: 2, 2048, 128>}, {pipeline_mode = #tpu.pipeline_mode<synchronous>, transform_indices = @transform_10, window_bounds = array<i64: 2, 1, 128>}, {pipeline_mode = #tpu.pipeline_mode<synchronous>, transform_indices = @transform_11, window_bounds = array<i64: 2, 1, 128>}, {pipeline_mode = #tpu.pipeline_mode<synchronous>, transform_indices = @transform_12, window_bounds = array<i64: 2, 1, 128>}, {pipeline_mode = #tpu.pipeline_mode<synchronous>, transform_indices = @transform_13, window_bounds = array<i64: 128, 128>}, {pipeline_mode = #tpu.pipeline_mode<synchronous>, transform_indices = @transform_14, window_bounds = array<i64: 1, 128>}, {transform_indices = @transform_15, window_bounds = array<i64: 1, 8, 128>}]} {
    %c0 = arith.constant 0 : index
    %c0_0 = arith.constant 0 : index
    %c0_1 = arith.constant 0 : index
    %0 = vector.load %arg1[%c0, %c0_0, %c0_1] : memref<1x8x128xbf16, #tpu.memory_space<vmem>>, vector<1x8x128xbf16>
    %1 = vector.shape_cast %0 : vector<1x8x128xbf16> to vector<8x128xbf16>
    %2 = arith.extf %1 : vector<8x128xbf16> to vector<8x128xf32>
    %3 = arith.truncf %2 : vector<8x128xf32> to vector<8x128xbf16>
    %c0_2 = arith.constant 0 : index
    %c0_3 = arith.constant 0 : index
    %c0_4 = arith.constant 0 : index
    %4 = vector.load %arg2[%c0_2, %c0_3, %c0_4] : memref<2x128x384xbf16, #tpu.memory_space<vmem>>, vector<1x128x384xbf16>
    %5 = vector.shape_cast %4 : vector<1x128x384xbf16> to vector<128x384xbf16>
    %cst = arith.constant dense<0.000000e+00> : vector<8x384xf32>
    %6 = tpu.matmul %3, %5, %cst {dimension_numbers = #tpu.dot_dimension_numbers<[1], [0], [0], [1], [0, 0, 1, 1], [], []>} : vector<8x128xbf16>, vector<128x384xbf16>, vector<8x384xf32> -> vector<8x384xf32>
    %c0_5 = arith.constant 0 : index
    %c0_6 = arith.constant 0 : index
    %c0_7 = arith.constant 0 : index
    %7 = vector.load %arg3[%c0_5, %c0_6, %c0_7] : memref<2x1x384xf32, #tpu.memory_space<vmem>>, vector<1x1x384xf32>
    %8 = vector.shape_cast %7 : vector<1x1x384xf32> to vector<1x384xf32>
    %9 = vector.broadcast %8 : vector<1x384xf32> to vector<8x384xf32>
    %10 = arith.addf %6, %9 : vector<8x384xf32>
    %11 = vector.extract_strided_slice %10 {offsets = [0, 0], sizes = [8, 128], strides = [1, 1]} : vector<8x384xf32> to vector<8x128xf32>
    %12 = arith.truncf %11 : vector<8x128xf32> to vector<8x128xbf16>
    %13 = vector.extract_strided_slice %10 {offsets = [0, 128], sizes = [8, 128], strides = [1, 1]} : vector<8x384xf32> to vector<8x128xf32>
    %14 = arith.truncf %13 : vector<8x128xf32> to vector<8x128xbf16>
    %15 = vector.extract_strided_slice %10 {offsets = [0, 256], sizes = [8, 128], strides = [1, 1]} : vector<8x384xf32> to vector<8x128xf32>
    %16 = arith.truncf %15 : vector<8x128xf32> to vector<8x128xbf16>
    %17 = vector.extract_strided_slice %12 {offsets = [0, 0], sizes = [8, 32], strides = [1, 1]} : vector<8x128xbf16> to vector<8x32xbf16>
    %18 = vector.shape_cast %17 : vector<8x32xbf16> to vector<1x8x32xbf16>
    %19 = vector.extract_strided_slice %14 {offsets = [0, 0], sizes = [8, 32], strides = [1, 1]} : vector<8x128xbf16> to vector<8x32xbf16>
    %20 = vector.shape_cast %19 : vector<8x32xbf16> to vector<1x8x32xbf16>
    %21 = vector.extract_strided_slice %16 {offsets = [0, 0], sizes = [8, 32], strides = [1, 1]} : vector<8x128xbf16> to vector<8x32xbf16>
    %22 = vector.shape_cast %21 : vector<8x32xbf16> to vector<1x8x32xbf16>
    "tpu.trace_start"() <{level = 10 : i32, message = "bqd,bkd->bqk"}> : () -> ()
    %cst_8 = arith.constant dense<0.000000e+00> : vector<1x8x8xf32>
    %23 = tpu.matmul %18, %20, %cst_8 {dimension_numbers = #tpu.dot_dimension_numbers<[2], [2], [1], [1], [0, 0, 0, 1, 1, 1], [0], [0]>} : vector<1x8x32xbf16>, vector<1x8x32xbf16>, vector<1x8x8xf32> -> vector<1x8x8xf32>
    "tpu.trace_stop"() : () -> ()
    %cst_9 = arith.constant dense<0xFF800000> : vector<1x8xf32>
    %24 = vector.multi_reduction <maximumf>, %23, %cst_9 [2] : vector<1x8x8xf32> to vector<1x8xf32>
    %25 = vector.shape_cast %24 : vector<1x8xf32> to vector<1x8x1xf32>
    %26 = vector.broadcast %25 : vector<1x8x1xf32> to vector<1x8x8xf32>
    %27 = arith.subf %23, %26 : vector<1x8x8xf32>
    %28 = math.exp %27 : vector<1x8x8xf32>
    %cst_10 = arith.constant dense<0.000000e+00> : vector<1x8xf32>
    %29 = vector.multi_reduction <add>, %28, %cst_10 [2] : vector<1x8x8xf32> to vector<1x8xf32>
    %30 = vector.shape_cast %29 : vector<1x8xf32> to vector<1x8x1xf32>
    %31 = tpu.reciprocal %30 {approx = true} : vector<1x8x1xf32> -> vector<1x8x1xf32>
    %32 = vector.broadcast %31 : vector<1x8x1xf32> to vector<1x8x8xf32>
    %33 = arith.mulf %28, %32 : vector<1x8x8xf32>
    %34 = arith.truncf %33 : vector<1x8x8xf32> to vector<1x8x8xbf16>
    "tpu.trace_start"() <{level = 10 : i32, message = "bqk,bkd->bqd"}> : () -> ()
    %cst_11 = arith.constant dense<0.000000e+00> : vector<1x8x32xf32>
    %35 = tpu.matmul %34, %22, %cst_11 {dimension_numbers = #tpu.dot_dimension_numbers<[2], [1], [1], [2], [0, 0, 0, 1, 1, 2], [0], [0]>} : vector<1x8x8xbf16>, vector<1x8x32xbf16>, vector<1x8x32xf32> -> vector<1x8x32xf32>
    "tpu.trace_stop"() : () -> ()
    %36 = vector.shape_cast %35 : vector<1x8x32xf32> to vector<8x32xf32>
    %37 = vector.extract_strided_slice %12 {offsets = [0, 32], sizes = [8, 32], strides = [1, 1]} : vector<8x128xbf16> to vector<8x32xbf16>
    %38 = vector.shape_cast %37 : vector<8x32xbf16> to vector<1x8x32xbf16>
    %39 = vector.extract_strided_slice %14 {offsets = [0, 32], sizes = [8, 32], strides = [1, 1]} : vector<8x128xbf16> to vector<8x32xbf16>
    %40 = vector.shape_cast %39 : vector<8x32xbf16> to vector<1x8x32xbf16>
    %41 = vector.extract_strided_slice %16 {offsets = [0, 32], sizes = [8, 32], strides = [1, 1]} : vector<8x128xbf16> to vector<8x32xbf16>
    %42 = vector.shape_cast %41 : vector<8x32xbf16> to vector<1x8x32xbf16>
    "tpu.trace_start"() <{level = 10 : i32, message = "bqd,bkd->bqk"}> : () -> ()
    %cst_12 = arith.constant dense<0.000000e+00> : vector<1x8x8xf32>
    %43 = tpu.matmul %38, %40, %cst_12 {dimension_numbers = #tpu.dot_dimension_numbers<[2], [2], [1], [1], [0, 0, 0, 1, 1, 1], [0], [0]>} : vector<1x8x32xbf16>, vector<1x8x32xbf16>, vector<1x8x8xf32> -> vector<1x8x8xf32>
    "tpu.trace_stop"() : () -> ()
    %cst_13 = arith.constant dense<0xFF800000> : vector<1x8xf32>
    %44 = vector.multi_reduction <maximumf>, %43, %cst_13 [2] : vector<1x8x8xf32> to vector<1x8xf32>
    %45 = vector.shape_cast %44 : vector<1x8xf32> to vector<1x8x1xf32>
    %46 = vector.broadcast %45 : vector<1x8x1xf32> to vector<1x8x8xf32>
    %47 = arith.subf %43, %46 : vector<1x8x8xf32>
    %48 = math.exp %47 : vector<1x8x8xf32>
    %cst_14 = arith.constant dense<0.000000e+00> : vector<1x8xf32>
    %49 = vector.multi_reduction <add>, %48, %cst_14 [2] : vector<1x8x8xf32> to vector<1x8xf32>
    %50 = vector.shape_cast %49 : vector<1x8xf32> to vector<1x8x1xf32>
    %51 = tpu.reciprocal %50 {approx = true} : vector<1x8x1xf32> -> vector<1x8x1xf32>
    %52 = vector.broadcast %51 : vector<1x8x1xf32> to vector<1x8x8xf32>
    %53 = arith.mulf %48, %52 : vector<1x8x8xf32>
    %54 = arith.truncf %53 : vector<1x8x8xf32> to vector<1x8x8xbf16>
    "tpu.trace_start"() <{level = 10 : i32, message = "bqk,bkd->bqd"}> : () -> ()
    %cst_15 = arith.constant dense<0.000000e+00> : vector<1x8x32xf32>
    %55 = tpu.matmul %54, %42, %cst_15 {dimension_numbers = #tpu.dot_dimension_numbers<[2], [1], [1], [2], [0, 0, 0, 1, 1, 2], [0], [0]>} : vector<1x8x8xbf16>, vector<1x8x32xbf16>, vector<1x8x32xf32> -> vector<1x8x32xf32>
    "tpu.trace_stop"() : () -> ()
    %56 = vector.shape_cast %55 : vector<1x8x32xf32> to vector<8x32xf32>
    %57 = vector.extract_strided_slice %12 {offsets = [0, 64], sizes = [8, 32], strides = [1, 1]} : vector<8x128xbf16> to vector<8x32xbf16>
    %58 = vector.shape_cast %57 : vector<8x32xbf16> to vector<1x8x32xbf16>
    %59 = vector.extract_strided_slice %14 {offsets = [0, 64], sizes = [8, 32], strides = [1, 1]} : vector<8x128xbf16> to vector<8x32xbf16>
    %60 = vector.shape_cast %59 : vector<8x32xbf16> to vector<1x8x32xbf16>
    %61 = vector.extract_strided_slice %16 {offsets = [0, 64], sizes = [8, 32], strides = [1, 1]} : vector<8x128xbf16> to vector<8x32xbf16>
    %62 = vector.shape_cast %61 : vector<8x32xbf16> to vector<1x8x32xbf16>
    "tpu.trace_start"() <{level = 10 : i32, message = "bqd,bkd->bqk"}> : () -> ()
    %cst_16 = arith.constant dense<0.000000e+00> : vector<1x8x8xf32>
    %63 = tpu.matmul %58, %60, %cst_16 {dimension_numbers = #tpu.dot_dimension_numbers<[2], [2], [1], [1], [0, 0, 0, 1, 1, 1], [0], [0]>} : vector<1x8x32xbf16>, vector<1x8x32xbf16>, vector<1x8x8xf32> -> vector<1x8x8xf32>
    "tpu.trace_stop"() : () -> ()
    %cst_17 = arith.constant dense<0xFF800000> : vector<1x8xf32>
    %64 = vector.multi_reduction <maximumf>, %63, %cst_17 [2] : vector<1x8x8xf32> to vector<1x8xf32>
    %65 = vector.shape_cast %64 : vector<1x8xf32> to vector<1x8x1xf32>
    %66 = vector.broadcast %65 : vector<1x8x1xf32> to vector<1x8x8xf32>
    %67 = arith.subf %63, %66 : vector<1x8x8xf32>
    %68 = math.exp %67 : vector<1x8x8xf32>
    %cst_18 = arith.constant dense<0.000000e+00> : vector<1x8xf32>
    %69 = vector.multi_reduction <add>, %68, %cst_18 [2] : vector<1x8x8xf32> to vector<1x8xf32>
    %70 = vector.shape_cast %69 : vector<1x8xf32> to vector<1x8x1xf32>
    %71 = tpu.reciprocal %70 {approx = true} : vector<1x8x1xf32> -> vector<1x8x1xf32>
    %72 = vector.broadcast %71 : vector<1x8x1xf32> to vector<1x8x8xf32>
    %73 = arith.mulf %68, %72 : vector<1x8x8xf32>
    %74 = arith.truncf %73 : vector<1x8x8xf32> to vector<1x8x8xbf16>
    "tpu.trace_start"() <{level = 10 : i32, message = "bqk,bkd->bqd"}> : () -> ()
    %cst_19 = arith.constant dense<0.000000e+00> : vector<1x8x32xf32>
    %75 = tpu.matmul %74, %62, %cst_19 {dimension_numbers = #tpu.dot_dimension_numbers<[2], [1], [1], [2], [0, 0, 0, 1, 1, 2], [0], [0]>} : vector<1x8x8xbf16>, vector<1x8x32xbf16>, vector<1x8x32xf32> -> vector<1x8x32xf32>
    "tpu.trace_stop"() : () -> ()
    %76 = vector.shape_cast %75 : vector<1x8x32xf32> to vector<8x32xf32>
    %77 = vector.extract_strided_slice %12 {offsets = [0, 96], sizes = [8, 32], strides = [1, 1]} : vector<8x128xbf16> to vector<8x32xbf16>
    %78 = vector.shape_cast %77 : vector<8x32xbf16> to vector<1x8x32xbf16>
    %79 = vector.extract_strided_slice %14 {offsets = [0, 96], sizes = [8, 32], strides = [1, 1]} : vector<8x128xbf16> to vector<8x32xbf16>
    %80 = vector.shape_cast %79 : vector<8x32xbf16> to vector<1x8x32xbf16>
    %81 = vector.extract_strided_slice %16 {offsets = [0, 96], sizes = [8, 32], strides = [1, 1]} : vector<8x128xbf16> to vector<8x32xbf16>
    %82 = vector.shape_cast %81 : vector<8x32xbf16> to vector<1x8x32xbf16>
    "tpu.trace_start"() <{level = 10 : i32, message = "bqd,bkd->bqk"}> : () -> ()
    %cst_20 = arith.constant dense<0.000000e+00> : vector<1x8x8xf32>
    %83 = tpu.matmul %78, %80, %cst_20 {dimension_numbers = #tpu.dot_dimension_numbers<[2], [2], [1], [1], [0, 0, 0, 1, 1, 1], [0], [0]>} : vector<1x8x32xbf16>, vector<1x8x32xbf16>, vector<1x8x8xf32> -> vector<1x8x8xf32>
    "tpu.trace_stop"() : () -> ()
    %cst_21 = arith.constant dense<0xFF800000> : vector<1x8xf32>
    %84 = vector.multi_reduction <maximumf>, %83, %cst_21 [2] : vector<1x8x8xf32> to vector<1x8xf32>
    %85 = vector.shape_cast %84 : vector<1x8xf32> to vector<1x8x1xf32>
    %86 = vector.broadcast %85 : vector<1x8x1xf32> to vector<1x8x8xf32>
    %87 = arith.subf %83, %86 : vector<1x8x8xf32>
    %88 = math.exp %87 : vector<1x8x8xf32>
    %cst_22 = arith.constant dense<0.000000e+00> : vector<1x8xf32>
    %89 = vector.multi_reduction <add>, %88, %cst_22 [2] : vector<1x8x8xf32> to vector<1x8xf32>
    %90 = vector.shape_cast %89 : vector<1x8xf32> to vector<1x8x1xf32>
    %91 = tpu.reciprocal %90 {approx = true} : vector<1x8x1xf32> -> vector<1x8x1xf32>
    %92 = vector.broadcast %91 : vector<1x8x1xf32> to vector<1x8x8xf32>
    %93 = arith.mulf %88, %92 : vector<1x8x8xf32>
    %94 = arith.truncf %93 : vector<1x8x8xf32> to vector<1x8x8xbf16>
    "tpu.trace_start"() <{level = 10 : i32, message = "bqk,bkd->bqd"}> : () -> ()
    %cst_23 = arith.constant dense<0.000000e+00> : vector<1x8x32xf32>
    %95 = tpu.matmul %94, %82, %cst_23 {dimension_numbers = #tpu.dot_dimension_numbers<[2], [1], [1], [2], [0, 0, 0, 1, 1, 2], [0], [0]>} : vector<1x8x8xbf16>, vector<1x8x32xbf16>, vector<1x8x32xf32> -> vector<1x8x32xf32>
    "tpu.trace_stop"() : () -> ()
    %96 = vector.shape_cast %95 : vector<1x8x32xf32> to vector<8x32xf32>
    %97 = tpu.concatenate %36, %56, %76, %96 in 1 : vector<8x32xf32>, vector<8x32xf32>, vector<8x32xf32>, vector<8x32xf32> -> vector<8x128xf32>
    %98 = arith.truncf %97 : vector<8x128xf32> to vector<8x128xbf16>
    %c0_24 = arith.constant 0 : index
    %c0_25 = arith.constant 0 : index
    %c0_26 = arith.constant 0 : index
    %99 = vector.load %arg4[%c0_24, %c0_25, %c0_26] : memref<2x128x128xbf16, #tpu.memory_space<vmem>>, vector<1x128x128xbf16>
    %100 = vector.shape_cast %99 : vector<1x128x128xbf16> to vector<128x128xbf16>
    %cst_27 = arith.constant dense<0.000000e+00> : vector<8x128xf32>
    %101 = tpu.matmul %98, %100, %cst_27 {dimension_numbers = #tpu.dot_dimension_numbers<[1], [0], [0], [1], [0, 0, 1, 1], [], []>} : vector<8x128xbf16>, vector<128x128xbf16>, vector<8x128xf32> -> vector<8x128xf32>
    %c0_28 = arith.constant 0 : index
    %c0_29 = arith.constant 0 : index
    %c0_30 = arith.constant 0 : index
    %102 = vector.load %arg5[%c0_28, %c0_29, %c0_30] : memref<2x1x128xf32, #tpu.memory_space<vmem>>, vector<1x1x128xf32>
    %103 = vector.shape_cast %102 : vector<1x1x128xf32> to vector<1x128xf32>
    %104 = vector.broadcast %103 : vector<1x128xf32> to vector<8x128xf32>
    %105 = arith.addf %101, %104 : vector<8x128xf32>
    %106 = arith.addf %2, %105 : vector<8x128xf32>
    %cst_31 = arith.constant dense<0.000000e+00> : vector<8xf32>
    %107 = vector.multi_reduction <add>, %106, %cst_31 [1] : vector<8x128xf32> to vector<8xf32>
    %108 = vector.shape_cast %107 : vector<8xf32> to vector<8x1xf32>
    %cst_32 = arith.constant 1.280000e+02 : f32
    %109 = vector.broadcast %cst_32 : f32 to vector<8x1xf32>
    %110 = arith.divf %108, %109 : vector<8x1xf32>
    %111 = vector.broadcast %110 : vector<8x1xf32> to vector<8x128xf32>
    %112 = arith.subf %106, %111 : vector<8x128xf32>
    %113 = arith.mulf %112, %112 : vector<8x128xf32>
    %cst_33 = arith.constant dense<0.000000e+00> : vector<8xf32>
    %114 = vector.multi_reduction <add>, %113, %cst_33 [1] : vector<8x128xf32> to vector<8xf32>
    %115 = vector.shape_cast %114 : vector<8xf32> to vector<8x1xf32>
    %cst_34 = arith.constant 1.280000e+02 : f32
    %116 = vector.broadcast %cst_34 : f32 to vector<8x1xf32>
    %117 = arith.divf %115, %116 : vector<8x1xf32>
    %118 = vector.broadcast %110 : vector<8x1xf32> to vector<8x128xf32>
    %119 = arith.subf %106, %118 : vector<8x128xf32>
    %cst_35 = arith.constant 9.99999974E-6 : f32
    %120 = vector.broadcast %cst_35 : f32 to vector<8x1xf32>
    %121 = arith.addf %117, %120 : vector<8x1xf32>
    %122 = math.rsqrt %121 : vector<8x1xf32>
    %123 = vector.broadcast %122 : vector<8x1xf32> to vector<8x128xf32>
    %124 = arith.mulf %119, %123 : vector<8x128xf32>
    %c0_36 = arith.constant 0 : index
    %c0_37 = arith.constant 0 : index
    %c0_38 = arith.constant 0 : index
    %125 = vector.load %arg6[%c0_36, %c0_37, %c0_38] : memref<2x1x128xf32, #tpu.memory_space<vmem>>, vector<1x1x128xf32>
    %126 = vector.shape_cast %125 : vector<1x1x128xf32> to vector<1x128xf32>
    %127 = vector.broadcast %126 : vector<1x128xf32> to vector<8x128xf32>
    %128 = arith.mulf %124, %127 : vector<8x128xf32>
    %c0_39 = arith.constant 0 : index
    %c0_40 = arith.constant 0 : index
    %c0_41 = arith.constant 0 : index
    %129 = vector.load %arg7[%c0_39, %c0_40, %c0_41] : memref<2x1x128xf32, #tpu.memory_space<vmem>>, vector<1x1x128xf32>
    %130 = vector.shape_cast %129 : vector<1x1x128xf32> to vector<1x128xf32>
    %131 = vector.broadcast %130 : vector<1x128xf32> to vector<8x128xf32>
    %132 = arith.addf %128, %131 : vector<8x128xf32>
    %133 = arith.truncf %132 : vector<8x128xf32> to vector<8x128xbf16>
    %c0_42 = arith.constant 0 : index
    %c0_43 = arith.constant 0 : index
    %c0_44 = arith.constant 0 : index
    %134 = vector.load %arg8[%c0_42, %c0_43, %c0_44] : memref<2x128x2048xbf16, #tpu.memory_space<vmem>>, vector<1x128x2048xbf16>
    %135 = vector.shape_cast %134 : vector<1x128x2048xbf16> to vector<128x2048xbf16>
    %cst_45 = arith.constant dense<0.000000e+00> : vector<8x2048xf32>
    %136 = tpu.matmul %133, %135, %cst_45 {dimension_numbers = #tpu.dot_dimension_numbers<[1], [0], [0], [1], [0, 0, 1, 1], [], []>} : vector<8x128xbf16>, vector<128x2048xbf16>, vector<8x2048xf32> -> vector<8x2048xf32>
    %c0_46 = arith.constant 0 : index
    %c0_47 = arith.constant 0 : index
    %c0_48 = arith.constant 0 : index
    %137 = vector.load %arg9[%c0_46, %c0_47, %c0_48] : memref<2x1x2048xf32, #tpu.memory_space<vmem>>, vector<1x1x2048xf32>
    %138 = vector.shape_cast %137 : vector<1x1x2048xf32> to vector<1x2048xf32>
    %139 = vector.broadcast %138 : vector<1x2048xf32> to vector<8x2048xf32>
    %140 = arith.addf %136, %139 : vector<8x2048xf32>
    %cst_49 = arith.constant 0.000000e+00 : f32
    %141 = vector.broadcast %cst_49 : f32 to vector<8x2048xf32>
    %142 = arith.maximumf %140, %141 : vector<8x2048xf32>
    %143 = arith.truncf %142 : vector<8x2048xf32> to vector<8x2048xbf16>
    %c0_50 = arith.constant 0 : index
    %c0_51 = arith.constant 0 : index
    %c0_52 = arith.constant 0 : index
    %144 = vector.load %arg10[%c0_50, %c0_51, %c0_52] : memref<2x2048x128xbf16, #tpu.memory_space<vmem>>, vector<1x2048x128xbf16>
    %145 = vector.shape_cast %144 : vector<1x2048x128xbf16> to vector<2048x128xbf16>
    %cst_53 = arith.constant dense<0.000000e+00> : vector<8x128xf32>
    %146 = tpu.matmul %143, %145, %cst_53 {dimension_numbers = #tpu.dot_dimension_numbers<[1], [0], [0], [1], [0, 0, 1, 1], [], []>} : vector<8x2048xbf16>, vector<2048x128xbf16>, vector<8x128xf32> -> vector<8x128xf32>
    %c0_54 = arith.constant 0 : index
    %c0_55 = arith.constant 0 : index
    %c0_56 = arith.constant 0 : index
    %147 = vector.load %arg11[%c0_54, %c0_55, %c0_56] : memref<2x1x128xf32, #tpu.memory_space<vmem>>, vector<1x1x128xf32>
    %148 = vector.shape_cast %147 : vector<1x1x128xf32> to vector<1x128xf32>
    %149 = vector.broadcast %148 : vector<1x128xf32> to vector<8x128xf32>
    %150 = arith.addf %146, %149 : vector<8x128xf32>
    %151 = arith.addf %132, %150 : vector<8x128xf32>
    %cst_57 = arith.constant dense<0.000000e+00> : vector<8xf32>
    %152 = vector.multi_reduction <add>, %151, %cst_57 [1] : vector<8x128xf32> to vector<8xf32>
    %153 = vector.shape_cast %152 : vector<8xf32> to vector<8x1xf32>
    %cst_58 = arith.constant 1.280000e+02 : f32
    %154 = vector.broadcast %cst_58 : f32 to vector<8x1xf32>
    %155 = arith.divf %153, %154 : vector<8x1xf32>
    %156 = vector.broadcast %155 : vector<8x1xf32> to vector<8x128xf32>
    %157 = arith.subf %151, %156 : vector<8x128xf32>
    %158 = arith.mulf %157, %157 : vector<8x128xf32>
    %cst_59 = arith.constant dense<0.000000e+00> : vector<8xf32>
    %159 = vector.multi_reduction <add>, %158, %cst_59 [1] : vector<8x128xf32> to vector<8xf32>
    %160 = vector.shape_cast %159 : vector<8xf32> to vector<8x1xf32>
    %cst_60 = arith.constant 1.280000e+02 : f32
    %161 = vector.broadcast %cst_60 : f32 to vector<8x1xf32>
    %162 = arith.divf %160, %161 : vector<8x1xf32>
    %163 = vector.broadcast %155 : vector<8x1xf32> to vector<8x128xf32>
    %164 = arith.subf %151, %163 : vector<8x128xf32>
    %cst_61 = arith.constant 9.99999974E-6 : f32
    %165 = vector.broadcast %cst_61 : f32 to vector<8x1xf32>
    %166 = arith.addf %162, %165 : vector<8x1xf32>
    %167 = math.rsqrt %166 : vector<8x1xf32>
    %168 = vector.broadcast %167 : vector<8x1xf32> to vector<8x128xf32>
    %169 = arith.mulf %164, %168 : vector<8x128xf32>
    %c0_62 = arith.constant 0 : index
    %c0_63 = arith.constant 0 : index
    %c0_64 = arith.constant 0 : index
    %170 = vector.load %arg12[%c0_62, %c0_63, %c0_64] : memref<2x1x128xf32, #tpu.memory_space<vmem>>, vector<1x1x128xf32>
    %171 = vector.shape_cast %170 : vector<1x1x128xf32> to vector<1x128xf32>
    %172 = vector.broadcast %171 : vector<1x128xf32> to vector<8x128xf32>
    %173 = arith.mulf %169, %172 : vector<8x128xf32>
    %c0_65 = arith.constant 0 : index
    %c0_66 = arith.constant 0 : index
    %c0_67 = arith.constant 0 : index
    %174 = vector.load %arg13[%c0_65, %c0_66, %c0_67] : memref<2x1x128xf32, #tpu.memory_space<vmem>>, vector<1x1x128xf32>
    %175 = vector.shape_cast %174 : vector<1x1x128xf32> to vector<1x128xf32>
    %176 = vector.broadcast %175 : vector<1x128xf32> to vector<8x128xf32>
    %177 = arith.addf %173, %176 : vector<8x128xf32>
    %178 = arith.truncf %177 : vector<8x128xf32> to vector<8x128xbf16>
    %c1 = arith.constant 1 : index
    %c0_68 = arith.constant 0 : index
    %c0_69 = arith.constant 0 : index
    %179 = vector.load %arg2[%c1, %c0_68, %c0_69] : memref<2x128x384xbf16, #tpu.memory_space<vmem>>, vector<1x128x384xbf16>
    %180 = vector.shape_cast %179 : vector<1x128x384xbf16> to vector<128x384xbf16>
    %cst_70 = arith.constant dense<0.000000e+00> : vector<8x384xf32>
    %181 = tpu.matmul %178, %180, %cst_70 {dimension_numbers = #tpu.dot_dimension_numbers<[1], [0], [0], [1], [0, 0, 1, 1], [], []>} : vector<8x128xbf16>, vector<128x384xbf16>, vector<8x384xf32> -> vector<8x384xf32>
    %c1_71 = arith.constant 1 : index
    %c0_72 = arith.constant 0 : index
    %c0_73 = arith.constant 0 : index
    %182 = vector.load %arg3[%c1_71, %c0_72, %c0_73] : memref<2x1x384xf32, #tpu.memory_space<vmem>>, vector<1x1x384xf32>
    %183 = vector.shape_cast %182 : vector<1x1x384xf32> to vector<1x384xf32>
    %184 = vector.broadcast %183 : vector<1x384xf32> to vector<8x384xf32>
    %185 = arith.addf %181, %184 : vector<8x384xf32>
    %186 = vector.extract_strided_slice %185 {offsets = [0, 0], sizes = [8, 128], strides = [1, 1]} : vector<8x384xf32> to vector<8x128xf32>
    %187 = arith.truncf %186 : vector<8x128xf32> to vector<8x128xbf16>
    %188 = vector.extract_strided_slice %185 {offsets = [0, 128], sizes = [8, 128], strides = [1, 1]} : vector<8x384xf32> to vector<8x128xf32>
    %189 = arith.truncf %188 : vector<8x128xf32> to vector<8x128xbf16>
    %190 = vector.extract_strided_slice %185 {offsets = [0, 256], sizes = [8, 128], strides = [1, 1]} : vector<8x384xf32> to vector<8x128xf32>
    %191 = arith.truncf %190 : vector<8x128xf32> to vector<8x128xbf16>
    %192 = vector.extract_strided_slice %187 {offsets = [0, 0], sizes = [8, 32], strides = [1, 1]} : vector<8x128xbf16> to vector<8x32xbf16>
    %193 = vector.shape_cast %192 : vector<8x32xbf16> to vector<1x8x32xbf16>
    %194 = vector.extract_strided_slice %189 {offsets = [0, 0], sizes = [8, 32], strides = [1, 1]} : vector<8x128xbf16> to vector<8x32xbf16>
    %195 = vector.shape_cast %194 : vector<8x32xbf16> to vector<1x8x32xbf16>
    %196 = vector.extract_strided_slice %191 {offsets = [0, 0], sizes = [8, 32], strides = [1, 1]} : vector<8x128xbf16> to vector<8x32xbf16>
    %197 = vector.shape_cast %196 : vector<8x32xbf16> to vector<1x8x32xbf16>
    "tpu.trace_start"() <{level = 10 : i32, message = "bqd,bkd->bqk"}> : () -> ()
    %cst_74 = arith.constant dense<0.000000e+00> : vector<1x8x8xf32>
    %198 = tpu.matmul %193, %195, %cst_74 {dimension_numbers = #tpu.dot_dimension_numbers<[2], [2], [1], [1], [0, 0, 0, 1, 1, 1], [0], [0]>} : vector<1x8x32xbf16>, vector<1x8x32xbf16>, vector<1x8x8xf32> -> vector<1x8x8xf32>
    "tpu.trace_stop"() : () -> ()
    %cst_75 = arith.constant dense<0xFF800000> : vector<1x8xf32>
    %199 = vector.multi_reduction <maximumf>, %198, %cst_75 [2] : vector<1x8x8xf32> to vector<1x8xf32>
    %200 = vector.shape_cast %199 : vector<1x8xf32> to vector<1x8x1xf32>
    %201 = vector.broadcast %200 : vector<1x8x1xf32> to vector<1x8x8xf32>
    %202 = arith.subf %198, %201 : vector<1x8x8xf32>
    %203 = math.exp %202 : vector<1x8x8xf32>
    %cst_76 = arith.constant dense<0.000000e+00> : vector<1x8xf32>
    %204 = vector.multi_reduction <add>, %203, %cst_76 [2] : vector<1x8x8xf32> to vector<1x8xf32>
    %205 = vector.shape_cast %204 : vector<1x8xf32> to vector<1x8x1xf32>
    %206 = tpu.reciprocal %205 {approx = true} : vector<1x8x1xf32> -> vector<1x8x1xf32>
    %207 = vector.broadcast %206 : vector<1x8x1xf32> to vector<1x8x8xf32>
    %208 = arith.mulf %203, %207 : vector<1x8x8xf32>
    %209 = arith.truncf %208 : vector<1x8x8xf32> to vector<1x8x8xbf16>
    "tpu.trace_start"() <{level = 10 : i32, message = "bqk,bkd->bqd"}> : () -> ()
    %cst_77 = arith.constant dense<0.000000e+00> : vector<1x8x32xf32>
    %210 = tpu.matmul %209, %197, %cst_77 {dimension_numbers = #tpu.dot_dimension_numbers<[2], [1], [1], [2], [0, 0, 0, 1, 1, 2], [0], [0]>} : vector<1x8x8xbf16>, vector<1x8x32xbf16>, vector<1x8x32xf32> -> vector<1x8x32xf32>
    "tpu.trace_stop"() : () -> ()
    %211 = vector.shape_cast %210 : vector<1x8x32xf32> to vector<8x32xf32>
    %212 = vector.extract_strided_slice %187 {offsets = [0, 32], sizes = [8, 32], strides = [1, 1]} : vector<8x128xbf16> to vector<8x32xbf16>
    %213 = vector.shape_cast %212 : vector<8x32xbf16> to vector<1x8x32xbf16>
    %214 = vector.extract_strided_slice %189 {offsets = [0, 32], sizes = [8, 32], strides = [1, 1]} : vector<8x128xbf16> to vector<8x32xbf16>
    %215 = vector.shape_cast %214 : vector<8x32xbf16> to vector<1x8x32xbf16>
    %216 = vector.extract_strided_slice %191 {offsets = [0, 32], sizes = [8, 32], strides = [1, 1]} : vector<8x128xbf16> to vector<8x32xbf16>
    %217 = vector.shape_cast %216 : vector<8x32xbf16> to vector<1x8x32xbf16>
    "tpu.trace_start"() <{level = 10 : i32, message = "bqd,bkd->bqk"}> : () -> ()
    %cst_78 = arith.constant dense<0.000000e+00> : vector<1x8x8xf32>
    %218 = tpu.matmul %213, %215, %cst_78 {dimension_numbers = #tpu.dot_dimension_numbers<[2], [2], [1], [1], [0, 0, 0, 1, 1, 1], [0], [0]>} : vector<1x8x32xbf16>, vector<1x8x32xbf16>, vector<1x8x8xf32> -> vector<1x8x8xf32>
    "tpu.trace_stop"() : () -> ()
    %cst_79 = arith.constant dense<0xFF800000> : vector<1x8xf32>
    %219 = vector.multi_reduction <maximumf>, %218, %cst_79 [2] : vector<1x8x8xf32> to vector<1x8xf32>
    %220 = vector.shape_cast %219 : vector<1x8xf32> to vector<1x8x1xf32>
    %221 = vector.broadcast %220 : vector<1x8x1xf32> to vector<1x8x8xf32>
    %222 = arith.subf %218, %221 : vector<1x8x8xf32>
    %223 = math.exp %222 : vector<1x8x8xf32>
    %cst_80 = arith.constant dense<0.000000e+00> : vector<1x8xf32>
    %224 = vector.multi_reduction <add>, %223, %cst_80 [2] : vector<1x8x8xf32> to vector<1x8xf32>
    %225 = vector.shape_cast %224 : vector<1x8xf32> to vector<1x8x1xf32>
    %226 = tpu.reciprocal %225 {approx = true} : vector<1x8x1xf32> -> vector<1x8x1xf32>
    %227 = vector.broadcast %226 : vector<1x8x1xf32> to vector<1x8x8xf32>
    %228 = arith.mulf %223, %227 : vector<1x8x8xf32>
    %229 = arith.truncf %228 : vector<1x8x8xf32> to vector<1x8x8xbf16>
    "tpu.trace_start"() <{level = 10 : i32, message = "bqk,bkd->bqd"}> : () -> ()
    %cst_81 = arith.constant dense<0.000000e+00> : vector<1x8x32xf32>
    %230 = tpu.matmul %229, %217, %cst_81 {dimension_numbers = #tpu.dot_dimension_numbers<[2], [1], [1], [2], [0, 0, 0, 1, 1, 2], [0], [0]>} : vector<1x8x8xbf16>, vector<1x8x32xbf16>, vector<1x8x32xf32> -> vector<1x8x32xf32>
    "tpu.trace_stop"() : () -> ()
    %231 = vector.shape_cast %230 : vector<1x8x32xf32> to vector<8x32xf32>
    %232 = vector.extract_strided_slice %187 {offsets = [0, 64], sizes = [8, 32], strides = [1, 1]} : vector<8x128xbf16> to vector<8x32xbf16>
    %233 = vector.shape_cast %232 : vector<8x32xbf16> to vector<1x8x32xbf16>
    %234 = vector.extract_strided_slice %189 {offsets = [0, 64], sizes = [8, 32], strides = [1, 1]} : vector<8x128xbf16> to vector<8x32xbf16>
    %235 = vector.shape_cast %234 : vector<8x32xbf16> to vector<1x8x32xbf16>
    %236 = vector.extract_strided_slice %191 {offsets = [0, 64], sizes = [8, 32], strides = [1, 1]} : vector<8x128xbf16> to vector<8x32xbf16>
    %237 = vector.shape_cast %236 : vector<8x32xbf16> to vector<1x8x32xbf16>
    "tpu.trace_start"() <{level = 10 : i32, message = "bqd,bkd->bqk"}> : () -> ()
    %cst_82 = arith.constant dense<0.000000e+00> : vector<1x8x8xf32>
    %238 = tpu.matmul %233, %235, %cst_82 {dimension_numbers = #tpu.dot_dimension_numbers<[2], [2], [1], [1], [0, 0, 0, 1, 1, 1], [0], [0]>} : vector<1x8x32xbf16>, vector<1x8x32xbf16>, vector<1x8x8xf32> -> vector<1x8x8xf32>
    "tpu.trace_stop"() : () -> ()
    %cst_83 = arith.constant dense<0xFF800000> : vector<1x8xf32>
    %239 = vector.multi_reduction <maximumf>, %238, %cst_83 [2] : vector<1x8x8xf32> to vector<1x8xf32>
    %240 = vector.shape_cast %239 : vector<1x8xf32> to vector<1x8x1xf32>
    %241 = vector.broadcast %240 : vector<1x8x1xf32> to vector<1x8x8xf32>
    %242 = arith.subf %238, %241 : vector<1x8x8xf32>
    %243 = math.exp %242 : vector<1x8x8xf32>
    %cst_84 = arith.constant dense<0.000000e+00> : vector<1x8xf32>
    %244 = vector.multi_reduction <add>, %243, %cst_84 [2] : vector<1x8x8xf32> to vector<1x8xf32>
    %245 = vector.shape_cast %244 : vector<1x8xf32> to vector<1x8x1xf32>
    %246 = tpu.reciprocal %245 {approx = true} : vector<1x8x1xf32> -> vector<1x8x1xf32>
    %247 = vector.broadcast %246 : vector<1x8x1xf32> to vector<1x8x8xf32>
    %248 = arith.mulf %243, %247 : vector<1x8x8xf32>
    %249 = arith.truncf %248 : vector<1x8x8xf32> to vector<1x8x8xbf16>
    "tpu.trace_start"() <{level = 10 : i32, message = "bqk,bkd->bqd"}> : () -> ()
    %cst_85 = arith.constant dense<0.000000e+00> : vector<1x8x32xf32>
    %250 = tpu.matmul %249, %237, %cst_85 {dimension_numbers = #tpu.dot_dimension_numbers<[2], [1], [1], [2], [0, 0, 0, 1, 1, 2], [0], [0]>} : vector<1x8x8xbf16>, vector<1x8x32xbf16>, vector<1x8x32xf32> -> vector<1x8x32xf32>
    "tpu.trace_stop"() : () -> ()
    %251 = vector.shape_cast %250 : vector<1x8x32xf32> to vector<8x32xf32>
    %252 = vector.extract_strided_slice %187 {offsets = [0, 96], sizes = [8, 32], strides = [1, 1]} : vector<8x128xbf16> to vector<8x32xbf16>
    %253 = vector.shape_cast %252 : vector<8x32xbf16> to vector<1x8x32xbf16>
    %254 = vector.extract_strided_slice %189 {offsets = [0, 96], sizes = [8, 32], strides = [1, 1]} : vector<8x128xbf16> to vector<8x32xbf16>
    %255 = vector.shape_cast %254 : vector<8x32xbf16> to vector<1x8x32xbf16>
    %256 = vector.extract_strided_slice %191 {offsets = [0, 96], sizes = [8, 32], strides = [1, 1]} : vector<8x128xbf16> to vector<8x32xbf16>
    %257 = vector.shape_cast %256 : vector<8x32xbf16> to vector<1x8x32xbf16>
    "tpu.trace_start"() <{level = 10 : i32, message = "bqd,bkd->bqk"}> : () -> ()
    %cst_86 = arith.constant dense<0.000000e+00> : vector<1x8x8xf32>
    %258 = tpu.matmul %253, %255, %cst_86 {dimension_numbers = #tpu.dot_dimension_numbers<[2], [2], [1], [1], [0, 0, 0, 1, 1, 1], [0], [0]>} : vector<1x8x32xbf16>, vector<1x8x32xbf16>, vector<1x8x8xf32> -> vector<1x8x8xf32>
    "tpu.trace_stop"() : () -> ()
    %cst_87 = arith.constant dense<0xFF800000> : vector<1x8xf32>
    %259 = vector.multi_reduction <maximumf>, %258, %cst_87 [2] : vector<1x8x8xf32> to vector<1x8xf32>
    %260 = vector.shape_cast %259 : vector<1x8xf32> to vector<1x8x1xf32>
    %261 = vector.broadcast %260 : vector<1x8x1xf32> to vector<1x8x8xf32>
    %262 = arith.subf %258, %261 : vector<1x8x8xf32>
    %263 = math.exp %262 : vector<1x8x8xf32>
    %cst_88 = arith.constant dense<0.000000e+00> : vector<1x8xf32>
    %264 = vector.multi_reduction <add>, %263, %cst_88 [2] : vector<1x8x8xf32> to vector<1x8xf32>
    %265 = vector.shape_cast %264 : vector<1x8xf32> to vector<1x8x1xf32>
    %266 = tpu.reciprocal %265 {approx = true} : vector<1x8x1xf32> -> vector<1x8x1xf32>
    %267 = vector.broadcast %266 : vector<1x8x1xf32> to vector<1x8x8xf32>
    %268 = arith.mulf %263, %267 : vector<1x8x8xf32>
    %269 = arith.truncf %268 : vector<1x8x8xf32> to vector<1x8x8xbf16>
    "tpu.trace_start"() <{level = 10 : i32, message = "bqk,bkd->bqd"}> : () -> ()
    %cst_89 = arith.constant dense<0.000000e+00> : vector<1x8x32xf32>
    %270 = tpu.matmul %269, %257, %cst_89 {dimension_numbers = #tpu.dot_dimension_numbers<[2], [1], [1], [2], [0, 0, 0, 1, 1, 2], [0], [0]>} : vector<1x8x8xbf16>, vector<1x8x32xbf16>, vector<1x8x32xf32> -> vector<1x8x32xf32>
    "tpu.trace_stop"() : () -> ()
    %271 = vector.shape_cast %270 : vector<1x8x32xf32> to vector<8x32xf32>
    %272 = tpu.concatenate %211, %231, %251, %271 in 1 : vector<8x32xf32>, vector<8x32xf32>, vector<8x32xf32>, vector<8x32xf32> -> vector<8x128xf32>
    %273 = arith.truncf %272 : vector<8x128xf32> to vector<8x128xbf16>
    %c1_90 = arith.constant 1 : index
    %c0_91 = arith.constant 0 : index
    %c0_92 = arith.constant 0 : index
    %274 = vector.load %arg4[%c1_90, %c0_91, %c0_92] : memref<2x128x128xbf16, #tpu.memory_space<vmem>>, vector<1x128x128xbf16>
    %275 = vector.shape_cast %274 : vector<1x128x128xbf16> to vector<128x128xbf16>
    %cst_93 = arith.constant dense<0.000000e+00> : vector<8x128xf32>
    %276 = tpu.matmul %273, %275, %cst_93 {dimension_numbers = #tpu.dot_dimension_numbers<[1], [0], [0], [1], [0, 0, 1, 1], [], []>} : vector<8x128xbf16>, vector<128x128xbf16>, vector<8x128xf32> -> vector<8x128xf32>
    %c1_94 = arith.constant 1 : index
    %c0_95 = arith.constant 0 : index
    %c0_96 = arith.constant 0 : index
    %277 = vector.load %arg5[%c1_94, %c0_95, %c0_96] : memref<2x1x128xf32, #tpu.memory_space<vmem>>, vector<1x1x128xf32>
    %278 = vector.shape_cast %277 : vector<1x1x128xf32> to vector<1x128xf32>
    %279 = vector.broadcast %278 : vector<1x128xf32> to vector<8x128xf32>
    %280 = arith.addf %276, %279 : vector<8x128xf32>
    %281 = arith.addf %177, %280 : vector<8x128xf32>
    %cst_97 = arith.constant dense<0.000000e+00> : vector<8xf32>
    %282 = vector.multi_reduction <add>, %281, %cst_97 [1] : vector<8x128xf32> to vector<8xf32>
    %283 = vector.shape_cast %282 : vector<8xf32> to vector<8x1xf32>
    %cst_98 = arith.constant 1.280000e+02 : f32
    %284 = vector.broadcast %cst_98 : f32 to vector<8x1xf32>
    %285 = arith.divf %283, %284 : vector<8x1xf32>
    %286 = vector.broadcast %285 : vector<8x1xf32> to vector<8x128xf32>
    %287 = arith.subf %281, %286 : vector<8x128xf32>
    %288 = arith.mulf %287, %287 : vector<8x128xf32>
    %cst_99 = arith.constant dense<0.000000e+00> : vector<8xf32>
    %289 = vector.multi_reduction <add>, %288, %cst_99 [1] : vector<8x128xf32> to vector<8xf32>
    %290 = vector.shape_cast %289 : vector<8xf32> to vector<8x1xf32>
    %cst_100 = arith.constant 1.280000e+02 : f32
    %291 = vector.broadcast %cst_100 : f32 to vector<8x1xf32>
    %292 = arith.divf %290, %291 : vector<8x1xf32>
    %293 = vector.broadcast %285 : vector<8x1xf32> to vector<8x128xf32>
    %294 = arith.subf %281, %293 : vector<8x128xf32>
    %cst_101 = arith.constant 9.99999974E-6 : f32
    %295 = vector.broadcast %cst_101 : f32 to vector<8x1xf32>
    %296 = arith.addf %292, %295 : vector<8x1xf32>
    %297 = math.rsqrt %296 : vector<8x1xf32>
    %298 = vector.broadcast %297 : vector<8x1xf32> to vector<8x128xf32>
    %299 = arith.mulf %294, %298 : vector<8x128xf32>
    %c1_102 = arith.constant 1 : index
    %c0_103 = arith.constant 0 : index
    %c0_104 = arith.constant 0 : index
    %300 = vector.load %arg6[%c1_102, %c0_103, %c0_104] : memref<2x1x128xf32, #tpu.memory_space<vmem>>, vector<1x1x128xf32>
    %301 = vector.shape_cast %300 : vector<1x1x128xf32> to vector<1x128xf32>
    %302 = vector.broadcast %301 : vector<1x128xf32> to vector<8x128xf32>
    %303 = arith.mulf %299, %302 : vector<8x128xf32>
    %c1_105 = arith.constant 1 : index
    %c0_106 = arith.constant 0 : index
    %c0_107 = arith.constant 0 : index
    %304 = vector.load %arg7[%c1_105, %c0_106, %c0_107] : memref<2x1x128xf32, #tpu.memory_space<vmem>>, vector<1x1x128xf32>
    %305 = vector.shape_cast %304 : vector<1x1x128xf32> to vector<1x128xf32>
    %306 = vector.broadcast %305 : vector<1x128xf32> to vector<8x128xf32>
    %307 = arith.addf %303, %306 : vector<8x128xf32>
    %308 = arith.truncf %307 : vector<8x128xf32> to vector<8x128xbf16>
    %c1_108 = arith.constant 1 : index
    %c0_109 = arith.constant 0 : index
    %c0_110 = arith.constant 0 : index
    %309 = vector.load %arg8[%c1_108, %c0_109, %c0_110] : memref<2x128x2048xbf16, #tpu.memory_space<vmem>>, vector<1x128x2048xbf16>
    %310 = vector.shape_cast %309 : vector<1x128x2048xbf16> to vector<128x2048xbf16>
    %cst_111 = arith.constant dense<0.000000e+00> : vector<8x2048xf32>
    %311 = tpu.matmul %308, %310, %cst_111 {dimension_numbers = #tpu.dot_dimension_numbers<[1], [0], [0], [1], [0, 0, 1, 1], [], []>} : vector<8x128xbf16>, vector<128x2048xbf16>, vector<8x2048xf32> -> vector<8x2048xf32>
    %c1_112 = arith.constant 1 : index
    %c0_113 = arith.constant 0 : index
    %c0_114 = arith.constant 0 : index
    %312 = vector.load %arg9[%c1_112, %c0_113, %c0_114] : memref<2x1x2048xf32, #tpu.memory_space<vmem>>, vector<1x1x2048xf32>
    %313 = vector.shape_cast %312 : vector<1x1x2048xf32> to vector<1x2048xf32>
    %314 = vector.broadcast %313 : vector<1x2048xf32> to vector<8x2048xf32>
    %315 = arith.addf %311, %314 : vector<8x2048xf32>
    %cst_115 = arith.constant 0.000000e+00 : f32
    %316 = vector.broadcast %cst_115 : f32 to vector<8x2048xf32>
    %317 = arith.maximumf %315, %316 : vector<8x2048xf32>
    %318 = arith.truncf %317 : vector<8x2048xf32> to vector<8x2048xbf16>
    %c1_116 = arith.constant 1 : index
    %c0_117 = arith.constant 0 : index
    %c0_118 = arith.constant 0 : index
    %319 = vector.load %arg10[%c1_116, %c0_117, %c0_118] : memref<2x2048x128xbf16, #tpu.memory_space<vmem>>, vector<1x2048x128xbf16>
    %320 = vector.shape_cast %319 : vector<1x2048x128xbf16> to vector<2048x128xbf16>
    %cst_119 = arith.constant dense<0.000000e+00> : vector<8x128xf32>
    %321 = tpu.matmul %318, %320, %cst_119 {dimension_numbers = #tpu.dot_dimension_numbers<[1], [0], [0], [1], [0, 0, 1, 1], [], []>} : vector<8x2048xbf16>, vector<2048x128xbf16>, vector<8x128xf32> -> vector<8x128xf32>
    %c1_120 = arith.constant 1 : index
    %c0_121 = arith.constant 0 : index
    %c0_122 = arith.constant 0 : index
    %322 = vector.load %arg11[%c1_120, %c0_121, %c0_122] : memref<2x1x128xf32, #tpu.memory_space<vmem>>, vector<1x1x128xf32>
    %323 = vector.shape_cast %322 : vector<1x1x128xf32> to vector<1x128xf32>
    %324 = vector.broadcast %323 : vector<1x128xf32> to vector<8x128xf32>
    %325 = arith.addf %321, %324 : vector<8x128xf32>
    %326 = arith.addf %307, %325 : vector<8x128xf32>
    %cst_123 = arith.constant dense<0.000000e+00> : vector<8xf32>
    %327 = vector.multi_reduction <add>, %326, %cst_123 [1] : vector<8x128xf32> to vector<8xf32>
    %328 = vector.shape_cast %327 : vector<8xf32> to vector<8x1xf32>
    %cst_124 = arith.constant 1.280000e+02 : f32
    %329 = vector.broadcast %cst_124 : f32 to vector<8x1xf32>
    %330 = arith.divf %328, %329 : vector<8x1xf32>
    %331 = vector.broadcast %330 : vector<8x1xf32> to vector<8x128xf32>
    %332 = arith.subf %326, %331 : vector<8x128xf32>
    %333 = arith.mulf %332, %332 : vector<8x128xf32>
    %cst_125 = arith.constant dense<0.000000e+00> : vector<8xf32>
    %334 = vector.multi_reduction <add>, %333, %cst_125 [1] : vector<8x128xf32> to vector<8xf32>
    %335 = vector.shape_cast %334 : vector<8xf32> to vector<8x1xf32>
    %cst_126 = arith.constant 1.280000e+02 : f32
    %336 = vector.broadcast %cst_126 : f32 to vector<8x1xf32>
    %337 = arith.divf %335, %336 : vector<8x1xf32>
    %338 = vector.broadcast %330 : vector<8x1xf32> to vector<8x128xf32>
    %339 = arith.subf %326, %338 : vector<8x128xf32>
    %cst_127 = arith.constant 9.99999974E-6 : f32
    %340 = vector.broadcast %cst_127 : f32 to vector<8x1xf32>
    %341 = arith.addf %337, %340 : vector<8x1xf32>
    %342 = math.rsqrt %341 : vector<8x1xf32>
    %343 = vector.broadcast %342 : vector<8x1xf32> to vector<8x128xf32>
    %344 = arith.mulf %339, %343 : vector<8x128xf32>
    %c1_128 = arith.constant 1 : index
    %c0_129 = arith.constant 0 : index
    %c0_130 = arith.constant 0 : index
    %345 = vector.load %arg12[%c1_128, %c0_129, %c0_130] : memref<2x1x128xf32, #tpu.memory_space<vmem>>, vector<1x1x128xf32>
    %346 = vector.shape_cast %345 : vector<1x1x128xf32> to vector<1x128xf32>
    %347 = vector.broadcast %346 : vector<1x128xf32> to vector<8x128xf32>
    %348 = arith.mulf %344, %347 : vector<8x128xf32>
    %c1_131 = arith.constant 1 : index
    %c0_132 = arith.constant 0 : index
    %c0_133 = arith.constant 0 : index
    %349 = vector.load %arg13[%c1_131, %c0_132, %c0_133] : memref<2x1x128xf32, #tpu.memory_space<vmem>>, vector<1x1x128xf32>
    %350 = vector.shape_cast %349 : vector<1x1x128xf32> to vector<1x128xf32>
    %351 = vector.broadcast %350 : vector<1x128xf32> to vector<8x128xf32>
    %352 = arith.addf %348, %351 : vector<8x128xf32>
    %353 = arith.truncf %352 : vector<8x128xf32> to vector<8x128xbf16>
    %c0_134 = arith.constant 0 : index
    %c0_135 = arith.constant 0 : index
    %354 = vector.load %arg14[%c0_134, %c0_135] : memref<128x128xbf16, #tpu.memory_space<vmem>>, vector<128x128xbf16>
    %cst_136 = arith.constant dense<0.000000e+00> : vector<8x128xf32>
    %355 = tpu.matmul %353, %354, %cst_136 {dimension_numbers = #tpu.dot_dimension_numbers<[1], [0], [0], [1], [0, 0, 1, 1], [], []>} : vector<8x128xbf16>, vector<128x128xbf16>, vector<8x128xf32> -> vector<8x128xf32>
    %c0_137 = arith.constant 0 : index
    %c0_138 = arith.constant 0 : index
    %356 = vector.load %arg15[%c0_137, %c0_138] : memref<1x128xf32, #tpu.memory_space<vmem>>, vector<1x128xf32>
    %357 = vector.broadcast %356 : vector<1x128xf32> to vector<8x128xf32>
    %358 = arith.addf %355, %357 : vector<8x128xf32>
    %359 = vector.shape_cast %358 : vector<8x128xf32> to vector<1x8x128xf32>
    %360 = arith.truncf %359 : vector<1x8x128xf32> to vector<1x8x128xbf16>
    %c0_139 = arith.constant 0 : index
    %c0_140 = arith.constant 0 : index
    %c0_141 = arith.constant 0 : index
    %361 = vector.load %arg16[%c0_139, %c0_140, %c0_141] : memref<1x8x128xbf16, #tpu.memory_space<vmem>>, vector<1x8x128xbf16>
    tpu.vector_store %arg16[%c0_139, %c0_140, %c0_141], %360 {strides = array<i32>} : memref<1x8x128xbf16, #tpu.memory_space<vmem>>, vector<1x8x128xbf16>,
    return
  }
  func.func @transform_0(%arg0: i32) -> (i32, i32, i32) {
    %c0_i32 = arith.constant 0 : i32
    %c0_i32_0 = arith.constant 0 : i32
    %c0_i32_1 = arith.constant 0 : i32
    return %arg0, %c0_i32, %c0_i32_0 : i32, i32, i32
  }
  func.func @transform_1(%arg0: i32) -> (i32, i32, i32) {
    %c0_i32 = arith.constant 0 : i32
    %c0_i32_0 = arith.constant 0 : i32
    %c0_i32_1 = arith.constant 0 : i32
    %c0_i32_2 = arith.constant 0 : i32
    return %c0_i32, %c0_i32_0, %c0_i32_1 : i32, i32, i32
  }
  func.func @transform_2(%arg0: i32) -> (i32, i32, i32) {
    %c0_i32 = arith.constant 0 : i32
    %c0_i32_0 = arith.constant 0 : i32
    %c0_i32_1 = arith.constant 0 : i32
    %c0_i32_2 = arith.constant 0 : i32
    return %c0_i32, %c0_i32_0, %c0_i32_1 : i32, i32, i32
  }
  func.func @transform_3(%arg0: i32) -> (i32, i32, i32) {
    %c0_i32 = arith.constant 0 : i32
    %c0_i32_0 = arith.constant 0 : i32
    %c0_i32_1 = arith.constant 0 : i32
    %c0_i32_2 = arith.constant 0 : i32
    return %c0_i32, %c0_i32_0, %c0_i32_1 : i32, i32, i32
  }
  func.func @transform_4(%arg0: i32) -> (i32, i32, i32) {
    %c0_i32 = arith.constant 0 : i32
    %c0_i32_0 = arith.constant 0 : i32
    %c0_i32_1 = arith.constant 0 : i32
    %c0_i32_2 = arith.constant 0 : i32
    return %c0_i32, %c0_i32_0, %c0_i32_1 : i32, i32, i32
  }
  func.func @transform_5(%arg0: i32) -> (i32, i32, i32) {
    %c0_i32 = arith.constant 0 : i32
    %c0_i32_0 = arith.constant 0 : i32
    %c0_i32_1 = arith.constant 0 : i32
    %c0_i32_2 = arith.constant 0 : i32
    return %c0_i32, %c0_i32_0, %c0_i32_1 : i32, i32, i32
  }
  func.func @transform_6(%arg0: i32) -> (i32, i32, i32) {
    %c0_i32 = arith.constant 0 : i32
    %c0_i32_0 = arith.constant 0 : i32
    %c0_i32_1 = arith.constant 0 : i32
    %c0_i32_2 = arith.constant 0 : i32
    return %c0_i32, %c0_i32_0, %c0_i32_1 : i32, i32, i32
  }
  func.func @transform_7(%arg0: i32) -> (i32, i32, i32) {
    %c0_i32 = arith.constant 0 : i32
    %c0_i32_0 = arith.constant 0 : i32
    %c0_i32_1 = arith.constant 0 : i32
    %c0_i32_2 = arith.constant 0 : i32
    return %c0_i32, %c0_i32_0, %c0_i32_1 : i32, i32, i32
  }
  func.func @transform_8(%arg0: i32) -> (i32, i32, i32) {
    %c0_i32 = arith.constant 0 : i32
    %c0_i32_0 = arith.constant 0 : i32
    %c0_i32_1 = arith.constant 0 : i32
    %c0_i32_2 = arith.constant 0 : i32
    return %c0_i32, %c0_i32_0, %c0_i32_1 : i32, i32, i32
  }
  func.func @transform_9(%arg0: i32) -> (i32, i32, i32) {
    %c0_i32 = arith.constant 0 : i32
    %c0_i32_0 = arith.constant 0 : i32
    %c0_i32_1 = arith.constant 0 : i32
    %c0_i32_2 = arith.constant 0 : i32
    return %c0_i32, %c0_i32_0, %c0_i32_1 : i32, i32, i32
  }
  func.func @transform_10(%arg0: i32) -> (i32, i32, i32) {
    %c0_i32 = arith.constant 0 : i32
    %c0_i32_0 = arith.constant 0 : i32
    %c0_i32_1 = arith.constant 0 : i32
    %c0_i32_2 = arith.constant 0 : i32
    return %c0_i32, %c0_i32_0, %c0_i32_1 : i32, i32, i32
  }
  func.func @transform_11(%arg0: i32) -> (i32, i32, i32) {
    %c0_i32 = arith.constant 0 : i32
    %c0_i32_0 = arith.constant 0 : i32
    %c0_i32_1 = arith.constant 0 : i32
    %c0_i32_2 = arith.constant 0 : i32
    return %c0_i32, %c0_i32_0, %c0_i32_1 : i32, i32, i32
  }
  func.func @transform_12(%arg0: i32) -> (i32, i32, i32) {
    %c0_i32 = arith.constant 0 : i32
    %c0_i32_0 = arith.constant 0 : i32
    %c0_i32_1 = arith.constant 0 : i32
    %c0_i32_2 = arith.constant 0 : i32
    return %c0_i32, %c0_i32_0, %c0_i32_1 : i32, i32, i32
  }
  func.func @transform_13(%arg0: i32) -> (i32, i32) {
    %c0_i32 = arith.constant 0 : i32
    %c0_i32_0 = arith.constant 0 : i32
    %c0_i32_1 = arith.constant 0 : i32
    return %c0_i32, %c0_i32_0 : i32, i32
  }
  func.func @transform_14(%arg0: i32) -> (i32, i32) {
    %c0_i32 = arith.constant 0 : i32
    %c0_i32_0 = arith.constant 0 : i32
    %c0_i32_1 = arith.constant 0 : i32
    return %c0_i32, %c0_i32_0 : i32, i32
  }
  func.func @transform_15(%arg0: i32) -> (i32, i32, i32) {
    %c0_i32 = arith.constant 0 : i32
    %c0_i32_0 = arith.constant 0 : i32
    %c0_i32_1 = arith.constant 0 : i32
    return %arg0, %c0_i32, %c0_i32_0 : i32, i32, i32
  }
}

</mosaic_0001>

<llo_original>
// kernel: tpu_custom_call.1
$region0: #{tpu_custom_call.1}
  #allocation0 [shape = 'u32[]', space=smem, size = 0x4, offset = 0x4, fixed_abs, tag = 'smem constant byte address 0x4 - core index']
  #allocation1 [shape = 'u32[144,128]{1,0:T(1,128)}', space=vmem, size = 0x12000, scoped, tag = 'internal scratch']
  %s0 = inlined_call_operand.hbm [shape: bf16[2,8,128], index: 0, kind: input, shape index: {}]
  %s1 = inlined_call_operand.hbm [shape: bf16[2,128,384], index: 1, kind: input, shape index: {}]
  %s2 = inlined_call_operand.vmem [shape: f32[2,1,384], index: 2, kind: input, shape index: {}]
  %s3 = inlined_call_operand.hbm [shape: bf16[2,128,128], index: 3, kind: input, shape index: {}]
  %s4 = inlined_call_operand.vmem [shape: f32[2,1,128], index: 4, kind: input, shape index: {}]
  %s5 = inlined_call_operand.vmem [shape: f32[2,1,128], index: 5, kind: input, shape index: {}]
  %s6 = inlined_call_operand.vmem [shape: f32[2,1,128], index: 6, kind: input, shape index: {}]
  %s7 = inlined_call_operand.hbm [shape: bf16[2,128,2048], index: 7, kind: input, shape index: {}]
  %s8 = inlined_call_operand.hbm [shape: f32[2,1,2048], index: 8, kind: input, shape index: {}]
  %s9 = inlined_call_operand.hbm [shape: bf16[2,2048,128], index: 9, kind: input, shape index: {}]
  %s10 = inlined_call_operand.vmem [shape: f32[2,1,128], index: 10, kind: input, shape index: {}]
  %s11 = inlined_call_operand.vmem [shape: f32[2,1,128], index: 11, kind: input, shape index: {}]
  %s12 = inlined_call_operand.vmem [shape: f32[2,1,128], index: 12, kind: input, shape index: {}]
  %s13 = inlined_call_operand.hbm [shape: bf16[128,128], index: 13, kind: input, shape index: {}]
  %s14 = inlined_call_operand.vmem [shape: f32[1,128], index: 14, kind: input, shape index: {}]
  %s15 = inlined_call_operand.hbm [shape: bf16[2,8,128], index: 15, kind: output, shape index: {}]
  %s16 = sld [smem:[#allocation0]]
  $region121: #{tpu_custom_call.1} parent=0
    _
  %s18 = ssub.s32 1, %s16
  %s19 = scalar_select 0, %s18, %s16
  $region1: #{tpu_custom_call.1} parent=0
    #allocation2 [shape = 'u8[4096]{0}', space=vmem, size = 0x1000, scoped, tag = 'input window, operand 0']
    #allocation3 [shape = 's32[2]{0}', space=sflag, size = 0x8, scoped, tag = 'scoped memory for tpu_custom_call.1']
    #allocation4 [shape = 's32[2]{0}', space=sflag, size = 0x8, scoped, tag = 'scoped memory for tpu_custom_call.1']
    #allocation5 [shape = 'u8[196608]{0}', space=vmem, size = 0x30000, scoped, tag = 'input window, operand 1, single buffered']
    #allocation6 [shape = 's32[1]{0}', space=sflag, size = 0x4, scoped, tag = 'scoped memory for tpu_custom_call.1']
    #allocation7 [shape = 'u8[65536]{0}', space=vmem, size = 0x10000, scoped, tag = 'input window, operand 3, single buffered']
    #allocation8 [shape = 'u8[1048576]{0}', space=vmem, size = 0x100000, scoped, tag = 'input window, operand 7, single buffered']
    #allocation9 [shape = 's32[1]{0}', space=sflag, size = 0x4, scoped, tag = 'scoped memory for tpu_custom_call.1']
    #allocation10 [shape = 'u8[16384]{0}', space=vmem, size = 0x4000, scoped, tag = 'input window, operand 8, single buffered']
    #allocation11 [shape = 'u8[1048576]{0}', space=vmem, size = 0x100000, scoped, tag = 'input window, operand 9, single buffered']
    #allocation12 [shape = 's32[1]{0}', space=sflag, size = 0x4, scoped, tag = 'scoped memory for tpu_custom_call.1']
    #allocation13 [shape = 'u8[32768]{0}', space=vmem, size = 0x8000, scoped, tag = 'input window, operand 13, single buffered']
    #allocation14 [shape = 'u8[4096]{0}', space=vmem, size = 0x1000, scoped, tag = 'output window, operand 0']
    %20 = vsyncpa [#allocation3], 0
    %s21 = scalar_lea.sflag [#allocation3], 1
    %22 = vsyncpa %s21, 0
    %23 = vsyncpa [#allocation6], 0
    %24 = vsyncpa [#allocation9], 0
    %25 = vsyncpa [#allocation12], 0
    %26 = vsyncpa [#allocation4], 0
    %s27 = scalar_lea.sflag [#allocation4], 1
    %28 = vsyncpa %s27, 0
    loop: start=0, step=1, limit=4
    $region2: #{tpu_custom_call.1} parent=1 // loop_pre_header
      _
    $region3: #{tpu_custom_call.1} parent=1 // loop_header
      %s30 = sphi 0, %s34
      %p31 = scmp.ge.s32.totalorder %s30, 4
      %s40 = sphi 0, %s42
      %s43 = sphi 0, %s40
      %s44 = sphi 0, %s43
      %s60 = sphi 0, %s44
      %s64 = sphi 0, %s64
      %s66 = sphi 0, %s64
      %s67 = sphi 0, %s66
      %s81 = sphi 0, %s67
      %s85 = sphi 0, %s85
      %s87 = sphi 0, %s85
      %s88 = sphi 0, %s87
      %s102 = sphi 0, %s88
      %s106 = sphi 0, %s106
      %s108 = sphi 0, %s106
      %s109 = sphi 0, %s108
      %s123 = sphi 0, %s109
      %s127 = sphi 0, %s127
      %s129 = sphi 0, %s127
      %s130 = sphi 0, %s129
      %s144 = sphi 0, %s130
      %s148 = sphi 0, %s148
      %s150 = sphi 0, %s148
      %s151 = sphi 0, %s150
      %s165 = sphi 0, %s151
      %s169 = sphi 0, %s169
      %s171 = sphi 0, %s169
      %s172 = sphi 0, %s171
      %s186 = sphi 0, %s172
      %s190 = sphi 0, %s190
      %s192 = sphi 0, %s190
      %s193 = sphi 0, %s192
      %s207 = sphi 0, %s193
      %s211 = sphi 0, %s211
      %s213 = sphi 0, %s211
      %s214 = sphi 0, %s213
      %s228 = sphi 0, %s214
      %s232 = sphi 0, %s232
      %s234 = sphi 0, %s232
      %s235 = sphi 0, %s234
      %s249 = sphi 0, %s235
      %s253 = sphi 0, %s253
      %s255 = sphi 0, %s253
      %s256 = sphi 0, %s255
      %s270 = sphi 0, %s256
      %s274 = sphi 0, %s274
      %s276 = sphi 0, %s274
      %s277 = sphi 0, %s276
      %s291 = sphi 0, %s277
      %s295 = sphi 0, %s295
      %s297 = sphi 0, %s295
      %s298 = sphi 0, %s297
      %s312 = sphi 0, %s298
      %s316 = sphi 0, %s316
      %s318 = sphi 0, %s316
      %s319 = sphi 0, %s318
      %s333 = sphi 0, %s319
      %s337 = sphi 0, %s337
      %s339 = sphi 0, %s337
      %s340 = sphi 0, %s339
      %s354 = sphi 0, %s340
      %s360 = sphi 0, %s362
      %s363 = sphi 0, %s360
      %s364 = sphi 0, %s363
      %s380 = sphi 0, %s364
    $region4: #{tpu_custom_call.1} parent=1 // loop_header_branch
      %33 = sbr.rel (%p31) target = $region8
    $region5: #{tpu_custom_call.1} parent=1 // loop_body
      %s35 = ssub.s32 %s30, 1
      %s36 = ssub.s32 %s30, 2
      %s37 = sadd.s32 %s30, 1
      %s38 = ssub.s32 %s30, %s37
      %p39 = scmp.eq.s32.totalorder %s38, 0
      %s41 = sadd.s32 %s40, 1
      %s42 = scalar_select %p39, %s40, %s41
      %p45 = pneg %p39
      %p46 = scmp.eq.s32.totalorder %s30, 1
      %p47 = por %p45, %p46
      %p48 = scmp.ne.s32.totalorder %s40, %s43
      %p49 = scmp.eq.s32.totalorder %s30, 0
      %p50 = por %p48, %p49
      %p51 = scmp.ne.s32.totalorder %s40, %s43
      %p52 = scmp.eq.s32.totalorder %s35, 1
      %p53 = por %p51, %p52
      %p54 = scmp.ne.s32.totalorder %s43, %s44
      %p55 = scmp.eq.s32.totalorder %s35, 0
      %p56 = por %p54, %p55
      %p57 = scmp.ne.s32.totalorder %s43, %s44
      %p58 = scmp.eq.s32.totalorder %s36, 1
      %p59 = por %p57, %p58
      %p61 = scmp.ne.s32.totalorder %s44, %s60
      %p62 = scmp.eq.s32.totalorder %s36, 0
      %p63 = por %p61, %p62
      %s65 = sadd.s32 %s64, 1
      %p68 = scmp.eq.s32.totalorder %s30, 1
      %p69 = scmp.ne.s32.totalorder %s64, %s66
      %p70 = scmp.eq.s32.totalorder %s30, 0
      %p71 = por %p69, %p70
      %p72 = scmp.ne.s32.totalorder %s64, %s66
      %p73 = scmp.eq.s32.totalorder %s35, 1
      %p74 = por %p72, %p73
      %p75 = scmp.ne.s32.totalorder %s66, %s67
      %p76 = scmp.eq.s32.totalorder %s35, 0
      %p77 = por %p75, %p76
      %p78 = scmp.ne.s32.totalorder %s66, %s67
      %p79 = scmp.eq.s32.totalorder %s36, 1
      %p80 = por %p78, %p79
      %p82 = scmp.ne.s32.totalorder %s67, %s81
      %p83 = scmp.eq.s32.totalorder %s36, 0
      %p84 = por %p82, %p83
      %s86 = sadd.s32 %s85, 1
      %p89 = scmp.eq.s32.totalorder %s30, 1
      %p90 = scmp.ne.s32.totalorder %s85, %s87
      %p91 = scmp.eq.s32.totalorder %s30, 0
      %p92 = por %p90, %p91
      %p93 = scmp.ne.s32.totalorder %s85, %s87
      %p94 = scmp.eq.s32.totalorder %s35, 1
      %p95 = por %p93, %p94
      %p96 = scmp.ne.s32.totalorder %s87, %s88
      %p97 = scmp.eq.s32.totalorder %s35, 0
      %p98 = por %p96, %p97
      %p99 = scmp.ne.s32.totalorder %s87, %s88
      %p100 = scmp.eq.s32.totalorder %s36, 1
      %p101 = por %p99, %p100
      %p103 = scmp.ne.s32.totalorder %s88, %s102
      %p104 = scmp.eq.s32.totalorder %s36, 0
      %p105 = por %p103, %p104
      %s107 = sadd.s32 %s106, 1
      %p110 = scmp.eq.s32.totalorder %s30, 1
      %p111 = scmp.ne.s32.totalorder %s106, %s108
      %p112 = scmp.eq.s32.totalorder %s30, 0
      %p113 = por %p111, %p112
      %p114 = scmp.ne.s32.totalorder %s106, %s108
      %p115 = scmp.eq.s32.totalorder %s35, 1
      %p116 = por %p114, %p115
      %p117 = scmp.ne.s32.totalorder %s108, %s109
      %p118 = scmp.eq.s32.totalorder %s35, 0
      %p119 = por %p117, %p118
      %p120 = scmp.ne.s32.totalorder %s108, %s109
      %p121 = scmp.eq.s32.totalorder %s36, 1
      %p122 = por %p120, %p121
      %p124 = scmp.ne.s32.totalorder %s109, %s123
      %p125 = scmp.eq.s32.totalorder %s36, 0
      %p126 = por %p124, %p125
      %s128 = sadd.s32 %s127, 1
      %p131 = scmp.eq.s32.totalorder %s30, 1
      %p132 = scmp.ne.s32.totalorder %s127, %s129
      %p133 = scmp.eq.s32.totalorder %s30, 0
      %p134 = por %p132, %p133
      %p135 = scmp.ne.s32.totalorder %s127, %s129
      %p136 = scmp.eq.s32.totalorder %s35, 1
      %p137 = por %p135, %p136
      %p138 = scmp.ne.s32.totalorder %s129, %s130
      %p139 = scmp.eq.s32.totalorder %s35, 0
      %p140 = por %p138, %p139
      %p141 = scmp.ne.s32.totalorder %s129, %s130
      %p142 = scmp.eq.s32.totalorder %s36, 1
      %p143 = por %p141, %p142
      %p145 = scmp.ne.s32.totalorder %s130, %s144
      %p146 = scmp.eq.s32.totalorder %s36, 0
      %p147 = por %p145, %p146
      %s149 = sadd.s32 %s148, 1
      %p152 = scmp.eq.s32.totalorder %s30, 1
      %p153 = scmp.ne.s32.totalorder %s148, %s150
      %p154 = scmp.eq.s32.totalorder %s30, 0
      %p155 = por %p153, %p154
      %p156 = scmp.ne.s32.totalorder %s148, %s150
      %p157 = scmp.eq.s32.totalorder %s35, 1
      %p158 = por %p156, %p157
      %p159 = scmp.ne.s32.totalorder %s150, %s151
      %p160 = scmp.eq.s32.totalorder %s35, 0
      %p161 = por %p159, %p160
      %p162 = scmp.ne.s32.totalorder %s150, %s151
      %p163 = scmp.eq.s32.totalorder %s36, 1
      %p164 = por %p162, %p163
      %p166 = scmp.ne.s32.totalorder %s151, %s165
      %p167 = scmp.eq.s32.totalorder %s36, 0
      %p168 = por %p166, %p167
      %s170 = sadd.s32 %s169, 1
      %p173 = scmp.eq.s32.totalorder %s30, 1
      %p174 = scmp.ne.s32.totalorder %s169, %s171
      %p175 = scmp.eq.s32.totalorder %s30, 0
      %p176 = por %p174, %p175
      %p177 = scmp.ne.s32.totalorder %s169, %s171
      %p178 = scmp.eq.s32.totalorder %s35, 1
      %p179 = por %p177, %p178
      %p180 = scmp.ne.s32.totalorder %s171, %s172
      %p181 = scmp.eq.s32.totalorder %s35, 0
      %p182 = por %p180, %p181
      %p183 = scmp.ne.s32.totalorder %s171, %s172
      %p184 = scmp.eq.s32.totalorder %s36, 1
      %p185 = por %p183, %p184
      %p187 = scmp.ne.s32.totalorder %s172, %s186
      %p188 = scmp.eq.s32.totalorder %s36, 0
      %p189 = por %p187, %p188
      %s191 = sadd.s32 %s190, 1
      %p194 = scmp.eq.s32.totalorder %s30, 1
      %p195 = scmp.ne.s32.totalorder %s190, %s192
      %p196 = scmp.eq.s32.totalorder %s30, 0
      %p197 = por %p195, %p196
      %p198 = scmp.ne.s32.totalorder %s190, %s192
      %p199 = scmp.eq.s32.totalorder %s35, 1
      %p200 = por %p198, %p199
      %p201 = scmp.ne.s32.totalorder %s192, %s193
      %p202 = scmp.eq.s32.totalorder %s35, 0
      %p203 = por %p201, %p202
      %p204 = scmp.ne.s32.totalorder %s192, %s193
      %p205 = scmp.eq.s32.totalorder %s36, 1
      %p206 = por %p204, %p205
      %p208 = scmp.ne.s32.totalorder %s193, %s207
      %p209 = scmp.eq.s32.totalorder %s36, 0
      %p210 = por %p208, %p209
      %s212 = sadd.s32 %s211, 1
      %p215 = scmp.eq.s32.totalorder %s30, 1
      %p216 = scmp.ne.s32.totalorder %s211, %s213
      %p217 = scmp.eq.s32.totalorder %s30, 0
      %p218 = por %p216, %p217
      %p219 = scmp.ne.s32.totalorder %s211, %s213
      %p220 = scmp.eq.s32.totalorder %s35, 1
      %p221 = por %p219, %p220
      %p222 = scmp.ne.s32.totalorder %s213, %s214
      %p223 = scmp.eq.s32.totalorder %s35, 0
      %p224 = por %p222, %p223
      %p225 = scmp.ne.s32.totalorder %s213, %s214
      %p226 = scmp.eq.s32.totalorder %s36, 1
      %p227 = por %p225, %p226
      %p229 = scmp.ne.s32.totalorder %s214, %s228
      %p230 = scmp.eq.s32.totalorder %s36, 0
      %p231 = por %p229, %p230
      %s233 = sadd.s32 %s232, 1
      %p236 = scmp.eq.s32.totalorder %s30, 1
      %p237 = scmp.ne.s32.totalorder %s232, %s234
      %p238 = scmp.eq.s32.totalorder %s30, 0
      %p239 = por %p237, %p238
      %p240 = scmp.ne.s32.totalorder %s232, %s234
      %p241 = scmp.eq.s32.totalorder %s35, 1
      %p242 = por %p240, %p241
      %p243 = scmp.ne.s32.totalorder %s234, %s235
      %p244 = scmp.eq.s32.totalorder %s35, 0
      %p245 = por %p243, %p244
      %p246 = scmp.ne.s32.totalorder %s234, %s235
      %p247 = scmp.eq.s32.totalorder %s36, 1
      %p248 = por %p246, %p247
      %p250 = scmp.ne.s32.totalorder %s235, %s249
      %p251 = scmp.eq.s32.totalorder %s36, 0
      %p252 = por %p250, %p251
      %s254 = sadd.s32 %s253, 1
      %p257 = scmp.eq.s32.totalorder %s30, 1
      %p258 = scmp.ne.s32.totalorder %s253, %s255
      %p259 = scmp.eq.s32.totalorder %s30, 0
      %p260 = por %p258, %p259
      %p261 = scmp.ne.s32.totalorder %s253, %s255
      %p262 = scmp.eq.s32.totalorder %s35, 1
      %p263 = por %p261, %p262
      %p264 = scmp.ne.s32.totalorder %s255, %s256
      %p265 = scmp.eq.s32.totalorder %s35, 0
      %p266 = por %p264, %p265
      %p267 = scmp.ne.s32.totalorder %s255, %s256
      %p268 = scmp.eq.s32.totalorder %s36, 1
      %p269 = por %p267, %p268
      %p271 = scmp.ne.s32.totalorder %s256, %s270
      %p272 = scmp.eq.s32.totalorder %s36, 0
      %p273 = por %p271, %p272
      %s275 = sadd.s32 %s274, 1
      %p278 = scmp.eq.s32.totalorder %s30, 1
      %p279 = scmp.ne.s32.totalorder %s274, %s276
      %p280 = scmp.eq.s32.totalorder %s30, 0
      %p281 = por %p279, %p280
      %p282 = scmp.ne.s32.totalorder %s274, %s276
      %p283 = scmp.eq.s32.totalorder %s35, 1
      %p284 = por %p282, %p283
      %p285 = scmp.ne.s32.totalorder %s276, %s277
      %p286 = scmp.eq.s32.totalorder %s35, 0
      %p287 = por %p285, %p286
      %p288 = scmp.ne.s32.totalorder %s276, %s277
      %p289 = scmp.eq.s32.totalorder %s36, 1
      %p290 = por %p288, %p289
      %p292 = scmp.ne.s32.totalorder %s277, %s291
      %p293 = scmp.eq.s32.totalorder %s36, 0
      %p294 = por %p292, %p293
      %s296 = sadd.s32 %s295, 1
      %p299 = scmp.eq.s32.totalorder %s30, 1
      %p300 = scmp.ne.s32.totalorder %s295, %s297
      %p301 = scmp.eq.s32.totalorder %s30, 0
      %p302 = por %p300, %p301
      %p303 = scmp.ne.s32.totalorder %s295, %s297
      %p304 = scmp.eq.s32.totalorder %s35, 1
      %p305 = por %p303, %p304
      %p306 = scmp.ne.s32.totalorder %s297, %s298
      %p307 = scmp.eq.s32.totalorder %s35, 0
      %p308 = por %p306, %p307
      %p309 = scmp.ne.s32.totalorder %s297, %s298
      %p310 = scmp.eq.s32.totalorder %s36, 1
      %p311 = por %p309, %p310
      %p313 = scmp.ne.s32.totalorder %s298, %s312
      %p314 = scmp.eq.s32.totalorder %s36, 0
      %p315 = por %p313, %p314
      %s317 = sadd.s32 %s316, 1
      %p320 = scmp.eq.s32.totalorder %s30, 1
      %p321 = scmp.ne.s32.totalorder %s316, %s318
      %p322 = scmp.eq.s32.totalorder %s30, 0
      %p323 = por %p321, %p322
      %p324 = scmp.ne.s32.totalorder %s316, %s318
      %p325 = scmp.eq.s32.totalorder %s35, 1
      %p326 = por %p324, %p325
      %p327 = scmp.ne.s32.totalorder %s318, %s319
      %p328 = scmp.eq.s32.totalorder %s35, 0
      %p329 = por %p327, %p328
      %p330 = scmp.ne.s32.totalorder %s318, %s319
      %p331 = scmp.eq.s32.totalorder %s36, 1
      %p332 = por %p330, %p331
      %p334 = scmp.ne.s32.totalorder %s319, %s333
      %p335 = scmp.eq.s32.totalorder %s36, 0
      %p336 = por %p334, %p335
      %s338 = sadd.s32 %s337, 1
      %p341 = scmp.eq.s32.totalorder %s30, 1
      %p342 = scmp.ne.s32.totalorder %s337, %s339
      %p343 = scmp.eq.s32.totalorder %s30, 0
      %p344 = por %p342, %p343
      %p345 = scmp.ne.s32.totalorder %s337, %s339
      %p346 = scmp.eq.s32.totalorder %s35, 1
      %p347 = por %p345, %p346
      %p348 = scmp.ne.s32.totalorder %s339, %s340
      %p349 = scmp.eq.s32.totalorder %s35, 0
      %p350 = por %p348, %p349
      %p351 = scmp.ne.s32.totalorder %s339, %s340
      %p352 = scmp.eq.s32.totalorder %s36, 1
      %p353 = por %p351, %p352
      %p355 = scmp.ne.s32.totalorder %s340, %s354
      %p356 = scmp.eq.s32.totalorder %s36, 0
      %p357 = por %p355, %p356
      %s358 = ssub.s32 %s30, %s37
      %p359 = scmp.eq.s32.totalorder %s358, 0
      %s361 = sadd.s32 %s360, 1
      %s362 = scalar_select %p359, %s360, %s361
      %p365 = pneg %p359
      %p366 = scmp.eq.s32.totalorder %s30, 1
      %p367 = por %p365, %p366
      %p368 = scmp.ne.s32.totalorder %s360, %s363
      %p369 = scmp.eq.s32.totalorder %s30, 0
      %p370 = por %p368, %p369
      %p371 = scmp.ne.s32.totalorder %s360, %s363
      %p372 = scmp.eq.s32.totalorder %s35, 1
      %p373 = por %p371, %p372
      %p374 = scmp.ne.s32.totalorder %s363, %s364
      %p375 = scmp.eq.s32.totalorder %s35, 0
      %p376 = por %p374, %p375
      %p377 = scmp.ne.s32.totalorder %s363, %s364
      %p378 = scmp.eq.s32.totalorder %s36, 1
      %p379 = por %p377, %p378
      %p381 = scmp.ne.s32.totalorder %s364, %s380
      %p382 = scmp.eq.s32.totalorder %s36, 0
      %p383 = por %p381, %p382
      %p384 = scmp.le.s32.totalorder 1, %s30
      %p385 = scmp.lt.s32.totalorder %s30, 3
      %p386 = pnand %p384, %p385
      %p387 = pneg %p386
      // Predicated region
      $region9: #{tpu_custom_call.1} parent=5 // pred_check
        _
      $region10: #{tpu_custom_call.1} parent=5 // pred_check_branch
        %389 = sbr.rel (%p386) target = $region12
      $region11: #{tpu_custom_call.1} parent=5 // pred_region
        %s390 = ssub.s32 %s30, 1
        // Predicated region
        $region13: #{tpu_custom_call.1} parent=11 // pred_check
          %p391 = pneg %p77
        $region14: #{tpu_custom_call.1} parent=11 // pred_check_branch
          %393 = sbr.rel (%p391) target = $region16
        $region15: #{tpu_custom_call.1} parent=11 // pred_region
          %s395 = ssub.s32 6144, 6144
          %396 = vsyncadd [#allocation6], %s395
          %s397 = sshll.u32 [#allocation5], 4
          %s398 = int_to_ptr.vmem [resolvable:$true] %s397
          %403 = dma.hbm_to_vmem [thread:$0]  %s1, 6144, %s398, [#allocation6], 192, 192, 12
        $region16: #{tpu_custom_call.1} parent=11 // pred_fallthru
          _
        // Predicated region
        $region17: #{tpu_custom_call.1} parent=11 // pred_check
          %p404 = pneg %p98
        $region18: #{tpu_custom_call.1} parent=11 // pred_check_branch
          %406 = sbr.rel (%p404) target = $region20
        $region19: #{tpu_custom_call.1} parent=11 // pred_region
          _
        $region20: #{tpu_custom_call.1} parent=11 // pred_fallthru
          _
        // Predicated region
        $region21: #{tpu_custom_call.1} parent=11 // pred_check
          %p407 = pneg %p119
        $region22: #{tpu_custom_call.1} parent=11 // pred_check_branch
          %409 = sbr.rel (%p407) target = $region24
        $region23: #{tpu_custom_call.1} parent=11 // pred_region
          %s411 = ssub.s32 2048, 2048
          %412 = vsyncadd [#allocation6], %s411
          %s413 = sshll.u32 [#allocation7], 4
          %s414 = int_to_ptr.vmem [resolvable:$true] %s413
          %419 = dma.hbm_to_vmem [thread:$0]  %s3, 2048, %s414, [#allocation6], 64, 64, 4
        $region24: #{tpu_custom_call.1} parent=11 // pred_fallthru
          _
        // Predicated region
        $region25: #{tpu_custom_call.1} parent=11 // pred_check
          %p420 = pneg %p140
        $region26: #{tpu_custom_call.1} parent=11 // pred_check_branch
          %422 = sbr.rel (%p420) target = $region28
        $region27: #{tpu_custom_call.1} parent=11 // pred_region
          _
        $region28: #{tpu_custom_call.1} parent=11 // pred_fallthru
          _
        // Predicated region
        $region29: #{tpu_custom_call.1} parent=11 // pred_check
          %p423 = pneg %p161
        $region30: #{tpu_custom_call.1} parent=11 // pred_check_branch
          %425 = sbr.rel (%p423) target = $region32
        $region31: #{tpu_custom_call.1} parent=11 // pred_region
          _
        $region32: #{tpu_custom_call.1} parent=11 // pred_fallthru
          _
        // Predicated region
        $region33: #{tpu_custom_call.1} parent=11 // pred_check
          %p426 = pneg %p182
        $region34: #{tpu_custom_call.1} parent=11 // pred_check_branch
          %428 = sbr.rel (%p426) target = $region36
        $region35: #{tpu_custom_call.1} parent=11 // pred_region
          _
        $region36: #{tpu_custom_call.1} parent=11 // pred_fallthru
          _
        // Predicated region
        $region37: #{tpu_custom_call.1} parent=11 // pred_check
          %p429 = pneg %p203
        $region38: #{tpu_custom_call.1} parent=11 // pred_check_branch
          %431 = sbr.rel (%p429) target = $region40
        $region39: #{tpu_custom_call.1} parent=11 // pred_region
          %s433 = ssub.s32 32768, 32768
          %434 = vsyncadd [#allocation9], %s433
          %s435 = sshll.u32 [#allocation8], 4
          %s436 = int_to_ptr.vmem [resolvable:$true] %s435
          %441 = dma.hbm_to_vmem [thread:$0]  %s7, 32768, %s436, [#allocation9], 1024, 1024, 64
        $region40: #{tpu_custom_call.1} parent=11 // pred_fallthru
          _
        // Predicated region
        $region41: #{tpu_custom_call.1} parent=11 // pred_check
          %p442 = pneg %p224
        $region42: #{tpu_custom_call.1} parent=11 // pred_check_branch
          %444 = sbr.rel (%p442) target = $region44
        $region43: #{tpu_custom_call.1} parent=11 // pred_region
          %s446 = ssub.s32 512, 512
          %447 = vsyncadd [#allocation9], %s446
          %s448 = sshll.u32 [#allocation10], 4
          %s449 = int_to_ptr.vmem [resolvable:$true] %s448
          %454 = dma.hbm_to_vmem [thread:$0]  %s8, 512, %s449, [#allocation9], 256, 256, 16
        $region44: #{tpu_custom_call.1} parent=11 // pred_fallthru
          _
        // Predicated region
        $region45: #{tpu_custom_call.1} parent=11 // pred_check
          %p455 = pneg %p245
        $region46: #{tpu_custom_call.1} parent=11 // pred_check_branch
          %457 = sbr.rel (%p455) target = $region48
        $region47: #{tpu_custom_call.1} parent=11 // pred_region
          %s459 = ssub.s32 32768, 32768
          %460 = vsyncadd [#allocation12], %s459
          %s461 = sshll.u32 [#allocation11], 4
          %s462 = int_to_ptr.vmem [resolvable:$true] %s461
          %467 = dma.hbm_to_vmem [thread:$0]  %s9, 32768, %s462, [#allocation12], 64, 64, 4
        $region48: #{tpu_custom_call.1} parent=11 // pred_fallthru
          _
        // Predicated region
        $region49: #{tpu_custom_call.1} parent=11 // pred_check
          %p468 = pneg %p266
        $region50: #{tpu_custom_call.1} parent=11 // pred_check_branch
          %470 = sbr.rel (%p468) target = $region52
        $region51: #{tpu_custom_call.1} parent=11 // pred_region
          _
        $region52: #{tpu_custom_call.1} parent=11 // pred_fallthru
          _
        // Predicated region
        $region53: #{tpu_custom_call.1} parent=11 // pred_check
          %p471 = pneg %p287
        $region54: #{tpu_custom_call.1} parent=11 // pred_check_branch
          %473 = sbr.rel (%p471) target = $region56
        $region55: #{tpu_custom_call.1} parent=11 // pred_region
          _
        $region56: #{tpu_custom_call.1} parent=11 // pred_fallthru
          _
        // Predicated region
        $region57: #{tpu_custom_call.1} parent=11 // pred_check
          %p474 = pneg %p308
        $region58: #{tpu_custom_call.1} parent=11 // pred_check_branch
          %476 = sbr.rel (%p474) target = $region60
        $region59: #{tpu_custom_call.1} parent=11 // pred_region
          _
        $region60: #{tpu_custom_call.1} parent=11 // pred_fallthru
          _
        // Predicated region
        $region61: #{tpu_custom_call.1} parent=11 // pred_check
          %p477 = pneg %p329
        $region62: #{tpu_custom_call.1} parent=11 // pred_check_branch
          %479 = sbr.rel (%p477) target = $region64
        $region63: #{tpu_custom_call.1} parent=11 // pred_region
          %s481 = ssub.s32 1024, 1024
          %482 = vsyncadd [#allocation12], %s481
          %s483 = sshll.u32 [#allocation13], 4
          %s484 = int_to_ptr.vmem [resolvable:$true] %s483
          %489 = dma.hbm_to_vmem [thread:$0]  %s13, 1024, %s484, [#allocation12], 64, 64, 4
        $region64: #{tpu_custom_call.1} parent=11 // pred_fallthru
          _
        // Predicated region
        $region65: #{tpu_custom_call.1} parent=11 // pred_check
          %p490 = pneg %p350
        $region66: #{tpu_custom_call.1} parent=11 // pred_check_branch
          %492 = sbr.rel (%p490) target = $region68
        $region67: #{tpu_custom_call.1} parent=11 // pred_region
          _
        $region68: #{tpu_custom_call.1} parent=11 // pred_fallthru
          _
      $region12: #{tpu_custom_call.1} parent=5 // pred_fallthru
        _
      %p493 = scmp.lt.s32.totalorder %s30, 2
      // Predicated region
      $region69: #{tpu_custom_call.1} parent=5 // pred_check
        %p494 = pneg %p493
      $region70: #{tpu_custom_call.1} parent=5 // pred_check_branch
        %496 = sbr.rel (%p494) target = $region72
      $region71: #{tpu_custom_call.1} parent=5 // pred_region
        // Predicated region
        $region73: #{tpu_custom_call.1} parent=71 // pred_check
          %p497 = pneg %p50
        $region74: #{tpu_custom_call.1} parent=71 // pred_check_branch
          %499 = sbr.rel (%p497) target = $region76
        $region75: #{tpu_custom_call.1} parent=71 // pred_region
          %s500 = sand.u32 %s40, 1
          %s501 = scalar_lea.sflag [#allocation3], %s500
          %s502 = sand.u32 %s40, 1
          %s503 = smul.addr %s502, 4
          %s504 = scalar_lea.vmem [#allocation2], %s503
          %s506 = ssub.s32 64, 64
          %507 = vsyncadd %s501, %s506
          %s508 = smul.addr %s30, 64
          %s509 = scalar_lea.hbm %s0, %s508
          %s511 = sshll.u32 %s504, 4
          %s512 = int_to_ptr.vmem [resolvable:$true] %s511
          %514 = dma.hbm_to_vmem [thread:$0]  %s509, 64, %s512, %s501
        $region76: #{tpu_custom_call.1} parent=71 // pred_fallthru
          _
      $region72: #{tpu_custom_call.1} parent=5 // pred_fallthru
        _
      %p515 = scmp.le.s32.totalorder 1, %s30
      %p516 = scmp.lt.s32.totalorder %s30, 3
      %p517 = pnand %p515, %p516
      %p518 = pneg %p517
      // Predicated region
      $region77: #{tpu_custom_call.1} parent=5 // pred_check
        _
      $region78: #{tpu_custom_call.1} parent=5 // pred_check_branch
        %520 = sbr.rel (%p517) target = $region80
      $region79: #{tpu_custom_call.1} parent=5 // pred_region
        %s521 = ssub.s32 %s30, 1
        %s522 = sand.u32 %s43, 1
        %s523 = scalar_lea.sflag [#allocation3], %s522
        %s524 = sand.u32 %s43, 1
        %s525 = smul.addr %s524, 4
        %s526 = scalar_lea.vmem [#allocation2], %s525
        // Predicated region
        $region81: #{tpu_custom_call.1} parent=79 // pred_check
          %p527 = pneg %p56
        $region82: #{tpu_custom_call.1} parent=79 // pred_check_branch
          %529 = sbr.rel (%p527) target = $region84
        $region83: #{tpu_custom_call.1} parent=79 // pred_region
          %530 = dma.done %s523, 64
        $region84: #{tpu_custom_call.1} parent=79 // pred_fallthru
          _
        // Predicated region
        $region85: #{tpu_custom_call.1} parent=79 // pred_check
          %p531 = pneg %p77
        $region86: #{tpu_custom_call.1} parent=79 // pred_check_branch
          %533 = sbr.rel (%p531) target = $region88
        $region87: #{tpu_custom_call.1} parent=79 // pred_region
          %534 = dma.done [#allocation6], 6144
        $region88: #{tpu_custom_call.1} parent=79 // pred_fallthru
          _
        // Predicated region
        $region89: #{tpu_custom_call.1} parent=79 // pred_check
          %p535 = pneg %p119
        $region90: #{tpu_custom_call.1} parent=79 // pred_check_branch
          %537 = sbr.rel (%p535) target = $region92
        $region91: #{tpu_custom_call.1} parent=79 // pred_region
          %538 = dma.done [#allocation6], 2048
        $region92: #{tpu_custom_call.1} parent=79 // pred_fallthru
          _
        // Predicated region
        $region93: #{tpu_custom_call.1} parent=79 // pred_check
          %p539 = pneg %p203
        $region94: #{tpu_custom_call.1} parent=79 // pred_check_branch
          %541 = sbr.rel (%p539) target = $region96
        $region95: #{tpu_custom_call.1} parent=79 // pred_region
          %542 = dma.done [#allocation9], 32768
        $region96: #{tpu_custom_call.1} parent=79 // pred_fallthru
          _
        // Predicated region
        $region97: #{tpu_custom_call.1} parent=79 // pred_check
          %p543 = pneg %p224
        $region98: #{tpu_custom_call.1} parent=79 // pred_check_branch
          %545 = sbr.rel (%p543) target = $region100
        $region99: #{tpu_custom_call.1} parent=79 // pred_region
          %546 = dma.done [#allocation9], 512
        $region100: #{tpu_custom_call.1} parent=79 // pred_fallthru
          _
        // Predicated region
        $region101: #{tpu_custom_call.1} parent=79 // pred_check
          %p547 = pneg %p245
        $region102: #{tpu_custom_call.1} parent=79 // pred_check_branch
          %549 = sbr.rel (%p547) target = $region104
        $region103: #{tpu_custom_call.1} parent=79 // pred_region
          %550 = dma.done [#allocation12], 32768
        $region104: #{tpu_custom_call.1} parent=79 // pred_fallthru
          _
        // Predicated region
        $region105: #{tpu_custom_call.1} parent=79 // pred_check
          %p551 = pneg %p329
        $region106: #{tpu_custom_call.1} parent=79 // pred_check_branch
          %553 = sbr.rel (%p551) target = $region108
        $region107: #{tpu_custom_call.1} parent=79 // pred_region
          %554 = dma.done [#allocation12], 1024
        $region108: #{tpu_custom_call.1} parent=79 // pred_fallthru
          _
        %s555 = sand.u32 %s43, 1
        %s556 = scalar_lea.sflag [#allocation3], %s555
        %s557 = sand.u32 %s43, 1
        %s558 = smul.addr %s557, 4
        %s559 = scalar_lea.vmem [#allocation2], %s558
        %p560 = pneg %p56
        %p561 = pneg %p53
        %p562 = pneg %p77
        %p563 = pneg %p74
        %p564 = pneg %p98
        %p565 = pneg %p95
        %p566 = pneg %p119
        %p567 = pneg %p116
        %p568 = pneg %p140
        %p569 = pneg %p137
        %p570 = pneg %p161
        %p571 = pneg %p158
        %p572 = pneg %p182
        %p573 = pneg %p179
        %p574 = pneg %p203
        %p575 = pneg %p200
        %p576 = pneg %p224
        %p577 = pneg %p221
        %p578 = pneg %p245
        %p579 = pneg %p242
        %p580 = pneg %p266
        %p581 = pneg %p263
        %p582 = pneg %p287
        %p583 = pneg %p284
        %p584 = pneg %p308
        %p585 = pneg %p305
        %p586 = pneg %p329
        %p587 = pneg %p326
        %p588 = pneg %p350
        %p589 = pneg %p347
        %p590 = pneg %p376
        %p591 = pneg %p373
        %s592 = sand.u32 %s363, 1
        %s593 = scalar_lea.sflag [#allocation4], %s592
        %s594 = sand.u32 %s363, 1
        %s595 = smul.addr %s594, 4
        %s596 = scalar_lea.vmem [#allocation14], %s595
        %v598 = vld [vmem:[%s526] sm:$0xf]
        %v599 = vunpack.c.l.bf16 %v598
        %v600 = vld [vmem:[#allocation5] sm:$0xff]
        %v601 = vld [vmem:[#allocation5 + $0x8] sm:$0xf]
        %v602 = vld [vmem:[#allocation5 + $0xc] sm:$0xff]
        %v603 = vld [vmem:[#allocation5 + $0x14] sm:$0xf]
        %v604 = vld [vmem:[#allocation5 + $0x18] sm:$0xff]
        %v605 = vld [vmem:[#allocation5 + $0x20] sm:$0xf]
        %v606 = vld [vmem:[#allocation5 + $0x24] sm:$0xff]
        %v607 = vld [vmem:[#allocation5 + $0x2c] sm:$0xf]
        %v608 = vld [vmem:[#allocation5 + $0x30] sm:$0xff]
        %v609 = vld [vmem:[#allocation5 + $0x38] sm:$0xf]
        %v610 = vld [vmem:[#allocation5 + $0x3c] sm:$0xff]
        %v611 = vld [vmem:[#allocation5 + $0x44] sm:$0xf]
        %v612 = vld [vmem:[#allocation5 + $0x48] sm:$0xff]
        %v613 = vld [vmem:[#allocation5 + $0x50] sm:$0xf]
        %v614 = vld [vmem:[#allocation5 + $0x54] sm:$0xff]
        %v615 = vld [vmem:[#allocation5 + $0x5c] sm:$0xf]
        %v616 = vld [vmem:[#allocation5 + $0x60] sm:$0xff]
        %v617 = vld [vmem:[#allocation5 + $0x68] sm:$0xf]
        %v618 = vld [vmem:[#allocation5 + $0x6c] sm:$0xff]
        %v619 = vld [vmem:[#allocation5 + $0x74] sm:$0xf]
        %v620 = vld [vmem:[#allocation5 + $0x78] sm:$0xff]
        %v621 = vld [vmem:[#allocation5 + $0x80] sm:$0xf]
        %v622 = vld [vmem:[#allocation5 + $0x84] sm:$0xff]
        %v623 = vld [vmem:[#allocation5 + $0x8c] sm:$0xf]
        %v624 = vld [vmem:[#allocation5 + $0x90] sm:$0xff]
        %v625 = vld [vmem:[#allocation5 + $0x98] sm:$0xf]
        %v626 = vld [vmem:[#allocation5 + $0x9c] sm:$0xff]
        %v627 = vld [vmem:[#allocation5 + $0xa4] sm:$0xf]
        %v628 = vld [vmem:[#allocation5 + $0xa8] sm:$0xff]
        %v629 = vld [vmem:[#allocation5 + $0xb0] sm:$0xf]
        %v630 = vld [vmem:[#allocation5 + $0xb4] sm:$0xff]
        %v631 = vld [vmem:[#allocation5 + $0xbc] sm:$0xf]
        %v632 = vld [vmem:[%s2] sm:$0x7]
        %v634 = vlaneseq
        %v635 = vshrl.u32 %v634, 7
        %v636 = vsub.s32 0, %v635
        %v637 = vrot.slane %v632, %v636
        %v638 = vlaneseq
        %v639 = vshrl.u32 %v638, 7
        %v640 = vsub.s32 1, %v639
        %v641 = vrot.slane %v632, %v640
        %v642 = vlaneseq
        %v643 = vshrl.u32 %v642, 7
        %v644 = vsub.s32 2, %v643
        %v645 = vrot.slane %v632, %v644
        %v681 = vunpack.c.l.b16 %v600
        %v682 = vunpack.c.h.b16 %v600
        %v683 = vunpack.c.l.b16 %v601
        %v684 = vunpack.c.l.b16 %v602
        %v685 = vunpack.c.h.b16 %v602
        %v686 = vunpack.c.l.b16 %v603
        %v687 = vunpack.c.l.b16 %v604
        %v688 = vunpack.c.h.b16 %v604
        %v689 = vunpack.c.l.b16 %v605
        %v690 = vunpack.c.l.b16 %v606
        %v691 = vunpack.c.h.b16 %v606
        %v692 = vunpack.c.l.b16 %v607
        %v693 = vunpack.c.l.b16 %v608
        %v694 = vunpack.c.h.b16 %v608
        %v695 = vunpack.c.l.b16 %v609
        %v696 = vunpack.c.l.b16 %v610
        %v697 = vunpack.c.h.b16 %v610
        %v698 = vunpack.c.l.b16 %v611
        %v699 = vunpack.c.l.b16 %v612
        %v700 = vunpack.c.h.b16 %v612
        %v701 = vunpack.c.l.b16 %v613
        %v702 = vunpack.c.l.b16 %v614
        %v703 = vunpack.c.h.b16 %v614
        %v704 = vunpack.c.l.b16 %v615
        %v705 = vunpack.c.l.b16 %v616
        %v706 = vunpack.c.h.b16 %v616
        %v707 = vunpack.c.l.b16 %v617
        %v708 = vunpack.c.l.b16 %v618
        %v709 = vunpack.c.h.b16 %v618
        %v710 = vunpack.c.l.b16 %v619
        %v711 = vunpack.c.l.b16 %v620
        %v712 = vunpack.c.h.b16 %v620
        %v713 = vunpack.c.l.b16 %v621
        %v714 = vunpack.c.l.b16 %v622
        %v715 = vunpack.c.h.b16 %v622
        %v716 = vunpack.c.l.b16 %v623
        %v717 = vunpack.c.l.b16 %v624
        %v718 = vunpack.c.h.b16 %v624
        %v719 = vunpack.c.l.b16 %v625
        %v720 = vunpack.c.l.b16 %v626
        %v721 = vunpack.c.h.b16 %v626
        %v722 = vunpack.c.l.b16 %v627
        %v723 = vunpack.c.l.b16 %v628
        %v724 = vunpack.c.h.b16 %v628
        %v725 = vunpack.c.l.b16 %v629
        %v726 = vunpack.c.l.b16 %v630
        %v727 = vunpack.c.h.b16 %v630
        %v728 = vunpack.c.l.b16 %v631
        %v729 = vpack.c.b16 %v684, %v681
        %v730 = vpack.c.b16 %v685, %v682
        %v731 = vpack.c.b16 %v686, %v683
        %v732 = vpack.c.b16 %v690, %v687
        %v733 = vpack.c.b16 %v691, %v688
        %v734 = vpack.c.b16 %v692, %v689
        %v735 = vpack.c.b16 %v696, %v693
        %v736 = vpack.c.b16 %v697, %v694
        %v737 = vpack.c.b16 %v698, %v695
        %v738 = vpack.c.b16 %v702, %v699
        %v739 = vpack.c.b16 %v703, %v700
        %v740 = vpack.c.b16 %v704, %v701
        %v741 = vpack.c.b16 %v708, %v705
        %v742 = vpack.c.b16 %v709, %v706
        %v743 = vpack.c.b16 %v710, %v707
        %v744 = vpack.c.b16 %v714, %v711
        %v745 = vpack.c.b16 %v715, %v712
        %v746 = vpack.c.b16 %v716, %v713
        %v747 = vpack.c.b16 %v720, %v717
        %v748 = vpack.c.b16 %v721, %v718
        %v749 = vpack.c.b16 %v722, %v719
        %v750 = vpack.c.b16 %v726, %v723
        %v751 = vpack.c.b16 %v727, %v724
        %v752 = vpack.c.b16 %v728, %v725
        %777 = vmatprep.subr.bf16.mxu0 %v730
        %778 = vmatpush1.bf16.msra.mxu0 %v729
        %779 = vmatprep.subr.bf16.mxu0 %v733
        %780 = vmatpush1.bf16.msra.mxu0 %v732
        %781 = vmatprep.subr.bf16.mxu0 %v736
        %782 = vmatpush1.bf16.msra.mxu0 %v735
        %783 = vmatprep.subr.bf16.mxu0 %v739
        %784 = vmatpush1.bf16.msra.mxu0 %v738
        %785 = vmatprep.subr.bf16.mxu0 %v742
        %786 = vmatpush1.bf16.msra.mxu0 %v741
        %787 = vmatprep.subr.bf16.mxu0 %v745
        %788 = vmatpush1.bf16.msra.mxu0 %v744
        %789 = vmatprep.subr.bf16.mxu0 %v748
        %790 = vmatpush1.bf16.msra.mxu0 %v747
        %791 = vmatprep.subr.bf16.mxu0 %v751
        %792 = vmatpush1.bf16.msra.mxu0 %v750
        %793 = vmatprep.subr.bf16.mxu0 0
        %794 = vmatpush1.bf16.msra.mxu0 0
        %795 = vmatprep.subr.bf16.mxu0 0
        %796 = vmatpush1.bf16.msra.mxu0 0
        %797 = vmatprep.subr.bf16.mxu0 0
        %798 = vmatpush1.bf16.msra.mxu0 0
        %799 = vmatprep.subr.bf16.mxu0 0
        %800 = vmatpush1.bf16.msra.mxu0 0
        %801 = vmatprep.subr.bf16.mxu0 0
        %802 = vmatpush1.bf16.msra.mxu0 0
        %803 = vmatprep.subr.bf16.mxu0 0
        %804 = vmatpush1.bf16.msra.mxu0 0
        %805 = vmatprep.subr.bf16.mxu0 0
        %806 = vmatpush1.bf16.msra.mxu0 0
        %807 = vmatprep.subr.bf16.mxu0 0
        %808 = vmatpush1.bf16.msra.mxu0 0
        %809 = vmatprep.mubr.bf16.mxu0 0
        %810 = vmatmul.mubr.bf16.gmra.mrb[0].mxu0 %v598
        %v811 = vpop.f32.mrb[0].mxu0
        %v812 = vadd.f32 %v637, %v811
        %v813 = vpop.f32.mrb[0].mxu0
        %v814 = vadd.f32 %v641, %v813
        %v815 = vpop.f32.mrb[0].mxu0
        %v816 = vpop.f32.mrb[0].mxu0
        %817 = vdwg.mxu0
        %818 = vmatprep.subr.bf16.mxu0 0
        %819 = vmatpush1.bf16.msra.mxu0 %v731
        %820 = vmatprep.subr.bf16.mxu0 0
        %821 = vmatpush1.bf16.msra.mxu0 %v734
        %822 = vmatprep.subr.bf16.mxu0 0
        %823 = vmatpush1.bf16.msra.mxu0 %v737
        %824 = vmatprep.subr.bf16.mxu0 0
        %825 = vmatpush1.bf16.msra.mxu0 %v740
        %826 = vmatprep.subr.bf16.mxu0 0
        %827 = vmatpush1.bf16.msra.mxu0 %v743
        %828 = vmatprep.subr.bf16.mxu0 0
        %829 = vmatpush1.bf16.msra.mxu0 %v746
        %830 = vmatprep.subr.bf16.mxu0 0
        %831 = vmatpush1.bf16.msra.mxu0 %v749
        %832 = vmatprep.subr.bf16.mxu0 0
        %833 = vmatpush1.bf16.msra.mxu0 %v752
        %834 = vmatprep.subr.bf16.mxu0 0
        %835 = vmatpush1.bf16.msra.mxu0 0
        %836 = vmatprep.subr.bf16.mxu0 0
        %837 = vmatpush1.bf16.msra.mxu0 0
        %838 = vmatprep.subr.bf16.mxu0 0
        %839 = vmatpush1.bf16.msra.mxu0 0
        %840 = vmatprep.subr.bf16.mxu0 0
        %841 = vmatpush1.bf16.msra.mxu0 0
        %842 = vmatprep.subr.bf16.mxu0 0
        %843 = vmatpush1.bf16.msra.mxu0 0
        %844 = vmatprep.subr.bf16.mxu0 0
        %845 = vmatpush1.bf16.msra.mxu0 0
        %846 = vmatprep.subr.bf16.mxu0 0
        %847 = vmatpush1.bf16.msra.mxu0 0
        %848 = vmatprep.subr.bf16.mxu0 0
        %849 = vmatpush1.bf16.msra.mxu0 0
        %850 = vmatprep.mubr.bf16.mxu0 0
        %851 = vmatmul.mubr.bf16.gmra.mrb[0].mxu0 %v598
        %v852 = vpop.f32.mrb[0].mxu0
        %v853 = vadd.f32 %v645, %v852
        %v854 = vpop.f32.mrb[0].mxu0
        %v855 = vpop.f32.mrb[0].mxu0
        %v856 = vpop.f32.mrb[0].mxu0
        %857 = vdwg.mxu0
        %v858 = vpack.c.bf16 %v812, %v812
        %v859 = vpack.c.bf16 %v814, %v814
        %v860 = vpack.c.bf16 %v853, %v853
        %vm861 = vcmask 261120
        %v863 = vsel %vm861, %v858, 0
        %v866 = vsel %vm861, %v859, 0
        %868 = vmatprep.subr.bf16.mxu0 0
        %869 = vmatpush1.bf16.xpose.msra.mxu0 %v866
        %870 = vmatprep.subr.bf16.mxu0 0
        %871 = vmatpush1.bf16.xpose.msra.mxu0 0
        %872 = vmatprep.subr.bf16.mxu0 0
        %873 = vmatpush1.bf16.xpose.msra.mxu0 0
        %874 = vmatprep.subr.bf16.mxu0 0
        %875 = vmatpush1.bf16.xpose.msra.mxu0 0
        %876 = vmatprep.subr.bf16.mxu0 0
        %877 = vmatpush1.bf16.xpose.msra.mxu0 0
        %878 = vmatprep.subr.bf16.mxu0 0
        %879 = vmatpush1.bf16.xpose.msra.mxu0 0
        %880 = vmatprep.subr.bf16.mxu0 0
        %881 = vmatpush1.bf16.xpose.msra.mxu0 0
        %882 = vmatprep.subr.bf16.mxu0 0
        %883 = vmatpush1.bf16.xpose.msra.mxu0 0
        %884 = vmatprep.subr.bf16.mxu0 0
        %885 = vmatpush1.bf16.xpose.msra.mxu0 0
        %886 = vmatprep.subr.bf16.mxu0 0
        %887 = vmatpush1.bf16.xpose.msra.mxu0 0
        %888 = vmatprep.subr.bf16.mxu0 0
        %889 = vmatpush1.bf16.xpose.msra.mxu0 0
        %890 = vmatprep.subr.bf16.mxu0 0
        %891 = vmatpush1.bf16.xpose.msra.mxu0 0
        %892 = vmatprep.subr.bf16.mxu0 0
        %893 = vmatpush1.bf16.xpose.msra.mxu0 0
        %894 = vmatprep.subr.bf16.mxu0 0
        %895 = vmatpush1.bf16.xpose.msra.mxu0 0
        %896 = vmatprep.subr.bf16.mxu0 0
        %897 = vmatpush1.bf16.xpose.msra.mxu0 0
        %898 = vmatprep.subr.bf16.mxu0 0
        %899 = vmatpush1.bf16.xpose.msra.mxu0 0
        %900 = vmatprep.mubr.bf16.mxu0 0
        %901 = vmatmul.mubr.bf16.gmra.mrb[0].mxu0 %v863
        %v902 = vpop.f32.mrb[0].mxu0
        %v903 = vadd.f32 0.0, %v902
        %v904 = vpop.f32.mrb[0].mxu0
        %v905 = vpop.f32.mrb[0].mxu0
        %v906 = vpop.f32.mrb[0].mxu0
        %907 = vdwg.mxu0
        %vm908 = vcmask 64512
        %v909 = vsel %vm908, %v903, -inf
        %910 = vmax.xlane.f32.xlu0 %v909
        %v911 = vpop.xlane.xlu0 %910
        %v912 = vsub.f32 %v903, %v911
        %v913 = vmul.f32 %v912, 1.442695
        %v914 = vpow.pop %v913
        %v915 = vsel %vm908, %v914, 0.0
        %916 = vadd.xlane.f32.xlu0 %v915
        %v917 = vpop.xlane.xlu0 %916
        %v918 = vrcp.pop %v917
        %v919 = vmul.f32 %v914, %v918
        %v920 = vpack.c.bf16 %v919, %v919
        %v922 = vsel %vm908, %v920, 0
        %vm924 = vcmask 1043456
        %v926 = vsel %vm924, %v860, 0
        %928 = vmatprep.subr.bf16.mxu0 0
        %929 = vmatpush1.bf16.msra.mxu0 %v926
        %930 = vmatprep.subr.bf16.mxu0 0
        %931 = vmatpush1.bf16.msra.mxu0 0
        %932 = vmatprep.subr.bf16.mxu0 0
        %933 = vmatpush1.bf16.msra.mxu0 0
        %934 = vmatprep.subr.bf16.mxu0 0
        %935 = vmatpush1.bf16.msra.mxu0 0
        %936 = vmatprep.subr.bf16.mxu0 0
        %937 = vmatpush1.bf16.msra.mxu0 0
        %938 = vmatprep.subr.bf16.mxu0 0
        %939 = vmatpush1.bf16.msra.mxu0 0
        %940 = vmatprep.subr.bf16.mxu0 0
        %941 = vmatpush1.bf16.msra.mxu0 0
        %942 = vmatprep.subr.bf16.mxu0 0
        %943 = vmatpush1.bf16.msra.mxu0 0
        %944 = vmatprep.subr.bf16.mxu0 0
        %945 = vmatpush1.bf16.msra.mxu0 0
        %946 = vmatprep.subr.bf16.mxu0 0
        %947 = vmatpush1.bf16.msra.mxu0 0
        %948 = vmatprep.subr.bf16.mxu0 0
        %949 = vmatpush1.bf16.msra.mxu0 0
        %950 = vmatprep.subr.bf16.mxu0 0
        %951 = vmatpush1.bf16.msra.mxu0 0
        %952 = vmatprep.subr.bf16.mxu0 0
        %953 = vmatpush1.bf16.msra.mxu0 0
        %954 = vmatprep.subr.bf16.mxu0 0
        %955 = vmatpush1.bf16.msra.mxu0 0
        %956 = vmatprep.subr.bf16.mxu0 0
        %957 = vmatpush1.bf16.msra.mxu0 0
        %958 = vmatprep.subr.bf16.mxu0 0
        %959 = vmatpush1.bf16.msra.mxu0 0
        %960 = vmatprep.mubr.bf16.mxu0 0
        %961 = vmatmul.mubr.bf16.gmra.mrb[0].mxu0 %v922
        %v962 = vpop.f32.mrb[0].mxu0
        %v963 = vadd.f32 0.0, %v962
        %v964 = vpop.f32.mrb[0].mxu0
        %v965 = vpop.f32.mrb[0].mxu0
        %v966 = vpop.f32.mrb[0].mxu0
        %967 = vdwg.mxu0
        %969 = vrot.lane.b32.xlu0 %v858, 96
        %v970 = vpop.permute.xlu0 %969
        %972 = vrot.lane.b32.xlu0 %v859, 96
        %v973 = vpop.permute.xlu0 %972
        %v975 = vsel %vm861, %v970, 0
        %v978 = vsel %vm861, %v973, 0
        %980 = vmatprep.subr.bf16.mxu0 0
        %981 = vmatpush1.bf16.xpose.msra.mxu0 %v978
        %982 = vmatprep.subr.bf16.mxu0 0
        %983 = vmatpush1.bf16.xpose.msra.mxu0 0
        %984 = vmatprep.subr.bf16.mxu0 0
        %985 = vmatpush1.bf16.xpose.msra.mxu0 0
        %986 = vmatprep.subr.bf16.mxu0 0
        %987 = vmatpush1.bf16.xpose.msra.mxu0 0
        %988 = vmatprep.subr.bf16.mxu0 0
        %989 = vmatpush1.bf16.xpose.msra.mxu0 0
        %990 = vmatprep.subr.bf16.mxu0 0
        %991 = vmatpush1.bf16.xpose.msra.mxu0 0
        %992 = vmatprep.subr.bf16.mxu0 0
        %993 = vmatpush1.bf16.xpose.msra.mxu0 0
        %994 = vmatprep.subr.bf16.mxu0 0
        %995 = vmatpush1.bf16.xpose.msra.mxu0 0
        %996 = vmatprep.subr.bf16.mxu0 0
        %997 = vmatpush1.bf16.xpose.msra.mxu0 0
        %998 = vmatprep.subr.bf16.mxu0 0
        %999 = vmatpush1.bf16.xpose.msra.mxu0 0
        %1000 = vmatprep.subr.bf16.mxu0 0
        %1001 = vmatpush1.bf16.xpose.msra.mxu0 0
        %1002 = vmatprep.subr.bf16.mxu0 0
        %1003 = vmatpush1.bf16.xpose.msra.mxu0 0
        %1004 = vmatprep.subr.bf16.mxu0 0
        %1005 = vmatpush1.bf16.xpose.msra.mxu0 0
        %1006 = vmatprep.subr.bf16.mxu0 0
        %1007 = vmatpush1.bf16.xpose.msra.mxu0 0
        %1008 = vmatprep.subr.bf16.mxu0 0
        %1009 = vmatpush1.bf16.xpose.msra.mxu0 0
        %1010 = vmatprep.subr.bf16.mxu0 0
        %1011 = vmatpush1.bf16.xpose.msra.mxu0 0
        %1012 = vmatprep.mubr.bf16.mxu0 0
        %1013 = vmatmul.mubr.bf16.gmra.mrb[0].mxu0 %v975
        %v1014 = vpop.f32.mrb[0].mxu0
        %v1015 = vadd.f32 0.0, %v1014
        %v1016 = vpop.f32.mrb[0].mxu0
        %v1017 = vpop.f32.mrb[0].mxu0
        %v1018 = vpop.f32.mrb[0].mxu0
        %1019 = vdwg.mxu0
        %v1020 = vsel %vm908, %v1015, -inf
        %1021 = vmax.xlane.f32.xlu0 %v1020
        %v1022 = vpop.xlane.xlu0 %1021
        %v1023 = vsub.f32 %v1015, %v1022
        %v1024 = vmul.f32 %v1023, 1.442695
        %v1025 = vpow.pop %v1024
        %v1026 = vsel %vm908, %v1025, 0.0
        %1027 = vadd.xlane.f32.xlu0 %v1026
        %v1028 = vpop.xlane.xlu0 %1027
        %v1029 = vrcp.pop %v1028
        %v1030 = vmul.f32 %v1025, %v1029
        %v1031 = vpack.c.bf16 %v1030, %v1030
        %1033 = vrot.lane.b32.xlu0 %v860, 96
        %v1034 = vpop.permute.xlu0 %1033
        %v1036 = vsel %vm908, %v1031, 0
        %v1039 = vsel %vm924, %v1034, 0
        %1041 = vmatprep.subr.bf16.mxu0 0
        %1042 = vmatpush1.bf16.msra.mxu0 %v1039
        %1043 = vmatprep.subr.bf16.mxu0 0
        %1044 = vmatpush1.bf16.msra.mxu0 0
        %1045 = vmatprep.subr.bf16.mxu0 0
        %1046 = vmatpush1.bf16.msra.mxu0 0
        %1047 = vmatprep.subr.bf16.mxu0 0
        %1048 = vmatpush1.bf16.msra.mxu0 0
        %1049 = vmatprep.subr.bf16.mxu0 0
        %1050 = vmatpush1.bf16.msra.mxu0 0
        %1051 = vmatprep.subr.bf16.mxu0 0
        %1052 = vmatpush1.bf16.msra.mxu0 0
        %1053 = vmatprep.subr.bf16.mxu0 0
        %1054 = vmatpush1.bf16.msra.mxu0 0
        %1055 = vmatprep.subr.bf16.mxu0 0
        %1056 = vmatpush1.bf16.msra.mxu0 0
        %1057 = vmatprep.subr.bf16.mxu0 0
        %1058 = vmatpush1.bf16.msra.mxu0 0
        %1059 = vmatprep.subr.bf16.mxu0 0
        %1060 = vmatpush1.bf16.msra.mxu0 0
        %1061 = vmatprep.subr.bf16.mxu0 0
        %1062 = vmatpush1.bf16.msra.mxu0 0
        %1063 = vmatprep.subr.bf16.mxu0 0
        %1064 = vmatpush1.bf16.msra.mxu0 0
        %1065 = vmatprep.subr.bf16.mxu0 0
        %1066 = vmatpush1.bf16.msra.mxu0 0
        %1067 = vmatprep.subr.bf16.mxu0 0
        %1068 = vmatpush1.bf16.msra.mxu0 0
        %1069 = vmatprep.subr.bf16.mxu0 0
        %1070 = vmatpush1.bf16.msra.mxu0 0
        %1071 = vmatprep.subr.bf16.mxu0 0
        %1072 = vmatpush1.bf16.msra.mxu0 0
        %1073 = vmatprep.mubr.bf16.mxu0 0
        %1074 = vmatmul.mubr.bf16.gmra.mrb[0].mxu0 %v1036
        %v1075 = vpop.f32.mrb[0].mxu0
        %v1076 = vadd.f32 0.0, %v1075
        %v1077 = vpop.f32.mrb[0].mxu0
        %v1078 = vpop.f32.mrb[0].mxu0
        %v1079 = vpop.f32.mrb[0].mxu0
        %1080 = vdwg.mxu0
        %1081 = vrot.lane.b32.xlu0 %v858, 64
        %v1082 = vpop.permute.xlu0 %1081
        %1083 = vrot.lane.b32.xlu0 %v859, 64
        %v1084 = vpop.permute.xlu0 %1083
        %v1086 = vsel %vm861, %v1082, 0
        %v1089 = vsel %vm861, %v1084, 0
        %1091 = vmatprep.subr.bf16.mxu0 0
        %1092 = vmatpush1.bf16.xpose.msra.mxu0 %v1089
        %1093 = vmatprep.subr.bf16.mxu0 0
        %1094 = vmatpush1.bf16.xpose.msra.mxu0 0
        %1095 = vmatprep.subr.bf16.mxu0 0
        %1096 = vmatpush1.bf16.xpose.msra.mxu0 0
        %1097 = vmatprep.subr.bf16.mxu0 0
        %1098 = vmatpush1.bf16.xpose.msra.mxu0 0
        %1099 = vmatprep.subr.bf16.mxu0 0
        %1100 = vmatpush1.bf16.xpose.msra.mxu0 0
        %1101 = vmatprep.subr.bf16.mxu0 0
        %1102 = vmatpush1.bf16.xpose.msra.mxu0 0
        %1103 = vmatprep.subr.bf16.mxu0 0
        %1104 = vmatpush1.bf16.xpose.msra.mxu0 0
        %1105 = vmatprep.subr.bf16.mxu0 0
        %1106 = vmatpush1.bf16.xpose.msra.mxu0 0
        %1107 = vmatprep.subr.bf16.mxu0 0
        %1108 = vmatpush1.bf16.xpose.msra.mxu0 0
        %1109 = vmatprep.subr.bf16.mxu0 0
        %1110 = vmatpush1.bf16.xpose.msra.mxu0 0
        %1111 = vmatprep.subr.bf16.mxu0 0
        %1112 = vmatpush1.bf16.xpose.msra.mxu0 0
        %1113 = vmatprep.subr.bf16.mxu0 0
        %1114 = vmatpush1.bf16.xpose.msra.mxu0 0
        %1115 = vmatprep.subr.bf16.mxu0 0
        %1116 = vmatpush1.bf16.xpose.msra.mxu0 0
        %1117 = vmatprep.subr.bf16.mxu0 0
        %1118 = vmatpush1.bf16.xpose.msra.mxu0 0
        %1119 = vmatprep.subr.bf16.mxu0 0
        %1120 = vmatpush1.bf16.xpose.msra.mxu0 0
        %1121 = vmatprep.subr.bf16.mxu0 0
        %1122 = vmatpush1.bf16.xpose.msra.mxu0 0
        %1123 = vmatprep.mubr.bf16.mxu0 0
        %1124 = vmatmul.mubr.bf16.gmra.mrb[0].mxu0 %v1086
        %v1125 = vpop.f32.mrb[0].mxu0
        %v1126 = vadd.f32 0.0, %v1125
        %v1127 = vpop.f32.mrb[0].mxu0
        %v1128 = vpop.f32.mrb[0].mxu0
        %v1129 = vpop.f32.mrb[0].mxu0
        %1130 = vdwg.mxu0
        %v1131 = vsel %vm908, %v1126, -inf
        %1132 = vmax.xlane.f32.xlu0 %v1131
        %v1133 = vpop.xlane.xlu0 %1132
        %v1134 = vsub.f32 %v1126, %v1133
        %v1135 = vmul.f32 %v1134, 1.442695
        %v1136 = vpow.pop %v1135
        %v1137 = vsel %vm908, %v1136, 0.0
        %1138 = vadd.xlane.f32.xlu0 %v1137
        %v1139 = vpop.xlane.xlu0 %1138
        %v1140 = vrcp.pop %v1139
        %v1141 = vmul.f32 %v1136, %v1140
        %v1142 = vpack.c.bf16 %v1141, %v1141
        %1143 = vrot.lane.b32.xlu0 %v860, 64
        %v1144 = vpop.permute.xlu0 %1143
        %v1146 = vsel %vm908, %v1142, 0
        %v1149 = vsel %vm924, %v1144, 0
        %1151 = vmatprep.subr.bf16.mxu0 0
        %1152 = vmatpush1.bf16.msra.mxu0 %v1149
        %1153 = vmatprep.subr.bf16.mxu0 0
        %1154 = vmatpush1.bf16.msra.mxu0 0
        %1155 = vmatprep.subr.bf16.mxu0 0
        %1156 = vmatpush1.bf16.msra.mxu0 0
        %1157 = vmatprep.subr.bf16.mxu0 0
        %1158 = vmatpush1.bf16.msra.mxu0 0
        %1159 = vmatprep.subr.bf16.mxu0 0
        %1160 = vmatpush1.bf16.msra.mxu0 0
        %1161 = vmatprep.subr.bf16.mxu0 0
        %1162 = vmatpush1.bf16.msra.mxu0 0
        %1163 = vmatprep.subr.bf16.mxu0 0
        %1164 = vmatpush1.bf16.msra.mxu0 0
        %1165 = vmatprep.subr.bf16.mxu0 0
        %1166 = vmatpush1.bf16.msra.mxu0 0
        %1167 = vmatprep.subr.bf16.mxu0 0
        %1168 = vmatpush1.bf16.msra.mxu0 0
        %1169 = vmatprep.subr.bf16.mxu0 0
        %1170 = vmatpush1.bf16.msra.mxu0 0
        %1171 = vmatprep.subr.bf16.mxu0 0
        %1172 = vmatpush1.bf16.msra.mxu0 0
        %1173 = vmatprep.subr.bf16.mxu0 0
        %1174 = vmatpush1.bf16.msra.mxu0 0
        %1175 = vmatprep.subr.bf16.mxu0 0
        %1176 = vmatpush1.bf16.msra.mxu0 0
        %1177 = vmatprep.subr.bf16.mxu0 0
        %1178 = vmatpush1.bf16.msra.mxu0 0
        %1179 = vmatprep.subr.bf16.mxu0 0
        %1180 = vmatpush1.bf16.msra.mxu0 0
        %1181 = vmatprep.subr.bf16.mxu0 0
        %1182 = vmatpush1.bf16.msra.mxu0 0
        %1183 = vmatprep.mubr.bf16.mxu0 0
        %1184 = vmatmul.mubr.bf16.gmra.mrb[0].mxu0 %v1146
        %v1185 = vpop.f32.mrb[0].mxu0
        %v1186 = vadd.f32 0.0, %v1185
        %v1187 = vpop.f32.mrb[0].mxu0
        %v1188 = vpop.f32.mrb[0].mxu0
        %v1189 = vpop.f32.mrb[0].mxu0
        %1190 = vdwg.mxu0
        %1191 = vrot.lane.b32.xlu0 %v858, 32
        %v1192 = vpop.permute.xlu0 %1191
        %1193 = vrot.lane.b32.xlu0 %v859, 32
        %v1194 = vpop.permute.xlu0 %1193
        %v1196 = vsel %vm861, %v1192, 0
        %v1199 = vsel %vm861, %v1194, 0
        %1201 = vmatprep.subr.bf16.mxu0 0
        %1202 = vmatpush1.bf16.xpose.msra.mxu0 %v1199
        %1203 = vmatprep.subr.bf16.mxu0 0
        %1204 = vmatpush1.bf16.xpose.msra.mxu0 0
        %1205 = vmatprep.subr.bf16.mxu0 0
        %1206 = vmatpush1.bf16.xpose.msra.mxu0 0
        %1207 = vmatprep.subr.bf16.mxu0 0
        %1208 = vmatpush1.bf16.xpose.msra.mxu0 0
        %1209 = vmatprep.subr.bf16.mxu0 0
        %1210 = vmatpush1.bf16.xpose.msra.mxu0 0
        %1211 = vmatprep.subr.bf16.mxu0 0
        %1212 = vmatpush1.bf16.xpose.msra.mxu0 0
        %1213 = vmatprep.subr.bf16.mxu0 0
        %1214 = vmatpush1.bf16.xpose.msra.mxu0 0
        %1215 = vmatprep.subr.bf16.mxu0 0
        %1216 = vmatpush1.bf16.xpose.msra.mxu0 0
        %1217 = vmatprep.subr.bf16.mxu0 0
        %1218 = vmatpush1.bf16.xpose.msra.mxu0 0
        %1219 = vmatprep.subr.bf16.mxu0 0
        %1220 = vmatpush1.bf16.xpose.msra.mxu0 0
        %1221 = vmatprep.subr.bf16.mxu0 0
        %1222 = vmatpush1.bf16.xpose.msra.mxu0 0
        %1223 = vmatprep.subr.bf16.mxu0 0
        %1224 = vmatpush1.bf16.xpose.msra.mxu0 0
        %1225 = vmatprep.subr.bf16.mxu0 0
        %1226 = vmatpush1.bf16.xpose.msra.mxu0 0
        %1227 = vmatprep.subr.bf16.mxu0 0
        %1228 = vmatpush1.bf16.xpose.msra.mxu0 0
        %1229 = vmatprep.subr.bf16.mxu0 0
        %1230 = vmatpush1.bf16.xpose.msra.mxu0 0
        %1231 = vmatprep.subr.bf16.mxu0 0
        %1232 = vmatpush1.bf16.xpose.msra.mxu0 0
        %1233 = vmatprep.mubr.bf16.mxu0 0
        %1234 = vmatmul.mubr.bf16.gmra.mrb[0].mxu0 %v1196
        %v1235 = vpop.f32.mrb[0].mxu0
        %v1236 = vadd.f32 0.0, %v1235
        %v1237 = vpop.f32.mrb[0].mxu0
        %v1238 = vpop.f32.mrb[0].mxu0
        %v1239 = vpop.f32.mrb[0].mxu0
        %1240 = vdwg.mxu0
        %v1241 = vsel %vm908, %v1236, -inf
        %1242 = vmax.xlane.f32.xlu0 %v1241
        %v1243 = vpop.xlane.xlu0 %1242
        %v1244 = vsub.f32 %v1236, %v1243
        %v1245 = vmul.f32 %v1244, 1.442695
        %v1246 = vpow.pop %v1245
        %v1247 = vsel %vm908, %v1246, 0.0
        %1248 = vadd.xlane.f32.xlu0 %v1247
        %v1249 = vpop.xlane.xlu0 %1248
        %v1250 = vrcp.pop %v1249
        %v1251 = vmul.f32 %v1246, %v1250
        %v1252 = vpack.c.bf16 %v1251, %v1251
        %1253 = vrot.lane.b32.xlu0 %v860, 32
        %v1254 = vpop.permute.xlu0 %1253
        %v1256 = vsel %vm908, %v1252, 0
        %v1259 = vsel %vm924, %v1254, 0
        %1261 = vmatprep.subr.bf16.mxu0 0
        %1262 = vmatpush1.bf16.msra.mxu0 %v1259
        %1263 = vmatprep.subr.bf16.mxu0 0
        %1264 = vmatpush1.bf16.msra.mxu0 0
        %1265 = vmatprep.subr.bf16.mxu0 0
        %1266 = vmatpush1.bf16.msra.mxu0 0
        %1267 = vmatprep.subr.bf16.mxu0 0
        %1268 = vmatpush1.bf16.msra.mxu0 0
        %1269 = vmatprep.subr.bf16.mxu0 0
        %1270 = vmatpush1.bf16.msra.mxu0 0
        %1271 = vmatprep.subr.bf16.mxu0 0
        %1272 = vmatpush1.bf16.msra.mxu0 0
        %1273 = vmatprep.subr.bf16.mxu0 0
        %1274 = vmatpush1.bf16.msra.mxu0 0
        %1275 = vmatprep.subr.bf16.mxu0 0
        %1276 = vmatpush1.bf16.msra.mxu0 0
        %1277 = vmatprep.subr.bf16.mxu0 0
        %1278 = vmatpush1.bf16.msra.mxu0 0
        %1279 = vmatprep.subr.bf16.mxu0 0
        %1280 = vmatpush1.bf16.msra.mxu0 0
        %1281 = vmatprep.subr.bf16.mxu0 0
        %1282 = vmatpush1.bf16.msra.mxu0 0
        %1283 = vmatprep.subr.bf16.mxu0 0
        %1284 = vmatpush1.bf16.msra.mxu0 0
        %1285 = vmatprep.subr.bf16.mxu0 0
        %1286 = vmatpush1.bf16.msra.mxu0 0
        %1287 = vmatprep.subr.bf16.mxu0 0
        %1288 = vmatpush1.bf16.msra.mxu0 0
        %1289 = vmatprep.subr.bf16.mxu0 0
        %1290 = vmatpush1.bf16.msra.mxu0 0
        %1291 = vmatprep.subr.bf16.mxu0 0
        %1292 = vmatpush1.bf16.msra.mxu0 0
        %1293 = vmatprep.mubr.bf16.mxu0 0
        %1294 = vmatmul.mubr.bf16.gmra.mrb[0].mxu0 %v1256
        %v1295 = vpop.f32.mrb[0].mxu0
        %v1296 = vadd.f32 0.0, %v1295
        %v1297 = vpop.f32.mrb[0].mxu0
        %v1298 = vpop.f32.mrb[0].mxu0
        %v1299 = vpop.f32.mrb[0].mxu0
        %1300 = vdwg.mxu0
        %1302 = vrot.lane.b32.xlu0 %v1076, 32
        %v1303 = vpop.permute.xlu0 %1302
        %1306 = vrot.lane.b32.xlu0 %v1186, 64
        %v1307 = vpop.permute.xlu0 %1306
        %1310 = vrot.lane.b32.xlu0 %v1296, 96
        %v1311 = vpop.permute.xlu0 %1310
        %v1313 = vsel %vm861, %v963, %v1303
        %vm1314 = vcmask 523264
        %v1315 = vsel %vm1314, %v1313, %v1307
        %vm1316 = vcmask 785408
        %v1317 = vsel %vm1316, %v1315, %v1311
        %v1318 = vpack.c.bf16 %v1317, %v1317
        %v1319 = vld [vmem:[#allocation7] sm:$0xf]
        %v1320 = vld [vmem:[#allocation7 + $0x4] sm:$0xf]
        %v1321 = vld [vmem:[#allocation7 + $0x8] sm:$0xf]
        %v1322 = vld [vmem:[#allocation7 + $0xc] sm:$0xf]
        %v1323 = vld [vmem:[#allocation7 + $0x10] sm:$0xf]
        %v1324 = vld [vmem:[#allocation7 + $0x14] sm:$0xf]
        %v1325 = vld [vmem:[#allocation7 + $0x18] sm:$0xf]
        %v1326 = vld [vmem:[#allocation7 + $0x1c] sm:$0xf]
        %v1327 = vld [vmem:[#allocation7 + $0x20] sm:$0xf]
        %v1328 = vld [vmem:[#allocation7 + $0x24] sm:$0xf]
        %v1329 = vld [vmem:[#allocation7 + $0x28] sm:$0xf]
        %v1330 = vld [vmem:[#allocation7 + $0x2c] sm:$0xf]
        %v1331 = vld [vmem:[#allocation7 + $0x30] sm:$0xf]
        %v1332 = vld [vmem:[#allocation7 + $0x34] sm:$0xf]
        %v1333 = vld [vmem:[#allocation7 + $0x38] sm:$0xf]
        %v1334 = vld [vmem:[#allocation7 + $0x3c] sm:$0xf]
        %v1335 = vld [vmem:[%s4] sm:$0x1]
        %v1337 = vlaneseq
        %v1338 = vshrl.u32 %v1337, 7
        %v1339 = vsub.s32 0, %v1338
        %v1340 = vrot.slane %v1335, %v1339
        %v1358 = vunpack.c.l.b16 %v1319
        %v1359 = vunpack.c.l.b16 %v1320
        %v1360 = vunpack.c.l.b16 %v1321
        %v1361 = vunpack.c.l.b16 %v1322
        %v1362 = vunpack.c.l.b16 %v1323
        %v1363 = vunpack.c.l.b16 %v1324
        %v1364 = vunpack.c.l.b16 %v1325
        %v1365 = vunpack.c.l.b16 %v1326
        %v1366 = vunpack.c.l.b16 %v1327
        %v1367 = vunpack.c.l.b16 %v1328
        %v1368 = vunpack.c.l.b16 %v1329
        %v1369 = vunpack.c.l.b16 %v1330
        %v1370 = vunpack.c.l.b16 %v1331
        %v1371 = vunpack.c.l.b16 %v1332
        %v1372 = vunpack.c.l.b16 %v1333
        %v1373 = vunpack.c.l.b16 %v1334
        %v1374 = vpack.c.b16 %v1359, %v1358
        %v1375 = vpack.c.b16 %v1361, %v1360
        %v1376 = vpack.c.b16 %v1363, %v1362
        %v1377 = vpack.c.b16 %v1365, %v1364
        %v1378 = vpack.c.b16 %v1367, %v1366
        %v1379 = vpack.c.b16 %v1369, %v1368
        %v1380 = vpack.c.b16 %v1371, %v1370
        %v1381 = vpack.c.b16 %v1373, %v1372
        %1390 = vmatprep.subr.bf16.mxu0 0
        %1391 = vmatpush1.bf16.msra.mxu0 %v1374
        %1392 = vmatprep.subr.bf16.mxu0 0
        %1393 = vmatpush1.bf16.msra.mxu0 %v1375
        %1394 = vmatprep.subr.bf16.mxu0 0
        %1395 = vmatpush1.bf16.msra.mxu0 %v1376
        %1396 = vmatprep.subr.bf16.mxu0 0
        %1397 = vmatpush1.bf16.msra.mxu0 %v1377
        %1398 = vmatprep.subr.bf16.mxu0 0
        %1399 = vmatpush1.bf16.msra.mxu0 %v1378
        %1400 = vmatprep.subr.bf16.mxu0 0
        %1401 = vmatpush1.bf16.msra.mxu0 %v1379
        %1402 = vmatprep.subr.bf16.mxu0 0
        %1403 = vmatpush1.bf16.msra.mxu0 %v1380
        %1404 = vmatprep.subr.bf16.mxu0 0
        %1405 = vmatpush1.bf16.msra.mxu0 %v1381
        %1406 = vmatprep.subr.bf16.mxu0 0
        %1407 = vmatpush1.bf16.msra.mxu0 0
        %1408 = vmatprep.subr.bf16.mxu0 0
        %1409 = vmatpush1.bf16.msra.mxu0 0
        %1410 = vmatprep.subr.bf16.mxu0 0
        %1411 = vmatpush1.bf16.msra.mxu0 0
        %1412 = vmatprep.subr.bf16.mxu0 0
        %1413 = vmatpush1.bf16.msra.mxu0 0
        %1414 = vmatprep.subr.bf16.mxu0 0
        %1415 = vmatpush1.bf16.msra.mxu0 0
        %1416 = vmatprep.subr.bf16.mxu0 0
        %1417 = vmatpush1.bf16.msra.mxu0 0
        %1418 = vmatprep.subr.bf16.mxu0 0
        %1419 = vmatpush1.bf16.msra.mxu0 0
        %1420 = vmatprep.subr.bf16.mxu0 0
        %1421 = vmatpush1.bf16.msra.mxu0 0
        %1422 = vmatprep.mubr.bf16.mxu0 0
        %1423 = vmatmul.mubr.bf16.gmra.mrb[0].mxu0 %v1318
        %v1424 = vpop.f32.mrb[0].mxu0
        %v1425 = vadd.f32 %v1340, %v1424
        %v1426 = vpop.f32.mrb[0].mxu0
        %v1427 = vpop.f32.mrb[0].mxu0
        %v1428 = vpop.f32.mrb[0].mxu0
        %1429 = vdwg.mxu0
        %v1430 = vadd.f32 %v599, %v1425
        %1431 = vadd.xlane.f32.xlu0 %v1430
        %v1432 = vpop.xlane.xlu0 %1431
        %v1433 = vrcp.pop 128.0
        %v1434 = vmul.f32 %v1432, %v1433
        %v1435 = vsub.f32 %v1430, %v1434
        %v1436 = vmul.f32 %v1435, %v1435
        %1437 = vadd.xlane.f32.xlu0 %v1436
        %v1438 = vpop.xlane.xlu0 %1437
        %v1439 = vmul.f32 %v1438, %v1433
        %v1440 = vadd.f32 %v1439, 1e-05
        %v1441 = vrsqrt.pop %v1440
        %v1442 = vmul.f32 %v1435, %v1441
        %v1443 = vld [vmem:[%s5] sm:$0x1]
        %v1445 = vlaneseq
        %v1446 = vshrl.u32 %v1445, 7
        %v1447 = vsub.s32 0, %v1446
        %v1448 = vrot.slane %v1443, %v1447
        %v1450 = vmul.f32 %v1442, %v1448
        %v1451 = vld [vmem:[%s6] sm:$0x1]
        %v1453 = vlaneseq
        %v1454 = vshrl.u32 %v1453, 7
        %v1455 = vsub.s32 0, %v1454
        %v1456 = vrot.slane %v1451, %v1455
        %v1458 = vadd.f32 %v1450, %v1456
        %v1459 = vpack.c.bf16 %v1458, %v1458
        %v1460 = vld [vmem:[#allocation8] sm:$0xff]
        %v1461 = vld [vmem:[#allocation8 + $0x8] sm:$0xff]
        %v1462 = vld [vmem:[#allocation8 + $0x10] sm:$0xff]
        %v1463 = vld [vmem:[#allocation8 + $0x18] sm:$0xff]
        %v1464 = vld [vmem:[#allocation8 + $0x20] sm:$0xff]
        %v1465 = vld [vmem:[#allocation8 + $0x28] sm:$0xff]
        %v1466 = vld [vmem:[#allocation8 + $0x30] sm:$0xff]
        %v1467 = vld [vmem:[#allocation8 + $0x38] sm:$0xff]
        %v1468 = vld [vmem:[#allocation8 + $0x40] sm:$0xff]
        %v1469 = vld [vmem:[#allocation8 + $0x48] sm:$0xff]
        %v1470 = vld [vmem:[#allocation8 + $0x50] sm:$0xff]
        %v1471 = vld [vmem:[#allocation8 + $0x58] sm:$0xff]
        %v1472 = vld [vmem:[#allocation8 + $0x60] sm:$0xff]
        %v1473 = vld [vmem:[#allocation8 + $0x68] sm:$0xff]
        %v1474 = vld [vmem:[#allocation8 + $0x70] sm:$0xff]
        %v1475 = vld [vmem:[#allocation8 + $0x78] sm:$0xff]
        %v1476 = vld [vmem:[#allocation8 + $0x80] sm:$0xff]
        %v1477 = vld [vmem:[#allocation8 + $0x88] sm:$0xff]
        %v1478 = vld [vmem:[#allocation8 + $0x90] sm:$0xff]
        %v1479 = vld [vmem:[#allocation8 + $0x98] sm:$0xff]
        %v1480 = vld [vmem:[#allocation8 + $0xa0] sm:$0xff]
        %v1481 = vld [vmem:[#allocation8 + $0xa8] sm:$0xff]
        %v1482 = vld [vmem:[#allocation8 + $0xb0] sm:$0xff]
        %v1483 = vld [vmem:[#allocation8 + $0xb8] sm:$0xff]
        %v1484 = vld [vmem:[#allocation8 + $0xc0] sm:$0xff]
        %v1485 = vld [vmem:[#allocation8 + $0xc8] sm:$0xff]
        %v1486 = vld [vmem:[#allocation8 + $0xd0] sm:$0xff]
        %v1487 = vld [vmem:[#allocation8 + $0xd8] sm:$0xff]
        %v1488 = vld [vmem:[#allocation8 + $0xe0] sm:$0xff]
        %v1489 = vld [vmem:[#allocation8 + $0xe8] sm:$0xff]
        %v1490 = vld [vmem:[#allocation8 + $0xf0] sm:$0xff]
        %v1491 = vld [vmem:[#allocation8 + $0xf8] sm:$0xff]
        %v1492 = vld [vmem:[#allocation8 + $0x100] sm:$0xff]
        %v1493 = vld [vmem:[#allocation8 + $0x108] sm:$0xff]
        %v1494 = vld [vmem:[#allocation8 + $0x110] sm:$0xff]
        %v1495 = vld [vmem:[#allocation8 + $0x118] sm:$0xff]
        %v1496 = vld [vmem:[#allocation8 + $0x120] sm:$0xff]
        %v1497 = vld [vmem:[#allocation8 + $0x128] sm:$0xff]
        %v1498 = vld [vmem:[#allocation8 + $0x130] sm:$0xff]
        %v1499 = vld [vmem:[#allocation8 + $0x138] sm:$0xff]
        %v1500 = vld [vmem:[#allocation8 + $0x140] sm:$0xff]
        %v1501 = vld [vmem:[#allocation8 + $0x148] sm:$0xff]
        %v1502 = vld [vmem:[#allocation8 + $0x150] sm:$0xff]
        %v1503 = vld [vmem:[#allocation8 + $0x158] sm:$0xff]
        %v1504 = vld [vmem:[#allocation8 + $0x160] sm:$0xff]
        %v1505 = vld [vmem:[#allocation8 + $0x168] sm:$0xff]
        %v1506 = vld [vmem:[#allocation8 + $0x170] sm:$0xff]
        %v1507 = vld [vmem:[#allocation8 + $0x178] sm:$0xff]
        %v1508 = vld [vmem:[#allocation8 + $0x180] sm:$0xff]
        %v1509 = vld [vmem:[#allocation8 + $0x188] sm:$0xff]
        %v1510 = vld [vmem:[#allocation8 + $0x190] sm:$0xff]
        %v1511 = vld [vmem:[#allocation8 + $0x198] sm:$0xff]
        %v1512 = vld [vmem:[#allocation8 + $0x1a0] sm:$0xff]
        %v1513 = vld [vmem:[#allocation8 + $0x1a8] sm:$0xff]
        %v1514 = vld [vmem:[#allocation8 + $0x1b0] sm:$0xff]
        %v1515 = vld [vmem:[#allocation8 + $0x1b8] sm:$0xff]
        %v1516 = vld [vmem:[#allocation8 + $0x1c0] sm:$0xff]
        %v1517 = vld [vmem:[#allocation8 + $0x1c8] sm:$0xff]
        %v1518 = vld [vmem:[#allocation8 + $0x1d0] sm:$0xff]
        %v1519 = vld [vmem:[#allocation8 + $0x1d8] sm:$0xff]
        %v1520 = vld [vmem:[#allocation8 + $0x1e0] sm:$0xff]
        %v1521 = vld [vmem:[#allocation8 + $0x1e8] sm:$0xff]
        %v1522 = vld [vmem:[#allocation8 + $0x1f0] sm:$0xff]
        %v1523 = vld [vmem:[#allocation8 + $0x1f8] sm:$0xff]
        %v1524 = vld [vmem:[#allocation8 + $0x200] sm:$0xff]
        %v1525 = vld [vmem:[#allocation8 + $0x208] sm:$0xff]
        %v1526 = vld [vmem:[#allocation8 + $0x210] sm:$0xff]
        %v1527 = vld [vmem:[#allocation8 + $0x218] sm:$0xff]
        %v1528 = vld [vmem:[#allocation8 + $0x220] sm:$0xff]
        %v1529 = vld [vmem:[#allocation8 + $0x228] sm:$0xff]
        %v1530 = vld [vmem:[#allocation8 + $0x230] sm:$0xff]
        %v1531 = vld [vmem:[#allocation8 + $0x238] sm:$0xff]
        %v1532 = vld [vmem:[#allocation8 + $0x240] sm:$0xff]
        %v1533 = vld [vmem:[#allocation8 + $0x248] sm:$0xff]
        %v1534 = vld [vmem:[#allocation8 + $0x250] sm:$0xff]
        %v1535 = vld [vmem:[#allocation8 + $0x258] sm:$0xff]
        %v1536 = vld [vmem:[#allocation8 + $0x260] sm:$0xff]
        %v1537 = vld [vmem:[#allocation8 + $0x268] sm:$0xff]
        %v1538 = vld [vmem:[#allocation8 + $0x270] sm:$0xff]
        %v1539 = vld [vmem:[#allocation8 + $0x278] sm:$0xff]
        %v1540 = vld [vmem:[#allocation8 + $0x280] sm:$0xff]
        %v1541 = vld [vmem:[#allocation8 + $0x288] sm:$0xff]
        %v1542 = vld [vmem:[#allocation8 + $0x290] sm:$0xff]
        %v1543 = vld [vmem:[#allocation8 + $0x298] sm:$0xff]
        %v1544 = vld [vmem:[#allocation8 + $0x2a0] sm:$0xff]
        %v1545 = vld [vmem:[#allocation8 + $0x2a8] sm:$0xff]
        %v1546 = vld [vmem:[#allocation8 + $0x2b0] sm:$0xff]
        %v1547 = vld [vmem:[#allocation8 + $0x2b8] sm:$0xff]
        %v1548 = vld [vmem:[#allocation8 + $0x2c0] sm:$0xff]
        %v1549 = vld [vmem:[#allocation8 + $0x2c8] sm:$0xff]
        %v1550 = vld [vmem:[#allocation8 + $0x2d0] sm:$0xff]
        %v1551 = vld [vmem:[#allocation8 + $0x2d8] sm:$0xff]
        %v1552 = vld [vmem:[#allocation8 + $0x2e0] sm:$0xff]
        %v1553 = vld [vmem:[#allocation8 + $0x2e8] sm:$0xff]
        %v1554 = vld [vmem:[#allocation8 + $0x2f0] sm:$0xff]
        %v1555 = vld [vmem:[#allocation8 + $0x2f8] sm:$0xff]
        %v1556 = vld [vmem:[#allocation8 + $0x300] sm:$0xff]
        %v1557 = vld [vmem:[#allocation8 + $0x308] sm:$0xff]
        %v1558 = vld [vmem:[#allocation8 + $0x310] sm:$0xff]
        %v1559 = vld [vmem:[#allocation8 + $0x318] sm:$0xff]
        %v1560 = vld [vmem:[#allocation8 + $0x320] sm:$0xff]
        %v1561 = vld [vmem:[#allocation8 + $0x328] sm:$0xff]
        %v1562 = vld [vmem:[#allocation8 + $0x330] sm:$0xff]
        %v1563 = vld [vmem:[#allocation8 + $0x338] sm:$0xff]
        %v1564 = vld [vmem:[#allocation8 + $0x340] sm:$0xff]
        %v1565 = vld [vmem:[#allocation8 + $0x348] sm:$0xff]
        %v1566 = vld [vmem:[#allocation8 + $0x350] sm:$0xff]
        %v1567 = vld [vmem:[#allocation8 + $0x358] sm:$0xff]
        %v1568 = vld [vmem:[#allocation8 + $0x360] sm:$0xff]
        %v1569 = vld [vmem:[#allocation8 + $0x368] sm:$0xff]
        %v1570 = vld [vmem:[#allocation8 + $0x370] sm:$0xff]
        %v1571 = vld [vmem:[#allocation8 + $0x378] sm:$0xff]
        %v1572 = vld [vmem:[#allocation8 + $0x380] sm:$0xff]
        %v1573 = vld [vmem:[#allocation8 + $0x388] sm:$0xff]
        %v1574 = vld [vmem:[#allocation8 + $0x390] sm:$0xff]
        %v1575 = vld [vmem:[#allocation8 + $0x398] sm:$0xff]
        %v1576 = vld [vmem:[#allocation8 + $0x3a0] sm:$0xff]
        %v1577 = vld [vmem:[#allocation8 + $0x3a8] sm:$0xff]
        %v1578 = vld [vmem:[#allocation8 + $0x3b0] sm:$0xff]
        %v1579 = vld [vmem:[#allocation8 + $0x3b8] sm:$0xff]
        %v1580 = vld [vmem:[#allocation8 + $0x3c0] sm:$0xff]
        %v1581 = vld [vmem:[#allocation8 + $0x3c8] sm:$0xff]
        %v1582 = vld [vmem:[#allocation8 + $0x3d0] sm:$0xff]
        %v1583 = vld [vmem:[#allocation8 + $0x3d8] sm:$0xff]
        %v1584 = vld [vmem:[#allocation8 + $0x3e0] sm:$0xff]
        %v1585 = vld [vmem:[#allocation8 + $0x3e8] sm:$0xff]
        %v1586 = vld [vmem:[#allocation8 + $0x3f0] sm:$0xff]
        %v1587 = vld [vmem:[#allocation8 + $0x3f8] sm:$0xff]
        %v1588 = vld [vmem:[#allocation10] sm:$0xff]
        %v1589 = vld [vmem:[#allocation10 + $0x8] sm:$0xff]
        %v1592 = vlaneseq
        %v1593 = vshrl.u32 %v1592, 7
        %v1594 = vsub.s32 0, %v1593
        %v1595 = vrot.slane %v1588, %v1594
        %v1596 = vlaneseq
        %v1597 = vshrl.u32 %v1596, 7
        %v1598 = vsub.s32 1, %v1597
        %v1599 = vrot.slane %v1588, %v1598
        %v1600 = vlaneseq
        %v1601 = vshrl.u32 %v1600, 7
        %v1602 = vsub.s32 2, %v1601
        %v1603 = vrot.slane %v1588, %v1602
        %v1604 = vlaneseq
        %v1605 = vshrl.u32 %v1604, 7
        %v1606 = vsub.s32 3, %v1605
        %v1607 = vrot.slane %v1588, %v1606
        %v1608 = vlaneseq
        %v1609 = vshrl.u32 %v1608, 7
        %v1610 = vsub.s32 4, %v1609
        %v1611 = vrot.slane %v1588, %v1610
        %v1612 = vlaneseq
        %v1613 = vshrl.u32 %v1612, 7
        %v1614 = vsub.s32 5, %v1613
        %v1615 = vrot.slane %v1588, %v1614
        %v1616 = vlaneseq
        %v1617 = vshrl.u32 %v1616, 7
        %v1618 = vsub.s32 6, %v1617
        %v1619 = vrot.slane %v1588, %v1618
        %v1620 = vlaneseq
        %v1621 = vshrl.u32 %v1620, 7
        %v1622 = vsub.s32 7, %v1621
        %v1623 = vrot.slane %v1588, %v1622
        %v1624 = vlaneseq
        %v1625 = vshrl.u32 %v1624, 7
        %v1626 = vsub.s32 0, %v1625
        %v1627 = vrot.slane %v1589, %v1626
        %v1628 = vlaneseq
        %v1629 = vshrl.u32 %v1628, 7
        %v1630 = vsub.s32 1, %v1629
        %v1631 = vrot.slane %v1589, %v1630
        %v1632 = vlaneseq
        %v1633 = vshrl.u32 %v1632, 7
        %v1634 = vsub.s32 2, %v1633
        %v1635 = vrot.slane %v1589, %v1634
        %v1636 = vlaneseq
        %v1637 = vshrl.u32 %v1636, 7
        %v1638 = vsub.s32 3, %v1637
        %v1639 = vrot.slane %v1589, %v1638
        %v1640 = vlaneseq
        %v1641 = vshrl.u32 %v1640, 7
        %v1642 = vsub.s32 4, %v1641
        %v1643 = vrot.slane %v1589, %v1642
        %v1644 = vlaneseq
        %v1645 = vshrl.u32 %v1644, 7
        %v1646 = vsub.s32 5, %v1645
        %v1647 = vrot.slane %v1589, %v1646
        %v1648 = vlaneseq
        %v1649 = vshrl.u32 %v1648, 7
        %v1650 = vsub.s32 6, %v1649
        %v1651 = vrot.slane %v1589, %v1650
        %v1652 = vlaneseq
        %v1653 = vshrl.u32 %v1652, 7
        %v1654 = vsub.s32 7, %v1653
        %v1655 = vrot.slane %v1589, %v1654
        %v1800 = vunpack.c.l.b16 %v1460
        %v1801 = vunpack.c.h.b16 %v1460
        %v1802 = vunpack.c.l.b16 %v1461
        %v1803 = vunpack.c.h.b16 %v1461
        %v1804 = vunpack.c.l.b16 %v1462
        %v1805 = vunpack.c.h.b16 %v1462
        %v1806 = vunpack.c.l.b16 %v1463
        %v1807 = vunpack.c.h.b16 %v1463
        %v1808 = vunpack.c.l.b16 %v1464
        %v1809 = vunpack.c.h.b16 %v1464
        %v1810 = vunpack.c.l.b16 %v1465
        %v1811 = vunpack.c.h.b16 %v1465
        %v1812 = vunpack.c.l.b16 %v1466
        %v1813 = vunpack.c.h.b16 %v1466
        %v1814 = vunpack.c.l.b16 %v1467
        %v1815 = vunpack.c.h.b16 %v1467
        %v1816 = vunpack.c.l.b16 %v1468
        %v1817 = vunpack.c.h.b16 %v1468
        %v1818 = vunpack.c.l.b16 %v1469
        %v1819 = vunpack.c.h.b16 %v1469
        %v1820 = vunpack.c.l.b16 %v1470
        %v1821 = vunpack.c.h.b16 %v1470
        %v1822 = vunpack.c.l.b16 %v1471
        %v1823 = vunpack.c.h.b16 %v1471
        %v1824 = vunpack.c.l.b16 %v1472
        %v1825 = vunpack.c.h.b16 %v1472
        %v1826 = vunpack.c.l.b16 %v1473
        %v1827 = vunpack.c.h.b16 %v1473
        %v1828 = vunpack.c.l.b16 %v1474
        %v1829 = vunpack.c.h.b16 %v1474
        %v1830 = vunpack.c.l.b16 %v1475
        %v1831 = vunpack.c.h.b16 %v1475
        %v1832 = vunpack.c.l.b16 %v1476
        %v1833 = vunpack.c.h.b16 %v1476
        %v1834 = vunpack.c.l.b16 %v1477
        %v1835 = vunpack.c.h.b16 %v1477
        %v1836 = vunpack.c.l.b16 %v1478
        %v1837 = vunpack.c.h.b16 %v1478
        %v1838 = vunpack.c.l.b16 %v1479
        %v1839 = vunpack.c.h.b16 %v1479
        %v1840 = vunpack.c.l.b16 %v1480
        %v1841 = vunpack.c.h.b16 %v1480
        %v1842 = vunpack.c.l.b16 %v1481
        %v1843 = vunpack.c.h.b16 %v1481
        %v1844 = vunpack.c.l.b16 %v1482
        %v1845 = vunpack.c.h.b16 %v1482
        %v1846 = vunpack.c.l.b16 %v1483
        %v1847 = vunpack.c.h.b16 %v1483
        %v1848 = vunpack.c.l.b16 %v1484
        %v1849 = vunpack.c.h.b16 %v1484
        %v1850 = vunpack.c.l.b16 %v1485
        %v1851 = vunpack.c.h.b16 %v1485
        %v1852 = vunpack.c.l.b16 %v1486
        %v1853 = vunpack.c.h.b16 %v1486
        %v1854 = vunpack.c.l.b16 %v1487
        %v1855 = vunpack.c.h.b16 %v1487
        %v1856 = vunpack.c.l.b16 %v1488
        %v1857 = vunpack.c.h.b16 %v1488
        %v1858 = vunpack.c.l.b16 %v1489
        %v1859 = vunpack.c.h.b16 %v1489
        %v1860 = vunpack.c.l.b16 %v1490
        %v1861 = vunpack.c.h.b16 %v1490
        %v1862 = vunpack.c.l.b16 %v1491
        %v1863 = vunpack.c.h.b16 %v1491
        %v1864 = vunpack.c.l.b16 %v1492
        %v1865 = vunpack.c.h.b16 %v1492
        %v1866 = vunpack.c.l.b16 %v1493
        %v1867 = vunpack.c.h.b16 %v1493
        %v1868 = vunpack.c.l.b16 %v1494
        %v1869 = vunpack.c.h.b16 %v1494
        %v1870 = vunpack.c.l.b16 %v1495
        %v1871 = vunpack.c.h.b16 %v1495
        %v1872 = vunpack.c.l.b16 %v1496
        %v1873 = vunpack.c.h.b16 %v1496
        %v1874 = vunpack.c.l.b16 %v1497
        %v1875 = vunpack.c.h.b16 %v1497
        %v1876 = vunpack.c.l.b16 %v1498
        %v1877 = vunpack.c.h.b16 %v1498
        %v1878 = vunpack.c.l.b16 %v1499
        %v1879 = vunpack.c.h.b16 %v1499
        %v1880 = vunpack.c.l.b16 %v1500
        %v1881 = vunpack.c.h.b16 %v1500
        %v1882 = vunpack.c.l.b16 %v1501
        %v1883 = vunpack.c.h.b16 %v1501
        %v1884 = vunpack.c.l.b16 %v1502
        %v1885 = vunpack.c.h.b16 %v1502
        %v1886 = vunpack.c.l.b16 %v1503
        %v1887 = vunpack.c.h.b16 %v1503
        %v1888 = vunpack.c.l.b16 %v1504
        %v1889 = vunpack.c.h.b16 %v1504
        %v1890 = vunpack.c.l.b16 %v1505
        %v1891 = vunpack.c.h.b16 %v1505
        %v1892 = vunpack.c.l.b16 %v1506
        %v1893 = vunpack.c.h.b16 %v1506
        %v1894 = vunpack.c.l.b16 %v1507
        %v1895 = vunpack.c.h.b16 %v1507
        %v1896 = vunpack.c.l.b16 %v1508
        %v1897 = vunpack.c.h.b16 %v1508
        %v1898 = vunpack.c.l.b16 %v1509
        %v1899 = vunpack.c.h.b16 %v1509
        %v1900 = vunpack.c.l.b16 %v1510
        %v1901 = vunpack.c.h.b16 %v1510
        %v1902 = vunpack.c.l.b16 %v1511
        %v1903 = vunpack.c.h.b16 %v1511
        %v1904 = vunpack.c.l.b16 %v1512
        %v1905 = vunpack.c.h.b16 %v1512
        %v1906 = vunpack.c.l.b16 %v1513
        %v1907 = vunpack.c.h.b16 %v1513
        %v1908 = vunpack.c.l.b16 %v1514
        %v1909 = vunpack.c.h.b16 %v1514
        %v1910 = vunpack.c.l.b16 %v1515
        %v1911 = vunpack.c.h.b16 %v1515
        %v1912 = vunpack.c.l.b16 %v1516
        %v1913 = vunpack.c.h.b16 %v1516
        %v1914 = vunpack.c.l.b16 %v1517
        %v1915 = vunpack.c.h.b16 %v1517
        %v1916 = vunpack.c.l.b16 %v1518
        %v1917 = vunpack.c.h.b16 %v1518
        %v1918 = vunpack.c.l.b16 %v1519
        %v1919 = vunpack.c.h.b16 %v1519
        %v1920 = vunpack.c.l.b16 %v1520
        %v1921 = vunpack.c.h.b16 %v1520
        %v1922 = vunpack.c.l.b16 %v1521
        %v1923 = vunpack.c.h.b16 %v1521
        %v1924 = vunpack.c.l.b16 %v1522
        %v1925 = vunpack.c.h.b16 %v1522
        %v1926 = vunpack.c.l.b16 %v1523
        %v1927 = vunpack.c.h.b16 %v1523
        %v1928 = vunpack.c.l.b16 %v1524
        %v1929 = vunpack.c.h.b16 %v1524
        %v1930 = vunpack.c.l.b16 %v1525
        %v1931 = vunpack.c.h.b16 %v1525
        %v1932 = vunpack.c.l.b16 %v1526
        %v1933 = vunpack.c.h.b16 %v1526
        %v1934 = vunpack.c.l.b16 %v1527
        %v1935 = vunpack.c.h.b16 %v1527
        %v1936 = vunpack.c.l.b16 %v1528
        %v1937 = vunpack.c.h.b16 %v1528
        %v1938 = vunpack.c.l.b16 %v1529
        %v1939 = vunpack.c.h.b16 %v1529
        %v1940 = vunpack.c.l.b16 %v1530
        %v1941 = vunpack.c.h.b16 %v1530
        %v1942 = vunpack.c.l.b16 %v1531
        %v1943 = vunpack.c.h.b16 %v1531
        %v1944 = vunpack.c.l.b16 %v1532
        %v1945 = vunpack.c.h.b16 %v1532
        %v1946 = vunpack.c.l.b16 %v1533
        %v1947 = vunpack.c.h.b16 %v1533
        %v1948 = vunpack.c.l.b16 %v1534
        %v1949 = vunpack.c.h.b16 %v1534
        %v1950 = vunpack.c.l.b16 %v1535
        %v1951 = vunpack.c.h.b16 %v1535
        %v1952 = vunpack.c.l.b16 %v1536
        %v1953 = vunpack.c.h.b16 %v1536
        %v1954 = vunpack.c.l.b16 %v1537
        %v1955 = vunpack.c.h.b16 %v1537
        %v1956 = vunpack.c.l.b16 %v1538
        %v1957 = vunpack.c.h.b16 %v1538
        %v1958 = vunpack.c.l.b16 %v1539
        %v1959 = vunpack.c.h.b16 %v1539
        %v1960 = vunpack.c.l.b16 %v1540
        %v1961 = vunpack.c.h.b16 %v1540
        %v1962 = vunpack.c.l.b16 %v1541
        %v1963 = vunpack.c.h.b16 %v1541
        %v1964 = vunpack.c.l.b16 %v1542
        %v1965 = vunpack.c.h.b16 %v1542
        %v1966 = vunpack.c.l.b16 %v1543
        %v1967 = vunpack.c.h.b16 %v1543
        %v1968 = vunpack.c.l.b16 %v1544
        %v1969 = vunpack.c.h.b16 %v1544
        %v1970 = vunpack.c.l.b16 %v1545
        %v1971 = vunpack.c.h.b16 %v1545
        %v1972 = vunpack.c.l.b16 %v1546
        %v1973 = vunpack.c.h.b16 %v1546
        %v1974 = vunpack.c.l.b16 %v1547
        %v1975 = vunpack.c.h.b16 %v1547
        %v1976 = vunpack.c.l.b16 %v1548
        %v1977 = vunpack.c.h.b16 %v1548
        %v1978 = vunpack.c.l.b16 %v1549
        %v1979 = vunpack.c.h.b16 %v1549
        %v1980 = vunpack.c.l.b16 %v1550
        %v1981 = vunpack.c.h.b16 %v1550
        %v1982 = vunpack.c.l.b16 %v1551
        %v1983 = vunpack.c.h.b16 %v1551
        %v1984 = vunpack.c.l.b16 %v1552
        %v1985 = vunpack.c.h.b16 %v1552
        %v1986 = vunpack.c.l.b16 %v1553
        %v1987 = vunpack.c.h.b16 %v1553
        %v1988 = vunpack.c.l.b16 %v1554
        %v1989 = vunpack.c.h.b16 %v1554
        %v1990 = vunpack.c.l.b16 %v1555
        %v1991 = vunpack.c.h.b16 %v1555
        %v1992 = vunpack.c.l.b16 %v1556
        %v1993 = vunpack.c.h.b16 %v1556
        %v1994 = vunpack.c.l.b16 %v1557
        %v1995 = vunpack.c.h.b16 %v1557
        %v1996 = vunpack.c.l.b16 %v1558
        %v1997 = vunpack.c.h.b16 %v1558
        %v1998 = vunpack.c.l.b16 %v1559
        %v1999 = vunpack.c.h.b16 %v1559
        %v2000 = vunpack.c.l.b16 %v1560
        %v2001 = vunpack.c.h.b16 %v1560
        %v2002 = vunpack.c.l.b16 %v1561
        %v2003 = vunpack.c.h.b16 %v1561
        %v2004 = vunpack.c.l.b16 %v1562
        %v2005 = vunpack.c.h.b16 %v1562
        %v2006 = vunpack.c.l.b16 %v1563
        %v2007 = vunpack.c.h.b16 %v1563
        %v2008 = vunpack.c.l.b16 %v1564
        %v2009 = vunpack.c.h.b16 %v1564
        %v2010 = vunpack.c.l.b16 %v1565
        %v2011 = vunpack.c.h.b16 %v1565
        %v2012 = vunpack.c.l.b16 %v1566
        %v2013 = vunpack.c.h.b16 %v1566
        %v2014 = vunpack.c.l.b16 %v1567
        %v2015 = vunpack.c.h.b16 %v1567
        %v2016 = vunpack.c.l.b16 %v1568
        %v2017 = vunpack.c.h.b16 %v1568
        %v2018 = vunpack.c.l.b16 %v1569
        %v2019 = vunpack.c.h.b16 %v1569
        %v2020 = vunpack.c.l.b16 %v1570
        %v2021 = vunpack.c.h.b16 %v1570
        %v2022 = vunpack.c.l.b16 %v1571
        %v2023 = vunpack.c.h.b16 %v1571
        %v2024 = vunpack.c.l.b16 %v1572
        %v2025 = vunpack.c.h.b16 %v1572
        %v2026 = vunpack.c.l.b16 %v1573
        %v2027 = vunpack.c.h.b16 %v1573
        %v2028 = vunpack.c.l.b16 %v1574
        %v2029 = vunpack.c.h.b16 %v1574
        %v2030 = vunpack.c.l.b16 %v1575
        %v2031 = vunpack.c.h.b16 %v1575
        %v2032 = vunpack.c.l.b16 %v1576
        %v2033 = vunpack.c.h.b16 %v1576
        %v2034 = vunpack.c.l.b16 %v1577
        %v2035 = vunpack.c.h.b16 %v1577
        %v2036 = vunpack.c.l.b16 %v1578
        %v2037 = vunpack.c.h.b16 %v1578
        %v2038 = vunpack.c.l.b16 %v1579
        %v2039 = vunpack.c.h.b16 %v1579
        %v2040 = vunpack.c.l.b16 %v1580
        %v2041 = vunpack.c.h.b16 %v1580
        %v2042 = vunpack.c.l.b16 %v1581
        %v2043 = vunpack.c.h.b16 %v1581
        %v2044 = vunpack.c.l.b16 %v1582
        %v2045 = vunpack.c.h.b16 %v1582
        %v2046 = vunpack.c.l.b16 %v1583
        %v2047 = vunpack.c.h.b16 %v1583
        %v2048 = vunpack.c.l.b16 %v1584
        %v2049 = vunpack.c.h.b16 %v1584
        %v2050 = vunpack.c.l.b16 %v1585
        %v2051 = vunpack.c.h.b16 %v1585
        %v2052 = vunpack.c.l.b16 %v1586
        %v2053 = vunpack.c.h.b16 %v1586
        %v2054 = vunpack.c.l.b16 %v1587
        %v2055 = vunpack.c.h.b16 %v1587
        %v2056 = vpack.c.b16 %v1816, %v1800
        %v2057 = vpack.c.b16 %v1817, %v1801
        %v2058 = vpack.c.b16 %v1818, %v1802
        %v2059 = vpack.c.b16 %v1819, %v1803
        %v2060 = vpack.c.b16 %v1820, %v1804
        %v2061 = vpack.c.b16 %v1821, %v1805
        %v2062 = vpack.c.b16 %v1822, %v1806
        %v2063 = vpack.c.b16 %v1823, %v1807
        %v2064 = vpack.c.b16 %v1824, %v1808
        %v2065 = vpack.c.b16 %v1825, %v1809
        %v2066 = vpack.c.b16 %v1826, %v1810
        %v2067 = vpack.c.b16 %v1827, %v1811
        %v2068 = vpack.c.b16 %v1828, %v1812
        %v2069 = vpack.c.b16 %v1829, %v1813
        %v2070 = vpack.c.b16 %v1830, %v1814
        %v2071 = vpack.c.b16 %v1831, %v1815
        %v2072 = vpack.c.b16 %v1848, %v1832
        %v2073 = vpack.c.b16 %v1849, %v1833
        %v2074 = vpack.c.b16 %v1850, %v1834
        %v2075 = vpack.c.b16 %v1851, %v1835
        %v2076 = vpack.c.b16 %v1852, %v1836
        %v2077 = vpack.c.b16 %v1853, %v1837
        %v2078 = vpack.c.b16 %v1854, %v1838
        %v2079 = vpack.c.b16 %v1855, %v1839
        %v2080 = vpack.c.b16 %v1856, %v1840
        %v2081 = vpack.c.b16 %v1857, %v1841
        %v2082 = vpack.c.b16 %v1858, %v1842
        %v2083 = vpack.c.b16 %v1859, %v1843
        %v2084 = vpack.c.b16 %v1860, %v1844
        %v2085 = vpack.c.b16 %v1861, %v1845
        %v2086 = vpack.c.b16 %v1862, %v1846
        %v2087 = vpack.c.b16 %v1863, %v1847
        %v2088 = vpack.c.b16 %v1880, %v1864
        %v2089 = vpack.c.b16 %v1881, %v1865
        %v2090 = vpack.c.b16 %v1882, %v1866
        %v2091 = vpack.c.b16 %v1883, %v1867
        %v2092 = vpack.c.b16 %v1884, %v1868
        %v2093 = vpack.c.b16 %v1885, %v1869
        %v2094 = vpack.c.b16 %v1886, %v1870
        %v2095 = vpack.c.b16 %v1887, %v1871
        %v2096 = vpack.c.b16 %v1888, %v1872
        %v2097 = vpack.c.b16 %v1889, %v1873
        %v2098 = vpack.c.b16 %v1890, %v1874
        %v2099 = vpack.c.b16 %v1891, %v1875
        %v2100 = vpack.c.b16 %v1892, %v1876
        %v2101 = vpack.c.b16 %v1893, %v1877
        %v2102 = vpack.c.b16 %v1894, %v1878
        %v2103 = vpack.c.b16 %v1895, %v1879
        %v2104 = vpack.c.b16 %v1912, %v1896
        %v2105 = vpack.c.b16 %v1913, %v1897
        %v2106 = vpack.c.b16 %v1914, %v1898
        %v2107 = vpack.c.b16 %v1915, %v1899
        %v2108 = vpack.c.b16 %v1916, %v1900
        %v2109 = vpack.c.b16 %v1917, %v1901
        %v2110 = vpack.c.b16 %v1918, %v1902
        %v2111 = vpack.c.b16 %v1919, %v1903
        %v2112 = vpack.c.b16 %v1920, %v1904
        %v2113 = vpack.c.b16 %v1921, %v1905
        %v2114 = vpack.c.b16 %v1922, %v1906
        %v2115 = vpack.c.b16 %v1923, %v1907
        %v2116 = vpack.c.b16 %v1924, %v1908
        %v2117 = vpack.c.b16 %v1925, %v1909
        %v2118 = vpack.c.b16 %v1926, %v1910
        %v2119 = vpack.c.b16 %v1927, %v1911
        %v2120 = vpack.c.b16 %v1944, %v1928
        %v2121 = vpack.c.b16 %v1945, %v1929
        %v2122 = vpack.c.b16 %v1946, %v1930
        %v2123 = vpack.c.b16 %v1947, %v1931
        %v2124 = vpack.c.b16 %v1948, %v1932
        %v2125 = vpack.c.b16 %v1949, %v1933
        %v2126 = vpack.c.b16 %v1950, %v1934
        %v2127 = vpack.c.b16 %v1951, %v1935
        %v2128 = vpack.c.b16 %v1952, %v1936
        %v2129 = vpack.c.b16 %v1953, %v1937
        %v2130 = vpack.c.b16 %v1954, %v1938
        %v2131 = vpack.c.b16 %v1955, %v1939
        %v2132 = vpack.c.b16 %v1956, %v1940
        %v2133 = vpack.c.b16 %v1957, %v1941
        %v2134 = vpack.c.b16 %v1958, %v1942
        %v2135 = vpack.c.b16 %v1959, %v1943
        %v2136 = vpack.c.b16 %v1976, %v1960
        %v2137 = vpack.c.b16 %v1977, %v1961
        %v2138 = vpack.c.b16 %v1978, %v1962
        %v2139 = vpack.c.b16 %v1979, %v1963
        %v2140 = vpack.c.b16 %v1980, %v1964
        %v2141 = vpack.c.b16 %v1981, %v1965
        %v2142 = vpack.c.b16 %v1982, %v1966
        %v2143 = vpack.c.b16 %v1983, %v1967
        %v2144 = vpack.c.b16 %v1984, %v1968
        %v2145 = vpack.c.b16 %v1985, %v1969
        %v2146 = vpack.c.b16 %v1986, %v1970
        %v2147 = vpack.c.b16 %v1987, %v1971
        %v2148 = vpack.c.b16 %v1988, %v1972
        %v2149 = vpack.c.b16 %v1989, %v1973
        %v2150 = vpack.c.b16 %v1990, %v1974
        %v2151 = vpack.c.b16 %v1991, %v1975
        %v2152 = vpack.c.b16 %v2008, %v1992
        %v2153 = vpack.c.b16 %v2009, %v1993
        %v2154 = vpack.c.b16 %v2010, %v1994
        %v2155 = vpack.c.b16 %v2011, %v1995
        %v2156 = vpack.c.b16 %v2012, %v1996
        %v2157 = vpack.c.b16 %v2013, %v1997
        %v2158 = vpack.c.b16 %v2014, %v1998
        %v2159 = vpack.c.b16 %v2015, %v1999
        %v2160 = vpack.c.b16 %v2016, %v2000
        %v2161 = vpack.c.b16 %v2017, %v2001
        %v2162 = vpack.c.b16 %v2018, %v2002
        %v2163 = vpack.c.b16 %v2019, %v2003
        %v2164 = vpack.c.b16 %v2020, %v2004
        %v2165 = vpack.c.b16 %v2021, %v2005
        %v2166 = vpack.c.b16 %v2022, %v2006
        %v2167 = vpack.c.b16 %v2023, %v2007
        %v2168 = vpack.c.b16 %v2040, %v2024
        %v2169 = vpack.c.b16 %v2041, %v2025
        %v2170 = vpack.c.b16 %v2042, %v2026
        %v2171 = vpack.c.b16 %v2043, %v2027
        %v2172 = vpack.c.b16 %v2044, %v2028
        %v2173 = vpack.c.b16 %v2045, %v2029
        %v2174 = vpack.c.b16 %v2046, %v2030
        %v2175 = vpack.c.b16 %v2047, %v2031
        %v2176 = vpack.c.b16 %v2048, %v2032
        %v2177 = vpack.c.b16 %v2049, %v2033
        %v2178 = vpack.c.b16 %v2050, %v2034
        %v2179 = vpack.c.b16 %v2051, %v2035
        %v2180 = vpack.c.b16 %v2052, %v2036
        %v2181 = vpack.c.b16 %v2053, %v2037
        %v2182 = vpack.c.b16 %v2054, %v2038
        %v2183 = vpack.c.b16 %v2055, %v2039
        %2312 = vmatprep.subr.bf16.mxu0 %v2057
        %2313 = vmatpush1.bf16.msra.mxu0 %v2056
        %2314 = vmatprep.subr.bf16.mxu0 %v2073
        %2315 = vmatpush1.bf16.msra.mxu0 %v2072
        %2316 = vmatprep.subr.bf16.mxu0 %v2089
        %2317 = vmatpush1.bf16.msra.mxu0 %v2088
        %2318 = vmatprep.subr.bf16.mxu0 %v2105
        %2319 = vmatpush1.bf16.msra.mxu0 %v2104
        %2320 = vmatprep.subr.bf16.mxu0 %v2121
        %2321 = vmatpush1.bf16.msra.mxu0 %v2120
        %2322 = vmatprep.subr.bf16.mxu0 %v2137
        %2323 = vmatpush1.bf16.msra.mxu0 %v2136
        %2324 = vmatprep.subr.bf16.mxu0 %v2153
        %2325 = vmatpush1.bf16.msra.mxu0 %v2152
        %2326 = vmatprep.subr.bf16.mxu0 %v2169
        %2327 = vmatpush1.bf16.msra.mxu0 %v2168
        %2328 = vmatprep.subr.bf16.mxu0 0
        %2329 = vmatpush1.bf16.msra.mxu0 0
        %2330 = vmatprep.subr.bf16.mxu0 0
        %2331 = vmatpush1.bf16.msra.mxu0 0
        %2332 = vmatprep.subr.bf16.mxu0 0
        %2333 = vmatpush1.bf16.msra.mxu0 0
        %2334 = vmatprep.subr.bf16.mxu0 0
        %2335 = vmatpush1.bf16.msra.mxu0 0
        %2336 = vmatprep.subr.bf16.mxu0 0
        %2337 = vmatpush1.bf16.msra.mxu0 0
        %2338 = vmatprep.subr.bf16.mxu0 0
        %2339 = vmatpush1.bf16.msra.mxu0 0
        %2340 = vmatprep.subr.bf16.mxu0 0
        %2341 = vmatpush1.bf16.msra.mxu0 0
        %2342 = vmatprep.subr.bf16.mxu0 0
        %2343 = vmatpush1.bf16.msra.mxu0 0
        %2344 = vmatprep.mubr.bf16.mxu0 0
        %2345 = vmatmul.mubr.bf16.gmra.mrb[0].mxu0 %v1459
        %v2346 = vpop.f32.mrb[0].mxu0
        %v2347 = vadd.f32 %v1595, %v2346
        %v2348 = vpop.f32.mrb[0].mxu0
        %v2349 = vadd.f32 %v1599, %v2348
        %v2350 = vpop.f32.mrb[0].mxu0
        %v2351 = vpop.f32.mrb[0].mxu0
        %2352 = vdwg.mxu0
        %2353 = vmatprep.subr.bf16.mxu0 %v2059
        %2354 = vmatpush1.bf16.msra.mxu0 %v2058
        %2355 = vmatprep.subr.bf16.mxu0 %v2075
        %2356 = vmatpush1.bf16.msra.mxu0 %v2074
        %2357 = vmatprep.subr.bf16.mxu0 %v2091
        %2358 = vmatpush1.bf16.msra.mxu0 %v2090
        %2359 = vmatprep.subr.bf16.mxu0 %v2107
        %2360 = vmatpush1.bf16.msra.mxu0 %v2106
        %2361 = vmatprep.subr.bf16.mxu0 %v2123
        %2362 = vmatpush1.bf16.msra.mxu0 %v2122
        %2363 = vmatprep.subr.bf16.mxu0 %v2139
        %2364 = vmatpush1.bf16.msra.mxu0 %v2138
        %2365 = vmatprep.subr.bf16.mxu0 %v2155
        %2366 = vmatpush1.bf16.msra.mxu0 %v2154
        %2367 = vmatprep.subr.bf16.mxu0 %v2171
        %2368 = vmatpush1.bf16.msra.mxu0 %v2170
        %2369 = vmatprep.subr.bf16.mxu0 0
        %2370 = vmatpush1.bf16.msra.mxu0 0
        %2371 = vmatprep.subr.bf16.mxu0 0
        %2372 = vmatpush1.bf16.msra.mxu0 0
        %2373 = vmatprep.subr.bf16.mxu0 0
        %2374 = vmatpush1.bf16.msra.mxu0 0
        %2375 = vmatprep.subr.bf16.mxu0 0
        %2376 = vmatpush1.bf16.msra.mxu0 0
        %2377 = vmatprep.subr.bf16.mxu0 0
        %2378 = vmatpush1.bf16.msra.mxu0 0
        %2379 = vmatprep.subr.bf16.mxu0 0
        %2380 = vmatpush1.bf16.msra.mxu0 0
        %2381 = vmatprep.subr.bf16.mxu0 0
        %2382 = vmatpush1.bf16.msra.mxu0 0
        %2383 = vmatprep.subr.bf16.mxu0 0
        %2384 = vmatpush1.bf16.msra.mxu0 0
        %2385 = vmatprep.mubr.bf16.mxu0 0
        %2386 = vmatmul.mubr.bf16.gmra.mrb[0].mxu0 %v1459
        %v2387 = vpop.f32.mrb[0].mxu0
        %v2388 = vadd.f32 %v1603, %v2387
        %v2389 = vpop.f32.mrb[0].mxu0
        %v2390 = vadd.f32 %v1607, %v2389
        %v2391 = vpop.f32.mrb[0].mxu0
        %v2392 = vpop.f32.mrb[0].mxu0
        %2393 = vdwg.mxu0
        %2394 = vmatprep.subr.bf16.mxu0 %v2061
        %2395 = vmatpush1.bf16.msra.mxu0 %v2060
        %2396 = vmatprep.subr.bf16.mxu0 %v2077
        %2397 = vmatpush1.bf16.msra.mxu0 %v2076
        %2398 = vmatprep.subr.bf16.mxu0 %v2093
        %2399 = vmatpush1.bf16.msra.mxu0 %v2092
        %2400 = vmatprep.subr.bf16.mxu0 %v2109
        %2401 = vmatpush1.bf16.msra.mxu0 %v2108
        %2402 = vmatprep.subr.bf16.mxu0 %v2125
        %2403 = vmatpush1.bf16.msra.mxu0 %v2124
        %2404 = vmatprep.subr.bf16.mxu0 %v2141
        %2405 = vmatpush1.bf16.msra.mxu0 %v2140
        %2406 = vmatprep.subr.bf16.mxu0 %v2157
        %2407 = vmatpush1.bf16.msra.mxu0 %v2156
        %2408 = vmatprep.subr.bf16.mxu0 %v2173
        %2409 = vmatpush1.bf16.msra.mxu0 %v2172
        %2410 = vmatprep.subr.bf16.mxu0 0
        %2411 = vmatpush1.bf16.msra.mxu0 0
        %2412 = vmatprep.subr.bf16.mxu0 0
        %2413 = vmatpush1.bf16.msra.mxu0 0
        %2414 = vmatprep.subr.bf16.mxu0 0
        %2415 = vmatpush1.bf16.msra.mxu0 0
        %2416 = vmatprep.subr.bf16.mxu0 0
        %2417 = vmatpush1.bf16.msra.mxu0 0
        %2418 = vmatprep.subr.bf16.mxu0 0
        %2419 = vmatpush1.bf16.msra.mxu0 0
        %2420 = vmatprep.subr.bf16.mxu0 0
        %2421 = vmatpush1.bf16.msra.mxu0 0
        %2422 = vmatprep.subr.bf16.mxu0 0
        %2423 = vmatpush1.bf16.msra.mxu0 0
        %2424 = vmatprep.subr.bf16.mxu0 0
        %2425 = vmatpush1.bf16.msra.mxu0 0
        %2426 = vmatprep.mubr.bf16.mxu0 0
        %2427 = vmatmul.mubr.bf16.gmra.mrb[0].mxu0 %v1459
        %v2428 = vpop.f32.mrb[0].mxu0
        %v2429 = vadd.f32 %v1611, %v2428
        %v2430 = vpop.f32.mrb[0].mxu0
        %v2431 = vadd.f32 %v1615, %v2430
        %v2432 = vpop.f32.mrb[0].mxu0
        %v2433 = vpop.f32.mrb[0].mxu0
        %2434 = vdwg.mxu0
        %2435 = vmatprep.subr.bf16.mxu0 %v2063
        %2436 = vmatpush1.bf16.msra.mxu0 %v2062
        %2437 = vmatprep.subr.bf16.mxu0 %v2079
        %2438 = vmatpush1.bf16.msra.mxu0 %v2078
        %2439 = vmatprep.subr.bf16.mxu0 %v2095
        %2440 = vmatpush1.bf16.msra.mxu0 %v2094
        %2441 = vmatprep.subr.bf16.mxu0 %v2111
        %2442 = vmatpush1.bf16.msra.mxu0 %v2110
        %2443 = vmatprep.subr.bf16.mxu0 %v2127
        %2444 = vmatpush1.bf16.msra.mxu0 %v2126
        %2445 = vmatprep.subr.bf16.mxu0 %v2143
        %2446 = vmatpush1.bf16.msra.mxu0 %v2142
        %2447 = vmatprep.subr.bf16.mxu0 %v2159
        %2448 = vmatpush1.bf16.msra.mxu0 %v2158
        %2449 = vmatprep.subr.bf16.mxu0 %v2175
        %2450 = vmatpush1.bf16.msra.mxu0 %v2174
        %2451 = vmatprep.subr.bf16.mxu0 0
        %2452 = vmatpush1.bf16.msra.mxu0 0
        %2453 = vmatprep.subr.bf16.mxu0 0
        %2454 = vmatpush1.bf16.msra.mxu0 0
        %2455 = vmatprep.subr.bf16.mxu0 0
        %2456 = vmatpush1.bf16.msra.mxu0 0
        %2457 = vmatprep.subr.bf16.mxu0 0
        %2458 = vmatpush1.bf16.msra.mxu0 0
        %2459 = vmatprep.subr.bf16.mxu0 0
        %2460 = vmatpush1.bf16.msra.mxu0 0
        %2461 = vmatprep.subr.bf16.mxu0 0
        %2462 = vmatpush1.bf16.msra.mxu0 0
        %2463 = vmatprep.subr.bf16.mxu0 0
        %2464 = vmatpush1.bf16.msra.mxu0 0
        %2465 = vmatprep.subr.bf16.mxu0 0
        %2466 = vmatpush1.bf16.msra.mxu0 0
        %2467 = vmatprep.mubr.bf16.mxu0 0
        %2468 = vmatmul.mubr.bf16.gmra.mrb[0].mxu0 %v1459
        %v2469 = vpop.f32.mrb[0].mxu0
        %v2470 = vadd.f32 %v1619, %v2469
        %v2471 = vpop.f32.mrb[0].mxu0
        %v2472 = vadd.f32 %v1623, %v2471
        %v2473 = vpop.f32.mrb[0].mxu0
        %v2474 = vpop.f32.mrb[0].mxu0
        %2475 = vdwg.mxu0
        %2476 = vmatprep.subr.bf16.mxu0 %v2065
        %2477 = vmatpush1.bf16.msra.mxu0 %v2064
        %2478 = vmatprep.subr.bf16.mxu0 %v2081
        %2479 = vmatpush1.bf16.msra.mxu0 %v2080
        %2480 = vmatprep.subr.bf16.mxu0 %v2097
        %2481 = vmatpush1.bf16.msra.mxu0 %v2096
        %2482 = vmatprep.subr.bf16.mxu0 %v2113
        %2483 = vmatpush1.bf16.msra.mxu0 %v2112
        %2484 = vmatprep.subr.bf16.mxu0 %v2129
        %2485 = vmatpush1.bf16.msra.mxu0 %v2128
        %2486 = vmatprep.subr.bf16.mxu0 %v2145
        %2487 = vmatpush1.bf16.msra.mxu0 %v2144
        %2488 = vmatprep.subr.bf16.mxu0 %v2161
        %2489 = vmatpush1.bf16.msra.mxu0 %v2160
        %2490 = vmatprep.subr.bf16.mxu0 %v2177
        %2491 = vmatpush1.bf16.msra.mxu0 %v2176
        %2492 = vmatprep.subr.bf16.mxu0 0
        %2493 = vmatpush1.bf16.msra.mxu0 0
        %2494 = vmatprep.subr.bf16.mxu0 0
        %2495 = vmatpush1.bf16.msra.mxu0 0
        %2496 = vmatprep.subr.bf16.mxu0 0
        %2497 = vmatpush1.bf16.msra.mxu0 0
        %2498 = vmatprep.subr.bf16.mxu0 0
        %2499 = vmatpush1.bf16.msra.mxu0 0
        %2500 = vmatprep.subr.bf16.mxu0 0
        %2501 = vmatpush1.bf16.msra.mxu0 0
        %2502 = vmatprep.subr.bf16.mxu0 0
        %2503 = vmatpush1.bf16.msra.mxu0 0
        %2504 = vmatprep.subr.bf16.mxu0 0
        %2505 = vmatpush1.bf16.msra.mxu0 0
        %2506 = vmatprep.subr.bf16.mxu0 0
        %2507 = vmatpush1.bf16.msra.mxu0 0
        %2508 = vmatprep.mubr.bf16.mxu0 0
        %2509 = vmatmul.mubr.bf16.gmra.mrb[0].mxu0 %v1459
        %v2510 = vpop.f32.mrb[0].mxu0
        %v2511 = vadd.f32 %v1627, %v2510
        %v2512 = vpop.f32.mrb[0].mxu0
        %v2513 = vadd.f32 %v1631, %v2512
        %v2514 = vpop.f32.mrb[0].mxu0
        %v2515 = vpop.f32.mrb[0].mxu0
        %2516 = vdwg.mxu0
        %2517 = vmatprep.subr.bf16.mxu0 %v2067
        %2518 = vmatpush1.bf16.msra.mxu0 %v2066
        %2519 = vmatprep.subr.bf16.mxu0 %v2083
        %2520 = vmatpush1.bf16.msra.mxu0 %v2082
        %2521 = vmatprep.subr.bf16.mxu0 %v2099
        %2522 = vmatpush1.bf16.msra.mxu0 %v2098
        %2523 = vmatprep.subr.bf16.mxu0 %v2115
        %2524 = vmatpush1.bf16.msra.mxu0 %v2114
        %2525 = vmatprep.subr.bf16.mxu0 %v2131
        %2526 = vmatpush1.bf16.msra.mxu0 %v2130
        %2527 = vmatprep.subr.bf16.mxu0 %v2147
        %2528 = vmatpush1.bf16.msra.mxu0 %v2146
        %2529 = vmatprep.subr.bf16.mxu0 %v2163
        %2530 = vmatpush1.bf16.msra.mxu0 %v2162
        %2531 = vmatprep.subr.bf16.mxu0 %v2179
        %2532 = vmatpush1.bf16.msra.mxu0 %v2178
        %2533 = vmatprep.subr.bf16.mxu0 0
        %2534 = vmatpush1.bf16.msra.mxu0 0
        %2535 = vmatprep.subr.bf16.mxu0 0
        %2536 = vmatpush1.bf16.msra.mxu0 0
        %2537 = vmatprep.subr.bf16.mxu0 0
        %2538 = vmatpush1.bf16.msra.mxu0 0
        %2539 = vmatprep.subr.bf16.mxu0 0
        %2540 = vmatpush1.bf16.msra.mxu0 0
        %2541 = vmatprep.subr.bf16.mxu0 0
        %2542 = vmatpush1.bf16.msra.mxu0 0
        %2543 = vmatprep.subr.bf16.mxu0 0
        %2544 = vmatpush1.bf16.msra.mxu0 0
        %2545 = vmatprep.subr.bf16.mxu0 0
        %2546 = vmatpush1.bf16.msra.mxu0 0
        %2547 = vmatprep.subr.bf16.mxu0 0
        %2548 = vmatpush1.bf16.msra.mxu0 0
        %2549 = vmatprep.mubr.bf16.mxu0 0
        %2550 = vmatmul.mubr.bf16.gmra.mrb[0].mxu0 %v1459
        %v2551 = vpop.f32.mrb[0].mxu0
        %v2552 = vadd.f32 %v1635, %v2551
        %v2553 = vpop.f32.mrb[0].mxu0
        %v2554 = vadd.f32 %v1639, %v2553
        %v2555 = vpop.f32.mrb[0].mxu0
        %v2556 = vpop.f32.mrb[0].mxu0
        %2557 = vdwg.mxu0
        %2558 = vmatprep.subr.bf16.mxu0 %v2069
        %2559 = vmatpush1.bf16.msra.mxu0 %v2068
        %2560 = vmatprep.subr.bf16.mxu0 %v2085
        %2561 = vmatpush1.bf16.msra.mxu0 %v2084
        %2562 = vmatprep.subr.bf16.mxu0 %v2101
        %2563 = vmatpush1.bf16.msra.mxu0 %v2100
        %2564 = vmatprep.subr.bf16.mxu0 %v2117
        %2565 = vmatpush1.bf16.msra.mxu0 %v2116
        %2566 = vmatprep.subr.bf16.mxu0 %v2133
        %2567 = vmatpush1.bf16.msra.mxu0 %v2132
        %2568 = vmatprep.subr.bf16.mxu0 %v2149
        %2569 = vmatpush1.bf16.msra.mxu0 %v2148
        %2570 = vmatprep.subr.bf16.mxu0 %v2165
        %2571 = vmatpush1.bf16.msra.mxu0 %v2164
        %2572 = vmatprep.subr.bf16.mxu0 %v2181
        %2573 = vmatpush1.bf16.msra.mxu0 %v2180
        %2574 = vmatprep.subr.bf16.mxu0 0
        %2575 = vmatpush1.bf16.msra.mxu0 0
        %2576 = vmatprep.subr.bf16.mxu0 0
        %2577 = vmatpush1.bf16.msra.mxu0 0
        %2578 = vmatprep.subr.bf16.mxu0 0
        %2579 = vmatpush1.bf16.msra.mxu0 0
        %2580 = vmatprep.subr.bf16.mxu0 0
        %2581 = vmatpush1.bf16.msra.mxu0 0
        %2582 = vmatprep.subr.bf16.mxu0 0
        %2583 = vmatpush1.bf16.msra.mxu0 0
        %2584 = vmatprep.subr.bf16.mxu0 0
        %2585 = vmatpush1.bf16.msra.mxu0 0
        %2586 = vmatprep.subr.bf16.mxu0 0
        %2587 = vmatpush1.bf16.msra.mxu0 0
        %2588 = vmatprep.subr.bf16.mxu0 0
        %2589 = vmatpush1.bf16.msra.mxu0 0
        %2590 = vmatprep.mubr.bf16.mxu0 0
        %2591 = vmatmul.mubr.bf16.gmra.mrb[0].mxu0 %v1459
        %v2592 = vpop.f32.mrb[0].mxu0
        %v2593 = vadd.f32 %v1643, %v2592
        %v2594 = vpop.f32.mrb[0].mxu0
        %v2595 = vadd.f32 %v1647, %v2594
        %v2596 = vpop.f32.mrb[0].mxu0
        %v2597 = vpop.f32.mrb[0].mxu0
        %2598 = vdwg.mxu0
        %2599 = vmatprep.subr.bf16.mxu0 %v2071
        %2600 = vmatpush1.bf16.msra.mxu0 %v2070
        %2601 = vmatprep.subr.bf16.mxu0 %v2087
        %2602 = vmatpush1.bf16.msra.mxu0 %v2086
        %2603 = vmatprep.subr.bf16.mxu0 %v2103
        %2604 = vmatpush1.bf16.msra.mxu0 %v2102
        %2605 = vmatprep.subr.bf16.mxu0 %v2119
        %2606 = vmatpush1.bf16.msra.mxu0 %v2118
        %2607 = vmatprep.subr.bf16.mxu0 %v2135
        %2608 = vmatpush1.bf16.msra.mxu0 %v2134
        %2609 = vmatprep.subr.bf16.mxu0 %v2151
        %2610 = vmatpush1.bf16.msra.mxu0 %v2150
        %2611 = vmatprep.subr.bf16.mxu0 %v2167
        %2612 = vmatpush1.bf16.msra.mxu0 %v2166
        %2613 = vmatprep.subr.bf16.mxu0 %v2183
        %2614 = vmatpush1.bf16.msra.mxu0 %v2182
        %2615 = vmatprep.subr.bf16.mxu0 0
        %2616 = vmatpush1.bf16.msra.mxu0 0
        %2617 = vmatprep.subr.bf16.mxu0 0
        %2618 = vmatpush1.bf16.msra.mxu0 0
        %2619 = vmatprep.subr.bf16.mxu0 0
        %2620 = vmatpush1.bf16.msra.mxu0 0
        %2621 = vmatprep.subr.bf16.mxu0 0
        %2622 = vmatpush1.bf16.msra.mxu0 0
        %2623 = vmatprep.subr.bf16.mxu0 0
        %2624 = vmatpush1.bf16.msra.mxu0 0
        %2625 = vmatprep.subr.bf16.mxu0 0
        %2626 = vmatpush1.bf16.msra.mxu0 0
        %2627 = vmatprep.subr.bf16.mxu0 0
        %2628 = vmatpush1.bf16.msra.mxu0 0
        %2629 = vmatprep.subr.bf16.mxu0 0
        %2630 = vmatpush1.bf16.msra.mxu0 0
        %2631 = vmatprep.mubr.bf16.mxu0 0
        %2632 = vmatmul.mubr.bf16.gmra.mrb[0].mxu0 %v1459
        %v2633 = vpop.f32.mrb[0].mxu0
        %v2634 = vadd.f32 %v1651, %v2633
        %v2635 = vpop.f32.mrb[0].mxu0
        %v2636 = vadd.f32 %v1655, %v2635
        %v2637 = vpop.f32.mrb[0].mxu0
        %v2638 = vpop.f32.mrb[0].mxu0
        %2639 = vdwg.mxu0
        %v2640 = vmax.f32 %v2347, 0.0
        %v2641 = vmax.f32 %v2349, 0.0
        %v2642 = vmax.f32 %v2388, 0.0
        %v2643 = vmax.f32 %v2390, 0.0
        %v2644 = vmax.f32 %v2429, 0.0
        %v2645 = vmax.f32 %v2431, 0.0
        %v2646 = vmax.f32 %v2470, 0.0
        %v2647 = vmax.f32 %v2472, 0.0
        %v2648 = vmax.f32 %v2511, 0.0
        %v2649 = vmax.f32 %v2513, 0.0
        %v2650 = vmax.f32 %v2552, 0.0
        %v2651 = vmax.f32 %v2554, 0.0
        %v2652 = vmax.f32 %v2593, 0.0
        %v2653 = vmax.f32 %v2595, 0.0
        %v2654 = vmax.f32 %v2634, 0.0
        %v2655 = vmax.f32 %v2636, 0.0
        %v2656 = vpack.c.bf16 %v2640, %v2640
        %v2657 = vpack.c.bf16 %v2641, %v2641
        %v2658 = vpack.c.bf16 %v2642, %v2642
        %v2659 = vpack.c.bf16 %v2643, %v2643
        %v2660 = vpack.c.bf16 %v2644, %v2644
        %v2661 = vpack.c.bf16 %v2645, %v2645
        %v2662 = vpack.c.bf16 %v2646, %v2646
        %v2663 = vpack.c.bf16 %v2647, %v2647
        %v2664 = vpack.c.bf16 %v2648, %v2648
        %v2665 = vpack.c.bf16 %v2649, %v2649
        %v2666 = vpack.c.bf16 %v2650, %v2650
        %v2667 = vpack.c.bf16 %v2651, %v2651
        %v2668 = vpack.c.bf16 %v2652, %v2652
        %v2669 = vpack.c.bf16 %v2653, %v2653
        %v2670 = vpack.c.bf16 %v2654, %v2654
        %v2671 = vpack.c.bf16 %v2655, %v2655
        %v2672 = vld [vmem:[#allocation11] sm:$0xf]
        %v2673 = vld [vmem:[#allocation11 + $0x4] sm:$0xf]
        %v2674 = vld [vmem:[#allocation11 + $0x8] sm:$0xf]
        %v2675 = vld [vmem:[#allocation11 + $0xc] sm:$0xf]
        %v2676 = vld [vmem:[#allocation11 + $0x10] sm:$0xf]
        %v2677 = vld [vmem:[#allocation11 + $0x14] sm:$0xf]
        %v2678 = vld [vmem:[#allocation11 + $0x18] sm:$0xf]
        %v2679 = vld [vmem:[#allocation11 + $0x1c] sm:$0xf]
        %v2680 = vld [vmem:[#allocation11 + $0x20] sm:$0xf]
        %v2681 = vld [vmem:[#allocation11 + $0x24] sm:$0xf]
        %v2682 = vld [vmem:[#allocation11 + $0x28] sm:$0xf]
        %v2683 = vld [vmem:[#allocation11 + $0x2c] sm:$0xf]
        %v2684 = vld [vmem:[#allocation11 + $0x30] sm:$0xf]
        %v2685 = vld [vmem:[#allocation11 + $0x34] sm:$0xf]
        %v2686 = vld [vmem:[#allocation11 + $0x38] sm:$0xf]
        %v2687 = vld [vmem:[#allocation11 + $0x3c] sm:$0xf]
        %v2688 = vld [vmem:[#allocation11 + $0x40] sm:$0xf]
        %v2689 = vld [vmem:[#allocation11 + $0x44] sm:$0xf]
        %v2690 = vld [vmem:[#allocation11 + $0x48] sm:$0xf]
        %v2691 = vld [vmem:[#allocation11 + $0x4c] sm:$0xf]
        %v2692 = vld [vmem:[#allocation11 + $0x50] sm:$0xf]
        %v2693 = vld [vmem:[#allocation11 + $0x54] sm:$0xf]
        %v2694 = vld [vmem:[#allocation11 + $0x58] sm:$0xf]
        %v2695 = vld [vmem:[#allocation11 + $0x5c] sm:$0xf]
        %v2696 = vld [vmem:[#allocation11 + $0x60] sm:$0xf]
        %v2697 = vld [vmem:[#allocation11 + $0x64] sm:$0xf]
        %v2698 = vld [vmem:[#allocation11 + $0x68] sm:$0xf]
        %v2699 = vld [vmem:[#allocation11 + $0x6c] sm:$0xf]
        %v2700 = vld [vmem:[#allocation11 + $0x70] sm:$0xf]
        %v2701 = vld [vmem:[#allocation11 + $0x74] sm:$0xf]
        %v2702 = vld [vmem:[#allocation11 + $0x78] sm:$0xf]
        %v2703 = vld [vmem:[#allocation11 + $0x7c] sm:$0xf]
        %v2704 = vld [vmem:[#allocation11 + $0x80] sm:$0xf]
        %v2705 = vld [vmem:[#allocation11 + $0x84] sm:$0xf]
        %v2706 = vld [vmem:[#allocation11 + $0x88] sm:$0xf]
        %v2707 = vld [vmem:[#allocation11 + $0x8c] sm:$0xf]
        %v2708 = vld [vmem:[#allocation11 + $0x90] sm:$0xf]
        %v2709 = vld [vmem:[#allocation11 + $0x94] sm:$0xf]
        %v2710 = vld [vmem:[#allocation11 + $0x98] sm:$0xf]
        %v2711 = vld [vmem:[#allocation11 + $0x9c] sm:$0xf]
        %v2712 = vld [vmem:[#allocation11 + $0xa0] sm:$0xf]
        %v2713 = vld [vmem:[#allocation11 + $0xa4] sm:$0xf]
        %v2714 = vld [vmem:[#allocation11 + $0xa8] sm:$0xf]
        %v2715 = vld [vmem:[#allocation11 + $0xac] sm:$0xf]
        %v2716 = vld [vmem:[#allocation11 + $0xb0] sm:$0xf]
        %v2717 = vld [vmem:[#allocation11 + $0xb4] sm:$0xf]
        %v2718 = vld [vmem:[#allocation11 + $0xb8] sm:$0xf]
        %v2719 = vld [vmem:[#allocation11 + $0xbc] sm:$0xf]
        %v2720 = vld [vmem:[#allocation11 + $0xc0] sm:$0xf]
        %v2721 = vld [vmem:[#allocation11 + $0xc4] sm:$0xf]
        %v2722 = vld [vmem:[#allocation11 + $0xc8] sm:$0xf]
        %v2723 = vld [vmem:[#allocation11 + $0xcc] sm:$0xf]
        %v2724 = vld [vmem:[#allocation11 + $0xd0] sm:$0xf]
        %v2725 = vld [vmem:[#allocation11 + $0xd4] sm:$0xf]
        %v2726 = vld [vmem:[#allocation11 + $0xd8] sm:$0xf]
        %v2727 = vld [vmem:[#allocation11 + $0xdc] sm:$0xf]
        %v2728 = vld [vmem:[#allocation11 + $0xe0] sm:$0xf]
        %v2729 = vld [vmem:[#allocation11 + $0xe4] sm:$0xf]
        %v2730 = vld [vmem:[#allocation11 + $0xe8] sm:$0xf]
        %v2731 = vld [vmem:[#allocation11 + $0xec] sm:$0xf]
        %v2732 = vld [vmem:[#allocation11 + $0xf0] sm:$0xf]
        %v2733 = vld [vmem:[#allocation11 + $0xf4] sm:$0xf]
        %v2734 = vld [vmem:[#allocation11 + $0xf8] sm:$0xf]
        %v2735 = vld [vmem:[#allocation11 + $0xfc] sm:$0xf]
        %v2736 = vld [vmem:[#allocation11 + $0x100] sm:$0xf]
        %v2737 = vld [vmem:[#allocation11 + $0x104] sm:$0xf]
        %v2738 = vld [vmem:[#allocation11 + $0x108] sm:$0xf]
        %v2739 = vld [vmem:[#allocation11 + $0x10c] sm:$0xf]
        %v2740 = vld [vmem:[#allocation11 + $0x110] sm:$0xf]
        %v2741 = vld [vmem:[#allocation11 + $0x114] sm:$0xf]
        %v2742 = vld [vmem:[#allocation11 + $0x118] sm:$0xf]
        %v2743 = vld [vmem:[#allocation11 + $0x11c] sm:$0xf]
        %v2744 = vld [vmem:[#allocation11 + $0x120] sm:$0xf]
        %v2745 = vld [vmem:[#allocation11 + $0x124] sm:$0xf]
        %v2746 = vld [vmem:[#allocation11 + $0x128] sm:$0xf]
        %v2747 = vld [vmem:[#allocation11 + $0x12c] sm:$0xf]
        %v2748 = vld [vmem:[#allocation11 + $0x130] sm:$0xf]
        %v2749 = vld [vmem:[#allocation11 + $0x134] sm:$0xf]
        %v2750 = vld [vmem:[#allocation11 + $0x138] sm:$0xf]
        %v2751 = vld [vmem:[#allocation11 + $0x13c] sm:$0xf]
        %v2752 = vld [vmem:[#allocation11 + $0x140] sm:$0xf]
        %v2753 = vld [vmem:[#allocation11 + $0x144] sm:$0xf]
        %v2754 = vld [vmem:[#allocation11 + $0x148] sm:$0xf]
        %v2755 = vld [vmem:[#allocation11 + $0x14c] sm:$0xf]
        %v2756 = vld [vmem:[#allocation11 + $0x150] sm:$0xf]
        %v2757 = vld [vmem:[#allocation11 + $0x154] sm:$0xf]
        %v2758 = vld [vmem:[#allocation11 + $0x158] sm:$0xf]
        %v2759 = vld [vmem:[#allocation11 + $0x15c] sm:$0xf]
        %v2760 = vld [vmem:[#allocation11 + $0x160] sm:$0xf]
        %v2761 = vld [vmem:[#allocation11 + $0x164] sm:$0xf]
        %v2762 = vld [vmem:[#allocation11 + $0x168] sm:$0xf]
        %v2763 = vld [vmem:[#allocation11 + $0x16c] sm:$0xf]
        %v2764 = vld [vmem:[#allocation11 + $0x170] sm:$0xf]
        %v2765 = vld [vmem:[#allocation11 + $0x174] sm:$0xf]
        %v2766 = vld [vmem:[#allocation11 + $0x178] sm:$0xf]
        %v2767 = vld [vmem:[#allocation11 + $0x17c] sm:$0xf]
        %v2768 = vld [vmem:[#allocation11 + $0x180] sm:$0xf]
        %v2769 = vld [vmem:[#allocation11 + $0x184] sm:$0xf]
        %v2770 = vld [vmem:[#allocation11 + $0x188] sm:$0xf]
        %v2771 = vld [vmem:[#allocation11 + $0x18c] sm:$0xf]
        %v2772 = vld [vmem:[#allocation11 + $0x190] sm:$0xf]
        %v2773 = vld [vmem:[#allocation11 + $0x194] sm:$0xf]
        %v2774 = vld [vmem:[#allocation11 + $0x198] sm:$0xf]
        %v2775 = vld [vmem:[#allocation11 + $0x19c] sm:$0xf]
        %v2776 = vld [vmem:[#allocation11 + $0x1a0] sm:$0xf]
        %v2777 = vld [vmem:[#allocation11 + $0x1a4] sm:$0xf]
        %v2778 = vld [vmem:[#allocation11 + $0x1a8] sm:$0xf]
        %v2779 = vld [vmem:[#allocation11 + $0x1ac] sm:$0xf]
        %v2780 = vld [vmem:[#allocation11 + $0x1b0] sm:$0xf]
        %v2781 = vld [vmem:[#allocation11 + $0x1b4] sm:$0xf]
        %v2782 = vld [vmem:[#allocation11 + $0x1b8] sm:$0xf]
        %v2783 = vld [vmem:[#allocation11 + $0x1bc] sm:$0xf]
        %v2784 = vld [vmem:[#allocation11 + $0x1c0] sm:$0xf]
        %v2785 = vld [vmem:[#allocation11 + $0x1c4] sm:$0xf]
        %v2786 = vld [vmem:[#allocation11 + $0x1c8] sm:$0xf]
        %v2787 = vld [vmem:[#allocation11 + $0x1cc] sm:$0xf]
        %v2788 = vld [vmem:[#allocation11 + $0x1d0] sm:$0xf]
        %v2789 = vld [vmem:[#allocation11 + $0x1d4] sm:$0xf]
        %v2790 = vld [vmem:[#allocation11 + $0x1d8] sm:$0xf]
        %v2791 = vld [vmem:[#allocation11 + $0x1dc] sm:$0xf]
        %v2792 = vld [vmem:[#allocation11 + $0x1e0] sm:$0xf]
        %v2793 = vld [vmem:[#allocation11 + $0x1e4] sm:$0xf]
        %v2794 = vld [vmem:[#allocation11 + $0x1e8] sm:$0xf]
        %v2795 = vld [vmem:[#allocation11 + $0x1ec] sm:$0xf]
        %v2796 = vld [vmem:[#allocation11 + $0x1f0] sm:$0xf]
        %v2797 = vld [vmem:[#allocation11 + $0x1f4] sm:$0xf]
        %v2798 = vld [vmem:[#allocation11 + $0x1f8] sm:$0xf]
        %v2799 = vld [vmem:[#allocation11 + $0x1fc] sm:$0xf]
        %v2800 = vld [vmem:[#allocation11 + $0x200] sm:$0xf]
        %v2801 = vld [vmem:[#allocation11 + $0x204] sm:$0xf]
        %v2802 = vld [vmem:[#allocation11 + $0x208] sm:$0xf]
        %v2803 = vld [vmem:[#allocation11 + $0x20c] sm:$0xf]
        %v2804 = vld [vmem:[#allocation11 + $0x210] sm:$0xf]
        %v2805 = vld [vmem:[#allocation11 + $0x214] sm:$0xf]
        %v2806 = vld [vmem:[#allocation11 + $0x218] sm:$0xf]
        %v2807 = vld [vmem:[#allocation11 + $0x21c] sm:$0xf]
        %v2808 = vld [vmem:[#allocation11 + $0x220] sm:$0xf]
        %v2809 = vld [vmem:[#allocation11 + $0x224] sm:$0xf]
        %v2810 = vld [vmem:[#allocation11 + $0x228] sm:$0xf]
        %v2811 = vld [vmem:[#allocation11 + $0x22c] sm:$0xf]
        %v2812 = vld [vmem:[#allocation11 + $0x230] sm:$0xf]
        %v2813 = vld [vmem:[#allocation11 + $0x234] sm:$0xf]
        %v2814 = vld [vmem:[#allocation11 + $0x238] sm:$0xf]
        %v2815 = vld [vmem:[#allocation11 + $0x23c] sm:$0xf]
        %v2816 = vld [vmem:[#allocation11 + $0x240] sm:$0xf]
        %v2817 = vld [vmem:[#allocation11 + $0x244] sm:$0xf]
        %v2818 = vld [vmem:[#allocation11 + $0x248] sm:$0xf]
        %v2819 = vld [vmem:[#allocation11 + $0x24c] sm:$0xf]
        %v2820 = vld [vmem:[#allocation11 + $0x250] sm:$0xf]
        %v2821 = vld [vmem:[#allocation11 + $0x254] sm:$0xf]
        %v2822 = vld [vmem:[#allocation11 + $0x258] sm:$0xf]
        %v2823 = vld [vmem:[#allocation11 + $0x25c] sm:$0xf]
        %v2824 = vld [vmem:[#allocation11 + $0x260] sm:$0xf]
        %v2825 = vld [vmem:[#allocation11 + $0x264] sm:$0xf]
        %v2826 = vld [vmem:[#allocation11 + $0x268] sm:$0xf]
        %v2827 = vld [vmem:[#allocation11 + $0x26c] sm:$0xf]
        %v2828 = vld [vmem:[#allocation11 + $0x270] sm:$0xf]
        %v2829 = vld [vmem:[#allocation11 + $0x274] sm:$0xf]
        %v2830 = vld [vmem:[#allocation11 + $0x278] sm:$0xf]
        %v2831 = vld [vmem:[#allocation11 + $0x27c] sm:$0xf]
        %v2832 = vld [vmem:[#allocation11 + $0x280] sm:$0xf]
        %v2833 = vld [vmem:[#allocation11 + $0x284] sm:$0xf]
        %v2834 = vld [vmem:[#allocation11 + $0x288] sm:$0xf]
        %v2835 = vld [vmem:[#allocation11 + $0x28c] sm:$0xf]
        %v2836 = vld [vmem:[#allocation11 + $0x290] sm:$0xf]
        %v2837 = vld [vmem:[#allocation11 + $0x294] sm:$0xf]
        %v2838 = vld [vmem:[#allocation11 + $0x298] sm:$0xf]
        %v2839 = vld [vmem:[#allocation11 + $0x29c] sm:$0xf]
        %v2840 = vld [vmem:[#allocation11 + $0x2a0] sm:$0xf]
        %v2841 = vld [vmem:[#allocation11 + $0x2a4] sm:$0xf]
        %v2842 = vld [vmem:[#allocation11 + $0x2a8] sm:$0xf]
        %v2843 = vld [vmem:[#allocation11 + $0x2ac] sm:$0xf]
        %v2844 = vld [vmem:[#allocation11 + $0x2b0] sm:$0xf]
        %v2845 = vld [vmem:[#allocation11 + $0x2b4] sm:$0xf]
        %v2846 = vld [vmem:[#allocation11 + $0x2b8] sm:$0xf]
        %v2847 = vld [vmem:[#allocation11 + $0x2bc] sm:$0xf]
        %v2848 = vld [vmem:[#allocation11 + $0x2c0] sm:$0xf]
        %v2849 = vld [vmem:[#allocation11 + $0x2c4] sm:$0xf]
        %v2850 = vld [vmem:[#allocation11 + $0x2c8] sm:$0xf]
        %v2851 = vld [vmem:[#allocation11 + $0x2cc] sm:$0xf]
        %v2852 = vld [vmem:[#allocation11 + $0x2d0] sm:$0xf]
        %v2853 = vld [vmem:[#allocation11 + $0x2d4] sm:$0xf]
        %v2854 = vld [vmem:[#allocation11 + $0x2d8] sm:$0xf]
        %v2855 = vld [vmem:[#allocation11 + $0x2dc] sm:$0xf]
        %v2856 = vld [vmem:[#allocation11 + $0x2e0] sm:$0xf]
        %v2857 = vld [vmem:[#allocation11 + $0x2e4] sm:$0xf]
        %v2858 = vld [vmem:[#allocation11 + $0x2e8] sm:$0xf]
        %v2859 = vld [vmem:[#allocation11 + $0x2ec] sm:$0xf]
        %v2860 = vld [vmem:[#allocation11 + $0x2f0] sm:$0xf]
        %v2861 = vld [vmem:[#allocation11 + $0x2f4] sm:$0xf]
        %v2862 = vld [vmem:[#allocation11 + $0x2f8] sm:$0xf]
        %v2863 = vld [vmem:[#allocation11 + $0x2fc] sm:$0xf]
        %v2864 = vld [vmem:[#allocation11 + $0x300] sm:$0xf]
        %v2865 = vld [vmem:[#allocation11 + $0x304] sm:$0xf]
        %v2866 = vld [vmem:[#allocation11 + $0x308] sm:$0xf]
        %v2867 = vld [vmem:[#allocation11 + $0x30c] sm:$0xf]
        %v2868 = vld [vmem:[#allocation11 + $0x310] sm:$0xf]
        %v2869 = vld [vmem:[#allocation11 + $0x314] sm:$0xf]
        %v2870 = vld [vmem:[#allocation11 + $0x318] sm:$0xf]
        %v2871 = vld [vmem:[#allocation11 + $0x31c] sm:$0xf]
        %v2872 = vld [vmem:[#allocation11 + $0x320] sm:$0xf]
        %v2873 = vld [vmem:[#allocation11 + $0x324] sm:$0xf]
        %v2874 = vld [vmem:[#allocation11 + $0x328] sm:$0xf]
        %v2875 = vld [vmem:[#allocation11 + $0x32c] sm:$0xf]
        %v2876 = vld [vmem:[#allocation11 + $0x330] sm:$0xf]
        %v2877 = vld [vmem:[#allocation11 + $0x334] sm:$0xf]
        %v2878 = vld [vmem:[#allocation11 + $0x338] sm:$0xf]
        %v2879 = vld [vmem:[#allocation11 + $0x33c] sm:$0xf]
        %v2880 = vld [vmem:[#allocation11 + $0x340] sm:$0xf]
        %v2881 = vld [vmem:[#allocation11 + $0x344] sm:$0xf]
        %v2882 = vld [vmem:[#allocation11 + $0x348] sm:$0xf]
        %v2883 = vld [vmem:[#allocation11 + $0x34c] sm:$0xf]
        %v2884 = vld [vmem:[#allocation11 + $0x350] sm:$0xf]
        %v2885 = vld [vmem:[#allocation11 + $0x354] sm:$0xf]
        %v2886 = vld [vmem:[#allocation11 + $0x358] sm:$0xf]
        %v2887 = vld [vmem:[#allocation11 + $0x35c] sm:$0xf]
        %v2888 = vld [vmem:[#allocation11 + $0x360] sm:$0xf]
        %v2889 = vld [vmem:[#allocation11 + $0x364] sm:$0xf]
        %v2890 = vld [vmem:[#allocation11 + $0x368] sm:$0xf]
        %v2891 = vld [vmem:[#allocation11 + $0x36c] sm:$0xf]
        %v2892 = vld [vmem:[#allocation11 + $0x370] sm:$0xf]
        %v2893 = vld [vmem:[#allocation11 + $0x374] sm:$0xf]
        %v2894 = vld [vmem:[#allocation11 + $0x378] sm:$0xf]
        %v2895 = vld [vmem:[#allocation11 + $0x37c] sm:$0xf]
        %v2896 = vld [vmem:[#allocation11 + $0x380] sm:$0xf]
        %v2897 = vld [vmem:[#allocation11 + $0x384] sm:$0xf]
        %v2898 = vld [vmem:[#allocation11 + $0x388] sm:$0xf]
        %v2899 = vld [vmem:[#allocation11 + $0x38c] sm:$0xf]
        %v2900 = vld [vmem:[#allocation11 + $0x390] sm:$0xf]
        %v2901 = vld [vmem:[#allocation11 + $0x394] sm:$0xf]
        %v2902 = vld [vmem:[#allocation11 + $0x398] sm:$0xf]
        %v2903 = vld [vmem:[#allocation11 + $0x39c] sm:$0xf]
        %v2904 = vld [vmem:[#allocation11 + $0x3a0] sm:$0xf]
        %v2905 = vld [vmem:[#allocation11 + $0x3a4] sm:$0xf]
        %v2906 = vld [vmem:[#allocation11 + $0x3a8] sm:$0xf]
        %v2907 = vld [vmem:[#allocation11 + $0x3ac] sm:$0xf]
        %v2908 = vld [vmem:[#allocation11 + $0x3b0] sm:$0xf]
        %v2909 = vld [vmem:[#allocation11 + $0x3b4] sm:$0xf]
        %v2910 = vld [vmem:[#allocation11 + $0x3b8] sm:$0xf]
        %v2911 = vld [vmem:[#allocation11 + $0x3bc] sm:$0xf]
        %v2912 = vld [vmem:[#allocation11 + $0x3c0] sm:$0xf]
        %v2913 = vld [vmem:[#allocation11 + $0x3c4] sm:$0xf]
        %v2914 = vld [vmem:[#allocation11 + $0x3c8] sm:$0xf]
        %v2915 = vld [vmem:[#allocation11 + $0x3cc] sm:$0xf]
        %v2916 = vld [vmem:[#allocation11 + $0x3d0] sm:$0xf]
        %v2917 = vld [vmem:[#allocation11 + $0x3d4] sm:$0xf]
        %v2918 = vld [vmem:[#allocation11 + $0x3d8] sm:$0xf]
        %v2919 = vld [vmem:[#allocation11 + $0x3dc] sm:$0xf]
        %v2920 = vld [vmem:[#allocation11 + $0x3e0] sm:$0xf]
        %v2921 = vld [vmem:[#allocation11 + $0x3e4] sm:$0xf]
        %v2922 = vld [vmem:[#allocation11 + $0x3e8] sm:$0xf]
        %v2923 = vld [vmem:[#allocation11 + $0x3ec] sm:$0xf]
        %v2924 = vld [vmem:[#allocation11 + $0x3f0] sm:$0xf]
        %v2925 = vld [vmem:[#allocation11 + $0x3f4] sm:$0xf]
        %v2926 = vld [vmem:[#allocation11 + $0x3f8] sm:$0xf]
        %v2927 = vld [vmem:[#allocation11 + $0x3fc] sm:$0xf]
        %v2928 = vld [vmem:[%s10] sm:$0x1]
        %v2930 = vlaneseq
        %v2931 = vshrl.u32 %v2930, 7
        %v2932 = vsub.s32 0, %v2931
        %v2933 = vrot.slane %v2928, %v2932
        %v3191 = vunpack.c.l.b16 %v2672
        %v3192 = vunpack.c.l.b16 %v2673
        %v3193 = vunpack.c.l.b16 %v2674
        %v3194 = vunpack.c.l.b16 %v2675
        %v3195 = vunpack.c.l.b16 %v2676
        %v3196 = vunpack.c.l.b16 %v2677
        %v3197 = vunpack.c.l.b16 %v2678
        %v3198 = vunpack.c.l.b16 %v2679
        %v3199 = vunpack.c.l.b16 %v2680
        %v3200 = vunpack.c.l.b16 %v2681
        %v3201 = vunpack.c.l.b16 %v2682
        %v3202 = vunpack.c.l.b16 %v2683
        %v3203 = vunpack.c.l.b16 %v2684
        %v3204 = vunpack.c.l.b16 %v2685
        %v3205 = vunpack.c.l.b16 %v2686
        %v3206 = vunpack.c.l.b16 %v2687
        %v3207 = vunpack.c.l.b16 %v2688
        %v3208 = vunpack.c.l.b16 %v2689
        %v3209 = vunpack.c.l.b16 %v2690
        %v3210 = vunpack.c.l.b16 %v2691
        %v3211 = vunpack.c.l.b16 %v2692
        %v3212 = vunpack.c.l.b16 %v2693
        %v3213 = vunpack.c.l.b16 %v2694
        %v3214 = vunpack.c.l.b16 %v2695
        %v3215 = vunpack.c.l.b16 %v2696
        %v3216 = vunpack.c.l.b16 %v2697
        %v3217 = vunpack.c.l.b16 %v2698
        %v3218 = vunpack.c.l.b16 %v2699
        %v3219 = vunpack.c.l.b16 %v2700
        %v3220 = vunpack.c.l.b16 %v2701
        %v3221 = vunpack.c.l.b16 %v2702
        %v3222 = vunpack.c.l.b16 %v2703
        %v3223 = vunpack.c.l.b16 %v2704
        %v3224 = vunpack.c.l.b16 %v2705
        %v3225 = vunpack.c.l.b16 %v2706
        %v3226 = vunpack.c.l.b16 %v2707
        %v3227 = vunpack.c.l.b16 %v2708
        %v3228 = vunpack.c.l.b16 %v2709
        %v3229 = vunpack.c.l.b16 %v2710
        %v3230 = vunpack.c.l.b16 %v2711
        %v3231 = vunpack.c.l.b16 %v2712
        %v3232 = vunpack.c.l.b16 %v2713
        %v3233 = vunpack.c.l.b16 %v2714
        %v3234 = vunpack.c.l.b16 %v2715
        %v3235 = vunpack.c.l.b16 %v2716
        %v3236 = vunpack.c.l.b16 %v2717
        %v3237 = vunpack.c.l.b16 %v2718
        %v3238 = vunpack.c.l.b16 %v2719
        %v3239 = vunpack.c.l.b16 %v2720
        %v3240 = vunpack.c.l.b16 %v2721
        %v3241 = vunpack.c.l.b16 %v2722
        %v3242 = vunpack.c.l.b16 %v2723
        %v3243 = vunpack.c.l.b16 %v2724
        %v3244 = vunpack.c.l.b16 %v2725
        %v3245 = vunpack.c.l.b16 %v2726
        %v3246 = vunpack.c.l.b16 %v2727
        %v3247 = vunpack.c.l.b16 %v2728
        %v3248 = vunpack.c.l.b16 %v2729
        %v3249 = vunpack.c.l.b16 %v2730
        %v3250 = vunpack.c.l.b16 %v2731
        %v3251 = vunpack.c.l.b16 %v2732
        %v3252 = vunpack.c.l.b16 %v2733
        %v3253 = vunpack.c.l.b16 %v2734
        %v3254 = vunpack.c.l.b16 %v2735
        %v3255 = vunpack.c.l.b16 %v2736
        %v3256 = vunpack.c.l.b16 %v2737
        %v3257 = vunpack.c.l.b16 %v2738
        %v3258 = vunpack.c.l.b16 %v2739
        %v3259 = vunpack.c.l.b16 %v2740
        %v3260 = vunpack.c.l.b16 %v2741
        %v3261 = vunpack.c.l.b16 %v2742
        %v3262 = vunpack.c.l.b16 %v2743
        %v3263 = vunpack.c.l.b16 %v2744
        %v3264 = vunpack.c.l.b16 %v2745
        %v3265 = vunpack.c.l.b16 %v2746
        %v3266 = vunpack.c.l.b16 %v2747
        %v3267 = vunpack.c.l.b16 %v2748
        %v3268 = vunpack.c.l.b16 %v2749
        %v3269 = vunpack.c.l.b16 %v2750
        %v3270 = vunpack.c.l.b16 %v2751
        %v3271 = vunpack.c.l.b16 %v2752
        %v3272 = vunpack.c.l.b16 %v2753
        %v3273 = vunpack.c.l.b16 %v2754
        %v3274 = vunpack.c.l.b16 %v2755
        %v3275 = vunpack.c.l.b16 %v2756
        %v3276 = vunpack.c.l.b16 %v2757
        %v3277 = vunpack.c.l.b16 %v2758
        %v3278 = vunpack.c.l.b16 %v2759
        %v3279 = vunpack.c.l.b16 %v2760
        %v3280 = vunpack.c.l.b16 %v2761
        %v3281 = vunpack.c.l.b16 %v2762
        %v3282 = vunpack.c.l.b16 %v2763
        %v3283 = vunpack.c.l.b16 %v2764
        %v3284 = vunpack.c.l.b16 %v2765
        %v3285 = vunpack.c.l.b16 %v2766
        %v3286 = vunpack.c.l.b16 %v2767
        %v3287 = vunpack.c.l.b16 %v2768
        %v3288 = vunpack.c.l.b16 %v2769
        %v3289 = vunpack.c.l.b16 %v2770
        %v3290 = vunpack.c.l.b16 %v2771
        %v3291 = vunpack.c.l.b16 %v2772
        %v3292 = vunpack.c.l.b16 %v2773
        %v3293 = vunpack.c.l.b16 %v2774
        %v3294 = vunpack.c.l.b16 %v2775
        %v3295 = vunpack.c.l.b16 %v2776
        %v3296 = vunpack.c.l.b16 %v2777
        %v3297 = vunpack.c.l.b16 %v2778
        %v3298 = vunpack.c.l.b16 %v2779
        %v3299 = vunpack.c.l.b16 %v2780
        %v3300 = vunpack.c.l.b16 %v2781
        %v3301 = vunpack.c.l.b16 %v2782
        %v3302 = vunpack.c.l.b16 %v2783
        %v3303 = vunpack.c.l.b16 %v2784
        %v3304 = vunpack.c.l.b16 %v2785
        %v3305 = vunpack.c.l.b16 %v2786
        %v3306 = vunpack.c.l.b16 %v2787
        %v3307 = vunpack.c.l.b16 %v2788
        %v3308 = vunpack.c.l.b16 %v2789
        %v3309 = vunpack.c.l.b16 %v2790
        %v3310 = vunpack.c.l.b16 %v2791
        %v3311 = vunpack.c.l.b16 %v2792
        %v3312 = vunpack.c.l.b16 %v2793
        %v3313 = vunpack.c.l.b16 %v2794
        %v3314 = vunpack.c.l.b16 %v2795
        %v3315 = vunpack.c.l.b16 %v2796
        %v3316 = vunpack.c.l.b16 %v2797
        %v3317 = vunpack.c.l.b16 %v2798
        %v3318 = vunpack.c.l.b16 %v2799
        %v3319 = vunpack.c.l.b16 %v2800
        %v3320 = vunpack.c.l.b16 %v2801
        %v3321 = vunpack.c.l.b16 %v2802
        %v3322 = vunpack.c.l.b16 %v2803
        %v3323 = vunpack.c.l.b16 %v2804
        %v3324 = vunpack.c.l.b16 %v2805
        %v3325 = vunpack.c.l.b16 %v2806
        %v3326 = vunpack.c.l.b16 %v2807
        %v3327 = vunpack.c.l.b16 %v2808
        %v3328 = vunpack.c.l.b16 %v2809
        %v3329 = vunpack.c.l.b16 %v2810
        %v3330 = vunpack.c.l.b16 %v2811
        %v3331 = vunpack.c.l.b16 %v2812
        %v3332 = vunpack.c.l.b16 %v2813
        %v3333 = vunpack.c.l.b16 %v2814
        %v3334 = vunpack.c.l.b16 %v2815
        %v3335 = vunpack.c.l.b16 %v2816
        %v3336 = vunpack.c.l.b16 %v2817
        %v3337 = vunpack.c.l.b16 %v2818
        %v3338 = vunpack.c.l.b16 %v2819
        %v3339 = vunpack.c.l.b16 %v2820
        %v3340 = vunpack.c.l.b16 %v2821
        %v3341 = vunpack.c.l.b16 %v2822
        %v3342 = vunpack.c.l.b16 %v2823
        %v3343 = vunpack.c.l.b16 %v2824
        %v3344 = vunpack.c.l.b16 %v2825
        %v3345 = vunpack.c.l.b16 %v2826
        %v3346 = vunpack.c.l.b16 %v2827
        %v3347 = vunpack.c.l.b16 %v2828
        %v3348 = vunpack.c.l.b16 %v2829
        %v3349 = vunpack.c.l.b16 %v2830
        %v3350 = vunpack.c.l.b16 %v2831
        %v3351 = vunpack.c.l.b16 %v2832
        %v3352 = vunpack.c.l.b16 %v2833
        %v3353 = vunpack.c.l.b16 %v2834
        %v3354 = vunpack.c.l.b16 %v2835
        %v3355 = vunpack.c.l.b16 %v2836
        %v3356 = vunpack.c.l.b16 %v2837
        %v3357 = vunpack.c.l.b16 %v2838
        %v3358 = vunpack.c.l.b16 %v2839
        %v3359 = vunpack.c.l.b16 %v2840
        %v3360 = vunpack.c.l.b16 %v2841
        %v3361 = vunpack.c.l.b16 %v2842
        %v3362 = vunpack.c.l.b16 %v2843
        %v3363 = vunpack.c.l.b16 %v2844
        %v3364 = vunpack.c.l.b16 %v2845
        %v3365 = vunpack.c.l.b16 %v2846
        %v3366 = vunpack.c.l.b16 %v2847
        %v3367 = vunpack.c.l.b16 %v2848
        %v3368 = vunpack.c.l.b16 %v2849
        %v3369 = vunpack.c.l.b16 %v2850
        %v3370 = vunpack.c.l.b16 %v2851
        %v3371 = vunpack.c.l.b16 %v2852
        %v3372 = vunpack.c.l.b16 %v2853
        %v3373 = vunpack.c.l.b16 %v2854
        %v3374 = vunpack.c.l.b16 %v2855
        %v3375 = vunpack.c.l.b16 %v2856
        %v3376 = vunpack.c.l.b16 %v2857
        %v3377 = vunpack.c.l.b16 %v2858
        %v3378 = vunpack.c.l.b16 %v2859
        %v3379 = vunpack.c.l.b16 %v2860
        %v3380 = vunpack.c.l.b16 %v2861
        %v3381 = vunpack.c.l.b16 %v2862
        %v3382 = vunpack.c.l.b16 %v2863
        %v3383 = vunpack.c.l.b16 %v2864
        %v3384 = vunpack.c.l.b16 %v2865
        %v3385 = vunpack.c.l.b16 %v2866
        %v3386 = vunpack.c.l.b16 %v2867
        %v3387 = vunpack.c.l.b16 %v2868
        %v3388 = vunpack.c.l.b16 %v2869
        %v3389 = vunpack.c.l.b16 %v2870
        %v3390 = vunpack.c.l.b16 %v2871
        %v3391 = vunpack.c.l.b16 %v2872
        %v3392 = vunpack.c.l.b16 %v2873
        %v3393 = vunpack.c.l.b16 %v2874
        %v3394 = vunpack.c.l.b16 %v2875
        %v3395 = vunpack.c.l.b16 %v2876
        %v3396 = vunpack.c.l.b16 %v2877
        %v3397 = vunpack.c.l.b16 %v2878
        %v3398 = vunpack.c.l.b16 %v2879
        %v3399 = vunpack.c.l.b16 %v2880
        %v3400 = vunpack.c.l.b16 %v2881
        %v3401 = vunpack.c.l.b16 %v2882
        %v3402 = vunpack.c.l.b16 %v2883
        %v3403 = vunpack.c.l.b16 %v2884
        %v3404 = vunpack.c.l.b16 %v2885
        %v3405 = vunpack.c.l.b16 %v2886
        %v3406 = vunpack.c.l.b16 %v2887
        %v3407 = vunpack.c.l.b16 %v2888
        %v3408 = vunpack.c.l.b16 %v2889
        %v3409 = vunpack.c.l.b16 %v2890
        %v3410 = vunpack.c.l.b16 %v2891
        %v3411 = vunpack.c.l.b16 %v2892
        %v3412 = vunpack.c.l.b16 %v2893
        %v3413 = vunpack.c.l.b16 %v2894
        %v3414 = vunpack.c.l.b16 %v2895
        %v3415 = vunpack.c.l.b16 %v2896
        %v3416 = vunpack.c.l.b16 %v2897
        %v3417 = vunpack.c.l.b16 %v2898
        %v3418 = vunpack.c.l.b16 %v2899
        %v3419 = vunpack.c.l.b16 %v2900
        %v3420 = vunpack.c.l.b16 %v2901
        %v3421 = vunpack.c.l.b16 %v2902
        %v3422 = vunpack.c.l.b16 %v2903
        %v3423 = vunpack.c.l.b16 %v2904
        %v3424 = vunpack.c.l.b16 %v2905
        %v3425 = vunpack.c.l.b16 %v2906
        %v3426 = vunpack.c.l.b16 %v2907
        %v3427 = vunpack.c.l.b16 %v2908
        %v3428 = vunpack.c.l.b16 %v2909
        %v3429 = vunpack.c.l.b16 %v2910
        %v3430 = vunpack.c.l.b16 %v2911
        %v3431 = vunpack.c.l.b16 %v2912
        %v3432 = vunpack.c.l.b16 %v2913
        %v3433 = vunpack.c.l.b16 %v2914
        %v3434 = vunpack.c.l.b16 %v2915
        %v3435 = vunpack.c.l.b16 %v2916
        %v3436 = vunpack.c.l.b16 %v2917
        %v3437 = vunpack.c.l.b16 %v2918
        %v3438 = vunpack.c.l.b16 %v2919
        %v3439 = vunpack.c.l.b16 %v2920
        %v3440 = vunpack.c.l.b16 %v2921
        %v3441 = vunpack.c.l.b16 %v2922
        %v3442 = vunpack.c.l.b16 %v2923
        %v3443 = vunpack.c.l.b16 %v2924
        %v3444 = vunpack.c.l.b16 %v2925
        %v3445 = vunpack.c.l.b16 %v2926
        %v3446 = vunpack.c.l.b16 %v2927
        %v3447 = vpack.c.b16 %v3192, %v3191
        %v3448 = vpack.c.b16 %v3194, %v3193
        %v3449 = vpack.c.b16 %v3196, %v3195
        %v3450 = vpack.c.b16 %v3198, %v3197
        %v3451 = vpack.c.b16 %v3200, %v3199
        %v3452 = vpack.c.b16 %v3202, %v3201
        %v3453 = vpack.c.b16 %v3204, %v3203
        %v3454 = vpack.c.b16 %v3206, %v3205
        %v3455 = vpack.c.b16 %v3208, %v3207
        %v3456 = vpack.c.b16 %v3210, %v3209
        %v3457 = vpack.c.b16 %v3212, %v3211
        %v3458 = vpack.c.b16 %v3214, %v3213
        %v3459 = vpack.c.b16 %v3216, %v3215
        %v3460 = vpack.c.b16 %v3218, %v3217
        %v3461 = vpack.c.b16 %v3220, %v3219
        %v3462 = vpack.c.b16 %v3222, %v3221
        %v3463 = vpack.c.b16 %v3224, %v3223
        %v3464 = vpack.c.b16 %v3226, %v3225
        %v3465 = vpack.c.b16 %v3228, %v3227
        %v3466 = vpack.c.b16 %v3230, %v3229
        %v3467 = vpack.c.b16 %v3232, %v3231
        %v3468 = vpack.c.b16 %v3234, %v3233
        %v3469 = vpack.c.b16 %v3236, %v3235
        %v3470 = vpack.c.b16 %v3238, %v3237
        %v3471 = vpack.c.b16 %v3240, %v3239
        %v3472 = vpack.c.b16 %v3242, %v3241
        %v3473 = vpack.c.b16 %v3244, %v3243
        %v3474 = vpack.c.b16 %v3246, %v3245
        %v3475 = vpack.c.b16 %v3248, %v3247
        %v3476 = vpack.c.b16 %v3250, %v3249
        %v3477 = vpack.c.b16 %v3252, %v3251
        %v3478 = vpack.c.b16 %v3254, %v3253
        %v3479 = vpack.c.b16 %v3256, %v3255
        %v3480 = vpack.c.b16 %v3258, %v3257
        %v3481 = vpack.c.b16 %v3260, %v3259
        %v3482 = vpack.c.b16 %v3262, %v3261
        %v3483 = vpack.c.b16 %v3264, %v3263
        %v3484 = vpack.c.b16 %v3266, %v3265
        %v3485 = vpack.c.b16 %v3268, %v3267
        %v3486 = vpack.c.b16 %v3270, %v3269
        %v3487 = vpack.c.b16 %v3272, %v3271
        %v3488 = vpack.c.b16 %v3274, %v3273
        %v3489 = vpack.c.b16 %v3276, %v3275
        %v3490 = vpack.c.b16 %v3278, %v3277
        %v3491 = vpack.c.b16 %v3280, %v3279
        %v3492 = vpack.c.b16 %v3282, %v3281
        %v3493 = vpack.c.b16 %v3284, %v3283
        %v3494 = vpack.c.b16 %v3286, %v3285
        %v3495 = vpack.c.b16 %v3288, %v3287
        %v3496 = vpack.c.b16 %v3290, %v3289
        %v3497 = vpack.c.b16 %v3292, %v3291
        %v3498 = vpack.c.b16 %v3294, %v3293
        %v3499 = vpack.c.b16 %v3296, %v3295
        %v3500 = vpack.c.b16 %v3298, %v3297
        %v3501 = vpack.c.b16 %v3300, %v3299
        %v3502 = vpack.c.b16 %v3302, %v3301
        %v3503 = vpack.c.b16 %v3304, %v3303
        %v3504 = vpack.c.b16 %v3306, %v3305
        %v3505 = vpack.c.b16 %v3308, %v3307
        %v3506 = vpack.c.b16 %v3310, %v3309
        %v3507 = vpack.c.b16 %v3312, %v3311
        %v3508 = vpack.c.b16 %v3314, %v3313
        %v3509 = vpack.c.b16 %v3316, %v3315
        %v3510 = vpack.c.b16 %v3318, %v3317
        %v3511 = vpack.c.b16 %v3320, %v3319
        %v3512 = vpack.c.b16 %v3322, %v3321
        %v3513 = vpack.c.b16 %v3324, %v3323
        %v3514 = vpack.c.b16 %v3326, %v3325
        %v3515 = vpack.c.b16 %v3328, %v3327
        %v3516 = vpack.c.b16 %v3330, %v3329
        %v3517 = vpack.c.b16 %v3332, %v3331
        %v3518 = vpack.c.b16 %v3334, %v3333
        %v3519 = vpack.c.b16 %v3336, %v3335
        %v3520 = vpack.c.b16 %v3338, %v3337
        %v3521 = vpack.c.b16 %v3340, %v3339
        %v3522 = vpack.c.b16 %v3342, %v3341
        %v3523 = vpack.c.b16 %v3344, %v3343
        %v3524 = vpack.c.b16 %v3346, %v3345
        %v3525 = vpack.c.b16 %v3348, %v3347
        %v3526 = vpack.c.b16 %v3350, %v3349
        %v3527 = vpack.c.b16 %v3352, %v3351
        %v3528 = vpack.c.b16 %v3354, %v3353
        %v3529 = vpack.c.b16 %v3356, %v3355
        %v3530 = vpack.c.b16 %v3358, %v3357
        %v3531 = vpack.c.b16 %v3360, %v3359
        %v3532 = vpack.c.b16 %v3362, %v3361
        %v3533 = vpack.c.b16 %v3364, %v3363
        %v3534 = vpack.c.b16 %v3366, %v3365
        %v3535 = vpack.c.b16 %v3368, %v3367
        %v3536 = vpack.c.b16 %v3370, %v3369
        %v3537 = vpack.c.b16 %v3372, %v3371
        %v3538 = vpack.c.b16 %v3374, %v3373
        %v3539 = vpack.c.b16 %v3376, %v3375
        %v3540 = vpack.c.b16 %v3378, %v3377
        %v3541 = vpack.c.b16 %v3380, %v3379
        %v3542 = vpack.c.b16 %v3382, %v3381
        %v3543 = vpack.c.b16 %v3384, %v3383
        %v3544 = vpack.c.b16 %v3386, %v3385
        %v3545 = vpack.c.b16 %v3388, %v3387
        %v3546 = vpack.c.b16 %v3390, %v3389
        %v3547 = vpack.c.b16 %v3392, %v3391
        %v3548 = vpack.c.b16 %v3394, %v3393
        %v3549 = vpack.c.b16 %v3396, %v3395
        %v3550 = vpack.c.b16 %v3398, %v3397
        %v3551 = vpack.c.b16 %v3400, %v3399
        %v3552 = vpack.c.b16 %v3402, %v3401
        %v3553 = vpack.c.b16 %v3404, %v3403
        %v3554 = vpack.c.b16 %v3406, %v3405
        %v3555 = vpack.c.b16 %v3408, %v3407
        %v3556 = vpack.c.b16 %v3410, %v3409
        %v3557 = vpack.c.b16 %v3412, %v3411
        %v3558 = vpack.c.b16 %v3414, %v3413
        %v3559 = vpack.c.b16 %v3416, %v3415
        %v3560 = vpack.c.b16 %v3418, %v3417
        %v3561 = vpack.c.b16 %v3420, %v3419
        %v3562 = vpack.c.b16 %v3422, %v3421
        %v3563 = vpack.c.b16 %v3424, %v3423
        %v3564 = vpack.c.b16 %v3426, %v3425
        %v3565 = vpack.c.b16 %v3428, %v3427
        %v3566 = vpack.c.b16 %v3430, %v3429
        %v3567 = vpack.c.b16 %v3432, %v3431
        %v3568 = vpack.c.b16 %v3434, %v3433
        %v3569 = vpack.c.b16 %v3436, %v3435
        %v3570 = vpack.c.b16 %v3438, %v3437
        %v3571 = vpack.c.b16 %v3440, %v3439
        %v3572 = vpack.c.b16 %v3442, %v3441
        %v3573 = vpack.c.b16 %v3444, %v3443
        %v3574 = vpack.c.b16 %v3446, %v3445
        %3703 = vmatprep.subr.bf16.mxu0 0
        %3704 = vmatpush1.bf16.msra.mxu0 %v3447
        %3705 = vmatprep.subr.bf16.mxu0 0
        %3706 = vmatpush1.bf16.msra.mxu0 %v3448
        %3707 = vmatprep.subr.bf16.mxu0 0
        %3708 = vmatpush1.bf16.msra.mxu0 %v3449
        %3709 = vmatprep.subr.bf16.mxu0 0
        %3710 = vmatpush1.bf16.msra.mxu0 %v3450
        %3711 = vmatprep.subr.bf16.mxu0 0
        %3712 = vmatpush1.bf16.msra.mxu0 %v3451
        %3713 = vmatprep.subr.bf16.mxu0 0
        %3714 = vmatpush1.bf16.msra.mxu0 %v3452
        %3715 = vmatprep.subr.bf16.mxu0 0
        %3716 = vmatpush1.bf16.msra.mxu0 %v3453
        %3717 = vmatprep.subr.bf16.mxu0 0
        %3718 = vmatpush1.bf16.msra.mxu0 %v3454
        %3719 = vmatprep.subr.bf16.mxu0 0
        %3720 = vmatpush1.bf16.msra.mxu0 %v3455
        %3721 = vmatprep.subr.bf16.mxu0 0
        %3722 = vmatpush1.bf16.msra.mxu0 %v3456
        %3723 = vmatprep.subr.bf16.mxu0 0
        %3724 = vmatpush1.bf16.msra.mxu0 %v3457
        %3725 = vmatprep.subr.bf16.mxu0 0
        %3726 = vmatpush1.bf16.msra.mxu0 %v3458
        %3727 = vmatprep.subr.bf16.mxu0 0
        %3728 = vmatpush1.bf16.msra.mxu0 %v3459
        %3729 = vmatprep.subr.bf16.mxu0 0
        %3730 = vmatpush1.bf16.msra.mxu0 %v3460
        %3731 = vmatprep.subr.bf16.mxu0 0
        %3732 = vmatpush1.bf16.msra.mxu0 %v3461
        %3733 = vmatprep.subr.bf16.mxu0 0
        %3734 = vmatpush1.bf16.msra.mxu0 %v3462
        %3735 = vmatprep.mubr.bf16.mxu0 %v2657
        %3736 = vmatmul.mubr.bf16.gmra.mrb[0].mxu0 %v2656
        %v3737 = vpop.f32.mrb[0].mxu0
        %v3738 = vadd.f32 %v2933, %v3737
        %v3739 = vpop.f32.mrb[0].mxu0
        %v3740 = vpop.f32.mrb[0].mxu0
        %v3741 = vpop.f32.mrb[0].mxu0
        %3742 = vdwg.mxu0
        %3743 = vmatprep.subr.bf16.mxu0 0
        %3744 = vmatpush1.bf16.msra.mxu0 %v3463
        %3745 = vmatprep.subr.bf16.mxu0 0
        %3746 = vmatpush1.bf16.msra.mxu0 %v3464
        %3747 = vmatprep.subr.bf16.mxu0 0
        %3748 = vmatpush1.bf16.msra.mxu0 %v3465
        %3749 = vmatprep.subr.bf16.mxu0 0
        %3750 = vmatpush1.bf16.msra.mxu0 %v3466
        %3751 = vmatprep.subr.bf16.mxu0 0
        %3752 = vmatpush1.bf16.msra.mxu0 %v3467
        %3753 = vmatprep.subr.bf16.mxu0 0
        %3754 = vmatpush1.bf16.msra.mxu0 %v3468
        %3755 = vmatprep.subr.bf16.mxu0 0
        %3756 = vmatpush1.bf16.msra.mxu0 %v3469
        %3757 = vmatprep.subr.bf16.mxu0 0
        %3758 = vmatpush1.bf16.msra.mxu0 %v3470
        %3759 = vmatprep.subr.bf16.mxu0 0
        %3760 = vmatpush1.bf16.msra.mxu0 %v3471
        %3761 = vmatprep.subr.bf16.mxu0 0
        %3762 = vmatpush1.bf16.msra.mxu0 %v3472
        %3763 = vmatprep.subr.bf16.mxu0 0
        %3764 = vmatpush1.bf16.msra.mxu0 %v3473
        %3765 = vmatprep.subr.bf16.mxu0 0
        %3766 = vmatpush1.bf16.msra.mxu0 %v3474
        %3767 = vmatprep.subr.bf16.mxu0 0
        %3768 = vmatpush1.bf16.msra.mxu0 %v3475
        %3769 = vmatprep.subr.bf16.mxu0 0
        %3770 = vmatpush1.bf16.msra.mxu0 %v3476
        %3771 = vmatprep.subr.bf16.mxu0 0
        %3772 = vmatpush1.bf16.msra.mxu0 %v3477
        %3773 = vmatprep.subr.bf16.mxu0 0
        %3774 = vmatpush1.bf16.msra.mxu0 %v3478
        %3775 = vmatprep.mubr.bf16.mxu0 %v2659
        %3776 = vmatmul.mubr.bf16.gmra.mrb[0].mxu0 %v2658
        %v3777 = vpop.f32.mrb[0].mxu0
        %v3778 = vadd.f32 %v3738, %v3777
        %v3779 = vpop.f32.mrb[0].mxu0
        %v3780 = vpop.f32.mrb[0].mxu0
        %v3781 = vpop.f32.mrb[0].mxu0
        %3782 = vdwg.mxu0
        %3783 = vmatprep.subr.bf16.mxu0 0
        %3784 = vmatpush1.bf16.msra.mxu0 %v3479
        %3785 = vmatprep.subr.bf16.mxu0 0
        %3786 = vmatpush1.bf16.msra.mxu0 %v3480
        %3787 = vmatprep.subr.bf16.mxu0 0
        %3788 = vmatpush1.bf16.msra.mxu0 %v3481
        %3789 = vmatprep.subr.bf16.mxu0 0
        %3790 = vmatpush1.bf16.msra.mxu0 %v3482
        %3791 = vmatprep.subr.bf16.mxu0 0
        %3792 = vmatpush1.bf16.msra.mxu0 %v3483
        %3793 = vmatprep.subr.bf16.mxu0 0
        %3794 = vmatpush1.bf16.msra.mxu0 %v3484
        %3795 = vmatprep.subr.bf16.mxu0 0
        %3796 = vmatpush1.bf16.msra.mxu0 %v3485
        %3797 = vmatprep.subr.bf16.mxu0 0
        %3798 = vmatpush1.bf16.msra.mxu0 %v3486
        %3799 = vmatprep.subr.bf16.mxu0 0
        %3800 = vmatpush1.bf16.msra.mxu0 %v3487
        %3801 = vmatprep.subr.bf16.mxu0 0
        %3802 = vmatpush1.bf16.msra.mxu0 %v3488
        %3803 = vmatprep.subr.bf16.mxu0 0
        %3804 = vmatpush1.bf16.msra.mxu0 %v3489
        %3805 = vmatprep.subr.bf16.mxu0 0
        %3806 = vmatpush1.bf16.msra.mxu0 %v3490
        %3807 = vmatprep.subr.bf16.mxu0 0
        %3808 = vmatpush1.bf16.msra.mxu0 %v3491
        %3809 = vmatprep.subr.bf16.mxu0 0
        %3810 = vmatpush1.bf16.msra.mxu0 %v3492
        %3811 = vmatprep.subr.bf16.mxu0 0
        %3812 = vmatpush1.bf16.msra.mxu0 %v3493
        %3813 = vmatprep.subr.bf16.mxu0 0
        %3814 = vmatpush1.bf16.msra.mxu0 %v3494
        %3815 = vmatprep.mubr.bf16.mxu0 %v2661
        %3816 = vmatmul.mubr.bf16.gmra.mrb[0].mxu0 %v2660
        %v3817 = vpop.f32.mrb[0].mxu0
        %v3818 = vadd.f32 %v3778, %v3817
        %v3819 = vpop.f32.mrb[0].mxu0
        %v3820 = vpop.f32.mrb[0].mxu0
        %v3821 = vpop.f32.mrb[0].mxu0
        %3822 = vdwg.mxu0
        %3823 = vmatprep.subr.bf16.mxu0 0
        %3824 = vmatpush1.bf16.msra.mxu0 %v3495
        %3825 = vmatprep.subr.bf16.mxu0 0
        %3826 = vmatpush1.bf16.msra.mxu0 %v3496
        %3827 = vmatprep.subr.bf16.mxu0 0
        %3828 = vmatpush1.bf16.msra.mxu0 %v3497
        %3829 = vmatprep.subr.bf16.mxu0 0
        %3830 = vmatpush1.bf16.msra.mxu0 %v3498
        %3831 = vmatprep.subr.bf16.mxu0 0
        %3832 = vmatpush1.bf16.msra.mxu0 %v3499
        %3833 = vmatprep.subr.bf16.mxu0 0
        %3834 = vmatpush1.bf16.msra.mxu0 %v3500
        %3835 = vmatprep.subr.bf16.mxu0 0
        %3836 = vmatpush1.bf16.msra.mxu0 %v3501
        %3837 = vmatprep.subr.bf16.mxu0 0
        %3838 = vmatpush1.bf16.msra.mxu0 %v3502
        %3839 = vmatprep.subr.bf16.mxu0 0
        %3840 = vmatpush1.bf16.msra.mxu0 %v3503
        %3841 = vmatprep.subr.bf16.mxu0 0
        %3842 = vmatpush1.bf16.msra.mxu0 %v3504
        %3843 = vmatprep.subr.bf16.mxu0 0
        %3844 = vmatpush1.bf16.msra.mxu0 %v3505
        %3845 = vmatprep.subr.bf16.mxu0 0
        %3846 = vmatpush1.bf16.msra.mxu0 %v3506
        %3847 = vmatprep.subr.bf16.mxu0 0
        %3848 = vmatpush1.bf16.msra.mxu0 %v3507
        %3849 = vmatprep.subr.bf16.mxu0 0
        %3850 = vmatpush1.bf16.msra.mxu0 %v3508
        %3851 = vmatprep.subr.bf16.mxu0 0
        %3852 = vmatpush1.bf16.msra.mxu0 %v3509
        %3853 = vmatprep.subr.bf16.mxu0 0
        %3854 = vmatpush1.bf16.msra.mxu0 %v3510
        %3855 = vmatprep.mubr.bf16.mxu0 %v2663
        %3856 = vmatmul.mubr.bf16.gmra.mrb[0].mxu0 %v2662
        %v3857 = vpop.f32.mrb[0].mxu0
        %v3858 = vadd.f32 %v3818, %v3857
        %v3859 = vpop.f32.mrb[0].mxu0
        %v3860 = vpop.f32.mrb[0].mxu0
        %v3861 = vpop.f32.mrb[0].mxu0
        %3862 = vdwg.mxu0
        %3863 = vmatprep.subr.bf16.mxu0 0
        %3864 = vmatpush1.bf16.msra.mxu0 %v3511
        %3865 = vmatprep.subr.bf16.mxu0 0
        %3866 = vmatpush1.bf16.msra.mxu0 %v3512
        %3867 = vmatprep.subr.bf16.mxu0 0
        %3868 = vmatpush1.bf16.msra.mxu0 %v3513
        %3869 = vmatprep.subr.bf16.mxu0 0
        %3870 = vmatpush1.bf16.msra.mxu0 %v3514
        %3871 = vmatprep.subr.bf16.mxu0 0
        %3872 = vmatpush1.bf16.msra.mxu0 %v3515
        %3873 = vmatprep.subr.bf16.mxu0 0
        %3874 = vmatpush1.bf16.msra.mxu0 %v3516
        %3875 = vmatprep.subr.bf16.mxu0 0
        %3876 = vmatpush1.bf16.msra.mxu0 %v3517
        %3877 = vmatprep.subr.bf16.mxu0 0
        %3878 = vmatpush1.bf16.msra.mxu0 %v3518
        %3879 = vmatprep.subr.bf16.mxu0 0
        %3880 = vmatpush1.bf16.msra.mxu0 %v3519
        %3881 = vmatprep.subr.bf16.mxu0 0
        %3882 = vmatpush1.bf16.msra.mxu0 %v3520
        %3883 = vmatprep.subr.bf16.mxu0 0
        %3884 = vmatpush1.bf16.msra.mxu0 %v3521
        %3885 = vmatprep.subr.bf16.mxu0 0
        %3886 = vmatpush1.bf16.msra.mxu0 %v3522
        %3887 = vmatprep.subr.bf16.mxu0 0
        %3888 = vmatpush1.bf16.msra.mxu0 %v3523
        %3889 = vmatprep.subr.bf16.mxu0 0
        %3890 = vmatpush1.bf16.msra.mxu0 %v3524
        %3891 = vmatprep.subr.bf16.mxu0 0
        %3892 = vmatpush1.bf16.msra.mxu0 %v3525
        %3893 = vmatprep.subr.bf16.mxu0 0
        %3894 = vmatpush1.bf16.msra.mxu0 %v3526
        %3895 = vmatprep.mubr.bf16.mxu0 %v2665
        %3896 = vmatmul.mubr.bf16.gmra.mrb[0].mxu0 %v2664
        %v3897 = vpop.f32.mrb[0].mxu0
        %v3898 = vadd.f32 %v3858, %v3897
        %v3899 = vpop.f32.mrb[0].mxu0
        %v3900 = vpop.f32.mrb[0].mxu0
        %v3901 = vpop.f32.mrb[0].mxu0
        %3902 = vdwg.mxu0
        %3903 = vmatprep.subr.bf16.mxu0 0
        %3904 = vmatpush1.bf16.msra.mxu0 %v3527
        %3905 = vmatprep.subr.bf16.mxu0 0
        %3906 = vmatpush1.bf16.msra.mxu0 %v3528
        %3907 = vmatprep.subr.bf16.mxu0 0
        %3908 = vmatpush1.bf16.msra.mxu0 %v3529
        %3909 = vmatprep.subr.bf16.mxu0 0
        %3910 = vmatpush1.bf16.msra.mxu0 %v3530
        %3911 = vmatprep.subr.bf16.mxu0 0
        %3912 = vmatpush1.bf16.msra.mxu0 %v3531
        %3913 = vmatprep.subr.bf16.mxu0 0
        %3914 = vmatpush1.bf16.msra.mxu0 %v3532
        %3915 = vmatprep.subr.bf16.mxu0 0
        %3916 = vmatpush1.bf16.msra.mxu0 %v3533
        %3917 = vmatprep.subr.bf16.mxu0 0
        %3918 = vmatpush1.bf16.msra.mxu0 %v3534
        %3919 = vmatprep.subr.bf16.mxu0 0
        %3920 = vmatpush1.bf16.msra.mxu0 %v3535
        %3921 = vmatprep.subr.bf16.mxu0 0
        %3922 = vmatpush1.bf16.msra.mxu0 %v3536
        %3923 = vmatprep.subr.bf16.mxu0 0
        %3924 = vmatpush1.bf16.msra.mxu0 %v3537
        %3925 = vmatprep.subr.bf16.mxu0 0
        %3926 = vmatpush1.bf16.msra.mxu0 %v3538
        %3927 = vmatprep.subr.bf16.mxu0 0
        %3928 = vmatpush1.bf16.msra.mxu0 %v3539
        %3929 = vmatprep.subr.bf16.mxu0 0
        %3930 = vmatpush1.bf16.msra.mxu0 %v3540
        %3931 = vmatprep.subr.bf16.mxu0 0
        %3932 = vmatpush1.bf16.msra.mxu0 %v3541
        %3933 = vmatprep.subr.bf16.mxu0 0
        %3934 = vmatpush1.bf16.msra.mxu0 %v3542
        %3935 = vmatprep.mubr.bf16.mxu0 %v2667
        %3936 = vmatmul.mubr.bf16.gmra.mrb[0].mxu0 %v2666
        %v3937 = vpop.f32.mrb[0].mxu0
        %v3938 = vadd.f32 %v3898, %v3937
        %v3939 = vpop.f32.mrb[0].mxu0
        %v3940 = vpop.f32.mrb[0].mxu0
        %v3941 = vpop.f32.mrb[0].mxu0
        %3942 = vdwg.mxu0
        %3943 = vmatprep.subr.bf16.mxu0 0
        %3944 = vmatpush1.bf16.msra.mxu0 %v3543
        %3945 = vmatprep.subr.bf16.mxu0 0
        %3946 = vmatpush1.bf16.msra.mxu0 %v3544
        %3947 = vmatprep.subr.bf16.mxu0 0
        %3948 = vmatpush1.bf16.msra.mxu0 %v3545
        %3949 = vmatprep.subr.bf16.mxu0 0
        %3950 = vmatpush1.bf16.msra.mxu0 %v3546
        %3951 = vmatprep.subr.bf16.mxu0 0
        %3952 = vmatpush1.bf16.msra.mxu0 %v3547
        %3953 = vmatprep.subr.bf16.mxu0 0
        %3954 = vmatpush1.bf16.msra.mxu0 %v3548
        %3955 = vmatprep.subr.bf16.mxu0 0
        %3956 = vmatpush1.bf16.msra.mxu0 %v3549
        %3957 = vmatprep.subr.bf16.mxu0 0
        %3958 = vmatpush1.bf16.msra.mxu0 %v3550
        %3959 = vmatprep.subr.bf16.mxu0 0
        %3960 = vmatpush1.bf16.msra.mxu0 %v3551
        %3961 = vmatprep.subr.bf16.mxu0 0
        %3962 = vmatpush1.bf16.msra.mxu0 %v3552
        %3963 = vmatprep.subr.bf16.mxu0 0
        %3964 = vmatpush1.bf16.msra.mxu0 %v3553
        %3965 = vmatprep.subr.bf16.mxu0 0
        %3966 = vmatpush1.bf16.msra.mxu0 %v3554
        %3967 = vmatprep.subr.bf16.mxu0 0
        %3968 = vmatpush1.bf16.msra.mxu0 %v3555
        %3969 = vmatprep.subr.bf16.mxu0 0
        %3970 = vmatpush1.bf16.msra.mxu0 %v3556
        %3971 = vmatprep.subr.bf16.mxu0 0
        %3972 = vmatpush1.bf16.msra.mxu0 %v3557
        %3973 = vmatprep.subr.bf16.mxu0 0
        %3974 = vmatpush1.bf16.msra.mxu0 %v3558
        %3975 = vmatprep.mubr.bf16.mxu0 %v2669
        %3976 = vmatmul.mubr.bf16.gmra.mrb[0].mxu0 %v2668
        %v3977 = vpop.f32.mrb[0].mxu0
        %v3978 = vadd.f32 %v3938, %v3977
        %v3979 = vpop.f32.mrb[0].mxu0
        %v3980 = vpop.f32.mrb[0].mxu0
        %v3981 = vpop.f32.mrb[0].mxu0
        %3982 = vdwg.mxu0
        %3983 = vmatprep.subr.bf16.mxu0 0
        %3984 = vmatpush1.bf16.msra.mxu0 %v3559
        %3985 = vmatprep.subr.bf16.mxu0 0
        %3986 = vmatpush1.bf16.msra.mxu0 %v3560
        %3987 = vmatprep.subr.bf16.mxu0 0
        %3988 = vmatpush1.bf16.msra.mxu0 %v3561
        %3989 = vmatprep.subr.bf16.mxu0 0
        %3990 = vmatpush1.bf16.msra.mxu0 %v3562
        %3991 = vmatprep.subr.bf16.mxu0 0
        %3992 = vmatpush1.bf16.msra.mxu0 %v3563
        %3993 = vmatprep.subr.bf16.mxu0 0
        %3994 = vmatpush1.bf16.msra.mxu0 %v3564
        %3995 = vmatprep.subr.bf16.mxu0 0
        %3996 = vmatpush1.bf16.msra.mxu0 %v3565
        %3997 = vmatprep.subr.bf16.mxu0 0
        %3998 = vmatpush1.bf16.msra.mxu0 %v3566
        %3999 = vmatprep.subr.bf16.mxu0 0
        %4000 = vmatpush1.bf16.msra.mxu0 %v3567
        %4001 = vmatprep.subr.bf16.mxu0 0
        %4002 = vmatpush1.bf16.msra.mxu0 %v3568
        %4003 = vmatprep.subr.bf16.mxu0 0
        %4004 = vmatpush1.bf16.msra.mxu0 %v3569
        %4005 = vmatprep.subr.bf16.mxu0 0
        %4006 = vmatpush1.bf16.msra.mxu0 %v3570
        %4007 = vmatprep.subr.bf16.mxu0 0
        %4008 = vmatpush1.bf16.msra.mxu0 %v3571
        %4009 = vmatprep.subr.bf16.mxu0 0
        %4010 = vmatpush1.bf16.msra.mxu0 %v3572
        %4011 = vmatprep.subr.bf16.mxu0 0
        %4012 = vmatpush1.bf16.msra.mxu0 %v3573
        %4013 = vmatprep.subr.bf16.mxu0 0
        %4014 = vmatpush1.bf16.msra.mxu0 %v3574
        %4015 = vmatprep.mubr.bf16.mxu0 %v2671
        %4016 = vmatmul.mubr.bf16.gmra.mrb[0].mxu0 %v2670
        %v4017 = vpop.f32.mrb[0].mxu0
        %v4018 = vadd.f32 %v3978, %v4017
        %v4019 = vpop.f32.mrb[0].mxu0
        %v4020 = vpop.f32.mrb[0].mxu0
        %v4021 = vpop.f32.mrb[0].mxu0
        %4022 = vdwg.mxu0
        %v4023 = vadd.f32 %v1458, %v4018
        %4024 = vadd.xlane.f32.xlu0 %v4023
        %v4025 = vpop.xlane.xlu0 %4024
        %v4026 = vmul.f32 %v4025, %v1433
        %v4027 = vsub.f32 %v4023, %v4026
        %v4028 = vmul.f32 %v4027, %v4027
        %4029 = vadd.xlane.f32.xlu0 %v4028
        %v4030 = vpop.xlane.xlu0 %4029
        %v4031 = vmul.f32 %v4030, %v1433
        %v4032 = vadd.f32 %v4031, 1e-05
        %v4033 = vrsqrt.pop %v4032
        %v4034 = vmul.f32 %v4027, %v4033
        %v4035 = vld [vmem:[%s11] sm:$0x1]
        %v4037 = vlaneseq
        %v4038 = vshrl.u32 %v4037, 7
        %v4039 = vsub.s32 0, %v4038
        %v4040 = vrot.slane %v4035, %v4039
        %v4042 = vmul.f32 %v4034, %v4040
        %v4043 = vld [vmem:[%s12] sm:$0x1]
        %v4045 = vlaneseq
        %v4046 = vshrl.u32 %v4045, 7
        %v4047 = vsub.s32 0, %v4046
        %v4048 = vrot.slane %v4043, %v4047
        %v4050 = vadd.f32 %v4042, %v4048
        %v4051 = vpack.c.bf16 %v4050, %v4050
        %s4052 = scalar_lea.vmem [#allocation5], 192
        %v4053 = vld [vmem:[%s4052] sm:$0xff]
        %v4054 = vld [vmem:[%s4052 + $0x8] sm:$0xf]
        %v4055 = vld [vmem:[%s4052 + $0xc] sm:$0xff]
        %v4056 = vld [vmem:[%s4052 + $0x14] sm:$0xf]
        %v4057 = vld [vmem:[%s4052 + $0x18] sm:$0xff]
        %v4058 = vld [vmem:[%s4052 + $0x20] sm:$0xf]
        %v4059 = vld [vmem:[%s4052 + $0x24] sm:$0xff]
        %v4060 = vld [vmem:[%s4052 + $0x2c] sm:$0xf]
        %v4061 = vld [vmem:[%s4052 + $0x30] sm:$0xff]
        %v4062 = vld [vmem:[%s4052 + $0x38] sm:$0xf]
        %v4063 = vld [vmem:[%s4052 + $0x3c] sm:$0xff]
        %v4064 = vld [vmem:[%s4052 + $0x44] sm:$0xf]
        %v4065 = vld [vmem:[%s4052 + $0x48] sm:$0xff]
        %v4066 = vld [vmem:[%s4052 + $0x50] sm:$0xf]
        %v4067 = vld [vmem:[%s4052 + $0x54] sm:$0xff]
        %v4068 = vld [vmem:[%s4052 + $0x5c] sm:$0xf]
        %v4069 = vld [vmem:[%s4052 + $0x60] sm:$0xff]
        %v4070 = vld [vmem:[%s4052 + $0x68] sm:$0xf]
        %v4071 = vld [vmem:[%s4052 + $0x6c] sm:$0xff]
        %v4072 = vld [vmem:[%s4052 + $0x74] sm:$0xf]
        %v4073 = vld [vmem:[%s4052 + $0x78] sm:$0xff]
        %v4074 = vld [vmem:[%s4052 + $0x80] sm:$0xf]
        %v4075 = vld [vmem:[%s4052 + $0x84] sm:$0xff]
        %v4076 = vld [vmem:[%s4052 + $0x8c] sm:$0xf]
        %v4077 = vld [vmem:[%s4052 + $0x90] sm:$0xff]
        %v4078 = vld [vmem:[%s4052 + $0x98] sm:$0xf]
        %v4079 = vld [vmem:[%s4052 + $0x9c] sm:$0xff]
        %v4080 = vld [vmem:[%s4052 + $0xa4] sm:$0xf]
        %v4081 = vld [vmem:[%s4052 + $0xa8] sm:$0xff]
        %v4082 = vld [vmem:[%s4052 + $0xb0] sm:$0xf]
        %v4083 = vld [vmem:[%s4052 + $0xb4] sm:$0xff]
        %v4084 = vld [vmem:[%s4052 + $0xbc] sm:$0xf]
        %s4085 = scalar_lea.vmem %s2, 3
        %v4086 = vld [vmem:[%s4085] sm:$0x7]
        %v4088 = vlaneseq
        %v4089 = vshrl.u32 %v4088, 7
        %v4090 = vsub.s32 0, %v4089
        %v4091 = vrot.slane %v4086, %v4090
        %v4092 = vlaneseq
        %v4093 = vshrl.u32 %v4092, 7
        %v4094 = vsub.s32 1, %v4093
        %v4095 = vrot.slane %v4086, %v4094
        %v4096 = vlaneseq
        %v4097 = vshrl.u32 %v4096, 7
        %v4098 = vsub.s32 2, %v4097
        %v4099 = vrot.slane %v4086, %v4098
        %v4135 = vunpack.c.l.b16 %v4053
        %v4136 = vunpack.c.h.b16 %v4053
        %v4137 = vunpack.c.l.b16 %v4054
        %v4138 = vunpack.c.l.b16 %v4055
        %v4139 = vunpack.c.h.b16 %v4055
        %v4140 = vunpack.c.l.b16 %v4056
        %v4141 = vunpack.c.l.b16 %v4057
        %v4142 = vunpack.c.h.b16 %v4057
        %v4143 = vunpack.c.l.b16 %v4058
        %v4144 = vunpack.c.l.b16 %v4059
        %v4145 = vunpack.c.h.b16 %v4059
        %v4146 = vunpack.c.l.b16 %v4060
        %v4147 = vunpack.c.l.b16 %v4061
        %v4148 = vunpack.c.h.b16 %v4061
        %v4149 = vunpack.c.l.b16 %v4062
        %v4150 = vunpack.c.l.b16 %v4063
        %v4151 = vunpack.c.h.b16 %v4063
        %v4152 = vunpack.c.l.b16 %v4064
        %v4153 = vunpack.c.l.b16 %v4065
        %v4154 = vunpack.c.h.b16 %v4065
        %v4155 = vunpack.c.l.b16 %v4066
        %v4156 = vunpack.c.l.b16 %v4067
        %v4157 = vunpack.c.h.b16 %v4067
        %v4158 = vunpack.c.l.b16 %v4068
        %v4159 = vunpack.c.l.b16 %v4069
        %v4160 = vunpack.c.h.b16 %v4069
        %v4161 = vunpack.c.l.b16 %v4070
        %v4162 = vunpack.c.l.b16 %v4071
        %v4163 = vunpack.c.h.b16 %v4071
        %v4164 = vunpack.c.l.b16 %v4072
        %v4165 = vunpack.c.l.b16 %v4073
        %v4166 = vunpack.c.h.b16 %v4073
        %v4167 = vunpack.c.l.b16 %v4074
        %v4168 = vunpack.c.l.b16 %v4075
        %v4169 = vunpack.c.h.b16 %v4075
        %v4170 = vunpack.c.l.b16 %v4076
        %v4171 = vunpack.c.l.b16 %v4077
        %v4172 = vunpack.c.h.b16 %v4077
        %v4173 = vunpack.c.l.b16 %v4078
        %v4174 = vunpack.c.l.b16 %v4079
        %v4175 = vunpack.c.h.b16 %v4079
        %v4176 = vunpack.c.l.b16 %v4080
        %v4177 = vunpack.c.l.b16 %v4081
        %v4178 = vunpack.c.h.b16 %v4081
        %v4179 = vunpack.c.l.b16 %v4082
        %v4180 = vunpack.c.l.b16 %v4083
        %v4181 = vunpack.c.h.b16 %v4083
        %v4182 = vunpack.c.l.b16 %v4084
        %v4183 = vpack.c.b16 %v4138, %v4135
        %v4184 = vpack.c.b16 %v4139, %v4136
        %v4185 = vpack.c.b16 %v4140, %v4137
        %v4186 = vpack.c.b16 %v4144, %v4141
        %v4187 = vpack.c.b16 %v4145, %v4142
        %v4188 = vpack.c.b16 %v4146, %v4143
        %v4189 = vpack.c.b16 %v4150, %v4147
        %v4190 = vpack.c.b16 %v4151, %v4148
        %v4191 = vpack.c.b16 %v4152, %v4149
        %v4192 = vpack.c.b16 %v4156, %v4153
        %v4193 = vpack.c.b16 %v4157, %v4154
        %v4194 = vpack.c.b16 %v4158, %v4155
        %v4195 = vpack.c.b16 %v4162, %v4159
        %v4196 = vpack.c.b16 %v4163, %v4160
        %v4197 = vpack.c.b16 %v4164, %v4161
        %v4198 = vpack.c.b16 %v4168, %v4165
        %v4199 = vpack.c.b16 %v4169, %v4166
        %v4200 = vpack.c.b16 %v4170, %v4167
        %v4201 = vpack.c.b16 %v4174, %v4171
        %v4202 = vpack.c.b16 %v4175, %v4172
        %v4203 = vpack.c.b16 %v4176, %v4173
        %v4204 = vpack.c.b16 %v4180, %v4177
        %v4205 = vpack.c.b16 %v4181, %v4178
        %v4206 = vpack.c.b16 %v4182, %v4179
        %4231 = vmatprep.subr.bf16.mxu0 %v4184
        %4232 = vmatpush1.bf16.msra.mxu0 %v4183
        %4233 = vmatprep.subr.bf16.mxu0 %v4187
        %4234 = vmatpush1.bf16.msra.mxu0 %v4186
        %4235 = vmatprep.subr.bf16.mxu0 %v4190
        %4236 = vmatpush1.bf16.msra.mxu0 %v4189
        %4237 = vmatprep.subr.bf16.mxu0 %v4193
        %4238 = vmatpush1.bf16.msra.mxu0 %v4192
        %4239 = vmatprep.subr.bf16.mxu0 %v4196
        %4240 = vmatpush1.bf16.msra.mxu0 %v4195
        %4241 = vmatprep.subr.bf16.mxu0 %v4199
        %4242 = vmatpush1.bf16.msra.mxu0 %v4198
        %4243 = vmatprep.subr.bf16.mxu0 %v4202
        %4244 = vmatpush1.bf16.msra.mxu0 %v4201
        %4245 = vmatprep.subr.bf16.mxu0 %v4205
        %4246 = vmatpush1.bf16.msra.mxu0 %v4204
        %4247 = vmatprep.subr.bf16.mxu0 0
        %4248 = vmatpush1.bf16.msra.mxu0 0
        %4249 = vmatprep.subr.bf16.mxu0 0
        %4250 = vmatpush1.bf16.msra.mxu0 0
        %4251 = vmatprep.subr.bf16.mxu0 0
        %4252 = vmatpush1.bf16.msra.mxu0 0
        %4253 = vmatprep.subr.bf16.mxu0 0
        %4254 = vmatpush1.bf16.msra.mxu0 0
        %4255 = vmatprep.subr.bf16.mxu0 0
        %4256 = vmatpush1.bf16.msra.mxu0 0
        %4257 = vmatprep.subr.bf16.mxu0 0
        %4258 = vmatpush1.bf16.msra.mxu0 0
        %4259 = vmatprep.subr.bf16.mxu0 0
        %4260 = vmatpush1.bf16.msra.mxu0 0
        %4261 = vmatprep.subr.bf16.mxu0 0
        %4262 = vmatpush1.bf16.msra.mxu0 0
        %4263 = vmatprep.mubr.bf16.mxu0 0
        %4264 = vmatmul.mubr.bf16.gmra.mrb[0].mxu0 %v4051
        %v4265 = vpop.f32.mrb[0].mxu0
        %v4266 = vadd.f32 %v4091, %v4265
        %v4267 = vpop.f32.mrb[0].mxu0
        %v4268 = vadd.f32 %v4095, %v4267
        %v4269 = vpop.f32.mrb[0].mxu0
        %v4270 = vpop.f32.mrb[0].mxu0
        %4271 = vdwg.mxu0
        %4272 = vmatprep.subr.bf16.mxu0 0
        %4273 = vmatpush1.bf16.msra.mxu0 %v4185
        %4274 = vmatprep.subr.bf16.mxu0 0
        %4275 = vmatpush1.bf16.msra.mxu0 %v4188
        %4276 = vmatprep.subr.bf16.mxu0 0
        %4277 = vmatpush1.bf16.msra.mxu0 %v4191
        %4278 = vmatprep.subr.bf16.mxu0 0
        %4279 = vmatpush1.bf16.msra.mxu0 %v4194
        %4280 = vmatprep.subr.bf16.mxu0 0
        %4281 = vmatpush1.bf16.msra.mxu0 %v4197
        %4282 = vmatprep.subr.bf16.mxu0 0
        %4283 = vmatpush1.bf16.msra.mxu0 %v4200
        %4284 = vmatprep.subr.bf16.mxu0 0
        %4285 = vmatpush1.bf16.msra.mxu0 %v4203
        %4286 = vmatprep.subr.bf16.mxu0 0
        %4287 = vmatpush1.bf16.msra.mxu0 %v4206
        %4288 = vmatprep.subr.bf16.mxu0 0
        %4289 = vmatpush1.bf16.msra.mxu0 0
        %4290 = vmatprep.subr.bf16.mxu0 0
        %4291 = vmatpush1.bf16.msra.mxu0 0
        %4292 = vmatprep.subr.bf16.mxu0 0
        %4293 = vmatpush1.bf16.msra.mxu0 0
        %4294 = vmatprep.subr.bf16.mxu0 0
        %4295 = vmatpush1.bf16.msra.mxu0 0
        %4296 = vmatprep.subr.bf16.mxu0 0
        %4297 = vmatpush1.bf16.msra.mxu0 0
        %4298 = vmatprep.subr.bf16.mxu0 0
        %4299 = vmatpush1.bf16.msra.mxu0 0
        %4300 = vmatprep.subr.bf16.mxu0 0
        %4301 = vmatpush1.bf16.msra.mxu0 0
        %4302 = vmatprep.subr.bf16.mxu0 0
        %4303 = vmatpush1.bf16.msra.mxu0 0
        %4304 = vmatprep.mubr.bf16.mxu0 0
        %4305 = vmatmul.mubr.bf16.gmra.mrb[0].mxu0 %v4051
        %v4306 = vpop.f32.mrb[0].mxu0
        %v4307 = vadd.f32 %v4099, %v4306
        %v4308 = vpop.f32.mrb[0].mxu0
        %v4309 = vpop.f32.mrb[0].mxu0
        %v4310 = vpop.f32.mrb[0].mxu0
        %4311 = vdwg.mxu0
        %v4312 = vpack.c.bf16 %v4266, %v4266
        %v4313 = vpack.c.bf16 %v4268, %v4268
        %v4314 = vpack.c.bf16 %v4307, %v4307
        %v4316 = vsel %vm861, %v4312, 0
        %v4319 = vsel %vm861, %v4313, 0
        %4321 = vmatprep.subr.bf16.mxu0 0
        %4322 = vmatpush1.bf16.xpose.msra.mxu0 %v4319
        %4323 = vmatprep.subr.bf16.mxu0 0
        %4324 = vmatpush1.bf16.xpose.msra.mxu0 0
        %4325 = vmatprep.subr.bf16.mxu0 0
        %4326 = vmatpush1.bf16.xpose.msra.mxu0 0
        %4327 = vmatprep.subr.bf16.mxu0 0
        %4328 = vmatpush1.bf16.xpose.msra.mxu0 0
        %4329 = vmatprep.subr.bf16.mxu0 0
        %4330 = vmatpush1.bf16.xpose.msra.mxu0 0
        %4331 = vmatprep.subr.bf16.mxu0 0
        %4332 = vmatpush1.bf16.xpose.msra.mxu0 0
        %4333 = vmatprep.subr.bf16.mxu0 0
        %4334 = vmatpush1.bf16.xpose.msra.mxu0 0
        %4335 = vmatprep.subr.bf16.mxu0 0
        %4336 = vmatpush1.bf16.xpose.msra.mxu0 0
        %4337 = vmatprep.subr.bf16.mxu0 0
        %4338 = vmatpush1.bf16.xpose.msra.mxu0 0
        %4339 = vmatprep.subr.bf16.mxu0 0
        %4340 = vmatpush1.bf16.xpose.msra.mxu0 0
        %4341 = vmatprep.subr.bf16.mxu0 0
        %4342 = vmatpush1.bf16.xpose.msra.mxu0 0
        %4343 = vmatprep.subr.bf16.mxu0 0
        %4344 = vmatpush1.bf16.xpose.msra.mxu0 0
        %4345 = vmatprep.subr.bf16.mxu0 0
        %4346 = vmatpush1.bf16.xpose.msra.mxu0 0
        %4347 = vmatprep.subr.bf16.mxu0 0
        %4348 = vmatpush1.bf16.xpose.msra.mxu0 0
        %4349 = vmatprep.subr.bf16.mxu0 0
        %4350 = vmatpush1.bf16.xpose.msra.mxu0 0
        %4351 = vmatprep.subr.bf16.mxu0 0
        %4352 = vmatpush1.bf16.xpose.msra.mxu0 0
        %4353 = vmatprep.mubr.bf16.mxu0 0
        %4354 = vmatmul.mubr.bf16.gmra.mrb[0].mxu0 %v4316
        %v4355 = vpop.f32.mrb[0].mxu0
        %v4356 = vadd.f32 0.0, %v4355
        %v4357 = vpop.f32.mrb[0].mxu0
        %v4358 = vpop.f32.mrb[0].mxu0
        %v4359 = vpop.f32.mrb[0].mxu0
        %4360 = vdwg.mxu0
        %v4361 = vsel %vm908, %v4356, -inf
        %4362 = vmax.xlane.f32.xlu0 %v4361
        %v4363 = vpop.xlane.xlu0 %4362
        %v4364 = vsub.f32 %v4356, %v4363
        %v4365 = vmul.f32 %v4364, 1.442695
        %v4366 = vpow.pop %v4365
        %v4367 = vsel %vm908, %v4366, 0.0
        %4368 = vadd.xlane.f32.xlu0 %v4367
        %v4369 = vpop.xlane.xlu0 %4368
        %v4370 = vrcp.pop %v4369
        %v4371 = vmul.f32 %v4366, %v4370
        %v4372 = vpack.c.bf16 %v4371, %v4371
        %v4374 = vsel %vm908, %v4372, 0
        %v4377 = vsel %vm924, %v4314, 0
        %4379 = vmatprep.subr.bf16.mxu0 0
        %4380 = vmatpush1.bf16.msra.mxu0 %v4377
        %4381 = vmatprep.subr.bf16.mxu0 0
        %4382 = vmatpush1.bf16.msra.mxu0 0
        %4383 = vmatprep.subr.bf16.mxu0 0
        %4384 = vmatpush1.bf16.msra.mxu0 0
        %4385 = vmatprep.subr.bf16.mxu0 0
        %4386 = vmatpush1.bf16.msra.mxu0 0
        %4387 = vmatprep.subr.bf16.mxu0 0
        %4388 = vmatpush1.bf16.msra.mxu0 0
        %4389 = vmatprep.subr.bf16.mxu0 0
        %4390 = vmatpush1.bf16.msra.mxu0 0
        %4391 = vmatprep.subr.bf16.mxu0 0
        %4392 = vmatpush1.bf16.msra.mxu0 0
        %4393 = vmatprep.subr.bf16.mxu0 0
        %4394 = vmatpush1.bf16.msra.mxu0 0
        %4395 = vmatprep.subr.bf16.mxu0 0
        %4396 = vmatpush1.bf16.msra.mxu0 0
        %4397 = vmatprep.subr.bf16.mxu0 0
        %4398 = vmatpush1.bf16.msra.mxu0 0
        %4399 = vmatprep.subr.bf16.mxu0 0
        %4400 = vmatpush1.bf16.msra.mxu0 0
        %4401 = vmatprep.subr.bf16.mxu0 0
        %4402 = vmatpush1.bf16.msra.mxu0 0
        %4403 = vmatprep.subr.bf16.mxu0 0
        %4404 = vmatpush1.bf16.msra.mxu0 0
        %4405 = vmatprep.subr.bf16.mxu0 0
        %4406 = vmatpush1.bf16.msra.mxu0 0
        %4407 = vmatprep.subr.bf16.mxu0 0
        %4408 = vmatpush1.bf16.msra.mxu0 0
        %4409 = vmatprep.subr.bf16.mxu0 0
        %4410 = vmatpush1.bf16.msra.mxu0 0
        %4411 = vmatprep.mubr.bf16.mxu0 0
        %4412 = vmatmul.mubr.bf16.gmra.mrb[0].mxu0 %v4374
        %v4413 = vpop.f32.mrb[0].mxu0
        %v4414 = vadd.f32 0.0, %v4413
        %v4415 = vpop.f32.mrb[0].mxu0
        %v4416 = vpop.f32.mrb[0].mxu0
        %v4417 = vpop.f32.mrb[0].mxu0
        %4418 = vdwg.mxu0
        %4420 = vrot.lane.b32.xlu0 %v4312, 96
        %v4421 = vpop.permute.xlu0 %4420
        %4423 = vrot.lane.b32.xlu0 %v4313, 96
        %v4424 = vpop.permute.xlu0 %4423
        %v4426 = vsel %vm861, %v4421, 0
        %v4429 = vsel %vm861, %v4424, 0
        %4431 = vmatprep.subr.bf16.mxu0 0
        %4432 = vmatpush1.bf16.xpose.msra.mxu0 %v4429
        %4433 = vmatprep.subr.bf16.mxu0 0
        %4434 = vmatpush1.bf16.xpose.msra.mxu0 0
        %4435 = vmatprep.subr.bf16.mxu0 0
        %4436 = vmatpush1.bf16.xpose.msra.mxu0 0
        %4437 = vmatprep.subr.bf16.mxu0 0
        %4438 = vmatpush1.bf16.xpose.msra.mxu0 0
        %4439 = vmatprep.subr.bf16.mxu0 0
        %4440 = vmatpush1.bf16.xpose.msra.mxu0 0
        %4441 = vmatprep.subr.bf16.mxu0 0
        %4442 = vmatpush1.bf16.xpose.msra.mxu0 0
        %4443 = vmatprep.subr.bf16.mxu0 0
        %4444 = vmatpush1.bf16.xpose.msra.mxu0 0
        %4445 = vmatprep.subr.bf16.mxu0 0
        %4446 = vmatpush1.bf16.xpose.msra.mxu0 0
        %4447 = vmatprep.subr.bf16.mxu0 0
        %4448 = vmatpush1.bf16.xpose.msra.mxu0 0
        %4449 = vmatprep.subr.bf16.mxu0 0
        %4450 = vmatpush1.bf16.xpose.msra.mxu0 0
        %4451 = vmatprep.subr.bf16.mxu0 0
        %4452 = vmatpush1.bf16.xpose.msra.mxu0 0
        %4453 = vmatprep.subr.bf16.mxu0 0
        %4454 = vmatpush1.bf16.xpose.msra.mxu0 0
        %4455 = vmatprep.subr.bf16.mxu0 0
        %4456 = vmatpush1.bf16.xpose.msra.mxu0 0
        %4457 = vmatprep.subr.bf16.mxu0 0
        %4458 = vmatpush1.bf16.xpose.msra.mxu0 0
        %4459 = vmatprep.subr.bf16.mxu0 0
        %4460 = vmatpush1.bf16.xpose.msra.mxu0 0
        %4461 = vmatprep.subr.bf16.mxu0 0
        %4462 = vmatpush1.bf16.xpose.msra.mxu0 0
        %4463 = vmatprep.mubr.bf16.mxu0 0
        %4464 = vmatmul.mubr.bf16.gmra.mrb[0].mxu0 %v4426
        %v4465 = vpop.f32.mrb[0].mxu0
        %v4466 = vadd.f32 0.0, %v4465
        %v4467 = vpop.f32.mrb[0].mxu0
        %v4468 = vpop.f32.mrb[0].mxu0
        %v4469 = vpop.f32.mrb[0].mxu0
        %4470 = vdwg.mxu0
        %v4471 = vsel %vm908, %v4466, -inf
        %4472 = vmax.xlane.f32.xlu0 %v4471
        %v4473 = vpop.xlane.xlu0 %4472
        %v4474 = vsub.f32 %v4466, %v4473
        %v4475 = vmul.f32 %v4474, 1.442695
        %v4476 = vpow.pop %v4475
        %v4477 = vsel %vm908, %v4476, 0.0
        %4478 = vadd.xlane.f32.xlu0 %v4477
        %v4479 = vpop.xlane.xlu0 %4478
        %v4480 = vrcp.pop %v4479
        %v4481 = vmul.f32 %v4476, %v4480
        %v4482 = vpack.c.bf16 %v4481, %v4481
        %4484 = vrot.lane.b32.xlu0 %v4314, 96
        %v4485 = vpop.permute.xlu0 %4484
        %v4487 = vsel %vm908, %v4482, 0
        %v4490 = vsel %vm924, %v4485, 0
        %4492 = vmatprep.subr.bf16.mxu0 0
        %4493 = vmatpush1.bf16.msra.mxu0 %v4490
        %4494 = vmatprep.subr.bf16.mxu0 0
        %4495 = vmatpush1.bf16.msra.mxu0 0
        %4496 = vmatprep.subr.bf16.mxu0 0
        %4497 = vmatpush1.bf16.msra.mxu0 0
        %4498 = vmatprep.subr.bf16.mxu0 0
        %4499 = vmatpush1.bf16.msra.mxu0 0
        %4500 = vmatprep.subr.bf16.mxu0 0
        %4501 = vmatpush1.bf16.msra.mxu0 0
        %4502 = vmatprep.subr.bf16.mxu0 0
        %4503 = vmatpush1.bf16.msra.mxu0 0
        %4504 = vmatprep.subr.bf16.mxu0 0
        %4505 = vmatpush1.bf16.msra.mxu0 0
        %4506 = vmatprep.subr.bf16.mxu0 0
        %4507 = vmatpush1.bf16.msra.mxu0 0
        %4508 = vmatprep.subr.bf16.mxu0 0
        %4509 = vmatpush1.bf16.msra.mxu0 0
        %4510 = vmatprep.subr.bf16.mxu0 0
        %4511 = vmatpush1.bf16.msra.mxu0 0
        %4512 = vmatprep.subr.bf16.mxu0 0
        %4513 = vmatpush1.bf16.msra.mxu0 0
        %4514 = vmatprep.subr.bf16.mxu0 0
        %4515 = vmatpush1.bf16.msra.mxu0 0
        %4516 = vmatprep.subr.bf16.mxu0 0
        %4517 = vmatpush1.bf16.msra.mxu0 0
        %4518 = vmatprep.subr.bf16.mxu0 0
        %4519 = vmatpush1.bf16.msra.mxu0 0
        %4520 = vmatprep.subr.bf16.mxu0 0
        %4521 = vmatpush1.bf16.msra.mxu0 0
        %4522 = vmatprep.subr.bf16.mxu0 0
        %4523 = vmatpush1.bf16.msra.mxu0 0
        %4524 = vmatprep.mubr.bf16.mxu0 0
        %4525 = vmatmul.mubr.bf16.gmra.mrb[0].mxu0 %v4487
        %v4526 = vpop.f32.mrb[0].mxu0
        %v4527 = vadd.f32 0.0, %v4526
        %v4528 = vpop.f32.mrb[0].mxu0
        %v4529 = vpop.f32.mrb[0].mxu0
        %v4530 = vpop.f32.mrb[0].mxu0
        %4531 = vdwg.mxu0
        %4532 = vrot.lane.b32.xlu0 %v4312, 64
        %v4533 = vpop.permute.xlu0 %4532
        %4534 = vrot.lane.b32.xlu0 %v4313, 64
        %v4535 = vpop.permute.xlu0 %4534
        %v4537 = vsel %vm861, %v4533, 0
        %v4540 = vsel %vm861, %v4535, 0
        %4542 = vmatprep.subr.bf16.mxu0 0
        %4543 = vmatpush1.bf16.xpose.msra.mxu0 %v4540
        %4544 = vmatprep.subr.bf16.mxu0 0
        %4545 = vmatpush1.bf16.xpose.msra.mxu0 0
        %4546 = vmatprep.subr.bf16.mxu0 0
        %4547 = vmatpush1.bf16.xpose.msra.mxu0 0
        %4548 = vmatprep.subr.bf16.mxu0 0
        %4549 = vmatpush1.bf16.xpose.msra.mxu0 0
        %4550 = vmatprep.subr.bf16.mxu0 0
        %4551 = vmatpush1.bf16.xpose.msra.mxu0 0
        %4552 = vmatprep.subr.bf16.mxu0 0
        %4553 = vmatpush1.bf16.xpose.msra.mxu0 0
        %4554 = vmatprep.subr.bf16.mxu0 0
        %4555 = vmatpush1.bf16.xpose.msra.mxu0 0
        %4556 = vmatprep.subr.bf16.mxu0 0
        %4557 = vmatpush1.bf16.xpose.msra.mxu0 0
        %4558 = vmatprep.subr.bf16.mxu0 0
        %4559 = vmatpush1.bf16.xpose.msra.mxu0 0
        %4560 = vmatprep.subr.bf16.mxu0 0
        %4561 = vmatpush1.bf16.xpose.msra.mxu0 0
        %4562 = vmatprep.subr.bf16.mxu0 0
        %4563 = vmatpush1.bf16.xpose.msra.mxu0 0
        %4564 = vmatprep.subr.bf16.mxu0 0
        %4565 = vmatpush1.bf16.xpose.msra.mxu0 0
        %4566 = vmatprep.subr.bf16.mxu0 0
        %4567 = vmatpush1.bf16.xpose.msra.mxu0 0
        %4568 = vmatprep.subr.bf16.mxu0 0
        %4569 = vmatpush1.bf16.xpose.msra.mxu0 0
        %4570 = vmatprep.subr.bf16.mxu0 0
        %4571 = vmatpush1.bf16.xpose.msra.mxu0 0
        %4572 = vmatprep.subr.bf16.mxu0 0
        %4573 = vmatpush1.bf16.xpose.msra.mxu0 0
        %4574 = vmatprep.mubr.bf16.mxu0 0
        %4575 = vmatmul.mubr.bf16.gmra.mrb[0].mxu0 %v4537
        %v4576 = vpop.f32.mrb[0].mxu0
        %v4577 = vadd.f32 0.0, %v4576
        %v4578 = vpop.f32.mrb[0].mxu0
        %v4579 = vpop.f32.mrb[0].mxu0
        %v4580 = vpop.f32.mrb[0].mxu0
        %4581 = vdwg.mxu0
        %v4582 = vsel %vm908, %v4577, -inf
        %4583 = vmax.xlane.f32.xlu0 %v4582
        %v4584 = vpop.xlane.xlu0 %4583
        %v4585 = vsub.f32 %v4577, %v4584
        %v4586 = vmul.f32 %v4585, 1.442695
        %v4587 = vpow.pop %v4586
        %v4588 = vsel %vm908, %v4587, 0.0
        %4589 = vadd.xlane.f32.xlu0 %v4588
        %v4590 = vpop.xlane.xlu0 %4589
        %v4591 = vrcp.pop %v4590
        %v4592 = vmul.f32 %v4587, %v4591
        %v4593 = vpack.c.bf16 %v4592, %v4592
        %4594 = vrot.lane.b32.xlu0 %v4314, 64
        %v4595 = vpop.permute.xlu0 %4594
        %v4597 = vsel %vm908, %v4593, 0
        %v4600 = vsel %vm924, %v4595, 0
        %4602 = vmatprep.subr.bf16.mxu0 0
        %4603 = vmatpush1.bf16.msra.mxu0 %v4600
        %4604 = vmatprep.subr.bf16.mxu0 0
        %4605 = vmatpush1.bf16.msra.mxu0 0
        %4606 = vmatprep.subr.bf16.mxu0 0
        %4607 = vmatpush1.bf16.msra.mxu0 0
        %4608 = vmatprep.subr.bf16.mxu0 0
        %4609 = vmatpush1.bf16.msra.mxu0 0
        %4610 = vmatprep.subr.bf16.mxu0 0
        %4611 = vmatpush1.bf16.msra.mxu0 0
        %4612 = vmatprep.subr.bf16.mxu0 0
        %4613 = vmatpush1.bf16.msra.mxu0 0
        %4614 = vmatprep.subr.bf16.mxu0 0
        %4615 = vmatpush1.bf16.msra.mxu0 0
        %4616 = vmatprep.subr.bf16.mxu0 0
        %4617 = vmatpush1.bf16.msra.mxu0 0
        %4618 = vmatprep.subr.bf16.mxu0 0
        %4619 = vmatpush1.bf16.msra.mxu0 0
        %4620 = vmatprep.subr.bf16.mxu0 0
        %4621 = vmatpush1.bf16.msra.mxu0 0
        %4622 = vmatprep.subr.bf16.mxu0 0
        %4623 = vmatpush1.bf16.msra.mxu0 0
        %4624 = vmatprep.subr.bf16.mxu0 0
        %4625 = vmatpush1.bf16.msra.mxu0 0
        %4626 = vmatprep.subr.bf16.mxu0 0
        %4627 = vmatpush1.bf16.msra.mxu0 0
        %4628 = vmatprep.subr.bf16.mxu0 0
        %4629 = vmatpush1.bf16.msra.mxu0 0
        %4630 = vmatprep.subr.bf16.mxu0 0
        %4631 = vmatpush1.bf16.msra.mxu0 0
        %4632 = vmatprep.subr.bf16.mxu0 0
        %4633 = vmatpush1.bf16.msra.mxu0 0
        %4634 = vmatprep.mubr.bf16.mxu0 0
        %4635 = vmatmul.mubr.bf16.gmra.mrb[0].mxu0 %v4597
        %v4636 = vpop.f32.mrb[0].mxu0
        %v4637 = vadd.f32 0.0, %v4636
        %v4638 = vpop.f32.mrb[0].mxu0
        %v4639 = vpop.f32.mrb[0].mxu0
        %v4640 = vpop.f32.mrb[0].mxu0
        %4641 = vdwg.mxu0
        %4642 = vrot.lane.b32.xlu0 %v4312, 32
        %v4643 = vpop.permute.xlu0 %4642
        %4644 = vrot.lane.b32.xlu0 %v4313, 32
        %v4645 = vpop.permute.xlu0 %4644
        %v4647 = vsel %vm861, %v4643, 0
        %v4650 = vsel %vm861, %v4645, 0
        %4652 = vmatprep.subr.bf16.mxu0 0
        %4653 = vmatpush1.bf16.xpose.msra.mxu0 %v4650
        %4654 = vmatprep.subr.bf16.mxu0 0
        %4655 = vmatpush1.bf16.xpose.msra.mxu0 0
        %4656 = vmatprep.subr.bf16.mxu0 0
        %4657 = vmatpush1.bf16.xpose.msra.mxu0 0
        %4658 = vmatprep.subr.bf16.mxu0 0
        %4659 = vmatpush1.bf16.xpose.msra.mxu0 0
        %4660 = vmatprep.subr.bf16.mxu0 0
        %4661 = vmatpush1.bf16.xpose.msra.mxu0 0
        %4662 = vmatprep.subr.bf16.mxu0 0
        %4663 = vmatpush1.bf16.xpose.msra.mxu0 0
        %4664 = vmatprep.subr.bf16.mxu0 0
        %4665 = vmatpush1.bf16.xpose.msra.mxu0 0
        %4666 = vmatprep.subr.bf16.mxu0 0
        %4667 = vmatpush1.bf16.xpose.msra.mxu0 0
        %4668 = vmatprep.subr.bf16.mxu0 0
        %4669 = vmatpush1.bf16.xpose.msra.mxu0 0
        %4670 = vmatprep.subr.bf16.mxu0 0
        %4671 = vmatpush1.bf16.xpose.msra.mxu0 0
        %4672 = vmatprep.subr.bf16.mxu0 0
        %4673 = vmatpush1.bf16.xpose.msra.mxu0 0
        %4674 = vmatprep.subr.bf16.mxu0 0
        %4675 = vmatpush1.bf16.xpose.msra.mxu0 0
        %4676 = vmatprep.subr.bf16.mxu0 0
        %4677 = vmatpush1.bf16.xpose.msra.mxu0 0
        %4678 = vmatprep.subr.bf16.mxu0 0
        %4679 = vmatpush1.bf16.xpose.msra.mxu0 0
        %4680 = vmatprep.subr.bf16.mxu0 0
        %4681 = vmatpush1.bf16.xpose.msra.mxu0 0
        %4682 = vmatprep.subr.bf16.mxu0 0
        %4683 = vmatpush1.bf16.xpose.msra.mxu0 0
        %4684 = vmatprep.mubr.bf16.mxu0 0
        %4685 = vmatmul.mubr.bf16.gmra.mrb[0].mxu0 %v4647
        %v4686 = vpop.f32.mrb[0].mxu0
        %v4687 = vadd.f32 0.0, %v4686
        %v4688 = vpop.f32.mrb[0].mxu0
        %v4689 = vpop.f32.mrb[0].mxu0
        %v4690 = vpop.f32.mrb[0].mxu0
        %4691 = vdwg.mxu0
        %v4692 = vsel %vm908, %v4687, -inf
        %4693 = vmax.xlane.f32.xlu0 %v4692
        %v4694 = vpop.xlane.xlu0 %4693
        %v4695 = vsub.f32 %v4687, %v4694
        %v4696 = vmul.f32 %v4695, 1.442695
        %v4697 = vpow.pop %v4696
        %v4698 = vsel %vm908, %v4697, 0.0
        %4699 = vadd.xlane.f32.xlu0 %v4698
        %v4700 = vpop.xlane.xlu0 %4699
        %v4701 = vrcp.pop %v4700
        %v4702 = vmul.f32 %v4697, %v4701
        %v4703 = vpack.c.bf16 %v4702, %v4702
        %4704 = vrot.lane.b32.xlu0 %v4314, 32
        %v4705 = vpop.permute.xlu0 %4704
        %v4707 = vsel %vm908, %v4703, 0
        %v4710 = vsel %vm924, %v4705, 0
        %4712 = vmatprep.subr.bf16.mxu0 0
        %4713 = vmatpush1.bf16.msra.mxu0 %v4710
        %4714 = vmatprep.subr.bf16.mxu0 0
        %4715 = vmatpush1.bf16.msra.mxu0 0
        %4716 = vmatprep.subr.bf16.mxu0 0
        %4717 = vmatpush1.bf16.msra.mxu0 0
        %4718 = vmatprep.subr.bf16.mxu0 0
        %4719 = vmatpush1.bf16.msra.mxu0 0
        %4720 = vmatprep.subr.bf16.mxu0 0
        %4721 = vmatpush1.bf16.msra.mxu0 0
        %4722 = vmatprep.subr.bf16.mxu0 0
        %4723 = vmatpush1.bf16.msra.mxu0 0
        %4724 = vmatprep.subr.bf16.mxu0 0
        %4725 = vmatpush1.bf16.msra.mxu0 0
        %4726 = vmatprep.subr.bf16.mxu0 0
        %4727 = vmatpush1.bf16.msra.mxu0 0
        %4728 = vmatprep.subr.bf16.mxu0 0
        %4729 = vmatpush1.bf16.msra.mxu0 0
        %4730 = vmatprep.subr.bf16.mxu0 0
        %4731 = vmatpush1.bf16.msra.mxu0 0
        %4732 = vmatprep.subr.bf16.mxu0 0
        %4733 = vmatpush1.bf16.msra.mxu0 0
        %4734 = vmatprep.subr.bf16.mxu0 0
        %4735 = vmatpush1.bf16.msra.mxu0 0
        %4736 = vmatprep.subr.bf16.mxu0 0
        %4737 = vmatpush1.bf16.msra.mxu0 0
        %4738 = vmatprep.subr.bf16.mxu0 0
        %4739 = vmatpush1.bf16.msra.mxu0 0
        %4740 = vmatprep.subr.bf16.mxu0 0
        %4741 = vmatpush1.bf16.msra.mxu0 0
        %4742 = vmatprep.subr.bf16.mxu0 0
        %4743 = vmatpush1.bf16.msra.mxu0 0
        %4744 = vmatprep.mubr.bf16.mxu0 0
        %4745 = vmatmul.mubr.bf16.gmra.mrb[0].mxu0 %v4707
        %v4746 = vpop.f32.mrb[0].mxu0
        %v4747 = vadd.f32 0.0, %v4746
        %v4748 = vpop.f32.mrb[0].mxu0
        %v4749 = vpop.f32.mrb[0].mxu0
        %v4750 = vpop.f32.mrb[0].mxu0
        %4751 = vdwg.mxu0
        %4753 = vrot.lane.b32.xlu0 %v4527, 32
        %v4754 = vpop.permute.xlu0 %4753
        %4757 = vrot.lane.b32.xlu0 %v4637, 64
        %v4758 = vpop.permute.xlu0 %4757
        %4761 = vrot.lane.b32.xlu0 %v4747, 96
        %v4762 = vpop.permute.xlu0 %4761
        %v4764 = vsel %vm861, %v4414, %v4754
        %v4765 = vsel %vm1314, %v4764, %v4758
        %v4766 = vsel %vm1316, %v4765, %v4762
        %v4767 = vpack.c.bf16 %v4766, %v4766
        %s4768 = scalar_lea.vmem [#allocation7], 64
        %v4769 = vld [vmem:[%s4768] sm:$0xf]
        %v4770 = vld [vmem:[%s4768 + $0x4] sm:$0xf]
        %v4771 = vld [vmem:[%s4768 + $0x8] sm:$0xf]
        %v4772 = vld [vmem:[%s4768 + $0xc] sm:$0xf]
        %v4773 = vld [vmem:[%s4768 + $0x10] sm:$0xf]
        %v4774 = vld [vmem:[%s4768 + $0x14] sm:$0xf]
        %v4775 = vld [vmem:[%s4768 + $0x18] sm:$0xf]
        %v4776 = vld [vmem:[%s4768 + $0x1c] sm:$0xf]
        %v4777 = vld [vmem:[%s4768 + $0x20] sm:$0xf]
        %v4778 = vld [vmem:[%s4768 + $0x24] sm:$0xf]
        %v4779 = vld [vmem:[%s4768 + $0x28] sm:$0xf]
        %v4780 = vld [vmem:[%s4768 + $0x2c] sm:$0xf]
        %v4781 = vld [vmem:[%s4768 + $0x30] sm:$0xf]
        %v4782 = vld [vmem:[%s4768 + $0x34] sm:$0xf]
        %v4783 = vld [vmem:[%s4768 + $0x38] sm:$0xf]
        %v4784 = vld [vmem:[%s4768 + $0x3c] sm:$0xf]
        %s4785 = scalar_lea.vmem %s4, 1
        %v4786 = vld [vmem:[%s4785] sm:$0x1]
        %v4788 = vlaneseq
        %v4789 = vshrl.u32 %v4788, 7
        %v4790 = vsub.s32 0, %v4789
        %v4791 = vrot.slane %v4786, %v4790
        %v4809 = vunpack.c.l.b16 %v4769
        %v4810 = vunpack.c.l.b16 %v4770
        %v4811 = vunpack.c.l.b16 %v4771
        %v4812 = vunpack.c.l.b16 %v4772
        %v4813 = vunpack.c.l.b16 %v4773
        %v4814 = vunpack.c.l.b16 %v4774
        %v4815 = vunpack.c.l.b16 %v4775
        %v4816 = vunpack.c.l.b16 %v4776
        %v4817 = vunpack.c.l.b16 %v4777
        %v4818 = vunpack.c.l.b16 %v4778
        %v4819 = vunpack.c.l.b16 %v4779
        %v4820 = vunpack.c.l.b16 %v4780
        %v4821 = vunpack.c.l.b16 %v4781
        %v4822 = vunpack.c.l.b16 %v4782
        %v4823 = vunpack.c.l.b16 %v4783
        %v4824 = vunpack.c.l.b16 %v4784
        %v4825 = vpack.c.b16 %v4810, %v4809
        %v4826 = vpack.c.b16 %v4812, %v4811
        %v4827 = vpack.c.b16 %v4814, %v4813
        %v4828 = vpack.c.b16 %v4816, %v4815
        %v4829 = vpack.c.b16 %v4818, %v4817
        %v4830 = vpack.c.b16 %v4820, %v4819
        %v4831 = vpack.c.b16 %v4822, %v4821
        %v4832 = vpack.c.b16 %v4824, %v4823
        %4841 = vmatprep.subr.bf16.mxu0 0
        %4842 = vmatpush1.bf16.msra.mxu0 %v4825
        %4843 = vmatprep.subr.bf16.mxu0 0
        %4844 = vmatpush1.bf16.msra.mxu0 %v4826
        %4845 = vmatprep.subr.bf16.mxu0 0
        %4846 = vmatpush1.bf16.msra.mxu0 %v4827
        %4847 = vmatprep.subr.bf16.mxu0 0
        %4848 = vmatpush1.bf16.msra.mxu0 %v4828
        %4849 = vmatprep.subr.bf16.mxu0 0
        %4850 = vmatpush1.bf16.msra.mxu0 %v4829
        %4851 = vmatprep.subr.bf16.mxu0 0
        %4852 = vmatpush1.bf16.msra.mxu0 %v4830
        %4853 = vmatprep.subr.bf16.mxu0 0
        %4854 = vmatpush1.bf16.msra.mxu0 %v4831
        %4855 = vmatprep.subr.bf16.mxu0 0
        %4856 = vmatpush1.bf16.msra.mxu0 %v4832
        %4857 = vmatprep.subr.bf16.mxu0 0
        %4858 = vmatpush1.bf16.msra.mxu0 0
        %4859 = vmatprep.subr.bf16.mxu0 0
        %4860 = vmatpush1.bf16.msra.mxu0 0
        %4861 = vmatprep.subr.bf16.mxu0 0
        %4862 = vmatpush1.bf16.msra.mxu0 0
        %4863 = vmatprep.subr.bf16.mxu0 0
        %4864 = vmatpush1.bf16.msra.mxu0 0
        %4865 = vmatprep.subr.bf16.mxu0 0
        %4866 = vmatpush1.bf16.msra.mxu0 0
        %4867 = vmatprep.subr.bf16.mxu0 0
        %4868 = vmatpush1.bf16.msra.mxu0 0
        %4869 = vmatprep.subr.bf16.mxu0 0
        %4870 = vmatpush1.bf16.msra.mxu0 0
        %4871 = vmatprep.subr.bf16.mxu0 0
        %4872 = vmatpush1.bf16.msra.mxu0 0
        %4873 = vmatprep.mubr.bf16.mxu0 0
        %4874 = vmatmul.mubr.bf16.gmra.mrb[0].mxu0 %v4767
        %v4875 = vpop.f32.mrb[0].mxu0
        %v4876 = vadd.f32 %v4791, %v4875
        %v4877 = vpop.f32.mrb[0].mxu0
        %v4878 = vpop.f32.mrb[0].mxu0
        %v4879 = vpop.f32.mrb[0].mxu0
        %4880 = vdwg.mxu0
        %v4881 = vadd.f32 %v4050, %v4876
        %4882 = vadd.xlane.f32.xlu0 %v4881
        %v4883 = vpop.xlane.xlu0 %4882
        %v4884 = vmul.f32 %v4883, %v1433
        %v4885 = vsub.f32 %v4881, %v4884
        %v4886 = vmul.f32 %v4885, %v4885
        %4887 = vadd.xlane.f32.xlu0 %v4886
        %v4888 = vpop.xlane.xlu0 %4887
        %v4889 = vmul.f32 %v4888, %v1433
        %v4890 = vadd.f32 %v4889, 1e-05
        %v4891 = vrsqrt.pop %v4890
        %v4892 = vmul.f32 %v4885, %v4891
        %s4893 = scalar_lea.vmem %s5, 1
        %v4894 = vld [vmem:[%s4893] sm:$0x1]
        %v4896 = vlaneseq
        %v4897 = vshrl.u32 %v4896, 7
        %v4898 = vsub.s32 0, %v4897
        %v4899 = vrot.slane %v4894, %v4898
        %v4901 = vmul.f32 %v4892, %v4899
        %s4902 = scalar_lea.vmem %s6, 1
        %v4903 = vld [vmem:[%s4902] sm:$0x1]
        %v4905 = vlaneseq
        %v4906 = vshrl.u32 %v4905, 7
        %v4907 = vsub.s32 0, %v4906
        %v4908 = vrot.slane %v4903, %v4907
        %v4910 = vadd.f32 %v4901, %v4908
        %v4911 = vpack.c.bf16 %v4910, %v4910
        %s4912 = scalar_lea.vmem [#allocation8], 1024
        %v4913 = vld [vmem:[%s4912] sm:$0xff]
        %v4914 = vld [vmem:[%s4912 + $0x8] sm:$0xff]
        %v4915 = vld [vmem:[%s4912 + $0x10] sm:$0xff]
        %v4916 = vld [vmem:[%s4912 + $0x18] sm:$0xff]
        %v4917 = vld [vmem:[%s4912 + $0x20] sm:$0xff]
        %v4918 = vld [vmem:[%s4912 + $0x28] sm:$0xff]
        %v4919 = vld [vmem:[%s4912 + $0x30] sm:$0xff]
        %v4920 = vld [vmem:[%s4912 + $0x38] sm:$0xff]
        %v4921 = vld [vmem:[%s4912 + $0x40] sm:$0xff]
        %v4922 = vld [vmem:[%s4912 + $0x48] sm:$0xff]
        %v4923 = vld [vmem:[%s4912 + $0x50] sm:$0xff]
        %v4924 = vld [vmem:[%s4912 + $0x58] sm:$0xff]
        %v4925 = vld [vmem:[%s4912 + $0x60] sm:$0xff]
        %v4926 = vld [vmem:[%s4912 + $0x68] sm:$0xff]
        %v4927 = vld [vmem:[%s4912 + $0x70] sm:$0xff]
        %v4928 = vld [vmem:[%s4912 + $0x78] sm:$0xff]
        %v4929 = vld [vmem:[%s4912 + $0x80] sm:$0xff]
        %v4930 = vld [vmem:[%s4912 + $0x88] sm:$0xff]
        %v4931 = vld [vmem:[%s4912 + $0x90] sm:$0xff]
        %v4932 = vld [vmem:[%s4912 + $0x98] sm:$0xff]
        %v4933 = vld [vmem:[%s4912 + $0xa0] sm:$0xff]
        %v4934 = vld [vmem:[%s4912 + $0xa8] sm:$0xff]
        %v4935 = vld [vmem:[%s4912 + $0xb0] sm:$0xff]
        %v4936 = vld [vmem:[%s4912 + $0xb8] sm:$0xff]
        %v4937 = vld [vmem:[%s4912 + $0xc0] sm:$0xff]
        %v4938 = vld [vmem:[%s4912 + $0xc8] sm:$0xff]
        %v4939 = vld [vmem:[%s4912 + $0xd0] sm:$0xff]
        %v4940 = vld [vmem:[%s4912 + $0xd8] sm:$0xff]
        %v4941 = vld [vmem:[%s4912 + $0xe0] sm:$0xff]
        %v4942 = vld [vmem:[%s4912 + $0xe8] sm:$0xff]
        %v4943 = vld [vmem:[%s4912 + $0xf0] sm:$0xff]
        %v4944 = vld [vmem:[%s4912 + $0xf8] sm:$0xff]
        %v4945 = vld [vmem:[%s4912 + $0x100] sm:$0xff]
        %v4946 = vld [vmem:[%s4912 + $0x108] sm:$0xff]
        %v4947 = vld [vmem:[%s4912 + $0x110] sm:$0xff]
        %v4948 = vld [vmem:[%s4912 + $0x118] sm:$0xff]
        %v4949 = vld [vmem:[%s4912 + $0x120] sm:$0xff]
        %v4950 = vld [vmem:[%s4912 + $0x128] sm:$0xff]
        %v4951 = vld [vmem:[%s4912 + $0x130] sm:$0xff]
        %v4952 = vld [vmem:[%s4912 + $0x138] sm:$0xff]
        %v4953 = vld [vmem:[%s4912 + $0x140] sm:$0xff]
        %v4954 = vld [vmem:[%s4912 + $0x148] sm:$0xff]
        %v4955 = vld [vmem:[%s4912 + $0x150] sm:$0xff]
        %v4956 = vld [vmem:[%s4912 + $0x158] sm:$0xff]
        %v4957 = vld [vmem:[%s4912 + $0x160] sm:$0xff]
        %v4958 = vld [vmem:[%s4912 + $0x168] sm:$0xff]
        %v4959 = vld [vmem:[%s4912 + $0x170] sm:$0xff]
        %v4960 = vld [vmem:[%s4912 + $0x178] sm:$0xff]
        %v4961 = vld [vmem:[%s4912 + $0x180] sm:$0xff]
        %v4962 = vld [vmem:[%s4912 + $0x188] sm:$0xff]
        %v4963 = vld [vmem:[%s4912 + $0x190] sm:$0xff]
        %v4964 = vld [vmem:[%s4912 + $0x198] sm:$0xff]
        %v4965 = vld [vmem:[%s4912 + $0x1a0] sm:$0xff]
        %v4966 = vld [vmem:[%s4912 + $0x1a8] sm:$0xff]
        %v4967 = vld [vmem:[%s4912 + $0x1b0] sm:$0xff]
        %v4968 = vld [vmem:[%s4912 + $0x1b8] sm:$0xff]
        %v4969 = vld [vmem:[%s4912 + $0x1c0] sm:$0xff]
        %v4970 = vld [vmem:[%s4912 + $0x1c8] sm:$0xff]
        %v4971 = vld [vmem:[%s4912 + $0x1d0] sm:$0xff]
        %v4972 = vld [vmem:[%s4912 + $0x1d8] sm:$0xff]
        %v4973 = vld [vmem:[%s4912 + $0x1e0] sm:$0xff]
        %v4974 = vld [vmem:[%s4912 + $0x1e8] sm:$0xff]
        %v4975 = vld [vmem:[%s4912 + $0x1f0] sm:$0xff]
        %v4976 = vld [vmem:[%s4912 + $0x1f8] sm:$0xff]
        %v4977 = vld [vmem:[%s4912 + $0x200] sm:$0xff]
        %v4978 = vld [vmem:[%s4912 + $0x208] sm:$0xff]
        %v4979 = vld [vmem:[%s4912 + $0x210] sm:$0xff]
        %v4980 = vld [vmem:[%s4912 + $0x218] sm:$0xff]
        %v4981 = vld [vmem:[%s4912 + $0x220] sm:$0xff]
        %v4982 = vld [vmem:[%s4912 + $0x228] sm:$0xff]
        %v4983 = vld [vmem:[%s4912 + $0x230] sm:$0xff]
        %v4984 = vld [vmem:[%s4912 + $0x238] sm:$0xff]
        %v4985 = vld [vmem:[%s4912 + $0x240] sm:$0xff]
        %v4986 = vld [vmem:[%s4912 + $0x248] sm:$0xff]
        %v4987 = vld [vmem:[%s4912 + $0x250] sm:$0xff]
        %v4988 = vld [vmem:[%s4912 + $0x258] sm:$0xff]
        %v4989 = vld [vmem:[%s4912 + $0x260] sm:$0xff]
        %v4990 = vld [vmem:[%s4912 + $0x268] sm:$0xff]
        %v4991 = vld [vmem:[%s4912 + $0x270] sm:$0xff]
        %v4992 = vld [vmem:[%s4912 + $0x278] sm:$0xff]
        %v4993 = vld [vmem:[%s4912 + $0x280] sm:$0xff]
        %v4994 = vld [vmem:[%s4912 + $0x288] sm:$0xff]
        %v4995 = vld [vmem:[%s4912 + $0x290] sm:$0xff]
        %v4996 = vld [vmem:[%s4912 + $0x298] sm:$0xff]
        %v4997 = vld [vmem:[%s4912 + $0x2a0] sm:$0xff]
        %v4998 = vld [vmem:[%s4912 + $0x2a8] sm:$0xff]
        %v4999 = vld [vmem:[%s4912 + $0x2b0] sm:$0xff]
        %v5000 = vld [vmem:[%s4912 + $0x2b8] sm:$0xff]
        %v5001 = vld [vmem:[%s4912 + $0x2c0] sm:$0xff]
        %v5002 = vld [vmem:[%s4912 + $0x2c8] sm:$0xff]
        %v5003 = vld [vmem:[%s4912 + $0x2d0] sm:$0xff]
        %v5004 = vld [vmem:[%s4912 + $0x2d8] sm:$0xff]
        %v5005 = vld [vmem:[%s4912 + $0x2e0] sm:$0xff]
        %v5006 = vld [vmem:[%s4912 + $0x2e8] sm:$0xff]
        %v5007 = vld [vmem:[%s4912 + $0x2f0] sm:$0xff]
        %v5008 = vld [vmem:[%s4912 + $0x2f8] sm:$0xff]
        %v5009 = vld [vmem:[%s4912 + $0x300] sm:$0xff]
        %v5010 = vld [vmem:[%s4912 + $0x308] sm:$0xff]
        %v5011 = vld [vmem:[%s4912 + $0x310] sm:$0xff]
        %v5012 = vld [vmem:[%s4912 + $0x318] sm:$0xff]
        %v5013 = vld [vmem:[%s4912 + $0x320] sm:$0xff]
        %v5014 = vld [vmem:[%s4912 + $0x328] sm:$0xff]
        %v5015 = vld [vmem:[%s4912 + $0x330] sm:$0xff]
        %v5016 = vld [vmem:[%s4912 + $0x338] sm:$0xff]
        %v5017 = vld [vmem:[%s4912 + $0x340] sm:$0xff]
        %v5018 = vld [vmem:[%s4912 + $0x348] sm:$0xff]
        %v5019 = vld [vmem:[%s4912 + $0x350] sm:$0xff]
        %v5020 = vld [vmem:[%s4912 + $0x358] sm:$0xff]
        %v5021 = vld [vmem:[%s4912 + $0x360] sm:$0xff]
        %v5022 = vld [vmem:[%s4912 + $0x368] sm:$0xff]
        %v5023 = vld [vmem:[%s4912 + $0x370] sm:$0xff]
        %v5024 = vld [vmem:[%s4912 + $0x378] sm:$0xff]
        %v5025 = vld [vmem:[%s4912 + $0x380] sm:$0xff]
        %v5026 = vld [vmem:[%s4912 + $0x388] sm:$0xff]
        %v5027 = vld [vmem:[%s4912 + $0x390] sm:$0xff]
        %v5028 = vld [vmem:[%s4912 + $0x398] sm:$0xff]
        %v5029 = vld [vmem:[%s4912 + $0x3a0] sm:$0xff]
        %v5030 = vld [vmem:[%s4912 + $0x3a8] sm:$0xff]
        %v5031 = vld [vmem:[%s4912 + $0x3b0] sm:$0xff]
        %v5032 = vld [vmem:[%s4912 + $0x3b8] sm:$0xff]
        %v5033 = vld [vmem:[%s4912 + $0x3c0] sm:$0xff]
        %v5034 = vld [vmem:[%s4912 + $0x3c8] sm:$0xff]
        %v5035 = vld [vmem:[%s4912 + $0x3d0] sm:$0xff]
        %v5036 = vld [vmem:[%s4912 + $0x3d8] sm:$0xff]
        %v5037 = vld [vmem:[%s4912 + $0x3e0] sm:$0xff]
        %v5038 = vld [vmem:[%s4912 + $0x3e8] sm:$0xff]
        %v5039 = vld [vmem:[%s4912 + $0x3f0] sm:$0xff]
        %v5040 = vld [vmem:[%s4912 + $0x3f8] sm:$0xff]
        %s5041 = scalar_lea.vmem [#allocation10], 16
        %v5042 = vld [vmem:[%s5041] sm:$0xff]
        %v5043 = vld [vmem:[%s5041 + $0x8] sm:$0xff]
        %v5046 = vlaneseq
        %v5047 = vshrl.u32 %v5046, 7
        %v5048 = vsub.s32 0, %v5047
        %v5049 = vrot.slane %v5042, %v5048
        %v5050 = vlaneseq
        %v5051 = vshrl.u32 %v5050, 7
        %v5052 = vsub.s32 1, %v5051
        %v5053 = vrot.slane %v5042, %v5052
        %v5054 = vlaneseq
        %v5055 = vshrl.u32 %v5054, 7
        %v5056 = vsub.s32 2, %v5055
        %v5057 = vrot.slane %v5042, %v5056
        %v5058 = vlaneseq
        %v5059 = vshrl.u32 %v5058, 7
        %v5060 = vsub.s32 3, %v5059
        %v5061 = vrot.slane %v5042, %v5060
        %v5062 = vlaneseq
        %v5063 = vshrl.u32 %v5062, 7
        %v5064 = vsub.s32 4, %v5063
        %v5065 = vrot.slane %v5042, %v5064
        %v5066 = vlaneseq
        %v5067 = vshrl.u32 %v5066, 7
        %v5068 = vsub.s32 5, %v5067
        %v5069 = vrot.slane %v5042, %v5068
        %v5070 = vlaneseq
        %v5071 = vshrl.u32 %v5070, 7
        %v5072 = vsub.s32 6, %v5071
        %v5073 = vrot.slane %v5042, %v5072
        %v5074 = vlaneseq
        %v5075 = vshrl.u32 %v5074, 7
        %v5076 = vsub.s32 7, %v5075
        %v5077 = vrot.slane %v5042, %v5076
        %v5078 = vlaneseq
        %v5079 = vshrl.u32 %v5078, 7
        %v5080 = vsub.s32 0, %v5079
        %v5081 = vrot.slane %v5043, %v5080
        %v5082 = vlaneseq
        %v5083 = vshrl.u32 %v5082, 7
        %v5084 = vsub.s32 1, %v5083
        %v5085 = vrot.slane %v5043, %v5084
        %v5086 = vlaneseq
        %v5087 = vshrl.u32 %v5086, 7
        %v5088 = vsub.s32 2, %v5087
        %v5089 = vrot.slane %v5043, %v5088
        %v5090 = vlaneseq
        %v5091 = vshrl.u32 %v5090, 7
        %v5092 = vsub.s32 3, %v5091
        %v5093 = vrot.slane %v5043, %v5092
        %v5094 = vlaneseq
        %v5095 = vshrl.u32 %v5094, 7
        %v5096 = vsub.s32 4, %v5095
        %v5097 = vrot.slane %v5043, %v5096
        %v5098 = vlaneseq
        %v5099 = vshrl.u32 %v5098, 7
        %v5100 = vsub.s32 5, %v5099
        %v5101 = vrot.slane %v5043, %v5100
        %v5102 = vlaneseq
        %v5103 = vshrl.u32 %v5102, 7
        %v5104 = vsub.s32 6, %v5103
        %v5105 = vrot.slane %v5043, %v5104
        %v5106 = vlaneseq
        %v5107 = vshrl.u32 %v5106, 7
        %v5108 = vsub.s32 7, %v5107
        %v5109 = vrot.slane %v5043, %v5108
        %v5254 = vunpack.c.l.b16 %v4913
        %v5255 = vunpack.c.h.b16 %v4913
        %v5256 = vunpack.c.l.b16 %v4914
        %v5257 = vunpack.c.h.b16 %v4914
        %v5258 = vunpack.c.l.b16 %v4915
        %v5259 = vunpack.c.h.b16 %v4915
        %v5260 = vunpack.c.l.b16 %v4916
        %v5261 = vunpack.c.h.b16 %v4916
        %v5262 = vunpack.c.l.b16 %v4917
        %v5263 = vunpack.c.h.b16 %v4917
        %v5264 = vunpack.c.l.b16 %v4918
        %v5265 = vunpack.c.h.b16 %v4918
        %v5266 = vunpack.c.l.b16 %v4919
        %v5267 = vunpack.c.h.b16 %v4919
        %v5268 = vunpack.c.l.b16 %v4920
        %v5269 = vunpack.c.h.b16 %v4920
        %v5270 = vunpack.c.l.b16 %v4921
        %v5271 = vunpack.c.h.b16 %v4921
        %v5272 = vunpack.c.l.b16 %v4922
        %v5273 = vunpack.c.h.b16 %v4922
        %v5274 = vunpack.c.l.b16 %v4923
        %v5275 = vunpack.c.h.b16 %v4923
        %v5276 = vunpack.c.l.b16 %v4924
        %v5277 = vunpack.c.h.b16 %v4924
        %v5278 = vunpack.c.l.b16 %v4925
        %v5279 = vunpack.c.h.b16 %v4925
        %v5280 = vunpack.c.l.b16 %v4926
        %v5281 = vunpack.c.h.b16 %v4926
        %v5282 = vunpack.c.l.b16 %v4927
        %v5283 = vunpack.c.h.b16 %v4927
        %v5284 = vunpack.c.l.b16 %v4928
        %v5285 = vunpack.c.h.b16 %v4928
        %v5286 = vunpack.c.l.b16 %v4929
        %v5287 = vunpack.c.h.b16 %v4929
        %v5288 = vunpack.c.l.b16 %v4930
        %v5289 = vunpack.c.h.b16 %v4930
        %v5290 = vunpack.c.l.b16 %v4931
        %v5291 = vunpack.c.h.b16 %v4931
        %v5292 = vunpack.c.l.b16 %v4932
        %v5293 = vunpack.c.h.b16 %v4932
        %v5294 = vunpack.c.l.b16 %v4933
        %v5295 = vunpack.c.h.b16 %v4933
        %v5296 = vunpack.c.l.b16 %v4934
        %v5297 = vunpack.c.h.b16 %v4934
        %v5298 = vunpack.c.l.b16 %v4935
        %v5299 = vunpack.c.h.b16 %v4935
        %v5300 = vunpack.c.l.b16 %v4936
        %v5301 = vunpack.c.h.b16 %v4936
        %v5302 = vunpack.c.l.b16 %v4937
        %v5303 = vunpack.c.h.b16 %v4937
        %v5304 = vunpack.c.l.b16 %v4938
        %v5305 = vunpack.c.h.b16 %v4938
        %v5306 = vunpack.c.l.b16 %v4939
        %v5307 = vunpack.c.h.b16 %v4939
        %v5308 = vunpack.c.l.b16 %v4940
        %v5309 = vunpack.c.h.b16 %v4940
        %v5310 = vunpack.c.l.b16 %v4941
        %v5311 = vunpack.c.h.b16 %v4941
        %v5312 = vunpack.c.l.b16 %v4942
        %v5313 = vunpack.c.h.b16 %v4942
        %v5314 = vunpack.c.l.b16 %v4943
        %v5315 = vunpack.c.h.b16 %v4943
        %v5316 = vunpack.c.l.b16 %v4944
        %v5317 = vunpack.c.h.b16 %v4944
        %v5318 = vunpack.c.l.b16 %v4945
        %v5319 = vunpack.c.h.b16 %v4945
        %v5320 = vunpack.c.l.b16 %v4946
        %v5321 = vunpack.c.h.b16 %v4946
        %v5322 = vunpack.c.l.b16 %v4947
        %v5323 = vunpack.c.h.b16 %v4947
        %v5324 = vunpack.c.l.b16 %v4948
        %v5325 = vunpack.c.h.b16 %v4948
        %v5326 = vunpack.c.l.b16 %v4949
        %v5327 = vunpack.c.h.b16 %v4949
        %v5328 = vunpack.c.l.b16 %v4950
        %v5329 = vunpack.c.h.b16 %v4950
        %v5330 = vunpack.c.l.b16 %v4951
        %v5331 = vunpack.c.h.b16 %v4951
        %v5332 = vunpack.c.l.b16 %v4952
        %v5333 = vunpack.c.h.b16 %v4952
        %v5334 = vunpack.c.l.b16 %v4953
        %v5335 = vunpack.c.h.b16 %v4953
        %v5336 = vunpack.c.l.b16 %v4954
        %v5337 = vunpack.c.h.b16 %v4954
        %v5338 = vunpack.c.l.b16 %v4955
        %v5339 = vunpack.c.h.b16 %v4955
        %v5340 = vunpack.c.l.b16 %v4956
        %v5341 = vunpack.c.h.b16 %v4956
        %v5342 = vunpack.c.l.b16 %v4957
        %v5343 = vunpack.c.h.b16 %v4957
        %v5344 = vunpack.c.l.b16 %v4958
        %v5345 = vunpack.c.h.b16 %v4958
        %v5346 = vunpack.c.l.b16 %v4959
        %v5347 = vunpack.c.h.b16 %v4959
        %v5348 = vunpack.c.l.b16 %v4960
        %v5349 = vunpack.c.h.b16 %v4960
        %v5350 = vunpack.c.l.b16 %v4961
        %v5351 = vunpack.c.h.b16 %v4961
        %v5352 = vunpack.c.l.b16 %v4962
        %v5353 = vunpack.c.h.b16 %v4962
        %v5354 = vunpack.c.l.b16 %v4963
        %v5355 = vunpack.c.h.b16 %v4963
        %v5356 = vunpack.c.l.b16 %v4964
        %v5357 = vunpack.c.h.b16 %v4964
        %v5358 = vunpack.c.l.b16 %v4965
        %v5359 = vunpack.c.h.b16 %v4965
        %v5360 = vunpack.c.l.b16 %v4966
        %v5361 = vunpack.c.h.b16 %v4966
        %v5362 = vunpack.c.l.b16 %v4967
        %v5363 = vunpack.c.h.b16 %v4967
        %v5364 = vunpack.c.l.b16 %v4968
        %v5365 = vunpack.c.h.b16 %v4968
        %v5366 = vunpack.c.l.b16 %v4969
        %v5367 = vunpack.c.h.b16 %v4969
        %v5368 = vunpack.c.l.b16 %v4970
        %v5369 = vunpack.c.h.b16 %v4970
        %v5370 = vunpack.c.l.b16 %v4971
        %v5371 = vunpack.c.h.b16 %v4971
        %v5372 = vunpack.c.l.b16 %v4972
        %v5373 = vunpack.c.h.b16 %v4972
        %v5374 = vunpack.c.l.b16 %v4973
        %v5375 = vunpack.c.h.b16 %v4973
        %v5376 = vunpack.c.l.b16 %v4974
        %v5377 = vunpack.c.h.b16 %v4974
        %v5378 = vunpack.c.l.b16 %v4975
        %v5379 = vunpack.c.h.b16 %v4975
        %v5380 = vunpack.c.l.b16 %v4976
        %v5381 = vunpack.c.h.b16 %v4976
        %v5382 = vunpack.c.l.b16 %v4977
        %v5383 = vunpack.c.h.b16 %v4977
        %v5384 = vunpack.c.l.b16 %v4978
        %v5385 = vunpack.c.h.b16 %v4978
        %v5386 = vunpack.c.l.b16 %v4979
        %v5387 = vunpack.c.h.b16 %v4979
        %v5388 = vunpack.c.l.b16 %v4980
        %v5389 = vunpack.c.h.b16 %v4980
        %v5390 = vunpack.c.l.b16 %v4981
        %v5391 = vunpack.c.h.b16 %v4981
        %v5392 = vunpack.c.l.b16 %v4982
        %v5393 = vunpack.c.h.b16 %v4982
        %v5394 = vunpack.c.l.b16 %v4983
        %v5395 = vunpack.c.h.b16 %v4983
        %v5396 = vunpack.c.l.b16 %v4984
        %v5397 = vunpack.c.h.b16 %v4984
        %v5398 = vunpack.c.l.b16 %v4985
        %v5399 = vunpack.c.h.b16 %v4985
        %v5400 = vunpack.c.l.b16 %v4986
        %v5401 = vunpack.c.h.b16 %v4986
        %v5402 = vunpack.c.l.b16 %v4987
        %v5403 = vunpack.c.h.b16 %v4987
        %v5404 = vunpack.c.l.b16 %v4988
        %v5405 = vunpack.c.h.b16 %v4988
        %v5406 = vunpack.c.l.b16 %v4989
        %v5407 = vunpack.c.h.b16 %v4989
        %v5408 = vunpack.c.l.b16 %v4990
        %v5409 = vunpack.c.h.b16 %v4990
        %v5410 = vunpack.c.l.b16 %v4991
        %v5411 = vunpack.c.h.b16 %v4991
        %v5412 = vunpack.c.l.b16 %v4992
        %v5413 = vunpack.c.h.b16 %v4992
        %v5414 = vunpack.c.l.b16 %v4993
        %v5415 = vunpack.c.h.b16 %v4993
        %v5416 = vunpack.c.l.b16 %v4994
        %v5417 = vunpack.c.h.b16 %v4994
        %v5418 = vunpack.c.l.b16 %v4995
        %v5419 = vunpack.c.h.b16 %v4995
        %v5420 = vunpack.c.l.b16 %v4996
        %v5421 = vunpack.c.h.b16 %v4996
        %v5422 = vunpack.c.l.b16 %v4997
        %v5423 = vunpack.c.h.b16 %v4997
        %v5424 = vunpack.c.l.b16 %v4998
        %v5425 = vunpack.c.h.b16 %v4998
        %v5426 = vunpack.c.l.b16 %v4999
        %v5427 = vunpack.c.h.b16 %v4999
        %v5428 = vunpack.c.l.b16 %v5000
        %v5429 = vunpack.c.h.b16 %v5000
        %v5430 = vunpack.c.l.b16 %v5001
        %v5431 = vunpack.c.h.b16 %v5001
        %v5432 = vunpack.c.l.b16 %v5002
        %v5433 = vunpack.c.h.b16 %v5002
        %v5434 = vunpack.c.l.b16 %v5003
        %v5435 = vunpack.c.h.b16 %v5003
        %v5436 = vunpack.c.l.b16 %v5004
        %v5437 = vunpack.c.h.b16 %v5004
        %v5438 = vunpack.c.l.b16 %v5005
        %v5439 = vunpack.c.h.b16 %v5005
        %v5440 = vunpack.c.l.b16 %v5006
        %v5441 = vunpack.c.h.b16 %v5006
        %v5442 = vunpack.c.l.b16 %v5007
        %v5443 = vunpack.c.h.b16 %v5007
        %v5444 = vunpack.c.l.b16 %v5008
        %v5445 = vunpack.c.h.b16 %v5008
        %v5446 = vunpack.c.l.b16 %v5009
        %v5447 = vunpack.c.h.b16 %v5009
        %v5448 = vunpack.c.l.b16 %v5010
        %v5449 = vunpack.c.h.b16 %v5010
        %v5450 = vunpack.c.l.b16 %v5011
        %v5451 = vunpack.c.h.b16 %v5011
        %v5452 = vunpack.c.l.b16 %v5012
        %v5453 = vunpack.c.h.b16 %v5012
        %v5454 = vunpack.c.l.b16 %v5013
        %v5455 = vunpack.c.h.b16 %v5013
        %v5456 = vunpack.c.l.b16 %v5014
        %v5457 = vunpack.c.h.b16 %v5014
        %v5458 = vunpack.c.l.b16 %v5015
        %v5459 = vunpack.c.h.b16 %v5015
        %v5460 = vunpack.c.l.b16 %v5016
        %v5461 = vunpack.c.h.b16 %v5016
        %v5462 = vunpack.c.l.b16 %v5017
        %v5463 = vunpack.c.h.b16 %v5017
        %v5464 = vunpack.c.l.b16 %v5018
        %v5465 = vunpack.c.h.b16 %v5018
        %v5466 = vunpack.c.l.b16 %v5019
        %v5467 = vunpack.c.h.b16 %v5019
        %v5468 = vunpack.c.l.b16 %v5020
        %v5469 = vunpack.c.h.b16 %v5020
        %v5470 = vunpack.c.l.b16 %v5021
        %v5471 = vunpack.c.h.b16 %v5021
        %v5472 = vunpack.c.l.b16 %v5022
        %v5473 = vunpack.c.h.b16 %v5022
        %v5474 = vunpack.c.l.b16 %v5023
        %v5475 = vunpack.c.h.b16 %v5023
        %v5476 = vunpack.c.l.b16 %v5024
        %v5477 = vunpack.c.h.b16 %v5024
        %v5478 = vunpack.c.l.b16 %v5025
        %v5479 = vunpack.c.h.b16 %v5025
        %v5480 = vunpack.c.l.b16 %v5026
        %v5481 = vunpack.c.h.b16 %v5026
        %v5482 = vunpack.c.l.b16 %v5027
        %v5483 = vunpack.c.h.b16 %v5027
        %v5484 = vunpack.c.l.b16 %v5028
        %v5485 = vunpack.c.h.b16 %v5028
        %v5486 = vunpack.c.l.b16 %v5029
        %v5487 = vunpack.c.h.b16 %v5029
        %v5488 = vunpack.c.l.b16 %v5030
        %v5489 = vunpack.c.h.b16 %v5030
        %v5490 = vunpack.c.l.b16 %v5031
        %v5491 = vunpack.c.h.b16 %v5031
        %v5492 = vunpack.c.l.b16 %v5032
        %v5493 = vunpack.c.h.b16 %v5032
        %v5494 = vunpack.c.l.b16 %v5033
        %v5495 = vunpack.c.h.b16 %v5033
        %v5496 = vunpack.c.l.b16 %v5034
        %v5497 = vunpack.c.h.b16 %v5034
        %v5498 = vunpack.c.l.b16 %v5035
        %v5499 = vunpack.c.h.b16 %v5035
        %v5500 = vunpack.c.l.b16 %v5036
        %v5501 = vunpack.c.h.b16 %v5036
        %v5502 = vunpack.c.l.b16 %v5037
        %v5503 = vunpack.c.h.b16 %v5037
        %v5504 = vunpack.c.l.b16 %v5038
        %v5505 = vunpack.c.h.b16 %v5038
        %v5506 = vunpack.c.l.b16 %v5039
        %v5507 = vunpack.c.h.b16 %v5039
        %v5508 = vunpack.c.l.b16 %v5040
        %v5509 = vunpack.c.h.b16 %v5040
        %v5510 = vpack.c.b16 %v5270, %v5254
        %v5511 = vpack.c.b16 %v5271, %v5255
        %v5512 = vpack.c.b16 %v5272, %v5256
        %v5513 = vpack.c.b16 %v5273, %v5257
        %v5514 = vpack.c.b16 %v5274, %v5258
        %v5515 = vpack.c.b16 %v5275, %v5259
        %v5516 = vpack.c.b16 %v5276, %v5260
        %v5517 = vpack.c.b16 %v5277, %v5261
        %v5518 = vpack.c.b16 %v5278, %v5262
        %v5519 = vpack.c.b16 %v5279, %v5263
        %v5520 = vpack.c.b16 %v5280, %v5264
        %v5521 = vpack.c.b16 %v5281, %v5265
        %v5522 = vpack.c.b16 %v5282, %v5266
        %v5523 = vpack.c.b16 %v5283, %v5267
        %v5524 = vpack.c.b16 %v5284, %v5268
        %v5525 = vpack.c.b16 %v5285, %v5269
        %v5526 = vpack.c.b16 %v5302, %v5286
        %v5527 = vpack.c.b16 %v5303, %v5287
        %v5528 = vpack.c.b16 %v5304, %v5288
        %v5529 = vpack.c.b16 %v5305, %v5289
        %v5530 = vpack.c.b16 %v5306, %v5290
        %v5531 = vpack.c.b16 %v5307, %v5291
        %v5532 = vpack.c.b16 %v5308, %v5292
        %v5533 = vpack.c.b16 %v5309, %v5293
        %v5534 = vpack.c.b16 %v5310, %v5294
        %v5535 = vpack.c.b16 %v5311, %v5295
        %v5536 = vpack.c.b16 %v5312, %v5296
        %v5537 = vpack.c.b16 %v5313, %v5297
        %v5538 = vpack.c.b16 %v5314, %v5298
        %v5539 = vpack.c.b16 %v5315, %v5299
        %v5540 = vpack.c.b16 %v5316, %v5300
        %v5541 = vpack.c.b16 %v5317, %v5301
        %v5542 = vpack.c.b16 %v5334, %v5318
        %v5543 = vpack.c.b16 %v5335, %v5319
        %v5544 = vpack.c.b16 %v5336, %v5320
        %v5545 = vpack.c.b16 %v5337, %v5321
        %v5546 = vpack.c.b16 %v5338, %v5322
        %v5547 = vpack.c.b16 %v5339, %v5323
        %v5548 = vpack.c.b16 %v5340, %v5324
        %v5549 = vpack.c.b16 %v5341, %v5325
        %v5550 = vpack.c.b16 %v5342, %v5326
        %v5551 = vpack.c.b16 %v5343, %v5327
        %v5552 = vpack.c.b16 %v5344, %v5328
        %v5553 = vpack.c.b16 %v5345, %v5329
        %v5554 = vpack.c.b16 %v5346, %v5330
        %v5555 = vpack.c.b16 %v5347, %v5331
        %v5556 = vpack.c.b16 %v5348, %v5332
        %v5557 = vpack.c.b16 %v5349, %v5333
        %v5558 = vpack.c.b16 %v5366, %v5350
        %v5559 = vpack.c.b16 %v5367, %v5351
        %v5560 = vpack.c.b16 %v5368, %v5352
        %v5561 = vpack.c.b16 %v5369, %v5353
        %v5562 = vpack.c.b16 %v5370, %v5354
        %v5563 = vpack.c.b16 %v5371, %v5355
        %v5564 = vpack.c.b16 %v5372, %v5356
        %v5565 = vpack.c.b16 %v5373, %v5357
        %v5566 = vpack.c.b16 %v5374, %v5358
        %v5567 = vpack.c.b16 %v5375, %v5359
        %v5568 = vpack.c.b16 %v5376, %v5360
        %v5569 = vpack.c.b16 %v5377, %v5361
        %v5570 = vpack.c.b16 %v5378, %v5362
        %v5571 = vpack.c.b16 %v5379, %v5363
        %v5572 = vpack.c.b16 %v5380, %v5364
        %v5573 = vpack.c.b16 %v5381, %v5365
        %v5574 = vpack.c.b16 %v5398, %v5382
        %v5575 = vpack.c.b16 %v5399, %v5383
        %v5576 = vpack.c.b16 %v5400, %v5384
        %v5577 = vpack.c.b16 %v5401, %v5385
        %v5578 = vpack.c.b16 %v5402, %v5386
        %v5579 = vpack.c.b16 %v5403, %v5387
        %v5580 = vpack.c.b16 %v5404, %v5388
        %v5581 = vpack.c.b16 %v5405, %v5389
        %v5582 = vpack.c.b16 %v5406, %v5390
        %v5583 = vpack.c.b16 %v5407, %v5391
        %v5584 = vpack.c.b16 %v5408, %v5392
        %v5585 = vpack.c.b16 %v5409, %v5393
        %v5586 = vpack.c.b16 %v5410, %v5394
        %v5587 = vpack.c.b16 %v5411, %v5395
        %v5588 = vpack.c.b16 %v5412, %v5396
        %v5589 = vpack.c.b16 %v5413, %v5397
        %v5590 = vpack.c.b16 %v5430, %v5414
        %v5591 = vpack.c.b16 %v5431, %v5415
        %v5592 = vpack.c.b16 %v5432, %v5416
        %v5593 = vpack.c.b16 %v5433, %v5417
        %v5594 = vpack.c.b16 %v5434, %v5418
        %v5595 = vpack.c.b16 %v5435, %v5419
        %v5596 = vpack.c.b16 %v5436, %v5420
        %v5597 = vpack.c.b16 %v5437, %v5421
        %v5598 = vpack.c.b16 %v5438, %v5422
        %v5599 = vpack.c.b16 %v5439, %v5423
        %v5600 = vpack.c.b16 %v5440, %v5424
        %v5601 = vpack.c.b16 %v5441, %v5425
        %v5602 = vpack.c.b16 %v5442, %v5426
        %v5603 = vpack.c.b16 %v5443, %v5427
        %v5604 = vpack.c.b16 %v5444, %v5428
        %v5605 = vpack.c.b16 %v5445, %v5429
        %v5606 = vpack.c.b16 %v5462, %v5446
        %v5607 = vpack.c.b16 %v5463, %v5447
        %v5608 = vpack.c.b16 %v5464, %v5448
        %v5609 = vpack.c.b16 %v5465, %v5449
        %v5610 = vpack.c.b16 %v5466, %v5450
        %v5611 = vpack.c.b16 %v5467, %v5451
        %v5612 = vpack.c.b16 %v5468, %v5452
        %v5613 = vpack.c.b16 %v5469, %v5453
        %v5614 = vpack.c.b16 %v5470, %v5454
        %v5615 = vpack.c.b16 %v5471, %v5455
        %v5616 = vpack.c.b16 %v5472, %v5456
        %v5617 = vpack.c.b16 %v5473, %v5457
        %v5618 = vpack.c.b16 %v5474, %v5458
        %v5619 = vpack.c.b16 %v5475, %v5459
        %v5620 = vpack.c.b16 %v5476, %v5460
        %v5621 = vpack.c.b16 %v5477, %v5461
        %v5622 = vpack.c.b16 %v5494, %v5478
        %v5623 = vpack.c.b16 %v5495, %v5479
        %v5624 = vpack.c.b16 %v5496, %v5480
        %v5625 = vpack.c.b16 %v5497, %v5481
        %v5626 = vpack.c.b16 %v5498, %v5482
        %v5627 = vpack.c.b16 %v5499, %v5483
        %v5628 = vpack.c.b16 %v5500, %v5484
        %v5629 = vpack.c.b16 %v5501, %v5485
        %v5630 = vpack.c.b16 %v5502, %v5486
        %v5631 = vpack.c.b16 %v5503, %v5487
        %v5632 = vpack.c.b16 %v5504, %v5488
        %v5633 = vpack.c.b16 %v5505, %v5489
        %v5634 = vpack.c.b16 %v5506, %v5490
        %v5635 = vpack.c.b16 %v5507, %v5491
        %v5636 = vpack.c.b16 %v5508, %v5492
        %v5637 = vpack.c.b16 %v5509, %v5493
        %5766 = vmatprep.subr.bf16.mxu0 %v5511
        %5767 = vmatpush1.bf16.msra.mxu0 %v5510
        %5768 = vmatprep.subr.bf16.mxu0 %v5527
        %5769 = vmatpush1.bf16.msra.mxu0 %v5526
        %5770 = vmatprep.subr.bf16.mxu0 %v5543
        %5771 = vmatpush1.bf16.msra.mxu0 %v5542
        %5772 = vmatprep.subr.bf16.mxu0 %v5559
        %5773 = vmatpush1.bf16.msra.mxu0 %v5558
        %5774 = vmatprep.subr.bf16.mxu0 %v5575
        %5775 = vmatpush1.bf16.msra.mxu0 %v5574
        %5776 = vmatprep.subr.bf16.mxu0 %v5591
        %5777 = vmatpush1.bf16.msra.mxu0 %v5590
        %5778 = vmatprep.subr.bf16.mxu0 %v5607
        %5779 = vmatpush1.bf16.msra.mxu0 %v5606
        %5780 = vmatprep.subr.bf16.mxu0 %v5623
        %5781 = vmatpush1.bf16.msra.mxu0 %v5622
        %5782 = vmatprep.subr.bf16.mxu0 0
        %5783 = vmatpush1.bf16.msra.mxu0 0
        %5784 = vmatprep.subr.bf16.mxu0 0
        %5785 = vmatpush1.bf16.msra.mxu0 0
        %5786 = vmatprep.subr.bf16.mxu0 0
        %5787 = vmatpush1.bf16.msra.mxu0 0
        %5788 = vmatprep.subr.bf16.mxu0 0
        %5789 = vmatpush1.bf16.msra.mxu0 0
        %5790 = vmatprep.subr.bf16.mxu0 0
        %5791 = vmatpush1.bf16.msra.mxu0 0
        %5792 = vmatprep.subr.bf16.mxu0 0
        %5793 = vmatpush1.bf16.msra.mxu0 0
        %5794 = vmatprep.subr.bf16.mxu0 0
        %5795 = vmatpush1.bf16.msra.mxu0 0
        %5796 = vmatprep.subr.bf16.mxu0 0
        %5797 = vmatpush1.bf16.msra.mxu0 0
        %5798 = vmatprep.mubr.bf16.mxu0 0
        %5799 = vmatmul.mubr.bf16.gmra.mrb[0].mxu0 %v4911
        %v5800 = vpop.f32.mrb[0].mxu0
        %v5801 = vadd.f32 %v5049, %v5800
        %v5802 = vpop.f32.mrb[0].mxu0
        %v5803 = vadd.f32 %v5053, %v5802
        %v5804 = vpop.f32.mrb[0].mxu0
        %v5805 = vpop.f32.mrb[0].mxu0
        %5806 = vdwg.mxu0
        %5807 = vmatprep.subr.bf16.mxu0 %v5513
        %5808 = vmatpush1.bf16.msra.mxu0 %v5512
        %5809 = vmatprep.subr.bf16.mxu0 %v5529
        %5810 = vmatpush1.bf16.msra.mxu0 %v5528
        %5811 = vmatprep.subr.bf16.mxu0 %v5545
        %5812 = vmatpush1.bf16.msra.mxu0 %v5544
        %5813 = vmatprep.subr.bf16.mxu0 %v5561
        %5814 = vmatpush1.bf16.msra.mxu0 %v5560
        %5815 = vmatprep.subr.bf16.mxu0 %v5577
        %5816 = vmatpush1.bf16.msra.mxu0 %v5576
        %5817 = vmatprep.subr.bf16.mxu0 %v5593
        %5818 = vmatpush1.bf16.msra.mxu0 %v5592
        %5819 = vmatprep.subr.bf16.mxu0 %v5609
        %5820 = vmatpush1.bf16.msra.mxu0 %v5608
        %5821 = vmatprep.subr.bf16.mxu0 %v5625
        %5822 = vmatpush1.bf16.msra.mxu0 %v5624
        %5823 = vmatprep.subr.bf16.mxu0 0
        %5824 = vmatpush1.bf16.msra.mxu0 0
        %5825 = vmatprep.subr.bf16.mxu0 0
        %5826 = vmatpush1.bf16.msra.mxu0 0
        %5827 = vmatprep.subr.bf16.mxu0 0
        %5828 = vmatpush1.bf16.msra.mxu0 0
        %5829 = vmatprep.subr.bf16.mxu0 0
        %5830 = vmatpush1.bf16.msra.mxu0 0
        %5831 = vmatprep.subr.bf16.mxu0 0
        %5832 = vmatpush1.bf16.msra.mxu0 0
        %5833 = vmatprep.subr.bf16.mxu0 0
        %5834 = vmatpush1.bf16.msra.mxu0 0
        %5835 = vmatprep.subr.bf16.mxu0 0
        %5836 = vmatpush1.bf16.msra.mxu0 0
        %5837 = vmatprep.subr.bf16.mxu0 0
        %5838 = vmatpush1.bf16.msra.mxu0 0
        %5839 = vmatprep.mubr.bf16.mxu0 0
        %5840 = vmatmul.mubr.bf16.gmra.mrb[0].mxu0 %v4911
        %v5841 = vpop.f32.mrb[0].mxu0
        %v5842 = vadd.f32 %v5057, %v5841
        %v5843 = vpop.f32.mrb[0].mxu0
        %v5844 = vadd.f32 %v5061, %v5843
        %v5845 = vpop.f32.mrb[0].mxu0
        %v5846 = vpop.f32.mrb[0].mxu0
        %5847 = vdwg.mxu0
        %5848 = vmatprep.subr.bf16.mxu0 %v5515
        %5849 = vmatpush1.bf16.msra.mxu0 %v5514
        %5850 = vmatprep.subr.bf16.mxu0 %v5531
        %5851 = vmatpush1.bf16.msra.mxu0 %v5530
        %5852 = vmatprep.subr.bf16.mxu0 %v5547
        %5853 = vmatpush1.bf16.msra.mxu0 %v5546
        %5854 = vmatprep.subr.bf16.mxu0 %v5563
        %5855 = vmatpush1.bf16.msra.mxu0 %v5562
        %5856 = vmatprep.subr.bf16.mxu0 %v5579
        %5857 = vmatpush1.bf16.msra.mxu0 %v5578
        %5858 = vmatprep.subr.bf16.mxu0 %v5595
        %5859 = vmatpush1.bf16.msra.mxu0 %v5594
        %5860 = vmatprep.subr.bf16.mxu0 %v5611
        %5861 = vmatpush1.bf16.msra.mxu0 %v5610
        %5862 = vmatprep.subr.bf16.mxu0 %v5627
        %5863 = vmatpush1.bf16.msra.mxu0 %v5626
        %5864 = vmatprep.subr.bf16.mxu0 0
        %5865 = vmatpush1.bf16.msra.mxu0 0
        %5866 = vmatprep.subr.bf16.mxu0 0
        %5867 = vmatpush1.bf16.msra.mxu0 0
        %5868 = vmatprep.subr.bf16.mxu0 0
        %5869 = vmatpush1.bf16.msra.mxu0 0
        %5870 = vmatprep.subr.bf16.mxu0 0
        %5871 = vmatpush1.bf16.msra.mxu0 0
        %5872 = vmatprep.subr.bf16.mxu0 0
        %5873 = vmatpush1.bf16.msra.mxu0 0
        %5874 = vmatprep.subr.bf16.mxu0 0
        %5875 = vmatpush1.bf16.msra.mxu0 0
        %5876 = vmatprep.subr.bf16.mxu0 0
        %5877 = vmatpush1.bf16.msra.mxu0 0
        %5878 = vmatprep.subr.bf16.mxu0 0
        %5879 = vmatpush1.bf16.msra.mxu0 0
        %5880 = vmatprep.mubr.bf16.mxu0 0
        %5881 = vmatmul.mubr.bf16.gmra.mrb[0].mxu0 %v4911
        %v5882 = vpop.f32.mrb[0].mxu0
        %v5883 = vadd.f32 %v5065, %v5882
        %v5884 = vpop.f32.mrb[0].mxu0
        %v5885 = vadd.f32 %v5069, %v5884
        %v5886 = vpop.f32.mrb[0].mxu0
        %v5887 = vpop.f32.mrb[0].mxu0
        %5888 = vdwg.mxu0
        %5889 = vmatprep.subr.bf16.mxu0 %v5517
        %5890 = vmatpush1.bf16.msra.mxu0 %v5516
        %5891 = vmatprep.subr.bf16.mxu0 %v5533
        %5892 = vmatpush1.bf16.msra.mxu0 %v5532
        %5893 = vmatprep.subr.bf16.mxu0 %v5549
        %5894 = vmatpush1.bf16.msra.mxu0 %v5548
        %5895 = vmatprep.subr.bf16.mxu0 %v5565
        %5896 = vmatpush1.bf16.msra.mxu0 %v5564
        %5897 = vmatprep.subr.bf16.mxu0 %v5581
        %5898 = vmatpush1.bf16.msra.mxu0 %v5580
        %5899 = vmatprep.subr.bf16.mxu0 %v5597
        %5900 = vmatpush1.bf16.msra.mxu0 %v5596
        %5901 = vmatprep.subr.bf16.mxu0 %v5613
        %5902 = vmatpush1.bf16.msra.mxu0 %v5612
        %5903 = vmatprep.subr.bf16.mxu0 %v5629
        %5904 = vmatpush1.bf16.msra.mxu0 %v5628
        %5905 = vmatprep.subr.bf16.mxu0 0
        %5906 = vmatpush1.bf16.msra.mxu0 0
        %5907 = vmatprep.subr.bf16.mxu0 0
        %5908 = vmatpush1.bf16.msra.mxu0 0
        %5909 = vmatprep.subr.bf16.mxu0 0
        %5910 = vmatpush1.bf16.msra.mxu0 0
        %5911 = vmatprep.subr.bf16.mxu0 0
        %5912 = vmatpush1.bf16.msra.mxu0 0
        %5913 = vmatprep.subr.bf16.mxu0 0
        %5914 = vmatpush1.bf16.msra.mxu0 0
        %5915 = vmatprep.subr.bf16.mxu0 0
        %5916 = vmatpush1.bf16.msra.mxu0 0
        %5917 = vmatprep.subr.bf16.mxu0 0
        %5918 = vmatpush1.bf16.msra.mxu0 0
        %5919 = vmatprep.subr.bf16.mxu0 0
        %5920 = vmatpush1.bf16.msra.mxu0 0
        %5921 = vmatprep.mubr.bf16.mxu0 0
        %5922 = vmatmul.mubr.bf16.gmra.mrb[0].mxu0 %v4911
        %v5923 = vpop.f32.mrb[0].mxu0
        %v5924 = vadd.f32 %v5073, %v5923
        %v5925 = vpop.f32.mrb[0].mxu0
        %v5926 = vadd.f32 %v5077, %v5925
        %v5927 = vpop.f32.mrb[0].mxu0
        %v5928 = vpop.f32.mrb[0].mxu0
        %5929 = vdwg.mxu0
        %5930 = vmatprep.subr.bf16.mxu0 %v5519
        %5931 = vmatpush1.bf16.msra.mxu0 %v5518
        %5932 = vmatprep.subr.bf16.mxu0 %v5535
        %5933 = vmatpush1.bf16.msra.mxu0 %v5534
        %5934 = vmatprep.subr.bf16.mxu0 %v5551
        %5935 = vmatpush1.bf16.msra.mxu0 %v5550
        %5936 = vmatprep.subr.bf16.mxu0 %v5567
        %5937 = vmatpush1.bf16.msra.mxu0 %v5566
        %5938 = vmatprep.subr.bf16.mxu0 %v5583
        %5939 = vmatpush1.bf16.msra.mxu0 %v5582
        %5940 = vmatprep.subr.bf16.mxu0 %v5599
        %5941 = vmatpush1.bf16.msra.mxu0 %v5598
        %5942 = vmatprep.subr.bf16.mxu0 %v5615
        %5943 = vmatpush1.bf16.msra.mxu0 %v5614
        %5944 = vmatprep.subr.bf16.mxu0 %v5631
        %5945 = vmatpush1.bf16.msra.mxu0 %v5630
        %5946 = vmatprep.subr.bf16.mxu0 0
        %5947 = vmatpush1.bf16.msra.mxu0 0
        %5948 = vmatprep.subr.bf16.mxu0 0
        %5949 = vmatpush1.bf16.msra.mxu0 0
        %5950 = vmatprep.subr.bf16.mxu0 0
        %5951 = vmatpush1.bf16.msra.mxu0 0
        %5952 = vmatprep.subr.bf16.mxu0 0
        %5953 = vmatpush1.bf16.msra.mxu0 0
        %5954 = vmatprep.subr.bf16.mxu0 0
        %5955 = vmatpush1.bf16.msra.mxu0 0
        %5956 = vmatprep.subr.bf16.mxu0 0
        %5957 = vmatpush1.bf16.msra.mxu0 0
        %5958 = vmatprep.subr.bf16.mxu0 0
        %5959 = vmatpush1.bf16.msra.mxu0 0
        %5960 = vmatprep.subr.bf16.mxu0 0
        %5961 = vmatpush1.bf16.msra.mxu0 0
        %5962 = vmatprep.mubr.bf16.mxu0 0
        %5963 = vmatmul.mubr.bf16.gmra.mrb[0].mxu0 %v4911
        %v5964 = vpop.f32.mrb[0].mxu0
        %v5965 = vadd.f32 %v5081, %v5964
        %v5966 = vpop.f32.mrb[0].mxu0
        %v5967 = vadd.f32 %v5085, %v5966
        %v5968 = vpop.f32.mrb[0].mxu0
        %v5969 = vpop.f32.mrb[0].mxu0
        %5970 = vdwg.mxu0
        %5971 = vmatprep.subr.bf16.mxu0 %v5521
        %5972 = vmatpush1.bf16.msra.mxu0 %v5520
        %5973 = vmatprep.subr.bf16.mxu0 %v5537
        %5974 = vmatpush1.bf16.msra.mxu0 %v5536
        %5975 = vmatprep.subr.bf16.mxu0 %v5553
        %5976 = vmatpush1.bf16.msra.mxu0 %v5552
        %5977 = vmatprep.subr.bf16.mxu0 %v5569
        %5978 = vmatpush1.bf16.msra.mxu0 %v5568
        %5979 = vmatprep.subr.bf16.mxu0 %v5585
        %5980 = vmatpush1.bf16.msra.mxu0 %v5584
        %5981 = vmatprep.subr.bf16.mxu0 %v5601
        %5982 = vmatpush1.bf16.msra.mxu0 %v5600
        %5983 = vmatprep.subr.bf16.mxu0 %v5617
        %5984 = vmatpush1.bf16.msra.mxu0 %v5616
        %5985 = vmatprep.subr.bf16.mxu0 %v5633
        %5986 = vmatpush1.bf16.msra.mxu0 %v5632
        %5987 = vmatprep.subr.bf16.mxu0 0
        %5988 = vmatpush1.bf16.msra.mxu0 0
        %5989 = vmatprep.subr.bf16.mxu0 0
        %5990 = vmatpush1.bf16.msra.mxu0 0
        %5991 = vmatprep.subr.bf16.mxu0 0
        %5992 = vmatpush1.bf16.msra.mxu0 0
        %5993 = vmatprep.subr.bf16.mxu0 0
        %5994 = vmatpush1.bf16.msra.mxu0 0
        %5995 = vmatprep.subr.bf16.mxu0 0
        %5996 = vmatpush1.bf16.msra.mxu0 0
        %5997 = vmatprep.subr.bf16.mxu0 0
        %5998 = vmatpush1.bf16.msra.mxu0 0
        %5999 = vmatprep.subr.bf16.mxu0 0
        %6000 = vmatpush1.bf16.msra.mxu0 0
        %6001 = vmatprep.subr.bf16.mxu0 0
        %6002 = vmatpush1.bf16.msra.mxu0 0
        %6003 = vmatprep.mubr.bf16.mxu0 0
        %6004 = vmatmul.mubr.bf16.gmra.mrb[0].mxu0 %v4911
        %v6005 = vpop.f32.mrb[0].mxu0
        %v6006 = vadd.f32 %v5089, %v6005
        %v6007 = vpop.f32.mrb[0].mxu0
        %v6008 = vadd.f32 %v5093, %v6007
        %v6009 = vpop.f32.mrb[0].mxu0
        %v6010 = vpop.f32.mrb[0].mxu0
        %6011 = vdwg.mxu0
        %6012 = vmatprep.subr.bf16.mxu0 %v5523
        %6013 = vmatpush1.bf16.msra.mxu0 %v5522
        %6014 = vmatprep.subr.bf16.mxu0 %v5539
        %6015 = vmatpush1.bf16.msra.mxu0 %v5538
        %6016 = vmatprep.subr.bf16.mxu0 %v5555
        %6017 = vmatpush1.bf16.msra.mxu0 %v5554
        %6018 = vmatprep.subr.bf16.mxu0 %v5571
        %6019 = vmatpush1.bf16.msra.mxu0 %v5570
        %6020 = vmatprep.subr.bf16.mxu0 %v5587
        %6021 = vmatpush1.bf16.msra.mxu0 %v5586
        %6022 = vmatprep.subr.bf16.mxu0 %v5603
        %6023 = vmatpush1.bf16.msra.mxu0 %v5602
        %6024 = vmatprep.subr.bf16.mxu0 %v5619
        %6025 = vmatpush1.bf16.msra.mxu0 %v5618
        %6026 = vmatprep.subr.bf16.mxu0 %v5635
        %6027 = vmatpush1.bf16.msra.mxu0 %v5634
        %6028 = vmatprep.subr.bf16.mxu0 0
        %6029 = vmatpush1.bf16.msra.mxu0 0
        %6030 = vmatprep.subr.bf16.mxu0 0
        %6031 = vmatpush1.bf16.msra.mxu0 0
        %6032 = vmatprep.subr.bf16.mxu0 0
        %6033 = vmatpush1.bf16.msra.mxu0 0
        %6034 = vmatprep.subr.bf16.mxu0 0
        %6035 = vmatpush1.bf16.msra.mxu0 0
        %6036 = vmatprep.subr.bf16.mxu0 0
        %6037 = vmatpush1.bf16.msra.mxu0 0
        %6038 = vmatprep.subr.bf16.mxu0 0
        %6039 = vmatpush1.bf16.msra.mxu0 0
        %6040 = vmatprep.subr.bf16.mxu0 0
        %6041 = vmatpush1.bf16.msra.mxu0 0
        %6042 = vmatprep.subr.bf16.mxu0 0
        %6043 = vmatpush1.bf16.msra.mxu0 0
        %6044 = vmatprep.mubr.bf16.mxu0 0
        %6045 = vmatmul.mubr.bf16.gmra.mrb[0].mxu0 %v4911
        %v6046 = vpop.f32.mrb[0].mxu0
        %v6047 = vadd.f32 %v5097, %v6046
        %v6048 = vpop.f32.mrb[0].mxu0
        %v6049 = vadd.f32 %v5101, %v6048
        %v6050 = vpop.f32.mrb[0].mxu0
        %v6051 = vpop.f32.mrb[0].mxu0
        %6052 = vdwg.mxu0
        %6053 = vmatprep.subr.bf16.mxu0 %v5525
        %6054 = vmatpush1.bf16.msra.mxu0 %v5524
        %6055 = vmatprep.subr.bf16.mxu0 %v5541
        %6056 = vmatpush1.bf16.msra.mxu0 %v5540
        %6057 = vmatprep.subr.bf16.mxu0 %v5557
        %6058 = vmatpush1.bf16.msra.mxu0 %v5556
        %6059 = vmatprep.subr.bf16.mxu0 %v5573
        %6060 = vmatpush1.bf16.msra.mxu0 %v5572
        %6061 = vmatprep.subr.bf16.mxu0 %v5589
        %6062 = vmatpush1.bf16.msra.mxu0 %v5588
        %6063 = vmatprep.subr.bf16.mxu0 %v5605
        %6064 = vmatpush1.bf16.msra.mxu0 %v5604
        %6065 = vmatprep.subr.bf16.mxu0 %v5621
        %6066 = vmatpush1.bf16.msra.mxu0 %v5620
        %6067 = vmatprep.subr.bf16.mxu0 %v5637
        %6068 = vmatpush1.bf16.msra.mxu0 %v5636
        %6069 = vmatprep.subr.bf16.mxu0 0
        %6070 = vmatpush1.bf16.msra.mxu0 0
        %6071 = vmatprep.subr.bf16.mxu0 0
        %6072 = vmatpush1.bf16.msra.mxu0 0
        %6073 = vmatprep.subr.bf16.mxu0 0
        %6074 = vmatpush1.bf16.msra.mxu0 0
        %6075 = vmatprep.subr.bf16.mxu0 0
        %6076 = vmatpush1.bf16.msra.mxu0 0
        %6077 = vmatprep.subr.bf16.mxu0 0
        %6078 = vmatpush1.bf16.msra.mxu0 0
        %6079 = vmatprep.subr.bf16.mxu0 0
        %6080 = vmatpush1.bf16.msra.mxu0 0
        %6081 = vmatprep.subr.bf16.mxu0 0
        %6082 = vmatpush1.bf16.msra.mxu0 0
        %6083 = vmatprep.subr.bf16.mxu0 0
        %6084 = vmatpush1.bf16.msra.mxu0 0
        %6085 = vmatprep.mubr.bf16.mxu0 0
        %6086 = vmatmul.mubr.bf16.gmra.mrb[0].mxu0 %v4911
        %v6087 = vpop.f32.mrb[0].mxu0
        %v6088 = vadd.f32 %v5105, %v6087
        %v6089 = vpop.f32.mrb[0].mxu0
        %v6090 = vadd.f32 %v5109, %v6089
        %v6091 = vpop.f32.mrb[0].mxu0
        %v6092 = vpop.f32.mrb[0].mxu0
        %6093 = vdwg.mxu0
        %v6094 = vmax.f32 %v5801, 0.0
        %v6095 = vmax.f32 %v5803, 0.0
        %v6096 = vmax.f32 %v5842, 0.0
        %v6097 = vmax.f32 %v5844, 0.0
        %v6098 = vmax.f32 %v5883, 0.0
        %v6099 = vmax.f32 %v5885, 0.0
        %v6100 = vmax.f32 %v5924, 0.0
        %v6101 = vmax.f32 %v5926, 0.0
        %v6102 = vmax.f32 %v5965, 0.0
        %v6103 = vmax.f32 %v5967, 0.0
        %v6104 = vmax.f32 %v6006, 0.0
        %v6105 = vmax.f32 %v6008, 0.0
        %v6106 = vmax.f32 %v6047, 0.0
        %v6107 = vmax.f32 %v6049, 0.0
        %v6108 = vmax.f32 %v6088, 0.0
        %v6109 = vmax.f32 %v6090, 0.0
        %v6110 = vpack.c.bf16 %v6094, %v6094
        %v6111 = vpack.c.bf16 %v6095, %v6095
        %v6112 = vpack.c.bf16 %v6096, %v6096
        %v6113 = vpack.c.bf16 %v6097, %v6097
        %v6114 = vpack.c.bf16 %v6098, %v6098
        %v6115 = vpack.c.bf16 %v6099, %v6099
        %v6116 = vpack.c.bf16 %v6100, %v6100
        %v6117 = vpack.c.bf16 %v6101, %v6101
        %v6118 = vpack.c.bf16 %v6102, %v6102
        %v6119 = vpack.c.bf16 %v6103, %v6103
        %v6120 = vpack.c.bf16 %v6104, %v6104
        %v6121 = vpack.c.bf16 %v6105, %v6105
        %v6122 = vpack.c.bf16 %v6106, %v6106
        %v6123 = vpack.c.bf16 %v6107, %v6107
        %v6124 = vpack.c.bf16 %v6108, %v6108
        %v6125 = vpack.c.bf16 %v6109, %v6109
        %s6126 = scalar_lea.vmem [#allocation11], 1024
        %v6127 = vld [vmem:[%s6126] sm:$0xf]
        %v6128 = vld [vmem:[%s6126 + $0x4] sm:$0xf]
        %v6129 = vld [vmem:[%s6126 + $0x8] sm:$0xf]
        %v6130 = vld [vmem:[%s6126 + $0xc] sm:$0xf]
        %v6131 = vld [vmem:[%s6126 + $0x10] sm:$0xf]
        %v6132 = vld [vmem:[%s6126 + $0x14] sm:$0xf]
        %v6133 = vld [vmem:[%s6126 + $0x18] sm:$0xf]
        %v6134 = vld [vmem:[%s6126 + $0x1c] sm:$0xf]
        %v6135 = vld [vmem:[%s6126 + $0x20] sm:$0xf]
        %v6136 = vld [vmem:[%s6126 + $0x24] sm:$0xf]
        %v6137 = vld [vmem:[%s6126 + $0x28] sm:$0xf]
        %v6138 = vld [vmem:[%s6126 + $0x2c] sm:$0xf]
        %v6139 = vld [vmem:[%s6126 + $0x30] sm:$0xf]
        %v6140 = vld [vmem:[%s6126 + $0x34] sm:$0xf]
        %v6141 = vld [vmem:[%s6126 + $0x38] sm:$0xf]
        %v6142 = vld [vmem:[%s6126 + $0x3c] sm:$0xf]
        %v6143 = vld [vmem:[%s6126 + $0x40] sm:$0xf]
        %v6144 = vld [vmem:[%s6126 + $0x44] sm:$0xf]
        %v6145 = vld [vmem:[%s6126 + $0x48] sm:$0xf]
        %v6146 = vld [vmem:[%s6126 + $0x4c] sm:$0xf]
        %v6147 = vld [vmem:[%s6126 + $0x50] sm:$0xf]
        %v6148 = vld [vmem:[%s6126 + $0x54] sm:$0xf]
        %v6149 = vld [vmem:[%s6126 + $0x58] sm:$0xf]
        %v6150 = vld [vmem:[%s6126 + $0x5c] sm:$0xf]
        %v6151 = vld [vmem:[%s6126 + $0x60] sm:$0xf]
        %v6152 = vld [vmem:[%s6126 + $0x64] sm:$0xf]
        %v6153 = vld [vmem:[%s6126 + $0x68] sm:$0xf]
        %v6154 = vld [vmem:[%s6126 + $0x6c] sm:$0xf]
        %v6155 = vld [vmem:[%s6126 + $0x70] sm:$0xf]
        %v6156 = vld [vmem:[%s6126 + $0x74] sm:$0xf]
        %v6157 = vld [vmem:[%s6126 + $0x78] sm:$0xf]
        %v6158 = vld [vmem:[%s6126 + $0x7c] sm:$0xf]
        %v6159 = vld [vmem:[%s6126 + $0x80] sm:$0xf]
        %v6160 = vld [vmem:[%s6126 + $0x84] sm:$0xf]
        %v6161 = vld [vmem:[%s6126 + $0x88] sm:$0xf]
        %v6162 = vld [vmem:[%s6126 + $0x8c] sm:$0xf]
        %v6163 = vld [vmem:[%s6126 + $0x90] sm:$0xf]
        %v6164 = vld [vmem:[%s6126 + $0x94] sm:$0xf]
        %v6165 = vld [vmem:[%s6126 + $0x98] sm:$0xf]
        %v6166 = vld [vmem:[%s6126 + $0x9c] sm:$0xf]
        %v6167 = vld [vmem:[%s6126 + $0xa0] sm:$0xf]
        %v6168 = vld [vmem:[%s6126 + $0xa4] sm:$0xf]
        %v6169 = vld [vmem:[%s6126 + $0xa8] sm:$0xf]
        %v6170 = vld [vmem:[%s6126 + $0xac] sm:$0xf]
        %v6171 = vld [vmem:[%s6126 + $0xb0] sm:$0xf]
        %v6172 = vld [vmem:[%s6126 + $0xb4] sm:$0xf]
        %v6173 = vld [vmem:[%s6126 + $0xb8] sm:$0xf]
        %v6174 = vld [vmem:[%s6126 + $0xbc] sm:$0xf]
        %v6175 = vld [vmem:[%s6126 + $0xc0] sm:$0xf]
        %v6176 = vld [vmem:[%s6126 + $0xc4] sm:$0xf]
        %v6177 = vld [vmem:[%s6126 + $0xc8] sm:$0xf]
        %v6178 = vld [vmem:[%s6126 + $0xcc] sm:$0xf]
        %v6179 = vld [vmem:[%s6126 + $0xd0] sm:$0xf]
        %v6180 = vld [vmem:[%s6126 + $0xd4] sm:$0xf]
        %v6181 = vld [vmem:[%s6126 + $0xd8] sm:$0xf]
        %v6182 = vld [vmem:[%s6126 + $0xdc] sm:$0xf]
        %v6183 = vld [vmem:[%s6126 + $0xe0] sm:$0xf]
        %v6184 = vld [vmem:[%s6126 + $0xe4] sm:$0xf]
        %v6185 = vld [vmem:[%s6126 + $0xe8] sm:$0xf]
        %v6186 = vld [vmem:[%s6126 + $0xec] sm:$0xf]
        %v6187 = vld [vmem:[%s6126 + $0xf0] sm:$0xf]
        %v6188 = vld [vmem:[%s6126 + $0xf4] sm:$0xf]
        %v6189 = vld [vmem:[%s6126 + $0xf8] sm:$0xf]
        %v6190 = vld [vmem:[%s6126 + $0xfc] sm:$0xf]
        %v6191 = vld [vmem:[%s6126 + $0x100] sm:$0xf]
        %v6192 = vld [vmem:[%s6126 + $0x104] sm:$0xf]
        %v6193 = vld [vmem:[%s6126 + $0x108] sm:$0xf]
        %v6194 = vld [vmem:[%s6126 + $0x10c] sm:$0xf]
        %v6195 = vld [vmem:[%s6126 + $0x110] sm:$0xf]
        %v6196 = vld [vmem:[%s6126 + $0x114] sm:$0xf]
        %v6197 = vld [vmem:[%s6126 + $0x118] sm:$0xf]
        %v6198 = vld [vmem:[%s6126 + $0x11c] sm:$0xf]
        %v6199 = vld [vmem:[%s6126 + $0x120] sm:$0xf]
        %v6200 = vld [vmem:[%s6126 + $0x124] sm:$0xf]
        %v6201 = vld [vmem:[%s6126 + $0x128] sm:$0xf]
        %v6202 = vld [vmem:[%s6126 + $0x12c] sm:$0xf]
        %v6203 = vld [vmem:[%s6126 + $0x130] sm:$0xf]
        %v6204 = vld [vmem:[%s6126 + $0x134] sm:$0xf]
        %v6205 = vld [vmem:[%s6126 + $0x138] sm:$0xf]
        %v6206 = vld [vmem:[%s6126 + $0x13c] sm:$0xf]
        %v6207 = vld [vmem:[%s6126 + $0x140] sm:$0xf]
        %v6208 = vld [vmem:[%s6126 + $0x144] sm:$0xf]
        %v6209 = vld [vmem:[%s6126 + $0x148] sm:$0xf]
        %v6210 = vld [vmem:[%s6126 + $0x14c] sm:$0xf]
        %v6211 = vld [vmem:[%s6126 + $0x150] sm:$0xf]
        %v6212 = vld [vmem:[%s6126 + $0x154] sm:$0xf]
        %v6213 = vld [vmem:[%s6126 + $0x158] sm:$0xf]
        %v6214 = vld [vmem:[%s6126 + $0x15c] sm:$0xf]
        %v6215 = vld [vmem:[%s6126 + $0x160] sm:$0xf]
        %v6216 = vld [vmem:[%s6126 + $0x164] sm:$0xf]
        %v6217 = vld [vmem:[%s6126 + $0x168] sm:$0xf]
        %v6218 = vld [vmem:[%s6126 + $0x16c] sm:$0xf]
        %v6219 = vld [vmem:[%s6126 + $0x170] sm:$0xf]
        %v6220 = vld [vmem:[%s6126 + $0x174] sm:$0xf]
        %v6221 = vld [vmem:[%s6126 + $0x178] sm:$0xf]
        %v6222 = vld [vmem:[%s6126 + $0x17c] sm:$0xf]
        %v6223 = vld [vmem:[%s6126 + $0x180] sm:$0xf]
        %v6224 = vld [vmem:[%s6126 + $0x184] sm:$0xf]
        %v6225 = vld [vmem:[%s6126 + $0x188] sm:$0xf]
        %v6226 = vld [vmem:[%s6126 + $0x18c] sm:$0xf]
        %v6227 = vld [vmem:[%s6126 + $0x190] sm:$0xf]
        %v6228 = vld [vmem:[%s6126 + $0x194] sm:$0xf]
        %v6229 = vld [vmem:[%s6126 + $0x198] sm:$0xf]
        %v6230 = vld [vmem:[%s6126 + $0x19c] sm:$0xf]
        %v6231 = vld [vmem:[%s6126 + $0x1a0] sm:$0xf]
        %v6232 = vld [vmem:[%s6126 + $0x1a4] sm:$0xf]
        %v6233 = vld [vmem:[%s6126 + $0x1a8] sm:$0xf]
        %v6234 = vld [vmem:[%s6126 + $0x1ac] sm:$0xf]
        %v6235 = vld [vmem:[%s6126 + $0x1b0] sm:$0xf]
        %v6236 = vld [vmem:[%s6126 + $0x1b4] sm:$0xf]
        %v6237 = vld [vmem:[%s6126 + $0x1b8] sm:$0xf]
        %v6238 = vld [vmem:[%s6126 + $0x1bc] sm:$0xf]
        %v6239 = vld [vmem:[%s6126 + $0x1c0] sm:$0xf]
        %v6240 = vld [vmem:[%s6126 + $0x1c4] sm:$0xf]
        %v6241 = vld [vmem:[%s6126 + $0x1c8] sm:$0xf]
        %v6242 = vld [vmem:[%s6126 + $0x1cc] sm:$0xf]
        %v6243 = vld [vmem:[%s6126 + $0x1d0] sm:$0xf]
        %v6244 = vld [vmem:[%s6126 + $0x1d4] sm:$0xf]
        %v6245 = vld [vmem:[%s6126 + $0x1d8] sm:$0xf]
        %v6246 = vld [vmem:[%s6126 + $0x1dc] sm:$0xf]
        %v6247 = vld [vmem:[%s6126 + $0x1e0] sm:$0xf]
        %v6248 = vld [vmem:[%s6126 + $0x1e4] sm:$0xf]
        %v6249 = vld [vmem:[%s6126 + $0x1e8] sm:$0xf]
        %v6250 = vld [vmem:[%s6126 + $0x1ec] sm:$0xf]
        %v6251 = vld [vmem:[%s6126 + $0x1f0] sm:$0xf]
        %v6252 = vld [vmem:[%s6126 + $0x1f4] sm:$0xf]
        %v6253 = vld [vmem:[%s6126 + $0x1f8] sm:$0xf]
        %v6254 = vld [vmem:[%s6126 + $0x1fc] sm:$0xf]
        %v6255 = vld [vmem:[%s6126 + $0x200] sm:$0xf]
        %v6256 = vld [vmem:[%s6126 + $0x204] sm:$0xf]
        %v6257 = vld [vmem:[%s6126 + $0x208] sm:$0xf]
        %v6258 = vld [vmem:[%s6126 + $0x20c] sm:$0xf]
        %v6259 = vld [vmem:[%s6126 + $0x210] sm:$0xf]
        %v6260 = vld [vmem:[%s6126 + $0x214] sm:$0xf]
        %v6261 = vld [vmem:[%s6126 + $0x218] sm:$0xf]
        %v6262 = vld [vmem:[%s6126 + $0x21c] sm:$0xf]
        %v6263 = vld [vmem:[%s6126 + $0x220] sm:$0xf]
        %v6264 = vld [vmem:[%s6126 + $0x224] sm:$0xf]
        %v6265 = vld [vmem:[%s6126 + $0x228] sm:$0xf]
        %v6266 = vld [vmem:[%s6126 + $0x22c] sm:$0xf]
        %v6267 = vld [vmem:[%s6126 + $0x230] sm:$0xf]
        %v6268 = vld [vmem:[%s6126 + $0x234] sm:$0xf]
        %v6269 = vld [vmem:[%s6126 + $0x238] sm:$0xf]
        %v6270 = vld [vmem:[%s6126 + $0x23c] sm:$0xf]
        %v6271 = vld [vmem:[%s6126 + $0x240] sm:$0xf]
        %v6272 = vld [vmem:[%s6126 + $0x244] sm:$0xf]
        %v6273 = vld [vmem:[%s6126 + $0x248] sm:$0xf]
        %v6274 = vld [vmem:[%s6126 + $0x24c] sm:$0xf]
        %v6275 = vld [vmem:[%s6126 + $0x250] sm:$0xf]
        %v6276 = vld [vmem:[%s6126 + $0x254] sm:$0xf]
        %v6277 = vld [vmem:[%s6126 + $0x258] sm:$0xf]
        %v6278 = vld [vmem:[%s6126 + $0x25c] sm:$0xf]
        %v6279 = vld [vmem:[%s6126 + $0x260] sm:$0xf]
        %v6280 = vld [vmem:[%s6126 + $0x264] sm:$0xf]
        %v6281 = vld [vmem:[%s6126 + $0x268] sm:$0xf]
        %v6282 = vld [vmem:[%s6126 + $0x26c] sm:$0xf]
        %v6283 = vld [vmem:[%s6126 + $0x270] sm:$0xf]
        %v6284 = vld [vmem:[%s6126 + $0x274] sm:$0xf]
        %v6285 = vld [vmem:[%s6126 + $0x278] sm:$0xf]
        %v6286 = vld [vmem:[%s6126 + $0x27c] sm:$0xf]
        %v6287 = vld [vmem:[%s6126 + $0x280] sm:$0xf]
        %v6288 = vld [vmem:[%s6126 + $0x284] sm:$0xf]
        %v6289 = vld [vmem:[%s6126 + $0x288] sm:$0xf]
        %v6290 = vld [vmem:[%s6126 + $0x28c] sm:$0xf]
        %v6291 = vld [vmem:[%s6126 + $0x290] sm:$0xf]
        %v6292 = vld [vmem:[%s6126 + $0x294] sm:$0xf]
        %v6293 = vld [vmem:[%s6126 + $0x298] sm:$0xf]
        %v6294 = vld [vmem:[%s6126 + $0x29c] sm:$0xf]
        %v6295 = vld [vmem:[%s6126 + $0x2a0] sm:$0xf]
        %v6296 = vld [vmem:[%s6126 + $0x2a4] sm:$0xf]
        %v6297 = vld [vmem:[%s6126 + $0x2a8] sm:$0xf]
        %v6298 = vld [vmem:[%s6126 + $0x2ac] sm:$0xf]
        %v6299 = vld [vmem:[%s6126 + $0x2b0] sm:$0xf]
        %v6300 = vld [vmem:[%s6126 + $0x2b4] sm:$0xf]
        %v6301 = vld [vmem:[%s6126 + $0x2b8] sm:$0xf]
        %v6302 = vld [vmem:[%s6126 + $0x2bc] sm:$0xf]
        %v6303 = vld [vmem:[%s6126 + $0x2c0] sm:$0xf]
        %v6304 = vld [vmem:[%s6126 + $0x2c4] sm:$0xf]
        %v6305 = vld [vmem:[%s6126 + $0x2c8] sm:$0xf]
        %v6306 = vld [vmem:[%s6126 + $0x2cc] sm:$0xf]
        %v6307 = vld [vmem:[%s6126 + $0x2d0] sm:$0xf]
        %v6308 = vld [vmem:[%s6126 + $0x2d4] sm:$0xf]
        %v6309 = vld [vmem:[%s6126 + $0x2d8] sm:$0xf]
        %v6310 = vld [vmem:[%s6126 + $0x2dc] sm:$0xf]
        %v6311 = vld [vmem:[%s6126 + $0x2e0] sm:$0xf]
        %v6312 = vld [vmem:[%s6126 + $0x2e4] sm:$0xf]
        %v6313 = vld [vmem:[%s6126 + $0x2e8] sm:$0xf]
        %v6314 = vld [vmem:[%s6126 + $0x2ec] sm:$0xf]
        %v6315 = vld [vmem:[%s6126 + $0x2f0] sm:$0xf]
        %v6316 = vld [vmem:[%s6126 + $0x2f4] sm:$0xf]
        %v6317 = vld [vmem:[%s6126 + $0x2f8] sm:$0xf]
        %v6318 = vld [vmem:[%s6126 + $0x2fc] sm:$0xf]
        %v6319 = vld [vmem:[%s6126 + $0x300] sm:$0xf]
        %v6320 = vld [vmem:[%s6126 + $0x304] sm:$0xf]
        %v6321 = vld [vmem:[%s6126 + $0x308] sm:$0xf]
        %v6322 = vld [vmem:[%s6126 + $0x30c] sm:$0xf]
        %v6323 = vld [vmem:[%s6126 + $0x310] sm:$0xf]
        %v6324 = vld [vmem:[%s6126 + $0x314] sm:$0xf]
        %v6325 = vld [vmem:[%s6126 + $0x318] sm:$0xf]
        %v6326 = vld [vmem:[%s6126 + $0x31c] sm:$0xf]
        %v6327 = vld [vmem:[%s6126 + $0x320] sm:$0xf]
        %v6328 = vld [vmem:[%s6126 + $0x324] sm:$0xf]
        %v6329 = vld [vmem:[%s6126 + $0x328] sm:$0xf]
        %v6330 = vld [vmem:[%s6126 + $0x32c] sm:$0xf]
        %v6331 = vld [vmem:[%s6126 + $0x330] sm:$0xf]
        %v6332 = vld [vmem:[%s6126 + $0x334] sm:$0xf]
        %v6333 = vld [vmem:[%s6126 + $0x338] sm:$0xf]
        %v6334 = vld [vmem:[%s6126 + $0x33c] sm:$0xf]
        %v6335 = vld [vmem:[%s6126 + $0x340] sm:$0xf]
        %v6336 = vld [vmem:[%s6126 + $0x344] sm:$0xf]
        %v6337 = vld [vmem:[%s6126 + $0x348] sm:$0xf]
        %v6338 = vld [vmem:[%s6126 + $0x34c] sm:$0xf]
        %v6339 = vld [vmem:[%s6126 + $0x350] sm:$0xf]
        %v6340 = vld [vmem:[%s6126 + $0x354] sm:$0xf]
        %v6341 = vld [vmem:[%s6126 + $0x358] sm:$0xf]
        %v6342 = vld [vmem:[%s6126 + $0x35c] sm:$0xf]
        %v6343 = vld [vmem:[%s6126 + $0x360] sm:$0xf]
        %v6344 = vld [vmem:[%s6126 + $0x364] sm:$0xf]
        %v6345 = vld [vmem:[%s6126 + $0x368] sm:$0xf]
        %v6346 = vld [vmem:[%s6126 + $0x36c] sm:$0xf]
        %v6347 = vld [vmem:[%s6126 + $0x370] sm:$0xf]
        %v6348 = vld [vmem:[%s6126 + $0x374] sm:$0xf]
        %v6349 = vld [vmem:[%s6126 + $0x378] sm:$0xf]
        %v6350 = vld [vmem:[%s6126 + $0x37c] sm:$0xf]
        %v6351 = vld [vmem:[%s6126 + $0x380] sm:$0xf]
        %v6352 = vld [vmem:[%s6126 + $0x384] sm:$0xf]
        %v6353 = vld [vmem:[%s6126 + $0x388] sm:$0xf]
        %v6354 = vld [vmem:[%s6126 + $0x38c] sm:$0xf]
        %v6355 = vld [vmem:[%s6126 + $0x390] sm:$0xf]
        %v6356 = vld [vmem:[%s6126 + $0x394] sm:$0xf]
        %v6357 = vld [vmem:[%s6126 + $0x398] sm:$0xf]
        %v6358 = vld [vmem:[%s6126 + $0x39c] sm:$0xf]
        %v6359 = vld [vmem:[%s6126 + $0x3a0] sm:$0xf]
        %v6360 = vld [vmem:[%s6126 + $0x3a4] sm:$0xf]
        %v6361 = vld [vmem:[%s6126 + $0x3a8] sm:$0xf]
        %v6362 = vld [vmem:[%s6126 + $0x3ac] sm:$0xf]
        %v6363 = vld [vmem:[%s6126 + $0x3b0] sm:$0xf]
        %v6364 = vld [vmem:[%s6126 + $0x3b4] sm:$0xf]
        %v6365 = vld [vmem:[%s6126 + $0x3b8] sm:$0xf]
        %v6366 = vld [vmem:[%s6126 + $0x3bc] sm:$0xf]
        %v6367 = vld [vmem:[%s6126 + $0x3c0] sm:$0xf]
        %v6368 = vld [vmem:[%s6126 + $0x3c4] sm:$0xf]
        %v6369 = vld [vmem:[%s6126 + $0x3c8] sm:$0xf]
        %v6370 = vld [vmem:[%s6126 + $0x3cc] sm:$0xf]
        %v6371 = vld [vmem:[%s6126 + $0x3d0] sm:$0xf]
        %v6372 = vld [vmem:[%s6126 + $0x3d4] sm:$0xf]
        %v6373 = vld [vmem:[%s6126 + $0x3d8] sm:$0xf]
        %v6374 = vld [vmem:[%s6126 + $0x3dc] sm:$0xf]
        %v6375 = vld [vmem:[%s6126 + $0x3e0] sm:$0xf]
        %v6376 = vld [vmem:[%s6126 + $0x3e4] sm:$0xf]
        %v6377 = vld [vmem:[%s6126 + $0x3e8] sm:$0xf]
        %v6378 = vld [vmem:[%s6126 + $0x3ec] sm:$0xf]
        %v6379 = vld [vmem:[%s6126 + $0x3f0] sm:$0xf]
        %v6380 = vld [vmem:[%s6126 + $0x3f4] sm:$0xf]
        %v6381 = vld [vmem:[%s6126 + $0x3f8] sm:$0xf]
        %v6382 = vld [vmem:[%s6126 + $0x3fc] sm:$0xf]
        %s6383 = scalar_lea.vmem %s10, 1
        %v6384 = vld [vmem:[%s6383] sm:$0x1]
        %v6386 = vlaneseq
        %v6387 = vshrl.u32 %v6386, 7
        %v6388 = vsub.s32 0, %v6387
        %v6389 = vrot.slane %v6384, %v6388
        %v6647 = vunpack.c.l.b16 %v6127
        %v6648 = vunpack.c.l.b16 %v6128
        %v6649 = vunpack.c.l.b16 %v6129
        %v6650 = vunpack.c.l.b16 %v6130
        %v6651 = vunpack.c.l.b16 %v6131
        %v6652 = vunpack.c.l.b16 %v6132
        %v6653 = vunpack.c.l.b16 %v6133
        %v6654 = vunpack.c.l.b16 %v6134
        %v6655 = vunpack.c.l.b16 %v6135
        %v6656 = vunpack.c.l.b16 %v6136
        %v6657 = vunpack.c.l.b16 %v6137
        %v6658 = vunpack.c.l.b16 %v6138
        %v6659 = vunpack.c.l.b16 %v6139
        %v6660 = vunpack.c.l.b16 %v6140
        %v6661 = vunpack.c.l.b16 %v6141
        %v6662 = vunpack.c.l.b16 %v6142
        %v6663 = vunpack.c.l.b16 %v6143
        %v6664 = vunpack.c.l.b16 %v6144
        %v6665 = vunpack.c.l.b16 %v6145
        %v6666 = vunpack.c.l.b16 %v6146
        %v6667 = vunpack.c.l.b16 %v6147
        %v6668 = vunpack.c.l.b16 %v6148
        %v6669 = vunpack.c.l.b16 %v6149
        %v6670 = vunpack.c.l.b16 %v6150
        %v6671 = vunpack.c.l.b16 %v6151
        %v6672 = vunpack.c.l.b16 %v6152
        %v6673 = vunpack.c.l.b16 %v6153
        %v6674 = vunpack.c.l.b16 %v6154
        %v6675 = vunpack.c.l.b16 %v6155
        %v6676 = vunpack.c.l.b16 %v6156
        %v6677 = vunpack.c.l.b16 %v6157
        %v6678 = vunpack.c.l.b16 %v6158
        %v6679 = vunpack.c.l.b16 %v6159
        %v6680 = vunpack.c.l.b16 %v6160
        %v6681 = vunpack.c.l.b16 %v6161
        %v6682 = vunpack.c.l.b16 %v6162
        %v6683 = vunpack.c.l.b16 %v6163
        %v6684 = vunpack.c.l.b16 %v6164
        %v6685 = vunpack.c.l.b16 %v6165
        %v6686 = vunpack.c.l.b16 %v6166
        %v6687 = vunpack.c.l.b16 %v6167
        %v6688 = vunpack.c.l.b16 %v6168
        %v6689 = vunpack.c.l.b16 %v6169
        %v6690 = vunpack.c.l.b16 %v6170
        %v6691 = vunpack.c.l.b16 %v6171
        %v6692 = vunpack.c.l.b16 %v6172
        %v6693 = vunpack.c.l.b16 %v6173
        %v6694 = vunpack.c.l.b16 %v6174
        %v6695 = vunpack.c.l.b16 %v6175
        %v6696 = vunpack.c.l.b16 %v6176
        %v6697 = vunpack.c.l.b16 %v6177
        %v6698 = vunpack.c.l.b16 %v6178
        %v6699 = vunpack.c.l.b16 %v6179
        %v6700 = vunpack.c.l.b16 %v6180
        %v6701 = vunpack.c.l.b16 %v6181
        %v6702 = vunpack.c.l.b16 %v6182
        %v6703 = vunpack.c.l.b16 %v6183
        %v6704 = vunpack.c.l.b16 %v6184
        %v6705 = vunpack.c.l.b16 %v6185
        %v6706 = vunpack.c.l.b16 %v6186
        %v6707 = vunpack.c.l.b16 %v6187
        %v6708 = vunpack.c.l.b16 %v6188
        %v6709 = vunpack.c.l.b16 %v6189
        %v6710 = vunpack.c.l.b16 %v6190
        %v6711 = vunpack.c.l.b16 %v6191
        %v6712 = vunpack.c.l.b16 %v6192
        %v6713 = vunpack.c.l.b16 %v6193
        %v6714 = vunpack.c.l.b16 %v6194
        %v6715 = vunpack.c.l.b16 %v6195
        %v6716 = vunpack.c.l.b16 %v6196
        %v6717 = vunpack.c.l.b16 %v6197
        %v6718 = vunpack.c.l.b16 %v6198
        %v6719 = vunpack.c.l.b16 %v6199
        %v6720 = vunpack.c.l.b16 %v6200
        %v6721 = vunpack.c.l.b16 %v6201
        %v6722 = vunpack.c.l.b16 %v6202
        %v6723 = vunpack.c.l.b16 %v6203
        %v6724 = vunpack.c.l.b16 %v6204
        %v6725 = vunpack.c.l.b16 %v6205
        %v6726 = vunpack.c.l.b16 %v6206
        %v6727 = vunpack.c.l.b16 %v6207
        %v6728 = vunpack.c.l.b16 %v6208
        %v6729 = vunpack.c.l.b16 %v6209
        %v6730 = vunpack.c.l.b16 %v6210
        %v6731 = vunpack.c.l.b16 %v6211
        %v6732 = vunpack.c.l.b16 %v6212
        %v6733 = vunpack.c.l.b16 %v6213
        %v6734 = vunpack.c.l.b16 %v6214
        %v6735 = vunpack.c.l.b16 %v6215
        %v6736 = vunpack.c.l.b16 %v6216
        %v6737 = vunpack.c.l.b16 %v6217
        %v6738 = vunpack.c.l.b16 %v6218
        %v6739 = vunpack.c.l.b16 %v6219
        %v6740 = vunpack.c.l.b16 %v6220
        %v6741 = vunpack.c.l.b16 %v6221
        %v6742 = vunpack.c.l.b16 %v6222
        %v6743 = vunpack.c.l.b16 %v6223
        %v6744 = vunpack.c.l.b16 %v6224
        %v6745 = vunpack.c.l.b16 %v6225
        %v6746 = vunpack.c.l.b16 %v6226
        %v6747 = vunpack.c.l.b16 %v6227
        %v6748 = vunpack.c.l.b16 %v6228
        %v6749 = vunpack.c.l.b16 %v6229
        %v6750 = vunpack.c.l.b16 %v6230
        %v6751 = vunpack.c.l.b16 %v6231
        %v6752 = vunpack.c.l.b16 %v6232
        %v6753 = vunpack.c.l.b16 %v6233
        %v6754 = vunpack.c.l.b16 %v6234
        %v6755 = vunpack.c.l.b16 %v6235
        %v6756 = vunpack.c.l.b16 %v6236
        %v6757 = vunpack.c.l.b16 %v6237
        %v6758 = vunpack.c.l.b16 %v6238
        %v6759 = vunpack.c.l.b16 %v6239
        %v6760 = vunpack.c.l.b16 %v6240
        %v6761 = vunpack.c.l.b16 %v6241
        %v6762 = vunpack.c.l.b16 %v6242
        %v6763 = vunpack.c.l.b16 %v6243
        %v6764 = vunpack.c.l.b16 %v6244
        %v6765 = vunpack.c.l.b16 %v6245
        %v6766 = vunpack.c.l.b16 %v6246
        %v6767 = vunpack.c.l.b16 %v6247
        %v6768 = vunpack.c.l.b16 %v6248
        %v6769 = vunpack.c.l.b16 %v6249
        %v6770 = vunpack.c.l.b16 %v6250
        %v6771 = vunpack.c.l.b16 %v6251
        %v6772 = vunpack.c.l.b16 %v6252
        %v6773 = vunpack.c.l.b16 %v6253
        %v6774 = vunpack.c.l.b16 %v6254
        %v6775 = vunpack.c.l.b16 %v6255
        %v6776 = vunpack.c.l.b16 %v6256
        %v6777 = vunpack.c.l.b16 %v6257
        %v6778 = vunpack.c.l.b16 %v6258
        %v6779 = vunpack.c.l.b16 %v6259
        %v6780 = vunpack.c.l.b16 %v6260
        %v6781 = vunpack.c.l.b16 %v6261
        %v6782 = vunpack.c.l.b16 %v6262
        %v6783 = vunpack.c.l.b16 %v6263
        %v6784 = vunpack.c.l.b16 %v6264
        %v6785 = vunpack.c.l.b16 %v6265
        %v6786 = vunpack.c.l.b16 %v6266
        %v6787 = vunpack.c.l.b16 %v6267
        %v6788 = vunpack.c.l.b16 %v6268
        %v6789 = vunpack.c.l.b16 %v6269
        %v6790 = vunpack.c.l.b16 %v6270
        %v6791 = vunpack.c.l.b16 %v6271
        %v6792 = vunpack.c.l.b16 %v6272
        %v6793 = vunpack.c.l.b16 %v6273
        %v6794 = vunpack.c.l.b16 %v6274
        %v6795 = vunpack.c.l.b16 %v6275
        %v6796 = vunpack.c.l.b16 %v6276
        %v6797 = vunpack.c.l.b16 %v6277
        %v6798 = vunpack.c.l.b16 %v6278
        %v6799 = vunpack.c.l.b16 %v6279
        %v6800 = vunpack.c.l.b16 %v6280
        %v6801 = vunpack.c.l.b16 %v6281
        %v6802 = vunpack.c.l.b16 %v6282
        %v6803 = vunpack.c.l.b16 %v6283
        %v6804 = vunpack.c.l.b16 %v6284
        %v6805 = vunpack.c.l.b16 %v6285
        %v6806 = vunpack.c.l.b16 %v6286
        %v6807 = vunpack.c.l.b16 %v6287
        %v6808 = vunpack.c.l.b16 %v6288
        %v6809 = vunpack.c.l.b16 %v6289
        %v6810 = vunpack.c.l.b16 %v6290
        %v6811 = vunpack.c.l.b16 %v6291
        %v6812 = vunpack.c.l.b16 %v6292
        %v6813 = vunpack.c.l.b16 %v6293
        %v6814 = vunpack.c.l.b16 %v6294
        %v6815 = vunpack.c.l.b16 %v6295
        %v6816 = vunpack.c.l.b16 %v6296
        %v6817 = vunpack.c.l.b16 %v6297
        %v6818 = vunpack.c.l.b16 %v6298
        %v6819 = vunpack.c.l.b16 %v6299
        %v6820 = vunpack.c.l.b16 %v6300
        %v6821 = vunpack.c.l.b16 %v6301
        %v6822 = vunpack.c.l.b16 %v6302
        %v6823 = vunpack.c.l.b16 %v6303
        %v6824 = vunpack.c.l.b16 %v6304
        %v6825 = vunpack.c.l.b16 %v6305
        %v6826 = vunpack.c.l.b16 %v6306
        %v6827 = vunpack.c.l.b16 %v6307
        %v6828 = vunpack.c.l.b16 %v6308
        %v6829 = vunpack.c.l.b16 %v6309
        %v6830 = vunpack.c.l.b16 %v6310
        %v6831 = vunpack.c.l.b16 %v6311
        %v6832 = vunpack.c.l.b16 %v6312
        %v6833 = vunpack.c.l.b16 %v6313
        %v6834 = vunpack.c.l.b16 %v6314
        %v6835 = vunpack.c.l.b16 %v6315
        %v6836 = vunpack.c.l.b16 %v6316
        %v6837 = vunpack.c.l.b16 %v6317
        %v6838 = vunpack.c.l.b16 %v6318
        %v6839 = vunpack.c.l.b16 %v6319
        %v6840 = vunpack.c.l.b16 %v6320
        %v6841 = vunpack.c.l.b16 %v6321
        %v6842 = vunpack.c.l.b16 %v6322
        %v6843 = vunpack.c.l.b16 %v6323
        %v6844 = vunpack.c.l.b16 %v6324
        %v6845 = vunpack.c.l.b16 %v6325
        %v6846 = vunpack.c.l.b16 %v6326
        %v6847 = vunpack.c.l.b16 %v6327
        %v6848 = vunpack.c.l.b16 %v6328
        %v6849 = vunpack.c.l.b16 %v6329
        %v6850 = vunpack.c.l.b16 %v6330
        %v6851 = vunpack.c.l.b16 %v6331
        %v6852 = vunpack.c.l.b16 %v6332
        %v6853 = vunpack.c.l.b16 %v6333
        %v6854 = vunpack.c.l.b16 %v6334
        %v6855 = vunpack.c.l.b16 %v6335
        %v6856 = vunpack.c.l.b16 %v6336
        %v6857 = vunpack.c.l.b16 %v6337
        %v6858 = vunpack.c.l.b16 %v6338
        %v6859 = vunpack.c.l.b16 %v6339
        %v6860 = vunpack.c.l.b16 %v6340
        %v6861 = vunpack.c.l.b16 %v6341
        %v6862 = vunpack.c.l.b16 %v6342
        %v6863 = vunpack.c.l.b16 %v6343
        %v6864 = vunpack.c.l.b16 %v6344
        %v6865 = vunpack.c.l.b16 %v6345
        %v6866 = vunpack.c.l.b16 %v6346
        %v6867 = vunpack.c.l.b16 %v6347
        %v6868 = vunpack.c.l.b16 %v6348
        %v6869 = vunpack.c.l.b16 %v6349
        %v6870 = vunpack.c.l.b16 %v6350
        %v6871 = vunpack.c.l.b16 %v6351
        %v6872 = vunpack.c.l.b16 %v6352
        %v6873 = vunpack.c.l.b16 %v6353
        %v6874 = vunpack.c.l.b16 %v6354
        %v6875 = vunpack.c.l.b16 %v6355
        %v6876 = vunpack.c.l.b16 %v6356
        %v6877 = vunpack.c.l.b16 %v6357
        %v6878 = vunpack.c.l.b16 %v6358
        %v6879 = vunpack.c.l.b16 %v6359
        %v6880 = vunpack.c.l.b16 %v6360
        %v6881 = vunpack.c.l.b16 %v6361
        %v6882 = vunpack.c.l.b16 %v6362
        %v6883 = vunpack.c.l.b16 %v6363
        %v6884 = vunpack.c.l.b16 %v6364
        %v6885 = vunpack.c.l.b16 %v6365
        %v6886 = vunpack.c.l.b16 %v6366
        %v6887 = vunpack.c.l.b16 %v6367
        %v6888 = vunpack.c.l.b16 %v6368
        %v6889 = vunpack.c.l.b16 %v6369
        %v6890 = vunpack.c.l.b16 %v6370
        %v6891 = vunpack.c.l.b16 %v6371
        %v6892 = vunpack.c.l.b16 %v6372
        %v6893 = vunpack.c.l.b16 %v6373
        %v6894 = vunpack.c.l.b16 %v6374
        %v6895 = vunpack.c.l.b16 %v6375
        %v6896 = vunpack.c.l.b16 %v6376
        %v6897 = vunpack.c.l.b16 %v6377
        %v6898 = vunpack.c.l.b16 %v6378
        %v6899 = vunpack.c.l.b16 %v6379
        %v6900 = vunpack.c.l.b16 %v6380
        %v6901 = vunpack.c.l.b16 %v6381
        %v6902 = vunpack.c.l.b16 %v6382
        %v6903 = vpack.c.b16 %v6648, %v6647
        %v6904 = vpack.c.b16 %v6650, %v6649
        %v6905 = vpack.c.b16 %v6652, %v6651
        %v6906 = vpack.c.b16 %v6654, %v6653
        %v6907 = vpack.c.b16 %v6656, %v6655
        %v6908 = vpack.c.b16 %v6658, %v6657
        %v6909 = vpack.c.b16 %v6660, %v6659
        %v6910 = vpack.c.b16 %v6662, %v6661
        %v6911 = vpack.c.b16 %v6664, %v6663
        %v6912 = vpack.c.b16 %v6666, %v6665
        %v6913 = vpack.c.b16 %v6668, %v6667
        %v6914 = vpack.c.b16 %v6670, %v6669
        %v6915 = vpack.c.b16 %v6672, %v6671
        %v6916 = vpack.c.b16 %v6674, %v6673
        %v6917 = vpack.c.b16 %v6676, %v6675
        %v6918 = vpack.c.b16 %v6678, %v6677
        %v6919 = vpack.c.b16 %v6680, %v6679
        %v6920 = vpack.c.b16 %v6682, %v6681
        %v6921 = vpack.c.b16 %v6684, %v6683
        %v6922 = vpack.c.b16 %v6686, %v6685
        %v6923 = vpack.c.b16 %v6688, %v6687
        %v6924 = vpack.c.b16 %v6690, %v6689
        %v6925 = vpack.c.b16 %v6692, %v6691
        %v6926 = vpack.c.b16 %v6694, %v6693
        %v6927 = vpack.c.b16 %v6696, %v6695
        %v6928 = vpack.c.b16 %v6698, %v6697
        %v6929 = vpack.c.b16 %v6700, %v6699
        %v6930 = vpack.c.b16 %v6702, %v6701
        %v6931 = vpack.c.b16 %v6704, %v6703
        %v6932 = vpack.c.b16 %v6706, %v6705
        %v6933 = vpack.c.b16 %v6708, %v6707
        %v6934 = vpack.c.b16 %v6710, %v6709
        %v6935 = vpack.c.b16 %v6712, %v6711
        %v6936 = vpack.c.b16 %v6714, %v6713
        %v6937 = vpack.c.b16 %v6716, %v6715
        %v6938 = vpack.c.b16 %v6718, %v6717
        %v6939 = vpack.c.b16 %v6720, %v6719
        %v6940 = vpack.c.b16 %v6722, %v6721
        %v6941 = vpack.c.b16 %v6724, %v6723
        %v6942 = vpack.c.b16 %v6726, %v6725
        %v6943 = vpack.c.b16 %v6728, %v6727
        %v6944 = vpack.c.b16 %v6730, %v6729
        %v6945 = vpack.c.b16 %v6732, %v6731
        %v6946 = vpack.c.b16 %v6734, %v6733
        %v6947 = vpack.c.b16 %v6736, %v6735
        %v6948 = vpack.c.b16 %v6738, %v6737
        %v6949 = vpack.c.b16 %v6740, %v6739
        %v6950 = vpack.c.b16 %v6742, %v6741
        %v6951 = vpack.c.b16 %v6744, %v6743
        %v6952 = vpack.c.b16 %v6746, %v6745
        %v6953 = vpack.c.b16 %v6748, %v6747
        %v6954 = vpack.c.b16 %v6750, %v6749
        %v6955 = vpack.c.b16 %v6752, %v6751
        %v6956 = vpack.c.b16 %v6754, %v6753
        %v6957 = vpack.c.b16 %v6756, %v6755
        %v6958 = vpack.c.b16 %v6758, %v6757
        %v6959 = vpack.c.b16 %v6760, %v6759
        %v6960 = vpack.c.b16 %v6762, %v6761
        %v6961 = vpack.c.b16 %v6764, %v6763
        %v6962 = vpack.c.b16 %v6766, %v6765
        %v6963 = vpack.c.b16 %v6768, %v6767
        %v6964 = vpack.c.b16 %v6770, %v6769
        %v6965 = vpack.c.b16 %v6772, %v6771
        %v6966 = vpack.c.b16 %v6774, %v6773
        %v6967 = vpack.c.b16 %v6776, %v6775
        %v6968 = vpack.c.b16 %v6778, %v6777
        %v6969 = vpack.c.b16 %v6780, %v6779
        %v6970 = vpack.c.b16 %v6782, %v6781
        %v6971 = vpack.c.b16 %v6784, %v6783
        %v6972 = vpack.c.b16 %v6786, %v6785
        %v6973 = vpack.c.b16 %v6788, %v6787
        %v6974 = vpack.c.b16 %v6790, %v6789
        %v6975 = vpack.c.b16 %v6792, %v6791
        %v6976 = vpack.c.b16 %v6794, %v6793
        %v6977 = vpack.c.b16 %v6796, %v6795
        %v6978 = vpack.c.b16 %v6798, %v6797
        %v6979 = vpack.c.b16 %v6800, %v6799
        %v6980 = vpack.c.b16 %v6802, %v6801
        %v6981 = vpack.c.b16 %v6804, %v6803
        %v6982 = vpack.c.b16 %v6806, %v6805
        %v6983 = vpack.c.b16 %v6808, %v6807
        %v6984 = vpack.c.b16 %v6810, %v6809
        %v6985 = vpack.c.b16 %v6812, %v6811
        %v6986 = vpack.c.b16 %v6814, %v6813
        %v6987 = vpack.c.b16 %v6816, %v6815
        %v6988 = vpack.c.b16 %v6818, %v6817
        %v6989 = vpack.c.b16 %v6820, %v6819
        %v6990 = vpack.c.b16 %v6822, %v6821
        %v6991 = vpack.c.b16 %v6824, %v6823
        %v6992 = vpack.c.b16 %v6826, %v6825
        %v6993 = vpack.c.b16 %v6828, %v6827
        %v6994 = vpack.c.b16 %v6830, %v6829
        %v6995 = vpack.c.b16 %v6832, %v6831
        %v6996 = vpack.c.b16 %v6834, %v6833
        %v6997 = vpack.c.b16 %v6836, %v6835
        %v6998 = vpack.c.b16 %v6838, %v6837
        %v6999 = vpack.c.b16 %v6840, %v6839
        %v7000 = vpack.c.b16 %v6842, %v6841
        %v7001 = vpack.c.b16 %v6844, %v6843
        %v7002 = vpack.c.b16 %v6846, %v6845
        %v7003 = vpack.c.b16 %v6848, %v6847
        %v7004 = vpack.c.b16 %v6850, %v6849
        %v7005 = vpack.c.b16 %v6852, %v6851
        %v7006 = vpack.c.b16 %v6854, %v6853
        %v7007 = vpack.c.b16 %v6856, %v6855
        %v7008 = vpack.c.b16 %v6858, %v6857
        %v7009 = vpack.c.b16 %v6860, %v6859
        %v7010 = vpack.c.b16 %v6862, %v6861
        %v7011 = vpack.c.b16 %v6864, %v6863
        %v7012 = vpack.c.b16 %v6866, %v6865
        %v7013 = vpack.c.b16 %v6868, %v6867
        %v7014 = vpack.c.b16 %v6870, %v6869
        %v7015 = vpack.c.b16 %v6872, %v6871
        %v7016 = vpack.c.b16 %v6874, %v6873
        %v7017 = vpack.c.b16 %v6876, %v6875
        %v7018 = vpack.c.b16 %v6878, %v6877
        %v7019 = vpack.c.b16 %v6880, %v6879
        %v7020 = vpack.c.b16 %v6882, %v6881
        %v7021 = vpack.c.b16 %v6884, %v6883
        %v7022 = vpack.c.b16 %v6886, %v6885
        %v7023 = vpack.c.b16 %v6888, %v6887
        %v7024 = vpack.c.b16 %v6890, %v6889
        %v7025 = vpack.c.b16 %v6892, %v6891
        %v7026 = vpack.c.b16 %v6894, %v6893
        %v7027 = vpack.c.b16 %v6896, %v6895
        %v7028 = vpack.c.b16 %v6898, %v6897
        %v7029 = vpack.c.b16 %v6900, %v6899
        %v7030 = vpack.c.b16 %v6902, %v6901
        %7159 = vmatprep.subr.bf16.mxu0 0
        %7160 = vmatpush1.bf16.msra.mxu0 %v6903
        %7161 = vmatprep.subr.bf16.mxu0 0
        %7162 = vmatpush1.bf16.msra.mxu0 %v6904
        %7163 = vmatprep.subr.bf16.mxu0 0
        %7164 = vmatpush1.bf16.msra.mxu0 %v6905
        %7165 = vmatprep.subr.bf16.mxu0 0
        %7166 = vmatpush1.bf16.msra.mxu0 %v6906
        %7167 = vmatprep.subr.bf16.mxu0 0
        %7168 = vmatpush1.bf16.msra.mxu0 %v6907
        %7169 = vmatprep.subr.bf16.mxu0 0
        %7170 = vmatpush1.bf16.msra.mxu0 %v6908
        %7171 = vmatprep.subr.bf16.mxu0 0
        %7172 = vmatpush1.bf16.msra.mxu0 %v6909
        %7173 = vmatprep.subr.bf16.mxu0 0
        %7174 = vmatpush1.bf16.msra.mxu0 %v6910
        %7175 = vmatprep.subr.bf16.mxu0 0
        %7176 = vmatpush1.bf16.msra.mxu0 %v6911
        %7177 = vmatprep.subr.bf16.mxu0 0
        %7178 = vmatpush1.bf16.msra.mxu0 %v6912
        %7179 = vmatprep.subr.bf16.mxu0 0
        %7180 = vmatpush1.bf16.msra.mxu0 %v6913
        %7181 = vmatprep.subr.bf16.mxu0 0
        %7182 = vmatpush1.bf16.msra.mxu0 %v6914
        %7183 = vmatprep.subr.bf16.mxu0 0
        %7184 = vmatpush1.bf16.msra.mxu0 %v6915
        %7185 = vmatprep.subr.bf16.mxu0 0
        %7186 = vmatpush1.bf16.msra.mxu0 %v6916
        %7187 = vmatprep.subr.bf16.mxu0 0
        %7188 = vmatpush1.bf16.msra.mxu0 %v6917
        %7189 = vmatprep.subr.bf16.mxu0 0
        %7190 = vmatpush1.bf16.msra.mxu0 %v6918
        %7191 = vmatprep.mubr.bf16.mxu0 %v6111
        %7192 = vmatmul.mubr.bf16.gmra.mrb[0].mxu0 %v6110
        %v7193 = vpop.f32.mrb[0].mxu0
        %v7194 = vadd.f32 %v6389, %v7193
        %v7195 = vpop.f32.mrb[0].mxu0
        %v7196 = vpop.f32.mrb[0].mxu0
        %v7197 = vpop.f32.mrb[0].mxu0
        %7198 = vdwg.mxu0
        %7199 = vmatprep.subr.bf16.mxu0 0
        %7200 = vmatpush1.bf16.msra.mxu0 %v6919
        %7201 = vmatprep.subr.bf16.mxu0 0
        %7202 = vmatpush1.bf16.msra.mxu0 %v6920
        %7203 = vmatprep.subr.bf16.mxu0 0
        %7204 = vmatpush1.bf16.msra.mxu0 %v6921
        %7205 = vmatprep.subr.bf16.mxu0 0
        %7206 = vmatpush1.bf16.msra.mxu0 %v6922
        %7207 = vmatprep.subr.bf16.mxu0 0
        %7208 = vmatpush1.bf16.msra.mxu0 %v6923
        %7209 = vmatprep.subr.bf16.mxu0 0
        %7210 = vmatpush1.bf16.msra.mxu0 %v6924
        %7211 = vmatprep.subr.bf16.mxu0 0
        %7212 = vmatpush1.bf16.msra.mxu0 %v6925
        %7213 = vmatprep.subr.bf16.mxu0 0
        %7214 = vmatpush1.bf16.msra.mxu0 %v6926
        %7215 = vmatprep.subr.bf16.mxu0 0
        %7216 = vmatpush1.bf16.msra.mxu0 %v6927
        %7217 = vmatprep.subr.bf16.mxu0 0
        %7218 = vmatpush1.bf16.msra.mxu0 %v6928
        %7219 = vmatprep.subr.bf16.mxu0 0
        %7220 = vmatpush1.bf16.msra.mxu0 %v6929
        %7221 = vmatprep.subr.bf16.mxu0 0
        %7222 = vmatpush1.bf16.msra.mxu0 %v6930
        %7223 = vmatprep.subr.bf16.mxu0 0
        %7224 = vmatpush1.bf16.msra.mxu0 %v6931
        %7225 = vmatprep.subr.bf16.mxu0 0
        %7226 = vmatpush1.bf16.msra.mxu0 %v6932
        %7227 = vmatprep.subr.bf16.mxu0 0
        %7228 = vmatpush1.bf16.msra.mxu0 %v6933
        %7229 = vmatprep.subr.bf16.mxu0 0
        %7230 = vmatpush1.bf16.msra.mxu0 %v6934
        %7231 = vmatprep.mubr.bf16.mxu0 %v6113
        %7232 = vmatmul.mubr.bf16.gmra.mrb[0].mxu0 %v6112
        %v7233 = vpop.f32.mrb[0].mxu0
        %v7234 = vadd.f32 %v7194, %v7233
        %v7235 = vpop.f32.mrb[0].mxu0
        %v7236 = vpop.f32.mrb[0].mxu0
        %v7237 = vpop.f32.mrb[0].mxu0
        %7238 = vdwg.mxu0
        %7239 = vmatprep.subr.bf16.mxu0 0
        %7240 = vmatpush1.bf16.msra.mxu0 %v6935
        %7241 = vmatprep.subr.bf16.mxu0 0
        %7242 = vmatpush1.bf16.msra.mxu0 %v6936
        %7243 = vmatprep.subr.bf16.mxu0 0
        %7244 = vmatpush1.bf16.msra.mxu0 %v6937
        %7245 = vmatprep.subr.bf16.mxu0 0
        %7246 = vmatpush1.bf16.msra.mxu0 %v6938
        %7247 = vmatprep.subr.bf16.mxu0 0
        %7248 = vmatpush1.bf16.msra.mxu0 %v6939
        %7249 = vmatprep.subr.bf16.mxu0 0
        %7250 = vmatpush1.bf16.msra.mxu0 %v6940
        %7251 = vmatprep.subr.bf16.mxu0 0
        %7252 = vmatpush1.bf16.msra.mxu0 %v6941
        %7253 = vmatprep.subr.bf16.mxu0 0
        %7254 = vmatpush1.bf16.msra.mxu0 %v6942
        %7255 = vmatprep.subr.bf16.mxu0 0
        %7256 = vmatpush1.bf16.msra.mxu0 %v6943
        %7257 = vmatprep.subr.bf16.mxu0 0
        %7258 = vmatpush1.bf16.msra.mxu0 %v6944
        %7259 = vmatprep.subr.bf16.mxu0 0
        %7260 = vmatpush1.bf16.msra.mxu0 %v6945
        %7261 = vmatprep.subr.bf16.mxu0 0
        %7262 = vmatpush1.bf16.msra.mxu0 %v6946
        %7263 = vmatprep.subr.bf16.mxu0 0
        %7264 = vmatpush1.bf16.msra.mxu0 %v6947
        %7265 = vmatprep.subr.bf16.mxu0 0
        %7266 = vmatpush1.bf16.msra.mxu0 %v6948
        %7267 = vmatprep.subr.bf16.mxu0 0
        %7268 = vmatpush1.bf16.msra.mxu0 %v6949
        %7269 = vmatprep.subr.bf16.mxu0 0
        %7270 = vmatpush1.bf16.msra.mxu0 %v6950
        %7271 = vmatprep.mubr.bf16.mxu0 %v6115
        %7272 = vmatmul.mubr.bf16.gmra.mrb[0].mxu0 %v6114
        %v7273 = vpop.f32.mrb[0].mxu0
        %v7274 = vadd.f32 %v7234, %v7273
        %v7275 = vpop.f32.mrb[0].mxu0
        %v7276 = vpop.f32.mrb[0].mxu0
        %v7277 = vpop.f32.mrb[0].mxu0
        %7278 = vdwg.mxu0
        %7279 = vmatprep.subr.bf16.mxu0 0
        %7280 = vmatpush1.bf16.msra.mxu0 %v6951
        %7281 = vmatprep.subr.bf16.mxu0 0
        %7282 = vmatpush1.bf16.msra.mxu0 %v6952
        %7283 = vmatprep.subr.bf16.mxu0 0
        %7284 = vmatpush1.bf16.msra.mxu0 %v6953
        %7285 = vmatprep.subr.bf16.mxu0 0
        %7286 = vmatpush1.bf16.msra.mxu0 %v6954
        %7287 = vmatprep.subr.bf16.mxu0 0
        %7288 = vmatpush1.bf16.msra.mxu0 %v6955
        %7289 = vmatprep.subr.bf16.mxu0 0
        %7290 = vmatpush1.bf16.msra.mxu0 %v6956
        %7291 = vmatprep.subr.bf16.mxu0 0
        %7292 = vmatpush1.bf16.msra.mxu0 %v6957
        %7293 = vmatprep.subr.bf16.mxu0 0
        %7294 = vmatpush1.bf16.msra.mxu0 %v6958
        %7295 = vmatprep.subr.bf16.mxu0 0
        %7296 = vmatpush1.bf16.msra.mxu0 %v6959
        %7297 = vmatprep.subr.bf16.mxu0 0
        %7298 = vmatpush1.bf16.msra.mxu0 %v6960
        %7299 = vmatprep.subr.bf16.mxu0 0
        %7300 = vmatpush1.bf16.msra.mxu0 %v6961
        %7301 = vmatprep.subr.bf16.mxu0 0
        %7302 = vmatpush1.bf16.msra.mxu0 %v6962
        %7303 = vmatprep.subr.bf16.mxu0 0
        %7304 = vmatpush1.bf16.msra.mxu0 %v6963
        %7305 = vmatprep.subr.bf16.mxu0 0
        %7306 = vmatpush1.bf16.msra.mxu0 %v6964
        %7307 = vmatprep.subr.bf16.mxu0 0
        %7308 = vmatpush1.bf16.msra.mxu0 %v6965
        %7309 = vmatprep.subr.bf16.mxu0 0
        %7310 = vmatpush1.bf16.msra.mxu0 %v6966
        %7311 = vmatprep.mubr.bf16.mxu0 %v6117
        %7312 = vmatmul.mubr.bf16.gmra.mrb[0].mxu0 %v6116
        %v7313 = vpop.f32.mrb[0].mxu0
        %v7314 = vadd.f32 %v7274, %v7313
        %v7315 = vpop.f32.mrb[0].mxu0
        %v7316 = vpop.f32.mrb[0].mxu0
        %v7317 = vpop.f32.mrb[0].mxu0
        %7318 = vdwg.mxu0
        %7319 = vmatprep.subr.bf16.mxu0 0
        %7320 = vmatpush1.bf16.msra.mxu0 %v6967
        %7321 = vmatprep.subr.bf16.mxu0 0
        %7322 = vmatpush1.bf16.msra.mxu0 %v6968
        %7323 = vmatprep.subr.bf16.mxu0 0
        %7324 = vmatpush1.bf16.msra.mxu0 %v6969
        %7325 = vmatprep.subr.bf16.mxu0 0
        %7326 = vmatpush1.bf16.msra.mxu0 %v6970
        %7327 = vmatprep.subr.bf16.mxu0 0
        %7328 = vmatpush1.bf16.msra.mxu0 %v6971
        %7329 = vmatprep.subr.bf16.mxu0 0
        %7330 = vmatpush1.bf16.msra.mxu0 %v6972
        %7331 = vmatprep.subr.bf16.mxu0 0
        %7332 = vmatpush1.bf16.msra.mxu0 %v6973
        %7333 = vmatprep.subr.bf16.mxu0 0
        %7334 = vmatpush1.bf16.msra.mxu0 %v6974
        %7335 = vmatprep.subr.bf16.mxu0 0
        %7336 = vmatpush1.bf16.msra.mxu0 %v6975
        %7337 = vmatprep.subr.bf16.mxu0 0
        %7338 = vmatpush1.bf16.msra.mxu0 %v6976
        %7339 = vmatprep.subr.bf16.mxu0 0
        %7340 = vmatpush1.bf16.msra.mxu0 %v6977
        %7341 = vmatprep.subr.bf16.mxu0 0
        %7342 = vmatpush1.bf16.msra.mxu0 %v6978
        %7343 = vmatprep.subr.bf16.mxu0 0
        %7344 = vmatpush1.bf16.msra.mxu0 %v6979
        %7345 = vmatprep.subr.bf16.mxu0 0
        %7346 = vmatpush1.bf16.msra.mxu0 %v6980
        %7347 = vmatprep.subr.bf16.mxu0 0
        %7348 = vmatpush1.bf16.msra.mxu0 %v6981
        %7349 = vmatprep.subr.bf16.mxu0 0
        %7350 = vmatpush1.bf16.msra.mxu0 %v6982
        %7351 = vmatprep.mubr.bf16.mxu0 %v6119
        %7352 = vmatmul.mubr.bf16.gmra.mrb[0].mxu0 %v6118
        %v7353 = vpop.f32.mrb[0].mxu0
        %v7354 = vadd.f32 %v7314, %v7353
        %v7355 = vpop.f32.mrb[0].mxu0
        %v7356 = vpop.f32.mrb[0].mxu0
        %v7357 = vpop.f32.mrb[0].mxu0
        %7358 = vdwg.mxu0
        %7359 = vmatprep.subr.bf16.mxu0 0
        %7360 = vmatpush1.bf16.msra.mxu0 %v6983
        %7361 = vmatprep.subr.bf16.mxu0 0
        %7362 = vmatpush1.bf16.msra.mxu0 %v6984
        %7363 = vmatprep.subr.bf16.mxu0 0
        %7364 = vmatpush1.bf16.msra.mxu0 %v6985
        %7365 = vmatprep.subr.bf16.mxu0 0
        %7366 = vmatpush1.bf16.msra.mxu0 %v6986
        %7367 = vmatprep.subr.bf16.mxu0 0
        %7368 = vmatpush1.bf16.msra.mxu0 %v6987
        %7369 = vmatprep.subr.bf16.mxu0 0
        %7370 = vmatpush1.bf16.msra.mxu0 %v6988
        %7371 = vmatprep.subr.bf16.mxu0 0
        %7372 = vmatpush1.bf16.msra.mxu0 %v6989
        %7373 = vmatprep.subr.bf16.mxu0 0
        %7374 = vmatpush1.bf16.msra.mxu0 %v6990
        %7375 = vmatprep.subr.bf16.mxu0 0
        %7376 = vmatpush1.bf16.msra.mxu0 %v6991
        %7377 = vmatprep.subr.bf16.mxu0 0
        %7378 = vmatpush1.bf16.msra.mxu0 %v6992
        %7379 = vmatprep.subr.bf16.mxu0 0
        %7380 = vmatpush1.bf16.msra.mxu0 %v6993
        %7381 = vmatprep.subr.bf16.mxu0 0
        %7382 = vmatpush1.bf16.msra.mxu0 %v6994
        %7383 = vmatprep.subr.bf16.mxu0 0
        %7384 = vmatpush1.bf16.msra.mxu0 %v6995
        %7385 = vmatprep.subr.bf16.mxu0 0
        %7386 = vmatpush1.bf16.msra.mxu0 %v6996
        %7387 = vmatprep.subr.bf16.mxu0 0
        %7388 = vmatpush1.bf16.msra.mxu0 %v6997
        %7389 = vmatprep.subr.bf16.mxu0 0
        %7390 = vmatpush1.bf16.msra.mxu0 %v6998
        %7391 = vmatprep.mubr.bf16.mxu0 %v6121
        %7392 = vmatmul.mubr.bf16.gmra.mrb[0].mxu0 %v6120
        %v7393 = vpop.f32.mrb[0].mxu0
        %v7394 = vadd.f32 %v7354, %v7393
        %v7395 = vpop.f32.mrb[0].mxu0
        %v7396 = vpop.f32.mrb[0].mxu0
        %v7397 = vpop.f32.mrb[0].mxu0
        %7398 = vdwg.mxu0
        %7399 = vmatprep.subr.bf16.mxu0 0
        %7400 = vmatpush1.bf16.msra.mxu0 %v6999
        %7401 = vmatprep.subr.bf16.mxu0 0
        %7402 = vmatpush1.bf16.msra.mxu0 %v7000
        %7403 = vmatprep.subr.bf16.mxu0 0
        %7404 = vmatpush1.bf16.msra.mxu0 %v7001
        %7405 = vmatprep.subr.bf16.mxu0 0
        %7406 = vmatpush1.bf16.msra.mxu0 %v7002
        %7407 = vmatprep.subr.bf16.mxu0 0
        %7408 = vmatpush1.bf16.msra.mxu0 %v7003
        %7409 = vmatprep.subr.bf16.mxu0 0
        %7410 = vmatpush1.bf16.msra.mxu0 %v7004
        %7411 = vmatprep.subr.bf16.mxu0 0
        %7412 = vmatpush1.bf16.msra.mxu0 %v7005
        %7413 = vmatprep.subr.bf16.mxu0 0
        %7414 = vmatpush1.bf16.msra.mxu0 %v7006
        %7415 = vmatprep.subr.bf16.mxu0 0
        %7416 = vmatpush1.bf16.msra.mxu0 %v7007
        %7417 = vmatprep.subr.bf16.mxu0 0
        %7418 = vmatpush1.bf16.msra.mxu0 %v7008
        %7419 = vmatprep.subr.bf16.mxu0 0
        %7420 = vmatpush1.bf16.msra.mxu0 %v7009
        %7421 = vmatprep.subr.bf16.mxu0 0
        %7422 = vmatpush1.bf16.msra.mxu0 %v7010
        %7423 = vmatprep.subr.bf16.mxu0 0
        %7424 = vmatpush1.bf16.msra.mxu0 %v7011
        %7425 = vmatprep.subr.bf16.mxu0 0
        %7426 = vmatpush1.bf16.msra.mxu0 %v7012
        %7427 = vmatprep.subr.bf16.mxu0 0
        %7428 = vmatpush1.bf16.msra.mxu0 %v7013
        %7429 = vmatprep.subr.bf16.mxu0 0
        %7430 = vmatpush1.bf16.msra.mxu0 %v7014
        %7431 = vmatprep.mubr.bf16.mxu0 %v6123
        %7432 = vmatmul.mubr.bf16.gmra.mrb[0].mxu0 %v6122
        %v7433 = vpop.f32.mrb[0].mxu0
        %v7434 = vadd.f32 %v7394, %v7433
        %v7435 = vpop.f32.mrb[0].mxu0
        %v7436 = vpop.f32.mrb[0].mxu0
        %v7437 = vpop.f32.mrb[0].mxu0
        %7438 = vdwg.mxu0
        %7439 = vmatprep.subr.bf16.mxu0 0
        %7440 = vmatpush1.bf16.msra.mxu0 %v7015
        %7441 = vmatprep.subr.bf16.mxu0 0
        %7442 = vmatpush1.bf16.msra.mxu0 %v7016
        %7443 = vmatprep.subr.bf16.mxu0 0
        %7444 = vmatpush1.bf16.msra.mxu0 %v7017
        %7445 = vmatprep.subr.bf16.mxu0 0
        %7446 = vmatpush1.bf16.msra.mxu0 %v7018
        %7447 = vmatprep.subr.bf16.mxu0 0
        %7448 = vmatpush1.bf16.msra.mxu0 %v7019
        %7449 = vmatprep.subr.bf16.mxu0 0
        %7450 = vmatpush1.bf16.msra.mxu0 %v7020
        %7451 = vmatprep.subr.bf16.mxu0 0
        %7452 = vmatpush1.bf16.msra.mxu0 %v7021
        %7453 = vmatprep.subr.bf16.mxu0 0
        %7454 = vmatpush1.bf16.msra.mxu0 %v7022
        %7455 = vmatprep.subr.bf16.mxu0 0
        %7456 = vmatpush1.bf16.msra.mxu0 %v7023
        %7457 = vmatprep.subr.bf16.mxu0 0
        %7458 = vmatpush1.bf16.msra.mxu0 %v7024
        %7459 = vmatprep.subr.bf16.mxu0 0
        %7460 = vmatpush1.bf16.msra.mxu0 %v7025
        %7461 = vmatprep.subr.bf16.mxu0 0
        %7462 = vmatpush1.bf16.msra.mxu0 %v7026
        %7463 = vmatprep.subr.bf16.mxu0 0
        %7464 = vmatpush1.bf16.msra.mxu0 %v7027
        %7465 = vmatprep.subr.bf16.mxu0 0
        %7466 = vmatpush1.bf16.msra.mxu0 %v7028
        %7467 = vmatprep.subr.bf16.mxu0 0
        %7468 = vmatpush1.bf16.msra.mxu0 %v7029
        %7469 = vmatprep.subr.bf16.mxu0 0
        %7470 = vmatpush1.bf16.msra.mxu0 %v7030
        %7471 = vmatprep.mubr.bf16.mxu0 %v6125
        %7472 = vmatmul.mubr.bf16.gmra.mrb[0].mxu0 %v6124
        %v7473 = vpop.f32.mrb[0].mxu0
        %v7474 = vadd.f32 %v7434, %v7473
        %v7475 = vpop.f32.mrb[0].mxu0
        %v7476 = vpop.f32.mrb[0].mxu0
        %v7477 = vpop.f32.mrb[0].mxu0
        %7478 = vdwg.mxu0
        %v7479 = vadd.f32 %v4910, %v7474
        %7480 = vadd.xlane.f32.xlu0 %v7479
        %v7481 = vpop.xlane.xlu0 %7480
        %v7482 = vmul.f32 %v7481, %v1433
        %v7483 = vsub.f32 %v7479, %v7482
        %v7484 = vmul.f32 %v7483, %v7483
        %7485 = vadd.xlane.f32.xlu0 %v7484
        %v7486 = vpop.xlane.xlu0 %7485
        %v7487 = vmul.f32 %v7486, %v1433
        %v7488 = vadd.f32 %v7487, 1e-05
        %v7489 = vrsqrt.pop %v7488
        %v7490 = vmul.f32 %v7483, %v7489
        %s7491 = scalar_lea.vmem %s11, 1
        %v7492 = vld [vmem:[%s7491] sm:$0x1]
        %v7494 = vlaneseq
        %v7495 = vshrl.u32 %v7494, 7
        %v7496 = vsub.s32 0, %v7495
        %v7497 = vrot.slane %v7492, %v7496
        %v7499 = vmul.f32 %v7490, %v7497
        %s7500 = scalar_lea.vmem %s12, 1
        %v7501 = vld [vmem:[%s7500] sm:$0x1]
        %v7503 = vlaneseq
        %v7504 = vshrl.u32 %v7503, 7
        %v7505 = vsub.s32 0, %v7504
        %v7506 = vrot.slane %v7501, %v7505
        %v7508 = vadd.f32 %v7499, %v7506
        %v7509 = vpack.c.bf16 %v7508, %v7508
        %v7510 = vld [vmem:[#allocation13] sm:$0xf]
        %v7511 = vld [vmem:[#allocation13 + $0x4] sm:$0xf]
        %v7512 = vld [vmem:[#allocation13 + $0x8] sm:$0xf]
        %v7513 = vld [vmem:[#allocation13 + $0xc] sm:$0xf]
        %v7514 = vld [vmem:[#allocation13 + $0x10] sm:$0xf]
        %v7515 = vld [vmem:[#allocation13 + $0x14] sm:$0xf]
        %v7516 = vld [vmem:[#allocation13 + $0x18] sm:$0xf]
        %v7517 = vld [vmem:[#allocation13 + $0x1c] sm:$0xf]
        %v7518 = vld [vmem:[#allocation13 + $0x20] sm:$0xf]
        %v7519 = vld [vmem:[#allocation13 + $0x24] sm:$0xf]
        %v7520 = vld [vmem:[#allocation13 + $0x28] sm:$0xf]
        %v7521 = vld [vmem:[#allocation13 + $0x2c] sm:$0xf]
        %v7522 = vld [vmem:[#allocation13 + $0x30] sm:$0xf]
        %v7523 = vld [vmem:[#allocation13 + $0x34] sm:$0xf]
        %v7524 = vld [vmem:[#allocation13 + $0x38] sm:$0xf]
        %v7525 = vld [vmem:[#allocation13 + $0x3c] sm:$0xf]
        %v7526 = vld [vmem:[%s14] sm:$0x1]
        %v7528 = vlaneseq
        %v7529 = vshrl.u32 %v7528, 7
        %v7530 = vsub.s32 0, %v7529
        %v7531 = vrot.slane %v7526, %v7530
        %v7549 = vunpack.c.l.b16 %v7510
        %v7550 = vunpack.c.l.b16 %v7511
        %v7551 = vunpack.c.l.b16 %v7512
        %v7552 = vunpack.c.l.b16 %v7513
        %v7553 = vunpack.c.l.b16 %v7514
        %v7554 = vunpack.c.l.b16 %v7515
        %v7555 = vunpack.c.l.b16 %v7516
        %v7556 = vunpack.c.l.b16 %v7517
        %v7557 = vunpack.c.l.b16 %v7518
        %v7558 = vunpack.c.l.b16 %v7519
        %v7559 = vunpack.c.l.b16 %v7520
        %v7560 = vunpack.c.l.b16 %v7521
        %v7561 = vunpack.c.l.b16 %v7522
        %v7562 = vunpack.c.l.b16 %v7523
        %v7563 = vunpack.c.l.b16 %v7524
        %v7564 = vunpack.c.l.b16 %v7525
        %v7565 = vpack.c.b16 %v7550, %v7549
        %v7566 = vpack.c.b16 %v7552, %v7551
        %v7567 = vpack.c.b16 %v7554, %v7553
        %v7568 = vpack.c.b16 %v7556, %v7555
        %v7569 = vpack.c.b16 %v7558, %v7557
        %v7570 = vpack.c.b16 %v7560, %v7559
        %v7571 = vpack.c.b16 %v7562, %v7561
        %v7572 = vpack.c.b16 %v7564, %v7563
        %7581 = vmatprep.subr.bf16.mxu0 0
        %7582 = vmatpush1.bf16.msra.mxu0 %v7565
        %7583 = vmatprep.subr.bf16.mxu0 0
        %7584 = vmatpush1.bf16.msra.mxu0 %v7566
        %7585 = vmatprep.subr.bf16.mxu0 0
        %7586 = vmatpush1.bf16.msra.mxu0 %v7567
        %7587 = vmatprep.subr.bf16.mxu0 0
        %7588 = vmatpush1.bf16.msra.mxu0 %v7568
        %7589 = vmatprep.subr.bf16.mxu0 0
        %7590 = vmatpush1.bf16.msra.mxu0 %v7569
        %7591 = vmatprep.subr.bf16.mxu0 0
        %7592 = vmatpush1.bf16.msra.mxu0 %v7570
        %7593 = vmatprep.subr.bf16.mxu0 0
        %7594 = vmatpush1.bf16.msra.mxu0 %v7571
        %7595 = vmatprep.subr.bf16.mxu0 0
        %7596 = vmatpush1.bf16.msra.mxu0 %v7572
        %7597 = vmatprep.subr.bf16.mxu0 0
        %7598 = vmatpush1.bf16.msra.mxu0 0
        %7599 = vmatprep.subr.bf16.mxu0 0
        %7600 = vmatpush1.bf16.msra.mxu0 0
        %7601 = vmatprep.subr.bf16.mxu0 0
        %7602 = vmatpush1.bf16.msra.mxu0 0
        %7603 = vmatprep.subr.bf16.mxu0 0
        %7604 = vmatpush1.bf16.msra.mxu0 0
        %7605 = vmatprep.subr.bf16.mxu0 0
        %7606 = vmatpush1.bf16.msra.mxu0 0
        %7607 = vmatprep.subr.bf16.mxu0 0
        %7608 = vmatpush1.bf16.msra.mxu0 0
        %7609 = vmatprep.subr.bf16.mxu0 0
        %7610 = vmatpush1.bf16.msra.mxu0 0
        %7611 = vmatprep.subr.bf16.mxu0 0
        %7612 = vmatpush1.bf16.msra.mxu0 0
        %7613 = vmatprep.mubr.bf16.mxu0 0
        %7614 = vmatmul.mubr.bf16.gmra.mrb[0].mxu0 %v7509
        %v7615 = vpop.f32.mrb[0].mxu0
        %v7616 = vadd.f32 %v7531, %v7615
        %v7617 = vpop.f32.mrb[0].mxu0
        %v7618 = vpop.f32.mrb[0].mxu0
        %v7619 = vpop.f32.mrb[0].mxu0
        %7620 = vdwg.mxu0
        %v7621 = vpack.c.bf16 %v7616, %v7616
        %7622 = vst [vmem:[%s596] sm:$0xf] %v7621
        %s7623 = sand.u32 %s363, 1
        %s7624 = scalar_lea.sflag [#allocation4], %s7623
        %s7625 = sand.u32 %s363, 1
        %s7626 = smul.addr %s7625, 4
        %s7627 = scalar_lea.vmem [#allocation14], %s7626
        // Predicated region
        $region109: #{tpu_custom_call.1} parent=79 // pred_check
          %p7628 = pneg %p373
        $region110: #{tpu_custom_call.1} parent=79 // pred_check_branch
          %7630 = sbr.rel (%p7628) target = $region112
        $region111: #{tpu_custom_call.1} parent=79 // pred_region
          %s7632 = ssub.s32 64, 64
          %7633 = vsyncadd %s7624, %s7632
          %s7634 = smul.addr %s35, 64
          %s7635 = scalar_lea.hbm %s15, %s7634
          %s7637 = sshll.u32 %s7627, 4
          %s7638 = int_to_ptr.vmem [resolvable:$true] %s7637
          %7640 = dma.vmem_to_hbm [thread:$0]  %s7638, 64, %s7635, %s7624
        $region112: #{tpu_custom_call.1} parent=79 // pred_fallthru
          _
      $region80: #{tpu_custom_call.1} parent=5 // pred_fallthru
        _
      %p7641 = scmp.le.s32.totalorder 2, %s30
      // Predicated region
      $region113: #{tpu_custom_call.1} parent=5 // pred_check
        %p7642 = pneg %p7641
      $region114: #{tpu_custom_call.1} parent=5 // pred_check_branch
        %7644 = sbr.rel (%p7642) target = $region116
      $region115: #{tpu_custom_call.1} parent=5 // pred_region
        %s7645 = ssub.s32 %s30, 2
        // Predicated region
        $region117: #{tpu_custom_call.1} parent=115 // pred_check
          %p7646 = pneg %p379
        $region118: #{tpu_custom_call.1} parent=115 // pred_check_branch
          %7648 = sbr.rel (%p7646) target = $region120
        $region119: #{tpu_custom_call.1} parent=115 // pred_region
          %s7649 = sand.u32 %s364, 1
          %s7650 = scalar_lea.sflag [#allocation4], %s7649
          %s7651 = sand.u32 %s364, 1
          %s7652 = smul.addr %s7651, 4
          %s7653 = scalar_lea.vmem [#allocation14], %s7652
          %7654 = dma.done %s7650, 64
        $region120: #{tpu_custom_call.1} parent=115 // pred_fallthru
          _
      $region116: #{tpu_custom_call.1} parent=5 // pred_fallthru
        _
    $region6: #{tpu_custom_call.1} parent=1 // loop_footer
      %s34 = sadd.s32 1, %s30
    $region7: #{tpu_custom_call.1} parent=1 // loop_footer_branch
      %29 = sbr.rel target = $region3
    $region8: #{tpu_custom_call.1} parent=1 // loop_exit
      _
    %7655 = vsyncpa [#allocation3], 1
    %s7656 = scalar_lea.sflag [#allocation3], 1
    %7657 = vsyncpa %s7656, 1
    %7658 = vsyncpa [#allocation6], 1
    %7659 = vsyncpa [#allocation9], 1
    %7660 = vsyncpa [#allocation12], 1
    %7661 = vsyncpa [#allocation4], 1
    %s7662 = scalar_lea.sflag [#allocation4], 1
    %7663 = vsyncpa %s7662, 1

</llo_original>
